<compile_context>
chip_gen: v7x
topology: tpu7x:2x2x1
jax: 0.10.0
libtpu: 0.0.40
codegen_flags: <defaults>
</compile_context>

<pallas_src>
import functools

import jax
import jax.numpy as jnp
from jax.experimental import pallas as pl
from jax.experimental.pallas import tpu as pltpu

# ---- model hyper-parameters (dim, heads, dim_head, mlp_dim) -----------------
D = 32              # dim
HEADS = 4
DIM_HEAD = 8
INNER = HEADS * DIM_HEAD   # 32
MLP = 64            # mlp_dim
EPS = 1e-5          # torch nn.LayerNorm default eps
SCALE = DIM_HEAD ** -0.5
VEC_W = max(D, MLP)        # width of the packed vector slab (64)


# ----------------------------- kernel helpers --------------------------------
def _layernorm(x, gamma, beta):
    # x: (R, D); gamma/beta: (1, D). Biased variance, like torch.nn.LayerNorm.
    mean = jnp.mean(x, axis=-1, keepdims=True)
    var = jnp.mean((x - mean) ** 2, axis=-1, keepdims=True)
    return (x - mean) * jax.lax.rsqrt(var + EPS) * gamma + beta


def _softmax_last(s):
    m = jnp.max(s, axis=-1, keepdims=True)
    e = jnp.exp(s - m)
    # approx=True -> EUP vrcp, off the VALU critical path.
    return e * pl.reciprocal(jnp.sum(e, axis=-1, keepdims=True), approx=True)


def _gelu(x):
    # TODO(synk): torch nn.GELU() default is the exact erf-based GELU; using the
    # tanh approximation here for guaranteed Mosaic transcendental support.
    return jax.nn.gelu(x, approximate=True)


def _mha_heads(q_src, kv_src, tb, n_tok, m_tok,
               w_in_ref, w_out_ref, q_base, k_base, v_base, o_base):
    """Multi-head attention over a flattened row slab.

    q_src: (tb*n_tok, D), kv_src: (tb*m_tok, D). Per-head weights are read from
    stacked slabs with static leading indices (no lane slicing); the per-head
    context is immediately projected with its own (Dh, D) output block and
    accumulated, so no lane-axis concatenation is ever needed.
    Returns (tb*n_tok, D) WITHOUT the output bias (added once by the caller).
    """
    acc = jnp.zeros((tb * n_tok, D), jnp.float32)
    for h in range(HEADS):                      # static, unrolled
        wq = w_in_ref[q_base + h]               # (D, Dh)
        wk = w_in_ref[k_base + h]               # (D, Dh)
        wv = w_in_ref[v_base + h]               # (D, Dh)
        wo = w_out_ref[o_base + h]              # (Dh, D)

        qh = jnp.dot(q_src, wq, preferred_element_type=jnp.float32)
        kh = jnp.dot(kv_src, wk, preferred_element_type=jnp.float32)
        vh = jnp.dot(kv_src, wv, preferred_element_type=jnp.float32)

        # leading-dim-only reshapes (free), then batched contractions over tb.
        q3 = qh.reshape(tb, n_tok, DIM_HEAD)
        k3 = kh.reshape(tb, m_tok, DIM_HEAD)
        v3 = vh.reshape(tb, m_tok, DIM_HEAD)

        s = jnp.einsum("bnd,bmd->bnm", q3, k3,
                       preferred_element_type=jnp.float32) * SCALE
        p = _softmax_last(s)
        c = jnp.einsum("bnm,bmd->bnd", p, v3,
                       preferred_element_type=jnp.float32)

        acc = acc + jnp.dot(c.reshape(tb * n_tok, DIM_HEAD), wo,
                            preferred_element_type=jnp.float32)
    return acc


# --------------------------------- kernel ------------------------------------
def transformer_cross_kernel(x_ref, y_ref, vec_ref, w_in_ref, w_out_ref, ff_ref,
                             o_ref):
    tb, n, _ = x_ref.shape
    _, m, _ = y_ref.shape
    rows = tb * n

    # (tb, n, D) -> (tb*n, D): leading-dim merge, layout-free.
    x = x_ref[...].reshape(rows, D).astype(jnp.float32)
    y = y_ref[...].reshape(tb * m, D).astype(jnp.float32)

    # Packed vector slab (static sublane slices; lane slice starts at 0 = free).
    g1, b1 = vec_ref[0:1, 0:D], vec_ref[1:2, 0:D]
    g2, b2 = vec_ref[2:3, 0:D], vec_ref[3:4, 0:D]
    g3, b3 = vec_ref[4:5, 0:D], vec_ref[5:6, 0:D]
    gf, bf = vec_ref[6:7, 0:D], vec_ref[7:8, 0:D]
    b_ao = vec_ref[8:9, 0:D]
    b_co = vec_ref[9:10, 0:D]
    b_ff1 = vec_ref[10:11, 0:MLP]
    b_ff2 = vec_ref[11:12, 0:D]

    # ---------------- PreNorm + self-attention + residual --------------------
    xn = _layernorm(x, g1, b1)
    a = _mha_heads(xn, xn, tb, n, n, w_in_ref, w_out_ref,
                   q_base=0, k_base=HEADS, v_base=2 * HEADS, o_base=0)
    x = a + b_ao + x

    # ------------- PreNorm + cross-attention (q from x, k/v from y) ----------
    # y is intentionally NOT normalized (PreNorm only norms its first arg).
    xn = _layernorm(x, g2, b2)
    c = _mha_heads(xn, y, tb, n, m, w_in_ref, w_out_ref,
                   q_base=3 * HEADS, k_base=4 * HEADS, v_base=5 * HEADS,
                   o_base=HEADS)
    x = c + b_co + x

    # ---------------- PreNorm + FeedForward + residual -----------------------
    xn = _layernorm(x, g3, b3)
    h1 = jnp.dot(xn, ff_ref[0:D, :], preferred_element_type=jnp.float32) + b_ff1
    h1 = _gelu(h1)
    f = jnp.dot(h1, ff_ref[D:D + MLP, 0:D],
                preferred_element_type=jnp.float32) + b_ff2
    x = f + x

    # ---------------- final LayerNorm ----------------------------------------
    out = _layernorm(x, gf, bf)
    # TODO(synk): output last dim is 32 (<128) -> masked stores; a lane-dense
    # (tb, n*D) output slab would remove them if stores show up in a profile.
    o_ref[...] = out.reshape(tb, n, D).astype(o_ref.dtype)


# --------------------------- parameter packing --------------------------------
def _pack_params(p):
    """Pack the 19 canonical tensors into 4 slabs consumed by the kernel."""
    f32 = jnp.float32

    def head_cols(w):   # (D, H*Dh) -> (H, D, Dh)   (head-major columns)
        return w.astype(f32).reshape(D, HEADS, DIM_HEAD).transpose(1, 0, 2)

    def head_rows(w):   # (H*Dh, D) -> (H, Dh, D)
        return w.astype(f32).reshape(HEADS, DIM_HEAD, D)

    w_qkv = p["w_qkv"]
    wq1 = w_qkv[:, :INNER]
    wk1 = w_qkv[:, INNER:2 * INNER]
    wv1 = w_qkv[:, 2 * INNER:]
    wq2 = p["w_q"]
    wk2 = p["w_kv"][:, :INNER]
    wv2 = p["w_kv"][:, INNER:]

    # (24, D, Dh): [self_q, self_k, self_v, cross_q, cross_k, cross_v] x heads
    w_in = jnp.concatenate(
        [head_cols(w) for w in (wq1, wk1, wv1, wq2, wk2, wv2)], axis=0)
    # (8, Dh, D): [self_out, cross_out] x heads
    w_out = jnp.concatenate([head_rows(p["w_ao"]), head_rows(p["w_co"])], axis=0)

    def row(v):
        v = v.astype(f32).reshape(1, -1)
        return jnp.pad(v, ((0, 0), (0, VEC_W - v.shape[1])))

    # (12, 64): g1,b1,g2,b2,g3,b3,gf,bf,b_ao,b_co,b_ff1,b_ff2
    vec = jnp.concatenate([
        row(p["g1"]), row(p["b1"]), row(p["g2"]), row(p["b2"]),
        row(p["g3"]), row(p["b3"]), row(p["gf"]), row(p["bf"]),
        row(p["b_ao"]), row(p["b_co"]), row(p["b_ff1"]), row(p["b_ff2"]),
    ], axis=0)

    # (D + MLP, MLP) = (96, 64): rows [0:D) = w_ff1, rows [D:D+MLP) = w_ff2 (col-padded)
    ff = jnp.concatenate([
        p["w_ff1"].astype(f32),
        jnp.pad(p["w_ff2"].astype(f32), ((0, 0), (0, MLP - D))),
    ], axis=0)

    return vec, w_in, w_out, ff


# --------------------------------- wrapper ------------------------------------
@functools.partial(jax.jit, static_argnames=("block_b",))
def transformer_cross_v2(x, y, params, block_b=32):
    B, N, _ = x.shape
    _, M, _ = y.shape

    # Batch tile: big enough to amortize grid-step/DMA overhead (TB*N rows into
    # the MXU) but keep >= 2 grid steps when B > 1 so both v7x TensorCores work.
    if B > 1:
        tb = max(1, min(block_b, (B + 1) // 2))
    else:
        tb = 1
    nb = -(-B // tb)          # cdiv
    Bp = nb * tb
    if Bp != B:
        x = jnp.pad(x, ((0, Bp - B), (0, 0), (0, 0)))
        y = jnp.pad(y, ((0, Bp - B), (0, 0), (0, 0)))

    vec, w_in, w_out, ff = _pack_params(params)

    in_specs = [
        pl.BlockSpec((tb, N, D), lambda b: (b, 0, 0)),     # x : TB batches / step
        pl.BlockSpec((tb, M, D), lambda b: (b, 0, 0)),     # y
        pl.BlockSpec(vec.shape, lambda b: (0, 0)),         # packed vectors
        pl.BlockSpec(w_in.shape, lambda b: (0, 0, 0)),     # per-head in-proj
        pl.BlockSpec(w_out.shape, lambda b: (0, 0, 0)),    # per-head out-proj
        pl.BlockSpec(ff.shape, lambda b: (0, 0)),          # feed-forward slab
    ]
    out_specs = pl.BlockSpec((tb, N, D), lambda b: (b, 0, 0))

    out = pl.pallas_call(
        transformer_cross_kernel,
        out_shape=jax.ShapeDtypeStruct((Bp, N, D), x.dtype),
        grid_spec=pltpu.PrefetchScalarGridSpec(
            num_scalar_prefetch=0,
            grid=(nb,),
            in_specs=in_specs,
            out_specs=out_specs,
        ),
        compiler_params=pltpu.CompilerParams(
            dimension_semantics=("parallel",)),
    )(x, y, vec, w_in, w_out, ff)
    return out[:B]


# ------------------------------ init & reference ------------------------------
def init_params(key):
    ks = jax.random.split(key, 7)

    def w(k, shape):
        return jax.random.normal(k, shape, jnp.float32) * 0.02

    p = {}
    # PreNorm(Attention): LayerNorm + to_qkv (no bias) + to_out (with bias)
    p["g1"] = jnp.ones((1, D), jnp.float32)
    p["b1"] = jnp.zeros((1, D), jnp.float32)
    p["w_qkv"] = w(ks[0], (D, 3 * INNER))
    p["w_ao"] = w(ks[1], (INNER, D))
    p["b_ao"] = jnp.zeros((1, D), jnp.float32)
    # PreNorm(CAttention): LayerNorm + to_q / to_kv (no bias) + to_out (with bias)
    p["g2"] = jnp.ones((1, D), jnp.float32)
    p["b2"] = jnp.zeros((1, D), jnp.float32)
    p["w_q"] = w(ks[2], (D, INNER))
    p["w_kv"] = w(ks[3], (D, 2 * INNER))
    p["w_co"] = w(ks[4], (INNER, D))
    p["b_co"] = jnp.zeros((1, D), jnp.float32)
    # PreNorm(FeedForward): LayerNorm + Linear(D, MLP) + GELU + Linear(MLP, D)
    p["g3"] = jnp.ones((1, D), jnp.float32)
    p["b3"] = jnp.zeros((1, D), jnp.float32)
    p["w_ff1"] = w(ks[5], (D, MLP))
    p["b_ff1"] = jnp.zeros((1, MLP), jnp.float32)
    p["w_ff2"] = w(ks[6], (MLP, D))
    p["b_ff2"] = jnp.zeros((1, D), jnp.float32)
    # final LayerNorm (self.norm)
    p["gf"] = jnp.ones((1, D), jnp.float32)
    p["bf"] = jnp.zeros((1, D), jnp.float32)
    return p


def _reference(x, y, p):
    """Pure-JAX reference of the same forward pass (for a sanity check)."""
    def ln(t, g, b):
        mu = jnp.mean(t, -1, keepdims=True)
        var = jnp.mean((t - mu) ** 2, -1, keepdims=True)
        return (t - mu) / jnp.sqrt(var + EPS) * g + b

    def mha(q, k, v):
        B_, Nq, _ = q.shape
        Mk = k.shape[1]
        qh = q.reshape(B_, Nq, HEADS, DIM_HEAD).transpose(0, 2, 1, 3)
        kh = k.reshape(B_, Mk, HEADS, DIM_HEAD).transpose(0, 2, 1, 3)
        vh = v.reshape(B_, Mk, HEADS, DIM_HEAD).transpose(0, 2, 1, 3)
        s = jnp.einsum("bhnd,bhmd->bhnm", qh, kh) * SCALE
        a = jax.nn.softmax(s, axis=-1)
        o = jnp.einsum("bhnm,bhmd->bhnd", a, vh)
        return o.transpose(0, 2, 1, 3).reshape(B_, Nq, INNER)

    xn = ln(x, p["g1"], p["b1"])
    qkv = xn @ p["w_qkv"]
    a = mha(qkv[..., :INNER], qkv[..., INNER:2 * INNER], qkv[..., 2 * INNER:])
    x = a @ p["w_ao"] + p["b_ao"] + x
    xn = ln(x, p["g2"], p["b2"])
    c = mha(xn @ p["w_q"], (y @ p["w_kv"])[..., :INNER], (y @ p["w_kv"])[..., INNER:])
    x = c @ p["w_co"] + p["b_co"] + x
    xn = ln(x, p["g3"], p["b3"])
    h = jax.nn.gelu(xn @ p["w_ff1"] + p["b_ff1"], approximate=True)
    x = h @ p["w_ff2"] + p["b_ff2"] + x
    return ln(x, p["gf"], p["bf"])


if __name__ == "__main__":
    key = jax.random.PRNGKey(0)
    kx, ky, kp = jax.random.split(key, 3)

    B, N, M = 8, 8, 8          # batch, x tokens, y tokens
    x = jax.random.normal(kx, (B, N, D), jnp.float32)
    y = jax.random.normal(ky, (B, M, D), jnp.float32)
    params = init_params(kp)

    out = transformer_cross_v2(x, y, params)
    out = jax.block_until_ready(out)
    assert out.shape == (B, N, D) and out.dtype == jnp.float32

    ref = _reference(x, y, params)
    max_err = float(jnp.max(jnp.abs(out - ref)))
    assert max_err < 5e-2, f"max abs error vs reference: {max_err}"
    print("KERNEL_OK")
</pallas_src>

<mosaic_0001>
module attributes {stable_mosaic.version = 11 : i64} {
  func.func @transformer_cross_kernel(%arg0: i32, %arg1: memref<4x8x32xf32, #tpu.memory_space<vmem>>, %arg2: memref<4x8x32xf32, #tpu.memory_space<vmem>>, %arg3: memref<12x64xf32, #tpu.memory_space<vmem>>, %arg4: memref<24x32x8xf32, #tpu.memory_space<vmem>>, %arg5: memref<8x8x32xf32, #tpu.memory_space<vmem>>, %arg6: memref<96x64xf32, #tpu.memory_space<vmem>>, %arg7: memref<4x8x32xf32, #tpu.memory_space<vmem>>) attributes {dimension_semantics = [#tpu.dimension_semantics<parallel>], iteration_bounds = array<i64: 2>, scalar_prefetch = 0 : i64, scratch_operands = 0 : i64, tpu.core_type = #tpu.core_type<tc>, window_params = [{transform_indices = @transform_0, window_bounds = array<i64: 4, 8, 32>}, {transform_indices = @transform_1, window_bounds = array<i64: 4, 8, 32>}, {pipeline_mode = #tpu.pipeline_mode<synchronous>, transform_indices = @transform_2, window_bounds = array<i64: 12, 64>}, {pipeline_mode = #tpu.pipeline_mode<synchronous>, transform_indices = @transform_3, window_bounds = array<i64: 24, 32, 8>}, {pipeline_mode = #tpu.pipeline_mode<synchronous>, transform_indices = @transform_4, window_bounds = array<i64: 8, 8, 32>}, {pipeline_mode = #tpu.pipeline_mode<synchronous>, transform_indices = @transform_5, window_bounds = array<i64: 96, 64>}, {transform_indices = @transform_6, window_bounds = array<i64: 4, 8, 32>}]} {
    %c0 = arith.constant 0 : index
    %c0_0 = arith.constant 0 : index
    %c0_1 = arith.constant 0 : index
    %0 = vector.load %arg1[%c0, %c0_0, %c0_1] : memref<4x8x32xf32, #tpu.memory_space<vmem>>, vector<4x8x32xf32>
    %1 = vector.shape_cast %0 : vector<4x8x32xf32> to vector<32x32xf32>
    %c0_2 = arith.constant 0 : index
    %c0_3 = arith.constant 0 : index
    %c0_4 = arith.constant 0 : index
    %2 = vector.load %arg2[%c0_2, %c0_3, %c0_4] : memref<4x8x32xf32, #tpu.memory_space<vmem>>, vector<4x8x32xf32>
    %3 = vector.shape_cast %2 : vector<4x8x32xf32> to vector<32x32xf32>
    %c0_5 = arith.constant 0 : index
    %c0_6 = arith.constant 0 : index
    %4 = vector.load %arg3[%c0_5, %c0_6] : memref<12x64xf32, #tpu.memory_space<vmem>>, vector<1x32xf32>
    %c1 = arith.constant 1 : index
    %c0_7 = arith.constant 0 : index
    %5 = vector.load %arg3[%c1, %c0_7] : memref<12x64xf32, #tpu.memory_space<vmem>>, vector<1x32xf32>
    %c2 = arith.constant 2 : index
    %c0_8 = arith.constant 0 : index
    %6 = vector.load %arg3[%c2, %c0_8] : memref<12x64xf32, #tpu.memory_space<vmem>>, vector<1x32xf32>
    %c3 = arith.constant 3 : index
    %c0_9 = arith.constant 0 : index
    %7 = vector.load %arg3[%c3, %c0_9] : memref<12x64xf32, #tpu.memory_space<vmem>>, vector<1x32xf32>
    %c4 = arith.constant 4 : index
    %c0_10 = arith.constant 0 : index
    %8 = vector.load %arg3[%c4, %c0_10] : memref<12x64xf32, #tpu.memory_space<vmem>>, vector<1x32xf32>
    %c5 = arith.constant 5 : index
    %c0_11 = arith.constant 0 : index
    %9 = vector.load %arg3[%c5, %c0_11] : memref<12x64xf32, #tpu.memory_space<vmem>>, vector<1x32xf32>
    %c6 = arith.constant 6 : index
    %c0_12 = arith.constant 0 : index
    %10 = vector.load %arg3[%c6, %c0_12] : memref<12x64xf32, #tpu.memory_space<vmem>>, vector<1x32xf32>
    %c7 = arith.constant 7 : index
    %c0_13 = arith.constant 0 : index
    %11 = vector.load %arg3[%c7, %c0_13] : memref<12x64xf32, #tpu.memory_space<vmem>>, vector<1x32xf32>
    %c8 = arith.constant 8 : index
    %c0_14 = arith.constant 0 : index
    %12 = vector.load %arg3[%c8, %c0_14] : memref<12x64xf32, #tpu.memory_space<vmem>>, vector<1x32xf32>
    %c9 = arith.constant 9 : index
    %c0_15 = arith.constant 0 : index
    %13 = vector.load %arg3[%c9, %c0_15] : memref<12x64xf32, #tpu.memory_space<vmem>>, vector<1x32xf32>
    %c10 = arith.constant 10 : index
    %c0_16 = arith.constant 0 : index
    %14 = vector.load %arg3[%c10, %c0_16] : memref<12x64xf32, #tpu.memory_space<vmem>>, vector<1x64xf32>
    %c11 = arith.constant 11 : index
    %c0_17 = arith.constant 0 : index
    %15 = vector.load %arg3[%c11, %c0_17] : memref<12x64xf32, #tpu.memory_space<vmem>>, vector<1x32xf32>
    %cst = arith.constant dense<0.000000e+00> : vector<32xf32>
    %16 = vector.multi_reduction <add>, %1, %cst [1] : vector<32x32xf32> to vector<32xf32>
    %17 = vector.shape_cast %16 : vector<32xf32> to vector<32x1xf32>
    %cst_18 = arith.constant 3.200000e+01 : f32
    %18 = vector.broadcast %cst_18 : f32 to vector<32x1xf32>
    %19 = arith.divf %17, %18 : vector<32x1xf32>
    %20 = vector.broadcast %19 : vector<32x1xf32> to vector<32x32xf32>
    %21 = arith.subf %1, %20 : vector<32x32xf32>
    %22 = arith.mulf %21, %21 : vector<32x32xf32>
    %cst_19 = arith.constant dense<0.000000e+00> : vector<32xf32>
    %23 = vector.multi_reduction <add>, %22, %cst_19 [1] : vector<32x32xf32> to vector<32xf32>
    %24 = vector.shape_cast %23 : vector<32xf32> to vector<32x1xf32>
    %cst_20 = arith.constant 3.200000e+01 : f32
    %25 = vector.broadcast %cst_20 : f32 to vector<32x1xf32>
    %26 = arith.divf %24, %25 : vector<32x1xf32>
    %27 = vector.broadcast %19 : vector<32x1xf32> to vector<32x32xf32>
    %28 = arith.subf %1, %27 : vector<32x32xf32>
    %cst_21 = arith.constant 9.99999974E-6 : f32
    %29 = vector.broadcast %cst_21 : f32 to vector<32x1xf32>
    %30 = arith.addf %26, %29 : vector<32x1xf32>
    %31 = math.rsqrt %30 : vector<32x1xf32>
    %32 = vector.broadcast %31 : vector<32x1xf32> to vector<32x32xf32>
    %33 = arith.mulf %28, %32 : vector<32x32xf32>
    %34 = vector.broadcast %4 : vector<1x32xf32> to vector<32x32xf32>
    %35 = arith.mulf %33, %34 : vector<32x32xf32>
    %36 = vector.broadcast %5 : vector<1x32xf32> to vector<32x32xf32>
    %37 = arith.addf %35, %36 : vector<32x32xf32>
    %cst_22 = arith.constant 0.000000e+00 : f32
    %38 = vector.broadcast %cst_22 : f32 to vector<32x32xf32>
    %c0_23 = arith.constant 0 : index
    %c0_24 = arith.constant 0 : index
    %c0_25 = arith.constant 0 : index
    %39 = vector.load %arg4[%c0_23, %c0_24, %c0_25] : memref<24x32x8xf32, #tpu.memory_space<vmem>>, vector<1x32x8xf32>
    %40 = vector.shape_cast %39 : vector<1x32x8xf32> to vector<32x8xf32>
    %c4_26 = arith.constant 4 : index
    %c0_27 = arith.constant 0 : index
    %c0_28 = arith.constant 0 : index
    %41 = vector.load %arg4[%c4_26, %c0_27, %c0_28] : memref<24x32x8xf32, #tpu.memory_space<vmem>>, vector<1x32x8xf32>
    %42 = vector.shape_cast %41 : vector<1x32x8xf32> to vector<32x8xf32>
    %c8_29 = arith.constant 8 : index
    %c0_30 = arith.constant 0 : index
    %c0_31 = arith.constant 0 : index
    %43 = vector.load %arg4[%c8_29, %c0_30, %c0_31] : memref<24x32x8xf32, #tpu.memory_space<vmem>>, vector<1x32x8xf32>
    %44 = vector.shape_cast %43 : vector<1x32x8xf32> to vector<32x8xf32>
    %c0_32 = arith.constant 0 : index
    %c0_33 = arith.constant 0 : index
    %c0_34 = arith.constant 0 : index
    %45 = vector.load %arg5[%c0_32, %c0_33, %c0_34] : memref<8x8x32xf32, #tpu.memory_space<vmem>>, vector<1x8x32xf32>
    %46 = vector.shape_cast %45 : vector<1x8x32xf32> to vector<8x32xf32>
    %cst_35 = arith.constant dense<0.000000e+00> : vector<32x8xf32>
    %47 = tpu.matmul %37, %40, %cst_35 {dimension_numbers = #tpu.dot_dimension_numbers<[1], [0], [0], [1], [0, 0, 1, 1], [], []>} : vector<32x32xf32>, vector<32x8xf32>, vector<32x8xf32> -> vector<32x8xf32>
    %cst_36 = arith.constant dense<0.000000e+00> : vector<32x8xf32>
    %48 = tpu.matmul %37, %42, %cst_36 {dimension_numbers = #tpu.dot_dimension_numbers<[1], [0], [0], [1], [0, 0, 1, 1], [], []>} : vector<32x32xf32>, vector<32x8xf32>, vector<32x8xf32> -> vector<32x8xf32>
    %cst_37 = arith.constant dense<0.000000e+00> : vector<32x8xf32>
    %49 = tpu.matmul %37, %44, %cst_37 {dimension_numbers = #tpu.dot_dimension_numbers<[1], [0], [0], [1], [0, 0, 1, 1], [], []>} : vector<32x32xf32>, vector<32x8xf32>, vector<32x8xf32> -> vector<32x8xf32>
    %50 = vector.shape_cast %47 : vector<32x8xf32> to vector<4x8x8xf32>
    %51 = vector.shape_cast %48 : vector<32x8xf32> to vector<4x8x8xf32>
    %52 = vector.shape_cast %49 : vector<32x8xf32> to vector<4x8x8xf32>
    "tpu.trace_start"() <{level = 10 : i32, message = "bnd,bmd->bnm"}> : () -> ()
    %cst_38 = arith.constant dense<0.000000e+00> : vector<4x8x8xf32>
    %53 = tpu.matmul %50, %51, %cst_38 {dimension_numbers = #tpu.dot_dimension_numbers<[2], [2], [1], [1], [0, 0, 0, 1, 1, 1], [0], [0]>} : vector<4x8x8xf32>, vector<4x8x8xf32>, vector<4x8x8xf32> -> vector<4x8x8xf32>
    "tpu.trace_stop"() : () -> ()
    %cst_39 = arith.constant 0.353553385 : f32
    %54 = vector.broadcast %cst_39 : f32 to vector<4x8x8xf32>
    %55 = arith.mulf %53, %54 : vector<4x8x8xf32>
    %cst_40 = arith.constant dense<0xFF800000> : vector<4x8xf32>
    %56 = vector.multi_reduction <maximumf>, %55, %cst_40 [2] : vector<4x8x8xf32> to vector<4x8xf32>
    %57 = vector.shape_cast %56 : vector<4x8xf32> to vector<4x8x1xf32>
    %58 = vector.broadcast %57 : vector<4x8x1xf32> to vector<4x8x8xf32>
    %59 = arith.subf %55, %58 : vector<4x8x8xf32>
    %60 = math.exp %59 : vector<4x8x8xf32>
    %cst_41 = arith.constant dense<0.000000e+00> : vector<4x8xf32>
    %61 = vector.multi_reduction <add>, %60, %cst_41 [2] : vector<4x8x8xf32> to vector<4x8xf32>
    %62 = vector.shape_cast %61 : vector<4x8xf32> to vector<4x8x1xf32>
    %63 = tpu.reciprocal %62 {approx = true} : vector<4x8x1xf32> -> vector<4x8x1xf32>
    %64 = vector.broadcast %63 : vector<4x8x1xf32> to vector<4x8x8xf32>
    %65 = arith.mulf %60, %64 : vector<4x8x8xf32>
    "tpu.trace_start"() <{level = 10 : i32, message = "bnm,bmd->bnd"}> : () -> ()
    %cst_42 = arith.constant dense<0.000000e+00> : vector<4x8x8xf32>
    %66 = tpu.matmul %65, %52, %cst_42 {dimension_numbers = #tpu.dot_dimension_numbers<[2], [1], [1], [2], [0, 0, 0, 1, 1, 2], [0], [0]>} : vector<4x8x8xf32>, vector<4x8x8xf32>, vector<4x8x8xf32> -> vector<4x8x8xf32>
    "tpu.trace_stop"() : () -> ()
    %67 = vector.shape_cast %66 : vector<4x8x8xf32> to vector<32x8xf32>
    %cst_43 = arith.constant dense<0.000000e+00> : vector<32x32xf32>
    %68 = tpu.matmul %67, %46, %cst_43 {dimension_numbers = #tpu.dot_dimension_numbers<[1], [0], [0], [1], [0, 0, 1, 1], [], []>} : vector<32x8xf32>, vector<8x32xf32>, vector<32x32xf32> -> vector<32x32xf32>
    %69 = arith.addf %38, %68 : vector<32x32xf32>
    %c1_44 = arith.constant 1 : index
    %c0_45 = arith.constant 0 : index
    %c0_46 = arith.constant 0 : index
    %70 = vector.load %arg4[%c1_44, %c0_45, %c0_46] : memref<24x32x8xf32, #tpu.memory_space<vmem>>, vector<1x32x8xf32>
    %71 = vector.shape_cast %70 : vector<1x32x8xf32> to vector<32x8xf32>
    %c5_47 = arith.constant 5 : index
    %c0_48 = arith.constant 0 : index
    %c0_49 = arith.constant 0 : index
    %72 = vector.load %arg4[%c5_47, %c0_48, %c0_49] : memref<24x32x8xf32, #tpu.memory_space<vmem>>, vector<1x32x8xf32>
    %73 = vector.shape_cast %72 : vector<1x32x8xf32> to vector<32x8xf32>
    %c9_50 = arith.constant 9 : index
    %c0_51 = arith.constant 0 : index
    %c0_52 = arith.constant 0 : index
    %74 = vector.load %arg4[%c9_50, %c0_51, %c0_52] : memref<24x32x8xf32, #tpu.memory_space<vmem>>, vector<1x32x8xf32>
    %75 = vector.shape_cast %74 : vector<1x32x8xf32> to vector<32x8xf32>
    %c1_53 = arith.constant 1 : index
    %c0_54 = arith.constant 0 : index
    %c0_55 = arith.constant 0 : index
    %76 = vector.load %arg5[%c1_53, %c0_54, %c0_55] : memref<8x8x32xf32, #tpu.memory_space<vmem>>, vector<1x8x32xf32>
    %77 = vector.shape_cast %76 : vector<1x8x32xf32> to vector<8x32xf32>
    %cst_56 = arith.constant dense<0.000000e+00> : vector<32x8xf32>
    %78 = tpu.matmul %37, %71, %cst_56 {dimension_numbers = #tpu.dot_dimension_numbers<[1], [0], [0], [1], [0, 0, 1, 1], [], []>} : vector<32x32xf32>, vector<32x8xf32>, vector<32x8xf32> -> vector<32x8xf32>
    %cst_57 = arith.constant dense<0.000000e+00> : vector<32x8xf32>
    %79 = tpu.matmul %37, %73, %cst_57 {dimension_numbers = #tpu.dot_dimension_numbers<[1], [0], [0], [1], [0, 0, 1, 1], [], []>} : vector<32x32xf32>, vector<32x8xf32>, vector<32x8xf32> -> vector<32x8xf32>
    %cst_58 = arith.constant dense<0.000000e+00> : vector<32x8xf32>
    %80 = tpu.matmul %37, %75, %cst_58 {dimension_numbers = #tpu.dot_dimension_numbers<[1], [0], [0], [1], [0, 0, 1, 1], [], []>} : vector<32x32xf32>, vector<32x8xf32>, vector<32x8xf32> -> vector<32x8xf32>
    %81 = vector.shape_cast %78 : vector<32x8xf32> to vector<4x8x8xf32>
    %82 = vector.shape_cast %79 : vector<32x8xf32> to vector<4x8x8xf32>
    %83 = vector.shape_cast %80 : vector<32x8xf32> to vector<4x8x8xf32>
    "tpu.trace_start"() <{level = 10 : i32, message = "bnd,bmd->bnm"}> : () -> ()
    %cst_59 = arith.constant dense<0.000000e+00> : vector<4x8x8xf32>
    %84 = tpu.matmul %81, %82, %cst_59 {dimension_numbers = #tpu.dot_dimension_numbers<[2], [2], [1], [1], [0, 0, 0, 1, 1, 1], [0], [0]>} : vector<4x8x8xf32>, vector<4x8x8xf32>, vector<4x8x8xf32> -> vector<4x8x8xf32>
    "tpu.trace_stop"() : () -> ()
    %cst_60 = arith.constant 0.353553385 : f32
    %85 = vector.broadcast %cst_60 : f32 to vector<4x8x8xf32>
    %86 = arith.mulf %84, %85 : vector<4x8x8xf32>
    %cst_61 = arith.constant dense<0xFF800000> : vector<4x8xf32>
    %87 = vector.multi_reduction <maximumf>, %86, %cst_61 [2] : vector<4x8x8xf32> to vector<4x8xf32>
    %88 = vector.shape_cast %87 : vector<4x8xf32> to vector<4x8x1xf32>
    %89 = vector.broadcast %88 : vector<4x8x1xf32> to vector<4x8x8xf32>
    %90 = arith.subf %86, %89 : vector<4x8x8xf32>
    %91 = math.exp %90 : vector<4x8x8xf32>
    %cst_62 = arith.constant dense<0.000000e+00> : vector<4x8xf32>
    %92 = vector.multi_reduction <add>, %91, %cst_62 [2] : vector<4x8x8xf32> to vector<4x8xf32>
    %93 = vector.shape_cast %92 : vector<4x8xf32> to vector<4x8x1xf32>
    %94 = tpu.reciprocal %93 {approx = true} : vector<4x8x1xf32> -> vector<4x8x1xf32>
    %95 = vector.broadcast %94 : vector<4x8x1xf32> to vector<4x8x8xf32>
    %96 = arith.mulf %91, %95 : vector<4x8x8xf32>
    "tpu.trace_start"() <{level = 10 : i32, message = "bnm,bmd->bnd"}> : () -> ()
    %cst_63 = arith.constant dense<0.000000e+00> : vector<4x8x8xf32>
    %97 = tpu.matmul %96, %83, %cst_63 {dimension_numbers = #tpu.dot_dimension_numbers<[2], [1], [1], [2], [0, 0, 0, 1, 1, 2], [0], [0]>} : vector<4x8x8xf32>, vector<4x8x8xf32>, vector<4x8x8xf32> -> vector<4x8x8xf32>
    "tpu.trace_stop"() : () -> ()
    %98 = vector.shape_cast %97 : vector<4x8x8xf32> to vector<32x8xf32>
    %cst_64 = arith.constant dense<0.000000e+00> : vector<32x32xf32>
    %99 = tpu.matmul %98, %77, %cst_64 {dimension_numbers = #tpu.dot_dimension_numbers<[1], [0], [0], [1], [0, 0, 1, 1], [], []>} : vector<32x8xf32>, vector<8x32xf32>, vector<32x32xf32> -> vector<32x32xf32>
    %100 = arith.addf %69, %99 : vector<32x32xf32>
    %c2_65 = arith.constant 2 : index
    %c0_66 = arith.constant 0 : index
    %c0_67 = arith.constant 0 : index
    %101 = vector.load %arg4[%c2_65, %c0_66, %c0_67] : memref<24x32x8xf32, #tpu.memory_space<vmem>>, vector<1x32x8xf32>
    %102 = vector.shape_cast %101 : vector<1x32x8xf32> to vector<32x8xf32>
    %c6_68 = arith.constant 6 : index
    %c0_69 = arith.constant 0 : index
    %c0_70 = arith.constant 0 : index
    %103 = vector.load %arg4[%c6_68, %c0_69, %c0_70] : memref<24x32x8xf32, #tpu.memory_space<vmem>>, vector<1x32x8xf32>
    %104 = vector.shape_cast %103 : vector<1x32x8xf32> to vector<32x8xf32>
    %c10_71 = arith.constant 10 : index
    %c0_72 = arith.constant 0 : index
    %c0_73 = arith.constant 0 : index
    %105 = vector.load %arg4[%c10_71, %c0_72, %c0_73] : memref<24x32x8xf32, #tpu.memory_space<vmem>>, vector<1x32x8xf32>
    %106 = vector.shape_cast %105 : vector<1x32x8xf32> to vector<32x8xf32>
    %c2_74 = arith.constant 2 : index
    %c0_75 = arith.constant 0 : index
    %c0_76 = arith.constant 0 : index
    %107 = vector.load %arg5[%c2_74, %c0_75, %c0_76] : memref<8x8x32xf32, #tpu.memory_space<vmem>>, vector<1x8x32xf32>
    %108 = vector.shape_cast %107 : vector<1x8x32xf32> to vector<8x32xf32>
    %cst_77 = arith.constant dense<0.000000e+00> : vector<32x8xf32>
    %109 = tpu.matmul %37, %102, %cst_77 {dimension_numbers = #tpu.dot_dimension_numbers<[1], [0], [0], [1], [0, 0, 1, 1], [], []>} : vector<32x32xf32>, vector<32x8xf32>, vector<32x8xf32> -> vector<32x8xf32>
    %cst_78 = arith.constant dense<0.000000e+00> : vector<32x8xf32>
    %110 = tpu.matmul %37, %104, %cst_78 {dimension_numbers = #tpu.dot_dimension_numbers<[1], [0], [0], [1], [0, 0, 1, 1], [], []>} : vector<32x32xf32>, vector<32x8xf32>, vector<32x8xf32> -> vector<32x8xf32>
    %cst_79 = arith.constant dense<0.000000e+00> : vector<32x8xf32>
    %111 = tpu.matmul %37, %106, %cst_79 {dimension_numbers = #tpu.dot_dimension_numbers<[1], [0], [0], [1], [0, 0, 1, 1], [], []>} : vector<32x32xf32>, vector<32x8xf32>, vector<32x8xf32> -> vector<32x8xf32>
    %112 = vector.shape_cast %109 : vector<32x8xf32> to vector<4x8x8xf32>
    %113 = vector.shape_cast %110 : vector<32x8xf32> to vector<4x8x8xf32>
    %114 = vector.shape_cast %111 : vector<32x8xf32> to vector<4x8x8xf32>
    "tpu.trace_start"() <{level = 10 : i32, message = "bnd,bmd->bnm"}> : () -> ()
    %cst_80 = arith.constant dense<0.000000e+00> : vector<4x8x8xf32>
    %115 = tpu.matmul %112, %113, %cst_80 {dimension_numbers = #tpu.dot_dimension_numbers<[2], [2], [1], [1], [0, 0, 0, 1, 1, 1], [0], [0]>} : vector<4x8x8xf32>, vector<4x8x8xf32>, vector<4x8x8xf32> -> vector<4x8x8xf32>
    "tpu.trace_stop"() : () -> ()
    %cst_81 = arith.constant 0.353553385 : f32
    %116 = vector.broadcast %cst_81 : f32 to vector<4x8x8xf32>
    %117 = arith.mulf %115, %116 : vector<4x8x8xf32>
    %cst_82 = arith.constant dense<0xFF800000> : vector<4x8xf32>
    %118 = vector.multi_reduction <maximumf>, %117, %cst_82 [2] : vector<4x8x8xf32> to vector<4x8xf32>
    %119 = vector.shape_cast %118 : vector<4x8xf32> to vector<4x8x1xf32>
    %120 = vector.broadcast %119 : vector<4x8x1xf32> to vector<4x8x8xf32>
    %121 = arith.subf %117, %120 : vector<4x8x8xf32>
    %122 = math.exp %121 : vector<4x8x8xf32>
    %cst_83 = arith.constant dense<0.000000e+00> : vector<4x8xf32>
    %123 = vector.multi_reduction <add>, %122, %cst_83 [2] : vector<4x8x8xf32> to vector<4x8xf32>
    %124 = vector.shape_cast %123 : vector<4x8xf32> to vector<4x8x1xf32>
    %125 = tpu.reciprocal %124 {approx = true} : vector<4x8x1xf32> -> vector<4x8x1xf32>
    %126 = vector.broadcast %125 : vector<4x8x1xf32> to vector<4x8x8xf32>
    %127 = arith.mulf %122, %126 : vector<4x8x8xf32>
    "tpu.trace_start"() <{level = 10 : i32, message = "bnm,bmd->bnd"}> : () -> ()
    %cst_84 = arith.constant dense<0.000000e+00> : vector<4x8x8xf32>
    %128 = tpu.matmul %127, %114, %cst_84 {dimension_numbers = #tpu.dot_dimension_numbers<[2], [1], [1], [2], [0, 0, 0, 1, 1, 2], [0], [0]>} : vector<4x8x8xf32>, vector<4x8x8xf32>, vector<4x8x8xf32> -> vector<4x8x8xf32>
    "tpu.trace_stop"() : () -> ()
    %129 = vector.shape_cast %128 : vector<4x8x8xf32> to vector<32x8xf32>
    %cst_85 = arith.constant dense<0.000000e+00> : vector<32x32xf32>
    %130 = tpu.matmul %129, %108, %cst_85 {dimension_numbers = #tpu.dot_dimension_numbers<[1], [0], [0], [1], [0, 0, 1, 1], [], []>} : vector<32x8xf32>, vector<8x32xf32>, vector<32x32xf32> -> vector<32x32xf32>
    %131 = arith.addf %100, %130 : vector<32x32xf32>
    %c3_86 = arith.constant 3 : index
    %c0_87 = arith.constant 0 : index
    %c0_88 = arith.constant 0 : index
    %132 = vector.load %arg4[%c3_86, %c0_87, %c0_88] : memref<24x32x8xf32, #tpu.memory_space<vmem>>, vector<1x32x8xf32>
    %133 = vector.shape_cast %132 : vector<1x32x8xf32> to vector<32x8xf32>
    %c7_89 = arith.constant 7 : index
    %c0_90 = arith.constant 0 : index
    %c0_91 = arith.constant 0 : index
    %134 = vector.load %arg4[%c7_89, %c0_90, %c0_91] : memref<24x32x8xf32, #tpu.memory_space<vmem>>, vector<1x32x8xf32>
    %135 = vector.shape_cast %134 : vector<1x32x8xf32> to vector<32x8xf32>
    %c11_92 = arith.constant 11 : index
    %c0_93 = arith.constant 0 : index
    %c0_94 = arith.constant 0 : index
    %136 = vector.load %arg4[%c11_92, %c0_93, %c0_94] : memref<24x32x8xf32, #tpu.memory_space<vmem>>, vector<1x32x8xf32>
    %137 = vector.shape_cast %136 : vector<1x32x8xf32> to vector<32x8xf32>
    %c3_95 = arith.constant 3 : index
    %c0_96 = arith.constant 0 : index
    %c0_97 = arith.constant 0 : index
    %138 = vector.load %arg5[%c3_95, %c0_96, %c0_97] : memref<8x8x32xf32, #tpu.memory_space<vmem>>, vector<1x8x32xf32>
    %139 = vector.shape_cast %138 : vector<1x8x32xf32> to vector<8x32xf32>
    %cst_98 = arith.constant dense<0.000000e+00> : vector<32x8xf32>
    %140 = tpu.matmul %37, %133, %cst_98 {dimension_numbers = #tpu.dot_dimension_numbers<[1], [0], [0], [1], [0, 0, 1, 1], [], []>} : vector<32x32xf32>, vector<32x8xf32>, vector<32x8xf32> -> vector<32x8xf32>
    %cst_99 = arith.constant dense<0.000000e+00> : vector<32x8xf32>
    %141 = tpu.matmul %37, %135, %cst_99 {dimension_numbers = #tpu.dot_dimension_numbers<[1], [0], [0], [1], [0, 0, 1, 1], [], []>} : vector<32x32xf32>, vector<32x8xf32>, vector<32x8xf32> -> vector<32x8xf32>
    %cst_100 = arith.constant dense<0.000000e+00> : vector<32x8xf32>
    %142 = tpu.matmul %37, %137, %cst_100 {dimension_numbers = #tpu.dot_dimension_numbers<[1], [0], [0], [1], [0, 0, 1, 1], [], []>} : vector<32x32xf32>, vector<32x8xf32>, vector<32x8xf32> -> vector<32x8xf32>
    %143 = vector.shape_cast %140 : vector<32x8xf32> to vector<4x8x8xf32>
    %144 = vector.shape_cast %141 : vector<32x8xf32> to vector<4x8x8xf32>
    %145 = vector.shape_cast %142 : vector<32x8xf32> to vector<4x8x8xf32>
    "tpu.trace_start"() <{level = 10 : i32, message = "bnd,bmd->bnm"}> : () -> ()
    %cst_101 = arith.constant dense<0.000000e+00> : vector<4x8x8xf32>
    %146 = tpu.matmul %143, %144, %cst_101 {dimension_numbers = #tpu.dot_dimension_numbers<[2], [2], [1], [1], [0, 0, 0, 1, 1, 1], [0], [0]>} : vector<4x8x8xf32>, vector<4x8x8xf32>, vector<4x8x8xf32> -> vector<4x8x8xf32>
    "tpu.trace_stop"() : () -> ()
    %cst_102 = arith.constant 0.353553385 : f32
    %147 = vector.broadcast %cst_102 : f32 to vector<4x8x8xf32>
    %148 = arith.mulf %146, %147 : vector<4x8x8xf32>
    %cst_103 = arith.constant dense<0xFF800000> : vector<4x8xf32>
    %149 = vector.multi_reduction <maximumf>, %148, %cst_103 [2] : vector<4x8x8xf32> to vector<4x8xf32>
    %150 = vector.shape_cast %149 : vector<4x8xf32> to vector<4x8x1xf32>
    %151 = vector.broadcast %150 : vector<4x8x1xf32> to vector<4x8x8xf32>
    %152 = arith.subf %148, %151 : vector<4x8x8xf32>
    %153 = math.exp %152 : vector<4x8x8xf32>
    %cst_104 = arith.constant dense<0.000000e+00> : vector<4x8xf32>
    %154 = vector.multi_reduction <add>, %153, %cst_104 [2] : vector<4x8x8xf32> to vector<4x8xf32>
    %155 = vector.shape_cast %154 : vector<4x8xf32> to vector<4x8x1xf32>
    %156 = tpu.reciprocal %155 {approx = true} : vector<4x8x1xf32> -> vector<4x8x1xf32>
    %157 = vector.broadcast %156 : vector<4x8x1xf32> to vector<4x8x8xf32>
    %158 = arith.mulf %153, %157 : vector<4x8x8xf32>
    "tpu.trace_start"() <{level = 10 : i32, message = "bnm,bmd->bnd"}> : () -> ()
    %cst_105 = arith.constant dense<0.000000e+00> : vector<4x8x8xf32>
    %159 = tpu.matmul %158, %145, %cst_105 {dimension_numbers = #tpu.dot_dimension_numbers<[2], [1], [1], [2], [0, 0, 0, 1, 1, 2], [0], [0]>} : vector<4x8x8xf32>, vector<4x8x8xf32>, vector<4x8x8xf32> -> vector<4x8x8xf32>
    "tpu.trace_stop"() : () -> ()
    %160 = vector.shape_cast %159 : vector<4x8x8xf32> to vector<32x8xf32>
    %cst_106 = arith.constant dense<0.000000e+00> : vector<32x32xf32>
    %161 = tpu.matmul %160, %139, %cst_106 {dimension_numbers = #tpu.dot_dimension_numbers<[1], [0], [0], [1], [0, 0, 1, 1], [], []>} : vector<32x8xf32>, vector<8x32xf32>, vector<32x32xf32> -> vector<32x32xf32>
    %162 = arith.addf %131, %161 : vector<32x32xf32>
    %163 = vector.broadcast %12 : vector<1x32xf32> to vector<32x32xf32>
    %164 = arith.addf %162, %163 : vector<32x32xf32>
    %165 = arith.addf %164, %1 : vector<32x32xf32>
    %cst_107 = arith.constant dense<0.000000e+00> : vector<32xf32>
    %166 = vector.multi_reduction <add>, %165, %cst_107 [1] : vector<32x32xf32> to vector<32xf32>
    %167 = vector.shape_cast %166 : vector<32xf32> to vector<32x1xf32>
    %cst_108 = arith.constant 3.200000e+01 : f32
    %168 = vector.broadcast %cst_108 : f32 to vector<32x1xf32>
    %169 = arith.divf %167, %168 : vector<32x1xf32>
    %170 = vector.broadcast %169 : vector<32x1xf32> to vector<32x32xf32>
    %171 = arith.subf %165, %170 : vector<32x32xf32>
    %172 = arith.mulf %171, %171 : vector<32x32xf32>
    %cst_109 = arith.constant dense<0.000000e+00> : vector<32xf32>
    %173 = vector.multi_reduction <add>, %172, %cst_109 [1] : vector<32x32xf32> to vector<32xf32>
    %174 = vector.shape_cast %173 : vector<32xf32> to vector<32x1xf32>
    %cst_110 = arith.constant 3.200000e+01 : f32
    %175 = vector.broadcast %cst_110 : f32 to vector<32x1xf32>
    %176 = arith.divf %174, %175 : vector<32x1xf32>
    %177 = vector.broadcast %169 : vector<32x1xf32> to vector<32x32xf32>
    %178 = arith.subf %165, %177 : vector<32x32xf32>
    %cst_111 = arith.constant 9.99999974E-6 : f32
    %179 = vector.broadcast %cst_111 : f32 to vector<32x1xf32>
    %180 = arith.addf %176, %179 : vector<32x1xf32>
    %181 = math.rsqrt %180 : vector<32x1xf32>
    %182 = vector.broadcast %181 : vector<32x1xf32> to vector<32x32xf32>
    %183 = arith.mulf %178, %182 : vector<32x32xf32>
    %184 = vector.broadcast %6 : vector<1x32xf32> to vector<32x32xf32>
    %185 = arith.mulf %183, %184 : vector<32x32xf32>
    %186 = vector.broadcast %7 : vector<1x32xf32> to vector<32x32xf32>
    %187 = arith.addf %185, %186 : vector<32x32xf32>
    %cst_112 = arith.constant 0.000000e+00 : f32
    %188 = vector.broadcast %cst_112 : f32 to vector<32x32xf32>
    %c12 = arith.constant 12 : index
    %c0_113 = arith.constant 0 : index
    %c0_114 = arith.constant 0 : index
    %189 = vector.load %arg4[%c12, %c0_113, %c0_114] : memref<24x32x8xf32, #tpu.memory_space<vmem>>, vector<1x32x8xf32>
    %190 = vector.shape_cast %189 : vector<1x32x8xf32> to vector<32x8xf32>
    %c16 = arith.constant 16 : index
    %c0_115 = arith.constant 0 : index
    %c0_116 = arith.constant 0 : index
    %191 = vector.load %arg4[%c16, %c0_115, %c0_116] : memref<24x32x8xf32, #tpu.memory_space<vmem>>, vector<1x32x8xf32>
    %192 = vector.shape_cast %191 : vector<1x32x8xf32> to vector<32x8xf32>
    %c20 = arith.constant 20 : index
    %c0_117 = arith.constant 0 : index
    %c0_118 = arith.constant 0 : index
    %193 = vector.load %arg4[%c20, %c0_117, %c0_118] : memref<24x32x8xf32, #tpu.memory_space<vmem>>, vector<1x32x8xf32>
    %194 = vector.shape_cast %193 : vector<1x32x8xf32> to vector<32x8xf32>
    %c4_119 = arith.constant 4 : index
    %c0_120 = arith.constant 0 : index
    %c0_121 = arith.constant 0 : index
    %195 = vector.load %arg5[%c4_119, %c0_120, %c0_121] : memref<8x8x32xf32, #tpu.memory_space<vmem>>, vector<1x8x32xf32>
    %196 = vector.shape_cast %195 : vector<1x8x32xf32> to vector<8x32xf32>
    %cst_122 = arith.constant dense<0.000000e+00> : vector<32x8xf32>
    %197 = tpu.matmul %187, %190, %cst_122 {dimension_numbers = #tpu.dot_dimension_numbers<[1], [0], [0], [1], [0, 0, 1, 1], [], []>} : vector<32x32xf32>, vector<32x8xf32>, vector<32x8xf32> -> vector<32x8xf32>
    %cst_123 = arith.constant dense<0.000000e+00> : vector<32x8xf32>
    %198 = tpu.matmul %3, %192, %cst_123 {dimension_numbers = #tpu.dot_dimension_numbers<[1], [0], [0], [1], [0, 0, 1, 1], [], []>} : vector<32x32xf32>, vector<32x8xf32>, vector<32x8xf32> -> vector<32x8xf32>
    %cst_124 = arith.constant dense<0.000000e+00> : vector<32x8xf32>
    %199 = tpu.matmul %3, %194, %cst_124 {dimension_numbers = #tpu.dot_dimension_numbers<[1], [0], [0], [1], [0, 0, 1, 1], [], []>} : vector<32x32xf32>, vector<32x8xf32>, vector<32x8xf32> -> vector<32x8xf32>
    %200 = vector.shape_cast %197 : vector<32x8xf32> to vector<4x8x8xf32>
    %201 = vector.shape_cast %198 : vector<32x8xf32> to vector<4x8x8xf32>
    %202 = vector.shape_cast %199 : vector<32x8xf32> to vector<4x8x8xf32>
    "tpu.trace_start"() <{level = 10 : i32, message = "bnd,bmd->bnm"}> : () -> ()
    %cst_125 = arith.constant dense<0.000000e+00> : vector<4x8x8xf32>
    %203 = tpu.matmul %200, %201, %cst_125 {dimension_numbers = #tpu.dot_dimension_numbers<[2], [2], [1], [1], [0, 0, 0, 1, 1, 1], [0], [0]>} : vector<4x8x8xf32>, vector<4x8x8xf32>, vector<4x8x8xf32> -> vector<4x8x8xf32>
    "tpu.trace_stop"() : () -> ()
    %cst_126 = arith.constant 0.353553385 : f32
    %204 = vector.broadcast %cst_126 : f32 to vector<4x8x8xf32>
    %205 = arith.mulf %203, %204 : vector<4x8x8xf32>
    %cst_127 = arith.constant dense<0xFF800000> : vector<4x8xf32>
    %206 = vector.multi_reduction <maximumf>, %205, %cst_127 [2] : vector<4x8x8xf32> to vector<4x8xf32>
    %207 = vector.shape_cast %206 : vector<4x8xf32> to vector<4x8x1xf32>
    %208 = vector.broadcast %207 : vector<4x8x1xf32> to vector<4x8x8xf32>
    %209 = arith.subf %205, %208 : vector<4x8x8xf32>
    %210 = math.exp %209 : vector<4x8x8xf32>
    %cst_128 = arith.constant dense<0.000000e+00> : vector<4x8xf32>
    %211 = vector.multi_reduction <add>, %210, %cst_128 [2] : vector<4x8x8xf32> to vector<4x8xf32>
    %212 = vector.shape_cast %211 : vector<4x8xf32> to vector<4x8x1xf32>
    %213 = tpu.reciprocal %212 {approx = true} : vector<4x8x1xf32> -> vector<4x8x1xf32>
    %214 = vector.broadcast %213 : vector<4x8x1xf32> to vector<4x8x8xf32>
    %215 = arith.mulf %210, %214 : vector<4x8x8xf32>
    "tpu.trace_start"() <{level = 10 : i32, message = "bnm,bmd->bnd"}> : () -> ()
    %cst_129 = arith.constant dense<0.000000e+00> : vector<4x8x8xf32>
    %216 = tpu.matmul %215, %202, %cst_129 {dimension_numbers = #tpu.dot_dimension_numbers<[2], [1], [1], [2], [0, 0, 0, 1, 1, 2], [0], [0]>} : vector<4x8x8xf32>, vector<4x8x8xf32>, vector<4x8x8xf32> -> vector<4x8x8xf32>
    "tpu.trace_stop"() : () -> ()
    %217 = vector.shape_cast %216 : vector<4x8x8xf32> to vector<32x8xf32>
    %cst_130 = arith.constant dense<0.000000e+00> : vector<32x32xf32>
    %218 = tpu.matmul %217, %196, %cst_130 {dimension_numbers = #tpu.dot_dimension_numbers<[1], [0], [0], [1], [0, 0, 1, 1], [], []>} : vector<32x8xf32>, vector<8x32xf32>, vector<32x32xf32> -> vector<32x32xf32>
    %219 = arith.addf %188, %218 : vector<32x32xf32>
    %c13 = arith.constant 13 : index
    %c0_131 = arith.constant 0 : index
    %c0_132 = arith.constant 0 : index
    %220 = vector.load %arg4[%c13, %c0_131, %c0_132] : memref<24x32x8xf32, #tpu.memory_space<vmem>>, vector<1x32x8xf32>
    %221 = vector.shape_cast %220 : vector<1x32x8xf32> to vector<32x8xf32>
    %c17 = arith.constant 17 : index
    %c0_133 = arith.constant 0 : index
    %c0_134 = arith.constant 0 : index
    %222 = vector.load %arg4[%c17, %c0_133, %c0_134] : memref<24x32x8xf32, #tpu.memory_space<vmem>>, vector<1x32x8xf32>
    %223 = vector.shape_cast %222 : vector<1x32x8xf32> to vector<32x8xf32>
    %c21 = arith.constant 21 : index
    %c0_135 = arith.constant 0 : index
    %c0_136 = arith.constant 0 : index
    %224 = vector.load %arg4[%c21, %c0_135, %c0_136] : memref<24x32x8xf32, #tpu.memory_space<vmem>>, vector<1x32x8xf32>
    %225 = vector.shape_cast %224 : vector<1x32x8xf32> to vector<32x8xf32>
    %c5_137 = arith.constant 5 : index
    %c0_138 = arith.constant 0 : index
    %c0_139 = arith.constant 0 : index
    %226 = vector.load %arg5[%c5_137, %c0_138, %c0_139] : memref<8x8x32xf32, #tpu.memory_space<vmem>>, vector<1x8x32xf32>
    %227 = vector.shape_cast %226 : vector<1x8x32xf32> to vector<8x32xf32>
    %cst_140 = arith.constant dense<0.000000e+00> : vector<32x8xf32>
    %228 = tpu.matmul %187, %221, %cst_140 {dimension_numbers = #tpu.dot_dimension_numbers<[1], [0], [0], [1], [0, 0, 1, 1], [], []>} : vector<32x32xf32>, vector<32x8xf32>, vector<32x8xf32> -> vector<32x8xf32>
    %cst_141 = arith.constant dense<0.000000e+00> : vector<32x8xf32>
    %229 = tpu.matmul %3, %223, %cst_141 {dimension_numbers = #tpu.dot_dimension_numbers<[1], [0], [0], [1], [0, 0, 1, 1], [], []>} : vector<32x32xf32>, vector<32x8xf32>, vector<32x8xf32> -> vector<32x8xf32>
    %cst_142 = arith.constant dense<0.000000e+00> : vector<32x8xf32>
    %230 = tpu.matmul %3, %225, %cst_142 {dimension_numbers = #tpu.dot_dimension_numbers<[1], [0], [0], [1], [0, 0, 1, 1], [], []>} : vector<32x32xf32>, vector<32x8xf32>, vector<32x8xf32> -> vector<32x8xf32>
    %231 = vector.shape_cast %228 : vector<32x8xf32> to vector<4x8x8xf32>
    %232 = vector.shape_cast %229 : vector<32x8xf32> to vector<4x8x8xf32>
    %233 = vector.shape_cast %230 : vector<32x8xf32> to vector<4x8x8xf32>
    "tpu.trace_start"() <{level = 10 : i32, message = "bnd,bmd->bnm"}> : () -> ()
    %cst_143 = arith.constant dense<0.000000e+00> : vector<4x8x8xf32>
    %234 = tpu.matmul %231, %232, %cst_143 {dimension_numbers = #tpu.dot_dimension_numbers<[2], [2], [1], [1], [0, 0, 0, 1, 1, 1], [0], [0]>} : vector<4x8x8xf32>, vector<4x8x8xf32>, vector<4x8x8xf32> -> vector<4x8x8xf32>
    "tpu.trace_stop"() : () -> ()
    %cst_144 = arith.constant 0.353553385 : f32
    %235 = vector.broadcast %cst_144 : f32 to vector<4x8x8xf32>
    %236 = arith.mulf %234, %235 : vector<4x8x8xf32>
    %cst_145 = arith.constant dense<0xFF800000> : vector<4x8xf32>
    %237 = vector.multi_reduction <maximumf>, %236, %cst_145 [2] : vector<4x8x8xf32> to vector<4x8xf32>
    %238 = vector.shape_cast %237 : vector<4x8xf32> to vector<4x8x1xf32>
    %239 = vector.broadcast %238 : vector<4x8x1xf32> to vector<4x8x8xf32>
    %240 = arith.subf %236, %239 : vector<4x8x8xf32>
    %241 = math.exp %240 : vector<4x8x8xf32>
    %cst_146 = arith.constant dense<0.000000e+00> : vector<4x8xf32>
    %242 = vector.multi_reduction <add>, %241, %cst_146 [2] : vector<4x8x8xf32> to vector<4x8xf32>
    %243 = vector.shape_cast %242 : vector<4x8xf32> to vector<4x8x1xf32>
    %244 = tpu.reciprocal %243 {approx = true} : vector<4x8x1xf32> -> vector<4x8x1xf32>
    %245 = vector.broadcast %244 : vector<4x8x1xf32> to vector<4x8x8xf32>
    %246 = arith.mulf %241, %245 : vector<4x8x8xf32>
    "tpu.trace_start"() <{level = 10 : i32, message = "bnm,bmd->bnd"}> : () -> ()
    %cst_147 = arith.constant dense<0.000000e+00> : vector<4x8x8xf32>
    %247 = tpu.matmul %246, %233, %cst_147 {dimension_numbers = #tpu.dot_dimension_numbers<[2], [1], [1], [2], [0, 0, 0, 1, 1, 2], [0], [0]>} : vector<4x8x8xf32>, vector<4x8x8xf32>, vector<4x8x8xf32> -> vector<4x8x8xf32>
    "tpu.trace_stop"() : () -> ()
    %248 = vector.shape_cast %247 : vector<4x8x8xf32> to vector<32x8xf32>
    %cst_148 = arith.constant dense<0.000000e+00> : vector<32x32xf32>
    %249 = tpu.matmul %248, %227, %cst_148 {dimension_numbers = #tpu.dot_dimension_numbers<[1], [0], [0], [1], [0, 0, 1, 1], [], []>} : vector<32x8xf32>, vector<8x32xf32>, vector<32x32xf32> -> vector<32x32xf32>
    %250 = arith.addf %219, %249 : vector<32x32xf32>
    %c14 = arith.constant 14 : index
    %c0_149 = arith.constant 0 : index
    %c0_150 = arith.constant 0 : index
    %251 = vector.load %arg4[%c14, %c0_149, %c0_150] : memref<24x32x8xf32, #tpu.memory_space<vmem>>, vector<1x32x8xf32>
    %252 = vector.shape_cast %251 : vector<1x32x8xf32> to vector<32x8xf32>
    %c18 = arith.constant 18 : index
    %c0_151 = arith.constant 0 : index
    %c0_152 = arith.constant 0 : index
    %253 = vector.load %arg4[%c18, %c0_151, %c0_152] : memref<24x32x8xf32, #tpu.memory_space<vmem>>, vector<1x32x8xf32>
    %254 = vector.shape_cast %253 : vector<1x32x8xf32> to vector<32x8xf32>
    %c22 = arith.constant 22 : index
    %c0_153 = arith.constant 0 : index
    %c0_154 = arith.constant 0 : index
    %255 = vector.load %arg4[%c22, %c0_153, %c0_154] : memref<24x32x8xf32, #tpu.memory_space<vmem>>, vector<1x32x8xf32>
    %256 = vector.shape_cast %255 : vector<1x32x8xf32> to vector<32x8xf32>
    %c6_155 = arith.constant 6 : index
    %c0_156 = arith.constant 0 : index
    %c0_157 = arith.constant 0 : index
    %257 = vector.load %arg5[%c6_155, %c0_156, %c0_157] : memref<8x8x32xf32, #tpu.memory_space<vmem>>, vector<1x8x32xf32>
    %258 = vector.shape_cast %257 : vector<1x8x32xf32> to vector<8x32xf32>
    %cst_158 = arith.constant dense<0.000000e+00> : vector<32x8xf32>
    %259 = tpu.matmul %187, %252, %cst_158 {dimension_numbers = #tpu.dot_dimension_numbers<[1], [0], [0], [1], [0, 0, 1, 1], [], []>} : vector<32x32xf32>, vector<32x8xf32>, vector<32x8xf32> -> vector<32x8xf32>
    %cst_159 = arith.constant dense<0.000000e+00> : vector<32x8xf32>
    %260 = tpu.matmul %3, %254, %cst_159 {dimension_numbers = #tpu.dot_dimension_numbers<[1], [0], [0], [1], [0, 0, 1, 1], [], []>} : vector<32x32xf32>, vector<32x8xf32>, vector<32x8xf32> -> vector<32x8xf32>
    %cst_160 = arith.constant dense<0.000000e+00> : vector<32x8xf32>
    %261 = tpu.matmul %3, %256, %cst_160 {dimension_numbers = #tpu.dot_dimension_numbers<[1], [0], [0], [1], [0, 0, 1, 1], [], []>} : vector<32x32xf32>, vector<32x8xf32>, vector<32x8xf32> -> vector<32x8xf32>
    %262 = vector.shape_cast %259 : vector<32x8xf32> to vector<4x8x8xf32>
    %263 = vector.shape_cast %260 : vector<32x8xf32> to vector<4x8x8xf32>
    %264 = vector.shape_cast %261 : vector<32x8xf32> to vector<4x8x8xf32>
    "tpu.trace_start"() <{level = 10 : i32, message = "bnd,bmd->bnm"}> : () -> ()
    %cst_161 = arith.constant dense<0.000000e+00> : vector<4x8x8xf32>
    %265 = tpu.matmul %262, %263, %cst_161 {dimension_numbers = #tpu.dot_dimension_numbers<[2], [2], [1], [1], [0, 0, 0, 1, 1, 1], [0], [0]>} : vector<4x8x8xf32>, vector<4x8x8xf32>, vector<4x8x8xf32> -> vector<4x8x8xf32>
    "tpu.trace_stop"() : () -> ()
    %cst_162 = arith.constant 0.353553385 : f32
    %266 = vector.broadcast %cst_162 : f32 to vector<4x8x8xf32>
    %267 = arith.mulf %265, %266 : vector<4x8x8xf32>
    %cst_163 = arith.constant dense<0xFF800000> : vector<4x8xf32>
    %268 = vector.multi_reduction <maximumf>, %267, %cst_163 [2] : vector<4x8x8xf32> to vector<4x8xf32>
    %269 = vector.shape_cast %268 : vector<4x8xf32> to vector<4x8x1xf32>
    %270 = vector.broadcast %269 : vector<4x8x1xf32> to vector<4x8x8xf32>
    %271 = arith.subf %267, %270 : vector<4x8x8xf32>
    %272 = math.exp %271 : vector<4x8x8xf32>
    %cst_164 = arith.constant dense<0.000000e+00> : vector<4x8xf32>
    %273 = vector.multi_reduction <add>, %272, %cst_164 [2] : vector<4x8x8xf32> to vector<4x8xf32>
    %274 = vector.shape_cast %273 : vector<4x8xf32> to vector<4x8x1xf32>
    %275 = tpu.reciprocal %274 {approx = true} : vector<4x8x1xf32> -> vector<4x8x1xf32>
    %276 = vector.broadcast %275 : vector<4x8x1xf32> to vector<4x8x8xf32>
    %277 = arith.mulf %272, %276 : vector<4x8x8xf32>
    "tpu.trace_start"() <{level = 10 : i32, message = "bnm,bmd->bnd"}> : () -> ()
    %cst_165 = arith.constant dense<0.000000e+00> : vector<4x8x8xf32>
    %278 = tpu.matmul %277, %264, %cst_165 {dimension_numbers = #tpu.dot_dimension_numbers<[2], [1], [1], [2], [0, 0, 0, 1, 1, 2], [0], [0]>} : vector<4x8x8xf32>, vector<4x8x8xf32>, vector<4x8x8xf32> -> vector<4x8x8xf32>
    "tpu.trace_stop"() : () -> ()
    %279 = vector.shape_cast %278 : vector<4x8x8xf32> to vector<32x8xf32>
    %cst_166 = arith.constant dense<0.000000e+00> : vector<32x32xf32>
    %280 = tpu.matmul %279, %258, %cst_166 {dimension_numbers = #tpu.dot_dimension_numbers<[1], [0], [0], [1], [0, 0, 1, 1], [], []>} : vector<32x8xf32>, vector<8x32xf32>, vector<32x32xf32> -> vector<32x32xf32>
    %281 = arith.addf %250, %280 : vector<32x32xf32>
    %c15 = arith.constant 15 : index
    %c0_167 = arith.constant 0 : index
    %c0_168 = arith.constant 0 : index
    %282 = vector.load %arg4[%c15, %c0_167, %c0_168] : memref<24x32x8xf32, #tpu.memory_space<vmem>>, vector<1x32x8xf32>
    %283 = vector.shape_cast %282 : vector<1x32x8xf32> to vector<32x8xf32>
    %c19 = arith.constant 19 : index
    %c0_169 = arith.constant 0 : index
    %c0_170 = arith.constant 0 : index
    %284 = vector.load %arg4[%c19, %c0_169, %c0_170] : memref<24x32x8xf32, #tpu.memory_space<vmem>>, vector<1x32x8xf32>
    %285 = vector.shape_cast %284 : vector<1x32x8xf32> to vector<32x8xf32>
    %c23 = arith.constant 23 : index
    %c0_171 = arith.constant 0 : index
    %c0_172 = arith.constant 0 : index
    %286 = vector.load %arg4[%c23, %c0_171, %c0_172] : memref<24x32x8xf32, #tpu.memory_space<vmem>>, vector<1x32x8xf32>
    %287 = vector.shape_cast %286 : vector<1x32x8xf32> to vector<32x8xf32>
    %c7_173 = arith.constant 7 : index
    %c0_174 = arith.constant 0 : index
    %c0_175 = arith.constant 0 : index
    %288 = vector.load %arg5[%c7_173, %c0_174, %c0_175] : memref<8x8x32xf32, #tpu.memory_space<vmem>>, vector<1x8x32xf32>
    %289 = vector.shape_cast %288 : vector<1x8x32xf32> to vector<8x32xf32>
    %cst_176 = arith.constant dense<0.000000e+00> : vector<32x8xf32>
    %290 = tpu.matmul %187, %283, %cst_176 {dimension_numbers = #tpu.dot_dimension_numbers<[1], [0], [0], [1], [0, 0, 1, 1], [], []>} : vector<32x32xf32>, vector<32x8xf32>, vector<32x8xf32> -> vector<32x8xf32>
    %cst_177 = arith.constant dense<0.000000e+00> : vector<32x8xf32>
    %291 = tpu.matmul %3, %285, %cst_177 {dimension_numbers = #tpu.dot_dimension_numbers<[1], [0], [0], [1], [0, 0, 1, 1], [], []>} : vector<32x32xf32>, vector<32x8xf32>, vector<32x8xf32> -> vector<32x8xf32>
    %cst_178 = arith.constant dense<0.000000e+00> : vector<32x8xf32>
    %292 = tpu.matmul %3, %287, %cst_178 {dimension_numbers = #tpu.dot_dimension_numbers<[1], [0], [0], [1], [0, 0, 1, 1], [], []>} : vector<32x32xf32>, vector<32x8xf32>, vector<32x8xf32> -> vector<32x8xf32>
    %293 = vector.shape_cast %290 : vector<32x8xf32> to vector<4x8x8xf32>
    %294 = vector.shape_cast %291 : vector<32x8xf32> to vector<4x8x8xf32>
    %295 = vector.shape_cast %292 : vector<32x8xf32> to vector<4x8x8xf32>
    "tpu.trace_start"() <{level = 10 : i32, message = "bnd,bmd->bnm"}> : () -> ()
    %cst_179 = arith.constant dense<0.000000e+00> : vector<4x8x8xf32>
    %296 = tpu.matmul %293, %294, %cst_179 {dimension_numbers = #tpu.dot_dimension_numbers<[2], [2], [1], [1], [0, 0, 0, 1, 1, 1], [0], [0]>} : vector<4x8x8xf32>, vector<4x8x8xf32>, vector<4x8x8xf32> -> vector<4x8x8xf32>
    "tpu.trace_stop"() : () -> ()
    %cst_180 = arith.constant 0.353553385 : f32
    %297 = vector.broadcast %cst_180 : f32 to vector<4x8x8xf32>
    %298 = arith.mulf %296, %297 : vector<4x8x8xf32>
    %cst_181 = arith.constant dense<0xFF800000> : vector<4x8xf32>
    %299 = vector.multi_reduction <maximumf>, %298, %cst_181 [2] : vector<4x8x8xf32> to vector<4x8xf32>
    %300 = vector.shape_cast %299 : vector<4x8xf32> to vector<4x8x1xf32>
    %301 = vector.broadcast %300 : vector<4x8x1xf32> to vector<4x8x8xf32>
    %302 = arith.subf %298, %301 : vector<4x8x8xf32>
    %303 = math.exp %302 : vector<4x8x8xf32>
    %cst_182 = arith.constant dense<0.000000e+00> : vector<4x8xf32>
    %304 = vector.multi_reduction <add>, %303, %cst_182 [2] : vector<4x8x8xf32> to vector<4x8xf32>
    %305 = vector.shape_cast %304 : vector<4x8xf32> to vector<4x8x1xf32>
    %306 = tpu.reciprocal %305 {approx = true} : vector<4x8x1xf32> -> vector<4x8x1xf32>
    %307 = vector.broadcast %306 : vector<4x8x1xf32> to vector<4x8x8xf32>
    %308 = arith.mulf %303, %307 : vector<4x8x8xf32>
    "tpu.trace_start"() <{level = 10 : i32, message = "bnm,bmd->bnd"}> : () -> ()
    %cst_183 = arith.constant dense<0.000000e+00> : vector<4x8x8xf32>
    %309 = tpu.matmul %308, %295, %cst_183 {dimension_numbers = #tpu.dot_dimension_numbers<[2], [1], [1], [2], [0, 0, 0, 1, 1, 2], [0], [0]>} : vector<4x8x8xf32>, vector<4x8x8xf32>, vector<4x8x8xf32> -> vector<4x8x8xf32>
    "tpu.trace_stop"() : () -> ()
    %310 = vector.shape_cast %309 : vector<4x8x8xf32> to vector<32x8xf32>
    %cst_184 = arith.constant dense<0.000000e+00> : vector<32x32xf32>
    %311 = tpu.matmul %310, %289, %cst_184 {dimension_numbers = #tpu.dot_dimension_numbers<[1], [0], [0], [1], [0, 0, 1, 1], [], []>} : vector<32x8xf32>, vector<8x32xf32>, vector<32x32xf32> -> vector<32x32xf32>
    %312 = arith.addf %281, %311 : vector<32x32xf32>
    %313 = vector.broadcast %13 : vector<1x32xf32> to vector<32x32xf32>
    %314 = arith.addf %312, %313 : vector<32x32xf32>
    %315 = arith.addf %314, %165 : vector<32x32xf32>
    %cst_185 = arith.constant dense<0.000000e+00> : vector<32xf32>
    %316 = vector.multi_reduction <add>, %315, %cst_185 [1] : vector<32x32xf32> to vector<32xf32>
    %317 = vector.shape_cast %316 : vector<32xf32> to vector<32x1xf32>
    %cst_186 = arith.constant 3.200000e+01 : f32
    %318 = vector.broadcast %cst_186 : f32 to vector<32x1xf32>
    %319 = arith.divf %317, %318 : vector<32x1xf32>
    %320 = vector.broadcast %319 : vector<32x1xf32> to vector<32x32xf32>
    %321 = arith.subf %315, %320 : vector<32x32xf32>
    %322 = arith.mulf %321, %321 : vector<32x32xf32>
    %cst_187 = arith.constant dense<0.000000e+00> : vector<32xf32>
    %323 = vector.multi_reduction <add>, %322, %cst_187 [1] : vector<32x32xf32> to vector<32xf32>
    %324 = vector.shape_cast %323 : vector<32xf32> to vector<32x1xf32>
    %cst_188 = arith.constant 3.200000e+01 : f32
    %325 = vector.broadcast %cst_188 : f32 to vector<32x1xf32>
    %326 = arith.divf %324, %325 : vector<32x1xf32>
    %327 = vector.broadcast %319 : vector<32x1xf32> to vector<32x32xf32>
    %328 = arith.subf %315, %327 : vector<32x32xf32>
    %cst_189 = arith.constant 9.99999974E-6 : f32
    %329 = vector.broadcast %cst_189 : f32 to vector<32x1xf32>
    %330 = arith.addf %326, %329 : vector<32x1xf32>
    %331 = math.rsqrt %330 : vector<32x1xf32>
    %332 = vector.broadcast %331 : vector<32x1xf32> to vector<32x32xf32>
    %333 = arith.mulf %328, %332 : vector<32x32xf32>
    %334 = vector.broadcast %8 : vector<1x32xf32> to vector<32x32xf32>
    %335 = arith.mulf %333, %334 : vector<32x32xf32>
    %336 = vector.broadcast %9 : vector<1x32xf32> to vector<32x32xf32>
    %337 = arith.addf %335, %336 : vector<32x32xf32>
    %c0_190 = arith.constant 0 : index
    %c0_191 = arith.constant 0 : index
    %338 = vector.load %arg6[%c0_190, %c0_191] : memref<96x64xf32, #tpu.memory_space<vmem>>, vector<32x64xf32>
    %cst_192 = arith.constant dense<0.000000e+00> : vector<32x64xf32>
    %339 = tpu.matmul %337, %338, %cst_192 {dimension_numbers = #tpu.dot_dimension_numbers<[1], [0], [0], [1], [0, 0, 1, 1], [], []>} : vector<32x32xf32>, vector<32x64xf32>, vector<32x64xf32> -> vector<32x64xf32>
    %340 = vector.broadcast %14 : vector<1x64xf32> to vector<32x64xf32>
    %341 = arith.addf %339, %340 : vector<32x64xf32>
    %342 = arith.mulf %341, %341 : vector<32x64xf32>
    %343 = arith.mulf %341, %342 : vector<32x64xf32>
    %cst_193 = arith.constant 4.471500e-02 : f32
    %344 = vector.broadcast %cst_193 : f32 to vector<32x64xf32>
    %345 = arith.mulf %344, %343 : vector<32x64xf32>
    %346 = arith.addf %341, %345 : vector<32x64xf32>
    %cst_194 = arith.constant 0.797884583 : f32
    %347 = vector.broadcast %cst_194 : f32 to vector<32x64xf32>
    %348 = arith.mulf %347, %346 : vector<32x64xf32>
    %349 = math.tanh %348 : vector<32x64xf32>
    %cst_195 = arith.constant 1.000000e+00 : f32
    %350 = vector.broadcast %cst_195 : f32 to vector<32x64xf32>
    %351 = arith.addf %350, %349 : vector<32x64xf32>
    %cst_196 = arith.constant 5.000000e-01 : f32
    %352 = vector.broadcast %cst_196 : f32 to vector<32x64xf32>
    %353 = arith.mulf %352, %351 : vector<32x64xf32>
    %354 = arith.mulf %341, %353 : vector<32x64xf32>
    %c32 = arith.constant 32 : index
    %c0_197 = arith.constant 0 : index
    %355 = vector.load %arg6[%c32, %c0_197] : memref<96x64xf32, #tpu.memory_space<vmem>>, vector<64x32xf32>
    %cst_198 = arith.constant dense<0.000000e+00> : vector<32x32xf32>
    %356 = tpu.matmul %354, %355, %cst_198 {dimension_numbers = #tpu.dot_dimension_numbers<[1], [0], [0], [1], [0, 0, 1, 1], [], []>} : vector<32x64xf32>, vector<64x32xf32>, vector<32x32xf32> -> vector<32x32xf32>
    %357 = vector.broadcast %15 : vector<1x32xf32> to vector<32x32xf32>
    %358 = arith.addf %356, %357 : vector<32x32xf32>
    %359 = arith.addf %358, %315 : vector<32x32xf32>
    %cst_199 = arith.constant dense<0.000000e+00> : vector<32xf32>
    %360 = vector.multi_reduction <add>, %359, %cst_199 [1] : vector<32x32xf32> to vector<32xf32>
    %361 = vector.shape_cast %360 : vector<32xf32> to vector<32x1xf32>
    %cst_200 = arith.constant 3.200000e+01 : f32
    %362 = vector.broadcast %cst_200 : f32 to vector<32x1xf32>
    %363 = arith.divf %361, %362 : vector<32x1xf32>
    %364 = vector.broadcast %363 : vector<32x1xf32> to vector<32x32xf32>
    %365 = arith.subf %359, %364 : vector<32x32xf32>
    %366 = arith.mulf %365, %365 : vector<32x32xf32>
    %cst_201 = arith.constant dense<0.000000e+00> : vector<32xf32>
    %367 = vector.multi_reduction <add>, %366, %cst_201 [1] : vector<32x32xf32> to vector<32xf32>
    %368 = vector.shape_cast %367 : vector<32xf32> to vector<32x1xf32>
    %cst_202 = arith.constant 3.200000e+01 : f32
    %369 = vector.broadcast %cst_202 : f32 to vector<32x1xf32>
    %370 = arith.divf %368, %369 : vector<32x1xf32>
    %371 = vector.broadcast %363 : vector<32x1xf32> to vector<32x32xf32>
    %372 = arith.subf %359, %371 : vector<32x32xf32>
    %cst_203 = arith.constant 9.99999974E-6 : f32
    %373 = vector.broadcast %cst_203 : f32 to vector<32x1xf32>
    %374 = arith.addf %370, %373 : vector<32x1xf32>
    %375 = math.rsqrt %374 : vector<32x1xf32>
    %376 = vector.broadcast %375 : vector<32x1xf32> to vector<32x32xf32>
    %377 = arith.mulf %372, %376 : vector<32x32xf32>
    %378 = vector.broadcast %10 : vector<1x32xf32> to vector<32x32xf32>
    %379 = arith.mulf %377, %378 : vector<32x32xf32>
    %380 = vector.broadcast %11 : vector<1x32xf32> to vector<32x32xf32>
    %381 = arith.addf %379, %380 : vector<32x32xf32>
    %382 = vector.shape_cast %381 : vector<32x32xf32> to vector<4x8x32xf32>
    %c0_204 = arith.constant 0 : index
    %c0_205 = arith.constant 0 : index
    %c0_206 = arith.constant 0 : index
    %383 = vector.load %arg7[%c0_204, %c0_205, %c0_206] : memref<4x8x32xf32, #tpu.memory_space<vmem>>, vector<4x8x32xf32>
    tpu.vector_store %arg7[%c0_204, %c0_205, %c0_206], %382 {strides = array<i32>} : memref<4x8x32xf32, #tpu.memory_space<vmem>>, vector<4x8x32xf32>,
    return
  }
  func.func @transform_0(%arg0: i32) -> (i32, i32, i32) {
    %c0_i32 = arith.constant 0 : i32
    %c0_i32_0 = arith.constant 0 : i32
    %c0_i32_1 = arith.constant 0 : i32
    return %arg0, %c0_i32, %c0_i32_0 : i32, i32, i32
  }
  func.func @transform_1(%arg0: i32) -> (i32, i32, i32) {
    %c0_i32 = arith.constant 0 : i32
    %c0_i32_0 = arith.constant 0 : i32
    %c0_i32_1 = arith.constant 0 : i32
    return %arg0, %c0_i32, %c0_i32_0 : i32, i32, i32
  }
  func.func @transform_2(%arg0: i32) -> (i32, i32) {
    %c0_i32 = arith.constant 0 : i32
    %c0_i32_0 = arith.constant 0 : i32
    %c0_i32_1 = arith.constant 0 : i32
    return %c0_i32, %c0_i32_0 : i32, i32
  }
  func.func @transform_3(%arg0: i32) -> (i32, i32, i32) {
    %c0_i32 = arith.constant 0 : i32
    %c0_i32_0 = arith.constant 0 : i32
    %c0_i32_1 = arith.constant 0 : i32
    %c0_i32_2 = arith.constant 0 : i32
    return %c0_i32, %c0_i32_0, %c0_i32_1 : i32, i32, i32
  }
  func.func @transform_4(%arg0: i32) -> (i32, i32, i32) {
    %c0_i32 = arith.constant 0 : i32
    %c0_i32_0 = arith.constant 0 : i32
    %c0_i32_1 = arith.constant 0 : i32
    %c0_i32_2 = arith.constant 0 : i32
    return %c0_i32, %c0_i32_0, %c0_i32_1 : i32, i32, i32
  }
  func.func @transform_5(%arg0: i32) -> (i32, i32) {
    %c0_i32 = arith.constant 0 : i32
    %c0_i32_0 = arith.constant 0 : i32
    %c0_i32_1 = arith.constant 0 : i32
    return %c0_i32, %c0_i32_0 : i32, i32
  }
  func.func @transform_6(%arg0: i32) -> (i32, i32, i32) {
    %c0_i32 = arith.constant 0 : i32
    %c0_i32_0 = arith.constant 0 : i32
    %c0_i32_1 = arith.constant 0 : i32
    return %arg0, %c0_i32, %c0_i32_0 : i32, i32, i32
  }
}

</mosaic_0001>

<llo_original>
// kernel: transformer_cross_v2.1
$region0: #{transformer_cross_v2.1}
  #allocation0 [shape = 'u32[]', space=smem, size = 0x4, offset = 0x4, fixed_abs, tag = 'smem constant byte address 0x4 - core index']
  #allocation1 [shape = 'u32[144,128]{1,0:T(1,128)}', space=vmem, size = 0x12000, scoped, tag = 'internal scratch']
  %s0 = inlined_call_operand.vmem [shape: f32[8,8,32], index: 0, kind: input, shape index: {}]
  %s1 = inlined_call_operand.vmem [shape: f32[8,8,32], index: 1, kind: input, shape index: {}]
  %s2 = inlined_call_operand.vmem [shape: f32[12,64], index: 2, kind: input, shape index: {}]
  %s3 = inlined_call_operand.vmem [shape: f32[24,32,8], index: 3, kind: input, shape index: {}]
  %s4 = inlined_call_operand.vmem [shape: f32[8,8,32], index: 4, kind: input, shape index: {}]
  %s5 = inlined_call_operand.vmem [shape: f32[96,64], index: 5, kind: input, shape index: {}]
  %s6 = inlined_call_operand.hbm [shape: f32[8,8,32], index: 6, kind: output, shape index: {}]
  %s7 = sld [smem:[#allocation0]]
  $region57: #{transformer_cross_v2.1} parent=0
    _
  %s9 = ssub.s32 1, %s7
  %s10 = scalar_select 0, %s9, %s7
  $region1: #{transformer_cross_v2.1} parent=0
    #allocation2 [shape = 'u8[32768]{0}', space=vmem, size = 0x8000, scoped, tag = 'output window, operand 0']
    #allocation3 [shape = 's32[2]{0}', space=sflag, size = 0x8, scoped, tag = 'scoped memory for transformer_cross_v2.1']
    %11 = vsyncpa [#allocation3], 0
    %s12 = scalar_lea.sflag [#allocation3], 1
    %13 = vsyncpa %s12, 0
    loop: start=0, step=1, limit=4
    $region2: #{transformer_cross_v2.1} parent=1 // loop_pre_header
      _
    $region3: #{transformer_cross_v2.1} parent=1 // loop_header
      %s15 = sphi 0, %s19
      %p16 = scmp.ge.s32.totalorder %s15, 4
      %s25 = sphi 0, %s27
      %s28 = sphi 0, %s25
      %s29 = sphi 0, %s28
      %s45 = sphi 0, %s29
      %s51 = sphi 0, %s53
      %s54 = sphi 0, %s51
      %s55 = sphi 0, %s54
      %s71 = sphi 0, %s55
      %s75 = sphi 0, %s75
      %s77 = sphi 0, %s75
      %s78 = sphi 0, %s77
      %s92 = sphi 0, %s78
      %s96 = sphi 0, %s96
      %s98 = sphi 0, %s96
      %s99 = sphi 0, %s98
      %s113 = sphi 0, %s99
      %s117 = sphi 0, %s117
      %s119 = sphi 0, %s117
      %s120 = sphi 0, %s119
      %s134 = sphi 0, %s120
      %s138 = sphi 0, %s138
      %s140 = sphi 0, %s138
      %s141 = sphi 0, %s140
      %s155 = sphi 0, %s141
      %s161 = sphi 0, %s163
      %s164 = sphi 0, %s161
      %s165 = sphi 0, %s164
      %s181 = sphi 0, %s165
    $region4: #{transformer_cross_v2.1} parent=1 // loop_header_branch
      %18 = sbr.rel (%p16) target = $region8
    $region5: #{transformer_cross_v2.1} parent=1 // loop_body
      %s20 = ssub.s32 %s15, 1
      %s21 = ssub.s32 %s15, 2
      %s22 = sadd.s32 %s15, 1
      %s23 = ssub.s32 %s15, %s22
      %p24 = scmp.eq.s32.totalorder %s23, 0
      %s26 = sadd.s32 %s25, 1
      %s27 = scalar_select %p24, %s25, %s26
      %p30 = pneg %p24
      %p31 = scmp.eq.s32.totalorder %s15, 1
      %p32 = por %p30, %p31
      %p33 = scmp.ne.s32.totalorder %s25, %s28
      %p34 = scmp.eq.s32.totalorder %s15, 0
      %p35 = por %p33, %p34
      %p36 = scmp.ne.s32.totalorder %s25, %s28
      %p37 = scmp.eq.s32.totalorder %s20, 1
      %p38 = por %p36, %p37
      %p39 = scmp.ne.s32.totalorder %s28, %s29
      %p40 = scmp.eq.s32.totalorder %s20, 0
      %p41 = por %p39, %p40
      %p42 = scmp.ne.s32.totalorder %s28, %s29
      %p43 = scmp.eq.s32.totalorder %s21, 1
      %p44 = por %p42, %p43
      %p46 = scmp.ne.s32.totalorder %s29, %s45
      %p47 = scmp.eq.s32.totalorder %s21, 0
      %p48 = por %p46, %p47
      %s49 = ssub.s32 %s15, %s22
      %p50 = scmp.eq.s32.totalorder %s49, 0
      %s52 = sadd.s32 %s51, 1
      %s53 = scalar_select %p50, %s51, %s52
      %p56 = pneg %p50
      %p57 = scmp.eq.s32.totalorder %s15, 1
      %p58 = por %p56, %p57
      %p59 = scmp.ne.s32.totalorder %s51, %s54
      %p60 = scmp.eq.s32.totalorder %s15, 0
      %p61 = por %p59, %p60
      %p62 = scmp.ne.s32.totalorder %s51, %s54
      %p63 = scmp.eq.s32.totalorder %s20, 1
      %p64 = por %p62, %p63
      %p65 = scmp.ne.s32.totalorder %s54, %s55
      %p66 = scmp.eq.s32.totalorder %s20, 0
      %p67 = por %p65, %p66
      %p68 = scmp.ne.s32.totalorder %s54, %s55
      %p69 = scmp.eq.s32.totalorder %s21, 1
      %p70 = por %p68, %p69
      %p72 = scmp.ne.s32.totalorder %s55, %s71
      %p73 = scmp.eq.s32.totalorder %s21, 0
      %p74 = por %p72, %p73
      %s76 = sadd.s32 %s75, 1
      %p79 = scmp.eq.s32.totalorder %s15, 1
      %p80 = scmp.ne.s32.totalorder %s75, %s77
      %p81 = scmp.eq.s32.totalorder %s15, 0
      %p82 = por %p80, %p81
      %p83 = scmp.ne.s32.totalorder %s75, %s77
      %p84 = scmp.eq.s32.totalorder %s20, 1
      %p85 = por %p83, %p84
      %p86 = scmp.ne.s32.totalorder %s77, %s78
      %p87 = scmp.eq.s32.totalorder %s20, 0
      %p88 = por %p86, %p87
      %p89 = scmp.ne.s32.totalorder %s77, %s78
      %p90 = scmp.eq.s32.totalorder %s21, 1
      %p91 = por %p89, %p90
      %p93 = scmp.ne.s32.totalorder %s78, %s92
      %p94 = scmp.eq.s32.totalorder %s21, 0
      %p95 = por %p93, %p94
      %s97 = sadd.s32 %s96, 1
      %p100 = scmp.eq.s32.totalorder %s15, 1
      %p101 = scmp.ne.s32.totalorder %s96, %s98
      %p102 = scmp.eq.s32.totalorder %s15, 0
      %p103 = por %p101, %p102
      %p104 = scmp.ne.s32.totalorder %s96, %s98
      %p105 = scmp.eq.s32.totalorder %s20, 1
      %p106 = por %p104, %p105
      %p107 = scmp.ne.s32.totalorder %s98, %s99
      %p108 = scmp.eq.s32.totalorder %s20, 0
      %p109 = por %p107, %p108
      %p110 = scmp.ne.s32.totalorder %s98, %s99
      %p111 = scmp.eq.s32.totalorder %s21, 1
      %p112 = por %p110, %p111
      %p114 = scmp.ne.s32.totalorder %s99, %s113
      %p115 = scmp.eq.s32.totalorder %s21, 0
      %p116 = por %p114, %p115
      %s118 = sadd.s32 %s117, 1
      %p121 = scmp.eq.s32.totalorder %s15, 1
      %p122 = scmp.ne.s32.totalorder %s117, %s119
      %p123 = scmp.eq.s32.totalorder %s15, 0
      %p124 = por %p122, %p123
      %p125 = scmp.ne.s32.totalorder %s117, %s119
      %p126 = scmp.eq.s32.totalorder %s20, 1
      %p127 = por %p125, %p126
      %p128 = scmp.ne.s32.totalorder %s119, %s120
      %p129 = scmp.eq.s32.totalorder %s20, 0
      %p130 = por %p128, %p129
      %p131 = scmp.ne.s32.totalorder %s119, %s120
      %p132 = scmp.eq.s32.totalorder %s21, 1
      %p133 = por %p131, %p132
      %p135 = scmp.ne.s32.totalorder %s120, %s134
      %p136 = scmp.eq.s32.totalorder %s21, 0
      %p137 = por %p135, %p136
      %s139 = sadd.s32 %s138, 1
      %p142 = scmp.eq.s32.totalorder %s15, 1
      %p143 = scmp.ne.s32.totalorder %s138, %s140
      %p144 = scmp.eq.s32.totalorder %s15, 0
      %p145 = por %p143, %p144
      %p146 = scmp.ne.s32.totalorder %s138, %s140
      %p147 = scmp.eq.s32.totalorder %s20, 1
      %p148 = por %p146, %p147
      %p149 = scmp.ne.s32.totalorder %s140, %s141
      %p150 = scmp.eq.s32.totalorder %s20, 0
      %p151 = por %p149, %p150
      %p152 = scmp.ne.s32.totalorder %s140, %s141
      %p153 = scmp.eq.s32.totalorder %s21, 1
      %p154 = por %p152, %p153
      %p156 = scmp.ne.s32.totalorder %s141, %s155
      %p157 = scmp.eq.s32.totalorder %s21, 0
      %p158 = por %p156, %p157
      %s159 = ssub.s32 %s15, %s22
      %p160 = scmp.eq.s32.totalorder %s159, 0
      %s162 = sadd.s32 %s161, 1
      %s163 = scalar_select %p160, %s161, %s162
      %p166 = pneg %p160
      %p167 = scmp.eq.s32.totalorder %s15, 1
      %p168 = por %p166, %p167
      %p169 = scmp.ne.s32.totalorder %s161, %s164
      %p170 = scmp.eq.s32.totalorder %s15, 0
      %p171 = por %p169, %p170
      %p172 = scmp.ne.s32.totalorder %s161, %s164
      %p173 = scmp.eq.s32.totalorder %s20, 1
      %p174 = por %p172, %p173
      %p175 = scmp.ne.s32.totalorder %s164, %s165
      %p176 = scmp.eq.s32.totalorder %s20, 0
      %p177 = por %p175, %p176
      %p178 = scmp.ne.s32.totalorder %s164, %s165
      %p179 = scmp.eq.s32.totalorder %s21, 1
      %p180 = por %p178, %p179
      %p182 = scmp.ne.s32.totalorder %s165, %s181
      %p183 = scmp.eq.s32.totalorder %s21, 0
      %p184 = por %p182, %p183
      %p185 = scmp.le.s32.totalorder 1, %s15
      %p186 = scmp.lt.s32.totalorder %s15, 3
      %p187 = pnand %p185, %p186
      %p188 = pneg %p187
      // Predicated region
      $region9: #{transformer_cross_v2.1} parent=5 // pred_check
        _
      $region10: #{transformer_cross_v2.1} parent=5 // pred_check_branch
        %190 = sbr.rel (%p187) target = $region12
      $region11: #{transformer_cross_v2.1} parent=5 // pred_region
        %s191 = ssub.s32 %s15, 1
        // Predicated region
        $region13: #{transformer_cross_v2.1} parent=11 // pred_check
          %p192 = pneg %p88
        $region14: #{transformer_cross_v2.1} parent=11 // pred_check_branch
          %194 = sbr.rel (%p192) target = $region16
        $region15: #{transformer_cross_v2.1} parent=11 // pred_region
          _
        $region16: #{transformer_cross_v2.1} parent=11 // pred_fallthru
          _
        // Predicated region
        $region17: #{transformer_cross_v2.1} parent=11 // pred_check
          %p195 = pneg %p109
        $region18: #{transformer_cross_v2.1} parent=11 // pred_check_branch
          %197 = sbr.rel (%p195) target = $region20
        $region19: #{transformer_cross_v2.1} parent=11 // pred_region
          _
        $region20: #{transformer_cross_v2.1} parent=11 // pred_fallthru
          _
        // Predicated region
        $region21: #{transformer_cross_v2.1} parent=11 // pred_check
          %p198 = pneg %p130
        $region22: #{transformer_cross_v2.1} parent=11 // pred_check_branch
          %200 = sbr.rel (%p198) target = $region24
        $region23: #{transformer_cross_v2.1} parent=11 // pred_region
          _
        $region24: #{transformer_cross_v2.1} parent=11 // pred_fallthru
          _
        // Predicated region
        $region25: #{transformer_cross_v2.1} parent=11 // pred_check
          %p201 = pneg %p151
        $region26: #{transformer_cross_v2.1} parent=11 // pred_check_branch
          %203 = sbr.rel (%p201) target = $region28
        $region27: #{transformer_cross_v2.1} parent=11 // pred_region
          _
        $region28: #{transformer_cross_v2.1} parent=11 // pred_fallthru
          _
      $region12: #{transformer_cross_v2.1} parent=5 // pred_fallthru
        _
      %p204 = scmp.lt.s32.totalorder %s15, 2
      // Predicated region
      $region29: #{transformer_cross_v2.1} parent=5 // pred_check
        %p205 = pneg %p204
      $region30: #{transformer_cross_v2.1} parent=5 // pred_check_branch
        %207 = sbr.rel (%p205) target = $region32
      $region31: #{transformer_cross_v2.1} parent=5 // pred_region
        // Predicated region
        $region33: #{transformer_cross_v2.1} parent=31 // pred_check
          %p208 = pneg %p35
        $region34: #{transformer_cross_v2.1} parent=31 // pred_check_branch
          %210 = sbr.rel (%p208) target = $region36
        $region35: #{transformer_cross_v2.1} parent=31 // pred_region
          %s211 = smul.u32 4, %s15
          %p212 = scmp.lt.s32.totalorder %s211, 7
          %s213 = scalar_select %p212, %s211, 7
          %s214 = smul.addr %s213, 8
          %s215 = scalar_lea.vmem %s0, %s214
          %s216 = smul.u32 4, %s15
        $region36: #{transformer_cross_v2.1} parent=31 // pred_fallthru
          _
        // Predicated region
        $region37: #{transformer_cross_v2.1} parent=31 // pred_check
          %p217 = pneg %p61
        $region38: #{transformer_cross_v2.1} parent=31 // pred_check_branch
          %219 = sbr.rel (%p217) target = $region40
        $region39: #{transformer_cross_v2.1} parent=31 // pred_region
          %s220 = smul.u32 4, %s15
          %p221 = scmp.lt.s32.totalorder %s220, 7
          %s222 = scalar_select %p221, %s220, 7
          %s223 = smul.addr %s222, 8
          %s224 = scalar_lea.vmem %s1, %s223
          %s225 = smul.u32 4, %s15
        $region40: #{transformer_cross_v2.1} parent=31 // pred_fallthru
          _
      $region32: #{transformer_cross_v2.1} parent=5 // pred_fallthru
        _
      %p226 = scmp.le.s32.totalorder 1, %s15
      %p227 = scmp.lt.s32.totalorder %s15, 3
      %p228 = pnand %p226, %p227
      %p229 = pneg %p228
      // Predicated region
      $region41: #{transformer_cross_v2.1} parent=5 // pred_check
        _
      $region42: #{transformer_cross_v2.1} parent=5 // pred_check_branch
        %231 = sbr.rel (%p228) target = $region44
      $region43: #{transformer_cross_v2.1} parent=5 // pred_region
        %s232 = ssub.s32 %s15, 1
        %s233 = smul.u32 4, %s20
        %p234 = scmp.lt.s32.totalorder %s233, 7
        %s235 = scalar_select %p234, %s233, 7
        %s236 = smul.addr %s235, 8
        %s237 = scalar_lea.vmem %s0, %s236
        %p238 = pneg %p41
        %p239 = pneg %p38
        %s240 = smul.u32 4, %s20
        %p241 = scmp.lt.s32.totalorder %s240, 7
        %s242 = scalar_select %p241, %s240, 7
        %s243 = smul.addr %s242, 8
        %s244 = scalar_lea.vmem %s1, %s243
        %p245 = pneg %p67
        %p246 = pneg %p64
        %p247 = pneg %p88
        %p248 = pneg %p85
        %p249 = pneg %p109
        %p250 = pneg %p106
        %p251 = pneg %p130
        %p252 = pneg %p127
        %p253 = pneg %p151
        %p254 = pneg %p148
        %p255 = pneg %p177
        %p256 = pneg %p174
        %s257 = sand.u32 %s164, 1
        %s258 = scalar_lea.sflag [#allocation3], %s257
        %s259 = sand.u32 %s164, 1
        %s260 = smul.addr %s259, 32
        %s261 = scalar_lea.vmem [#allocation2], %s260
        %s262 = smul.u32 4, %s20
        %p263 = scmp.lt.s32.totalorder %s262, 7
        %s264 = scalar_select %p263, %s262, 7
        %s265 = smul.addr %s264, 8
        %s266 = scalar_lea.vmem %s0, %s265
        %s267 = smul.u32 4, %s20
        %s268 = smul.u32 4, %s20
        %p269 = scmp.lt.s32.totalorder %s268, 7
        %s270 = scalar_select %p269, %s268, 7
        %s271 = smul.addr %s270, 8
        %s272 = scalar_lea.vmem %s1, %s271
        %s273 = smul.u32 4, %s20
        %s274 = smul.u32 4, %s20
        %v275 = vld [vmem:[%s266] sm:$0xff]
        %v276 = vld [vmem:[%s266 + $0x8] sm:$0xff]
        %v277 = vld [vmem:[%s266 + $0x10] sm:$0xff]
        %v278 = vld [vmem:[%s266 + $0x18] sm:$0xff]
        %v279 = vld [vmem:[%s272] sm:$0xff]
        %v280 = vld [vmem:[%s272 + $0x8] sm:$0xff]
        %v281 = vld [vmem:[%s272 + $0x10] sm:$0xff]
        %v282 = vld [vmem:[%s272 + $0x18] sm:$0xff]
        %v283 = vld [vmem:[%s2] sm:$0x1]
        %v284 = vld [vmem:[%s2 + $0x1] sm:$0x1]
        %v285 = vld [vmem:[%s2 + $0x2] sm:$0x1]
        %v286 = vld [vmem:[%s2 + $0x3] sm:$0x1]
        %v287 = vld [vmem:[%s2 + $0x4] sm:$0x1]
        %v288 = vld [vmem:[%s2 + $0x5] sm:$0x1]
        %v289 = vld [vmem:[%s2 + $0x6] sm:$0x1]
        %v290 = vld [vmem:[%s2 + $0x7] sm:$0x1]
        %v291 = vld [vmem:[%s2 + $0x8] sm:$0x1]
        %v292 = vld [vmem:[%s2 + $0x9] sm:$0x1]
        %v293 = vld [vmem:[%s2 + $0xa] sm:$0x1]
        %v294 = vld [vmem:[%s2 + $0xb] sm:$0x1]
        %vm295 = vcmask 261120
        %v296 = vsel %vm295, %v275, 0.0
        %297 = vadd.xlane.f32.xlu0 %v296
        %v298 = vpop.xlane.xlu0 %297
        %v299 = vsel %vm295, %v276, 0.0
        %300 = vadd.xlane.f32.xlu0 %v299
        %v301 = vpop.xlane.xlu0 %300
        %v302 = vsel %vm295, %v277, 0.0
        %303 = vadd.xlane.f32.xlu0 %v302
        %v304 = vpop.xlane.xlu0 %303
        %v305 = vsel %vm295, %v278, 0.0
        %306 = vadd.xlane.f32.xlu0 %v305
        %v307 = vpop.xlane.xlu0 %306
        %v308 = vrcp.pop 32.0
        %v309 = vmul.f32 %v298, %v308
        %v310 = vmul.f32 %v301, %v308
        %v311 = vmul.f32 %v304, %v308
        %v312 = vmul.f32 %v307, %v308
        %v313 = vsub.f32 %v275, %v309
        %v314 = vsub.f32 %v276, %v310
        %v315 = vsub.f32 %v277, %v311
        %v316 = vsub.f32 %v278, %v312
        %v317 = vmul.f32 %v313, %v313
        %v318 = vmul.f32 %v314, %v314
        %v319 = vmul.f32 %v315, %v315
        %v320 = vmul.f32 %v316, %v316
        %v321 = vsel %vm295, %v317, 0.0
        %322 = vadd.xlane.f32.xlu0 %v321
        %v323 = vpop.xlane.xlu0 %322
        %v324 = vsel %vm295, %v318, 0.0
        %325 = vadd.xlane.f32.xlu0 %v324
        %v326 = vpop.xlane.xlu0 %325
        %v327 = vsel %vm295, %v319, 0.0
        %328 = vadd.xlane.f32.xlu0 %v327
        %v329 = vpop.xlane.xlu0 %328
        %v330 = vsel %vm295, %v320, 0.0
        %331 = vadd.xlane.f32.xlu0 %v330
        %v332 = vpop.xlane.xlu0 %331
        %v333 = vmul.f32 %v323, %v308
        %v334 = vmul.f32 %v326, %v308
        %v335 = vmul.f32 %v329, %v308
        %v336 = vmul.f32 %v332, %v308
        %v337 = vadd.f32 %v333, 1e-05
        %v338 = vadd.f32 %v334, 1e-05
        %v339 = vadd.f32 %v335, 1e-05
        %v340 = vadd.f32 %v336, 1e-05
        %v341 = vrsqrt.pop %v337
        %v342 = vrsqrt.pop %v338
        %v343 = vrsqrt.pop %v339
        %v344 = vrsqrt.pop %v340
        %v345 = vmul.f32 %v313, %v341
        %v346 = vmul.f32 %v314, %v342
        %v347 = vmul.f32 %v315, %v343
        %v348 = vmul.f32 %v316, %v344
        %v349 = vlaneseq
        %v350 = vshrl.u32 %v349, 7
        %v351 = vsub.s32 0, %v350
        %v352 = vrot.slane %v283, %v351
        %v353 = vmul.f32 %v345, %v352
        %v354 = vmul.f32 %v346, %v352
        %v355 = vmul.f32 %v347, %v352
        %v356 = vmul.f32 %v348, %v352
        %v357 = vlaneseq
        %v358 = vshrl.u32 %v357, 7
        %v359 = vsub.s32 0, %v358
        %v360 = vrot.slane %v284, %v359
        %v361 = vadd.f32 %v353, %v360
        %v362 = vadd.f32 %v354, %v360
        %v363 = vadd.f32 %v355, %v360
        %v364 = vadd.f32 %v356, %v360
        %v365 = vld [vmem:[%s3] sm:$0xff]
        %v366 = vld [vmem:[%s3 + $0x8] sm:$0xff]
        %v367 = vld [vmem:[%s3 + $0x10] sm:$0xff]
        %v368 = vld [vmem:[%s3 + $0x18] sm:$0xff]
        %s369 = scalar_lea.vmem %s3, 128
        %v370 = vld [vmem:[%s369] sm:$0xff]
        %v371 = vld [vmem:[%s369 + $0x8] sm:$0xff]
        %v372 = vld [vmem:[%s369 + $0x10] sm:$0xff]
        %v373 = vld [vmem:[%s369 + $0x18] sm:$0xff]
        %s374 = scalar_lea.vmem %s3, 256
        %v375 = vld [vmem:[%s374] sm:$0xff]
        %v376 = vld [vmem:[%s374 + $0x8] sm:$0xff]
        %v377 = vld [vmem:[%s374 + $0x10] sm:$0xff]
        %v378 = vld [vmem:[%s374 + $0x18] sm:$0xff]
        %v379 = vld [vmem:[%s4] sm:$0xff]
        %v381 = vsel %vm295, %v361, 0
        %v384 = vsel %vm295, %v362, 0
        %v387 = vsel %vm295, %v363, 0
        %v390 = vsel %vm295, %v364, 0
        %392 = vmatprep.subr.mxu0 0.0
        %393 = vmatpush1.msra.mxu0 %v365
        %394 = vmatprep.subr.mxu0 0.0
        %395 = vmatpush1.msra.mxu0 %v366
        %396 = vmatprep.subr.mxu0 0.0
        %397 = vmatpush1.msra.mxu0 %v367
        %398 = vmatprep.subr.mxu0 0.0
        %399 = vmatpush1.msra.mxu0 %v368
        %400 = vmatprep.subr.mxu0 0.0
        %401 = vmatpush1.msra.mxu0 0.0
        %402 = vmatprep.subr.mxu0 0.0
        %403 = vmatpush1.msra.mxu0 0.0
        %404 = vmatprep.subr.mxu0 0.0
        %405 = vmatpush1.msra.mxu0 0.0
        %406 = vmatprep.subr.mxu0 0.0
        %407 = vmatpush1.msra.mxu0 0.0
        %408 = vmatprep.subr.mxu0 0.0
        %409 = vmatpush1.msra.mxu0 0.0
        %410 = vmatprep.subr.mxu0 0.0
        %411 = vmatpush1.msra.mxu0 0.0
        %412 = vmatprep.subr.mxu0 0.0
        %413 = vmatpush1.msra.mxu0 0.0
        %414 = vmatprep.subr.mxu0 0.0
        %415 = vmatpush1.msra.mxu0 0.0
        %416 = vmatprep.subr.mxu0 0.0
        %417 = vmatpush1.msra.mxu0 0.0
        %418 = vmatprep.subr.mxu0 0.0
        %419 = vmatpush1.msra.mxu0 0.0
        %420 = vmatprep.subr.mxu0 0.0
        %421 = vmatpush1.msra.mxu0 0.0
        %422 = vmatprep.subr.mxu0 0.0
        %423 = vmatpush1.msra.mxu0 0.0
        %424 = vmatprep.subr.mxu0 0.0
        %425 = vmatpush1.msra.mxu0 0.0
        %426 = vmatprep.subr.mxu0 0.0
        %427 = vmatpush1.msra.mxu0 0.0
        %428 = vmatprep.subr.mxu0 0.0
        %429 = vmatpush1.msra.mxu0 0.0
        %430 = vmatprep.subr.mxu0 0.0
        %431 = vmatpush1.msra.mxu0 0.0
        %432 = vmatprep.subr.mxu0 0.0
        %433 = vmatpush1.msra.mxu0 0.0
        %434 = vmatprep.subr.mxu0 0.0
        %435 = vmatpush1.msra.mxu0 0.0
        %436 = vmatprep.subr.mxu0 0.0
        %437 = vmatpush1.msra.mxu0 0.0
        %438 = vmatprep.subr.mxu0 0.0
        %439 = vmatpush1.msra.mxu0 0.0
        %440 = vmatprep.subr.mxu0 0.0
        %441 = vmatpush1.msra.mxu0 0.0
        %442 = vmatprep.subr.mxu0 0.0
        %443 = vmatpush1.msra.mxu0 0.0
        %444 = vmatprep.subr.mxu0 0.0
        %445 = vmatpush1.msra.mxu0 0.0
        %446 = vmatprep.subr.mxu0 0.0
        %447 = vmatpush1.msra.mxu0 0.0
        %448 = vmatprep.subr.mxu0 0.0
        %449 = vmatpush1.msra.mxu0 0.0
        %450 = vmatprep.subr.mxu0 0.0
        %451 = vmatpush1.msra.mxu0 0.0
        %452 = vmatprep.subr.mxu0 0.0
        %453 = vmatpush1.msra.mxu0 0.0
        %454 = vmatprep.subr.mxu0 0.0
        %455 = vmatpush1.msra.mxu0 0.0
        %456 = vmatprep.mubr.f32.mxu0 0.0
        %457 = vmatmul.mubr.f32.gmra.mrb[0].mxu0 %v381
        %v458 = vpop.f32.mrb[0].mxu0
        %v459 = vadd.f32 0.0, %v458
        %v460 = vpop.f32.mrb[0].mxu0
        %461 = vmatprep.mubr.f32.mxu0 0.0
        %462 = vmatmul.mubr.f32.gmra.mrb[0].mxu0 %v384
        %v463 = vpop.f32.mrb[0].mxu0
        %v464 = vadd.f32 0.0, %v463
        %v465 = vpop.f32.mrb[0].mxu0
        %466 = vmatprep.mubr.f32.mxu0 0.0
        %467 = vmatmul.mubr.f32.gmra.mrb[0].mxu0 %v387
        %v468 = vpop.f32.mrb[0].mxu0
        %v469 = vadd.f32 0.0, %v468
        %v470 = vpop.f32.mrb[0].mxu0
        %471 = vmatprep.mubr.f32.mxu0 0.0
        %472 = vmatmul.mubr.f32.gmra.mrb[0].mxu0 %v390
        %v473 = vpop.f32.mrb[0].mxu0
        %v474 = vadd.f32 0.0, %v473
        %v475 = vpop.f32.mrb[0].mxu0
        %476 = vdwg.mxu0
        %477 = vmatprep.subr.mxu0 0.0
        %478 = vmatpush1.msra.mxu0 %v370
        %479 = vmatprep.subr.mxu0 0.0
        %480 = vmatpush1.msra.mxu0 %v371
        %481 = vmatprep.subr.mxu0 0.0
        %482 = vmatpush1.msra.mxu0 %v372
        %483 = vmatprep.subr.mxu0 0.0
        %484 = vmatpush1.msra.mxu0 %v373
        %485 = vmatprep.subr.mxu0 0.0
        %486 = vmatpush1.msra.mxu0 0.0
        %487 = vmatprep.subr.mxu0 0.0
        %488 = vmatpush1.msra.mxu0 0.0
        %489 = vmatprep.subr.mxu0 0.0
        %490 = vmatpush1.msra.mxu0 0.0
        %491 = vmatprep.subr.mxu0 0.0
        %492 = vmatpush1.msra.mxu0 0.0
        %493 = vmatprep.subr.mxu0 0.0
        %494 = vmatpush1.msra.mxu0 0.0
        %495 = vmatprep.subr.mxu0 0.0
        %496 = vmatpush1.msra.mxu0 0.0
        %497 = vmatprep.subr.mxu0 0.0
        %498 = vmatpush1.msra.mxu0 0.0
        %499 = vmatprep.subr.mxu0 0.0
        %500 = vmatpush1.msra.mxu0 0.0
        %501 = vmatprep.subr.mxu0 0.0
        %502 = vmatpush1.msra.mxu0 0.0
        %503 = vmatprep.subr.mxu0 0.0
        %504 = vmatpush1.msra.mxu0 0.0
        %505 = vmatprep.subr.mxu0 0.0
        %506 = vmatpush1.msra.mxu0 0.0
        %507 = vmatprep.subr.mxu0 0.0
        %508 = vmatpush1.msra.mxu0 0.0
        %509 = vmatprep.subr.mxu0 0.0
        %510 = vmatpush1.msra.mxu0 0.0
        %511 = vmatprep.subr.mxu0 0.0
        %512 = vmatpush1.msra.mxu0 0.0
        %513 = vmatprep.subr.mxu0 0.0
        %514 = vmatpush1.msra.mxu0 0.0
        %515 = vmatprep.subr.mxu0 0.0
        %516 = vmatpush1.msra.mxu0 0.0
        %517 = vmatprep.subr.mxu0 0.0
        %518 = vmatpush1.msra.mxu0 0.0
        %519 = vmatprep.subr.mxu0 0.0
        %520 = vmatpush1.msra.mxu0 0.0
        %521 = vmatprep.subr.mxu0 0.0
        %522 = vmatpush1.msra.mxu0 0.0
        %523 = vmatprep.subr.mxu0 0.0
        %524 = vmatpush1.msra.mxu0 0.0
        %525 = vmatprep.subr.mxu0 0.0
        %526 = vmatpush1.msra.mxu0 0.0
        %527 = vmatprep.subr.mxu0 0.0
        %528 = vmatpush1.msra.mxu0 0.0
        %529 = vmatprep.subr.mxu0 0.0
        %530 = vmatpush1.msra.mxu0 0.0
        %531 = vmatprep.subr.mxu0 0.0
        %532 = vmatpush1.msra.mxu0 0.0
        %533 = vmatprep.subr.mxu0 0.0
        %534 = vmatpush1.msra.mxu0 0.0
        %535 = vmatprep.subr.mxu0 0.0
        %536 = vmatpush1.msra.mxu0 0.0
        %537 = vmatprep.subr.mxu0 0.0
        %538 = vmatpush1.msra.mxu0 0.0
        %539 = vmatprep.subr.mxu0 0.0
        %540 = vmatpush1.msra.mxu0 0.0
        %541 = vmatprep.mubr.f32.mxu0 0.0
        %542 = vmatmul.mubr.f32.gmra.mrb[0].mxu0 %v381
        %v543 = vpop.f32.mrb[0].mxu0
        %v544 = vadd.f32 0.0, %v543
        %v545 = vpop.f32.mrb[0].mxu0
        %546 = vmatprep.mubr.f32.mxu0 0.0
        %547 = vmatmul.mubr.f32.gmra.mrb[0].mxu0 %v384
        %v548 = vpop.f32.mrb[0].mxu0
        %v549 = vadd.f32 0.0, %v548
        %v550 = vpop.f32.mrb[0].mxu0
        %551 = vmatprep.mubr.f32.mxu0 0.0
        %552 = vmatmul.mubr.f32.gmra.mrb[0].mxu0 %v387
        %v553 = vpop.f32.mrb[0].mxu0
        %v554 = vadd.f32 0.0, %v553
        %v555 = vpop.f32.mrb[0].mxu0
        %556 = vmatprep.mubr.f32.mxu0 0.0
        %557 = vmatmul.mubr.f32.gmra.mrb[0].mxu0 %v390
        %v558 = vpop.f32.mrb[0].mxu0
        %v559 = vadd.f32 0.0, %v558
        %v560 = vpop.f32.mrb[0].mxu0
        %561 = vdwg.mxu0
        %562 = vmatprep.subr.mxu0 0.0
        %563 = vmatpush1.msra.mxu0 %v375
        %564 = vmatprep.subr.mxu0 0.0
        %565 = vmatpush1.msra.mxu0 %v376
        %566 = vmatprep.subr.mxu0 0.0
        %567 = vmatpush1.msra.mxu0 %v377
        %568 = vmatprep.subr.mxu0 0.0
        %569 = vmatpush1.msra.mxu0 %v378
        %570 = vmatprep.subr.mxu0 0.0
        %571 = vmatpush1.msra.mxu0 0.0
        %572 = vmatprep.subr.mxu0 0.0
        %573 = vmatpush1.msra.mxu0 0.0
        %574 = vmatprep.subr.mxu0 0.0
        %575 = vmatpush1.msra.mxu0 0.0
        %576 = vmatprep.subr.mxu0 0.0
        %577 = vmatpush1.msra.mxu0 0.0
        %578 = vmatprep.subr.mxu0 0.0
        %579 = vmatpush1.msra.mxu0 0.0
        %580 = vmatprep.subr.mxu0 0.0
        %581 = vmatpush1.msra.mxu0 0.0
        %582 = vmatprep.subr.mxu0 0.0
        %583 = vmatpush1.msra.mxu0 0.0
        %584 = vmatprep.subr.mxu0 0.0
        %585 = vmatpush1.msra.mxu0 0.0
        %586 = vmatprep.subr.mxu0 0.0
        %587 = vmatpush1.msra.mxu0 0.0
        %588 = vmatprep.subr.mxu0 0.0
        %589 = vmatpush1.msra.mxu0 0.0
        %590 = vmatprep.subr.mxu0 0.0
        %591 = vmatpush1.msra.mxu0 0.0
        %592 = vmatprep.subr.mxu0 0.0
        %593 = vmatpush1.msra.mxu0 0.0
        %594 = vmatprep.subr.mxu0 0.0
        %595 = vmatpush1.msra.mxu0 0.0
        %596 = vmatprep.subr.mxu0 0.0
        %597 = vmatpush1.msra.mxu0 0.0
        %598 = vmatprep.subr.mxu0 0.0
        %599 = vmatpush1.msra.mxu0 0.0
        %600 = vmatprep.subr.mxu0 0.0
        %601 = vmatpush1.msra.mxu0 0.0
        %602 = vmatprep.subr.mxu0 0.0
        %603 = vmatpush1.msra.mxu0 0.0
        %604 = vmatprep.subr.mxu0 0.0
        %605 = vmatpush1.msra.mxu0 0.0
        %606 = vmatprep.subr.mxu0 0.0
        %607 = vmatpush1.msra.mxu0 0.0
        %608 = vmatprep.subr.mxu0 0.0
        %609 = vmatpush1.msra.mxu0 0.0
        %610 = vmatprep.subr.mxu0 0.0
        %611 = vmatpush1.msra.mxu0 0.0
        %612 = vmatprep.subr.mxu0 0.0
        %613 = vmatpush1.msra.mxu0 0.0
        %614 = vmatprep.subr.mxu0 0.0
        %615 = vmatpush1.msra.mxu0 0.0
        %616 = vmatprep.subr.mxu0 0.0
        %617 = vmatpush1.msra.mxu0 0.0
        %618 = vmatprep.subr.mxu0 0.0
        %619 = vmatpush1.msra.mxu0 0.0
        %620 = vmatprep.subr.mxu0 0.0
        %621 = vmatpush1.msra.mxu0 0.0
        %622 = vmatprep.subr.mxu0 0.0
        %623 = vmatpush1.msra.mxu0 0.0
        %624 = vmatprep.subr.mxu0 0.0
        %625 = vmatpush1.msra.mxu0 0.0
        %626 = vmatprep.mubr.f32.mxu0 0.0
        %627 = vmatmul.mubr.f32.gmra.mrb[0].mxu0 %v381
        %v628 = vpop.f32.mrb[0].mxu0
        %v629 = vadd.f32 0.0, %v628
        %v630 = vpop.f32.mrb[0].mxu0
        %631 = vmatprep.mubr.f32.mxu0 0.0
        %632 = vmatmul.mubr.f32.gmra.mrb[0].mxu0 %v384
        %v633 = vpop.f32.mrb[0].mxu0
        %v634 = vadd.f32 0.0, %v633
        %v635 = vpop.f32.mrb[0].mxu0
        %636 = vmatprep.mubr.f32.mxu0 0.0
        %637 = vmatmul.mubr.f32.gmra.mrb[0].mxu0 %v387
        %v638 = vpop.f32.mrb[0].mxu0
        %v639 = vadd.f32 0.0, %v638
        %v640 = vpop.f32.mrb[0].mxu0
        %641 = vmatprep.mubr.f32.mxu0 0.0
        %642 = vmatmul.mubr.f32.gmra.mrb[0].mxu0 %v390
        %v643 = vpop.f32.mrb[0].mxu0
        %v644 = vadd.f32 0.0, %v643
        %v645 = vpop.f32.mrb[0].mxu0
        %646 = vdwg.mxu0
        %vm647 = vcmask 64512
        %v649 = vsel %vm647, %v459, 0
        %v652 = vsel %vm647, %v544, 0
        %654 = vmatprep.subr.mxu0 0.0
        %655 = vmatpush1.xpose.msra.mxu0 %v652
        %656 = vmatprep.subr.mxu0 0.0
        %657 = vmatpush1.xpose.msra.mxu0 0.0
        %658 = vmatprep.subr.mxu0 0.0
        %659 = vmatpush1.xpose.msra.mxu0 0.0
        %660 = vmatprep.subr.mxu0 0.0
        %661 = vmatpush1.xpose.msra.mxu0 0.0
        %662 = vmatprep.subr.mxu0 0.0
        %663 = vmatpush1.xpose.msra.mxu0 0.0
        %664 = vmatprep.subr.mxu0 0.0
        %665 = vmatpush1.xpose.msra.mxu0 0.0
        %666 = vmatprep.subr.mxu0 0.0
        %667 = vmatpush1.xpose.msra.mxu0 0.0
        %668 = vmatprep.subr.mxu0 0.0
        %669 = vmatpush1.xpose.msra.mxu0 0.0
        %670 = vmatprep.subr.mxu0 0.0
        %671 = vmatpush1.xpose.msra.mxu0 0.0
        %672 = vmatprep.subr.mxu0 0.0
        %673 = vmatpush1.xpose.msra.mxu0 0.0
        %674 = vmatprep.subr.mxu0 0.0
        %675 = vmatpush1.xpose.msra.mxu0 0.0
        %676 = vmatprep.subr.mxu0 0.0
        %677 = vmatpush1.xpose.msra.mxu0 0.0
        %678 = vmatprep.subr.mxu0 0.0
        %679 = vmatpush1.xpose.msra.mxu0 0.0
        %680 = vmatprep.subr.mxu0 0.0
        %681 = vmatpush1.xpose.msra.mxu0 0.0
        %682 = vmatprep.subr.mxu0 0.0
        %683 = vmatpush1.xpose.msra.mxu0 0.0
        %684 = vmatprep.subr.mxu0 0.0
        %685 = vmatpush1.xpose.msra.mxu0 0.0
        %686 = vmatprep.subr.mxu0 0.0
        %687 = vmatpush1.xpose.msra.mxu0 0.0
        %688 = vmatprep.subr.mxu0 0.0
        %689 = vmatpush1.xpose.msra.mxu0 0.0
        %690 = vmatprep.subr.mxu0 0.0
        %691 = vmatpush1.xpose.msra.mxu0 0.0
        %692 = vmatprep.subr.mxu0 0.0
        %693 = vmatpush1.xpose.msra.mxu0 0.0
        %694 = vmatprep.subr.mxu0 0.0
        %695 = vmatpush1.xpose.msra.mxu0 0.0
        %696 = vmatprep.subr.mxu0 0.0
        %697 = vmatpush1.xpose.msra.mxu0 0.0
        %698 = vmatprep.subr.mxu0 0.0
        %699 = vmatpush1.xpose.msra.mxu0 0.0
        %700 = vmatprep.subr.mxu0 0.0
        %701 = vmatpush1.xpose.msra.mxu0 0.0
        %702 = vmatprep.subr.mxu0 0.0
        %703 = vmatpush1.xpose.msra.mxu0 0.0
        %704 = vmatprep.subr.mxu0 0.0
        %705 = vmatpush1.xpose.msra.mxu0 0.0
        %706 = vmatprep.subr.mxu0 0.0
        %707 = vmatpush1.xpose.msra.mxu0 0.0
        %708 = vmatprep.subr.mxu0 0.0
        %709 = vmatpush1.xpose.msra.mxu0 0.0
        %710 = vmatprep.subr.mxu0 0.0
        %711 = vmatpush1.xpose.msra.mxu0 0.0
        %712 = vmatprep.subr.mxu0 0.0
        %713 = vmatpush1.xpose.msra.mxu0 0.0
        %714 = vmatprep.subr.mxu0 0.0
        %715 = vmatpush1.xpose.msra.mxu0 0.0
        %716 = vmatprep.subr.mxu0 0.0
        %717 = vmatpush1.xpose.msra.mxu0 0.0
        %718 = vmatprep.mubr.f32.mxu0 0.0
        %719 = vmatmul.mubr.f32.gmra.mrb[0].mxu0 %v649
        %v720 = vpop.f32.mrb[0].mxu0
        %v721 = vadd.f32 0.0, %v720
        %v722 = vpop.f32.mrb[0].mxu0
        %723 = vdwg.mxu0
        %v725 = vsel %vm647, %v464, 0
        %v728 = vsel %vm647, %v549, 0
        %730 = vmatprep.subr.mxu0 0.0
        %731 = vmatpush1.xpose.msra.mxu0 %v728
        %732 = vmatprep.subr.mxu0 0.0
        %733 = vmatpush1.xpose.msra.mxu0 0.0
        %734 = vmatprep.subr.mxu0 0.0
        %735 = vmatpush1.xpose.msra.mxu0 0.0
        %736 = vmatprep.subr.mxu0 0.0
        %737 = vmatpush1.xpose.msra.mxu0 0.0
        %738 = vmatprep.subr.mxu0 0.0
        %739 = vmatpush1.xpose.msra.mxu0 0.0
        %740 = vmatprep.subr.mxu0 0.0
        %741 = vmatpush1.xpose.msra.mxu0 0.0
        %742 = vmatprep.subr.mxu0 0.0
        %743 = vmatpush1.xpose.msra.mxu0 0.0
        %744 = vmatprep.subr.mxu0 0.0
        %745 = vmatpush1.xpose.msra.mxu0 0.0
        %746 = vmatprep.subr.mxu0 0.0
        %747 = vmatpush1.xpose.msra.mxu0 0.0
        %748 = vmatprep.subr.mxu0 0.0
        %749 = vmatpush1.xpose.msra.mxu0 0.0
        %750 = vmatprep.subr.mxu0 0.0
        %751 = vmatpush1.xpose.msra.mxu0 0.0
        %752 = vmatprep.subr.mxu0 0.0
        %753 = vmatpush1.xpose.msra.mxu0 0.0
        %754 = vmatprep.subr.mxu0 0.0
        %755 = vmatpush1.xpose.msra.mxu0 0.0
        %756 = vmatprep.subr.mxu0 0.0
        %757 = vmatpush1.xpose.msra.mxu0 0.0
        %758 = vmatprep.subr.mxu0 0.0
        %759 = vmatpush1.xpose.msra.mxu0 0.0
        %760 = vmatprep.subr.mxu0 0.0
        %761 = vmatpush1.xpose.msra.mxu0 0.0
        %762 = vmatprep.subr.mxu0 0.0
        %763 = vmatpush1.xpose.msra.mxu0 0.0
        %764 = vmatprep.subr.mxu0 0.0
        %765 = vmatpush1.xpose.msra.mxu0 0.0
        %766 = vmatprep.subr.mxu0 0.0
        %767 = vmatpush1.xpose.msra.mxu0 0.0
        %768 = vmatprep.subr.mxu0 0.0
        %769 = vmatpush1.xpose.msra.mxu0 0.0
        %770 = vmatprep.subr.mxu0 0.0
        %771 = vmatpush1.xpose.msra.mxu0 0.0
        %772 = vmatprep.subr.mxu0 0.0
        %773 = vmatpush1.xpose.msra.mxu0 0.0
        %774 = vmatprep.subr.mxu0 0.0
        %775 = vmatpush1.xpose.msra.mxu0 0.0
        %776 = vmatprep.subr.mxu0 0.0
        %777 = vmatpush1.xpose.msra.mxu0 0.0
        %778 = vmatprep.subr.mxu0 0.0
        %779 = vmatpush1.xpose.msra.mxu0 0.0
        %780 = vmatprep.subr.mxu0 0.0
        %781 = vmatpush1.xpose.msra.mxu0 0.0
        %782 = vmatprep.subr.mxu0 0.0
        %783 = vmatpush1.xpose.msra.mxu0 0.0
        %784 = vmatprep.subr.mxu0 0.0
        %785 = vmatpush1.xpose.msra.mxu0 0.0
        %786 = vmatprep.subr.mxu0 0.0
        %787 = vmatpush1.xpose.msra.mxu0 0.0
        %788 = vmatprep.subr.mxu0 0.0
        %789 = vmatpush1.xpose.msra.mxu0 0.0
        %790 = vmatprep.subr.mxu0 0.0
        %791 = vmatpush1.xpose.msra.mxu0 0.0
        %792 = vmatprep.subr.mxu0 0.0
        %793 = vmatpush1.xpose.msra.mxu0 0.0
        %794 = vmatprep.mubr.f32.mxu0 0.0
        %795 = vmatmul.mubr.f32.gmra.mrb[0].mxu0 %v725
        %v796 = vpop.f32.mrb[0].mxu0
        %v797 = vadd.f32 0.0, %v796
        %v798 = vpop.f32.mrb[0].mxu0
        %799 = vdwg.mxu0
        %v801 = vsel %vm647, %v469, 0
        %v804 = vsel %vm647, %v554, 0
        %806 = vmatprep.subr.mxu0 0.0
        %807 = vmatpush1.xpose.msra.mxu0 %v804
        %808 = vmatprep.subr.mxu0 0.0
        %809 = vmatpush1.xpose.msra.mxu0 0.0
        %810 = vmatprep.subr.mxu0 0.0
        %811 = vmatpush1.xpose.msra.mxu0 0.0
        %812 = vmatprep.subr.mxu0 0.0
        %813 = vmatpush1.xpose.msra.mxu0 0.0
        %814 = vmatprep.subr.mxu0 0.0
        %815 = vmatpush1.xpose.msra.mxu0 0.0
        %816 = vmatprep.subr.mxu0 0.0
        %817 = vmatpush1.xpose.msra.mxu0 0.0
        %818 = vmatprep.subr.mxu0 0.0
        %819 = vmatpush1.xpose.msra.mxu0 0.0
        %820 = vmatprep.subr.mxu0 0.0
        %821 = vmatpush1.xpose.msra.mxu0 0.0
        %822 = vmatprep.subr.mxu0 0.0
        %823 = vmatpush1.xpose.msra.mxu0 0.0
        %824 = vmatprep.subr.mxu0 0.0
        %825 = vmatpush1.xpose.msra.mxu0 0.0
        %826 = vmatprep.subr.mxu0 0.0
        %827 = vmatpush1.xpose.msra.mxu0 0.0
        %828 = vmatprep.subr.mxu0 0.0
        %829 = vmatpush1.xpose.msra.mxu0 0.0
        %830 = vmatprep.subr.mxu0 0.0
        %831 = vmatpush1.xpose.msra.mxu0 0.0
        %832 = vmatprep.subr.mxu0 0.0
        %833 = vmatpush1.xpose.msra.mxu0 0.0
        %834 = vmatprep.subr.mxu0 0.0
        %835 = vmatpush1.xpose.msra.mxu0 0.0
        %836 = vmatprep.subr.mxu0 0.0
        %837 = vmatpush1.xpose.msra.mxu0 0.0
        %838 = vmatprep.subr.mxu0 0.0
        %839 = vmatpush1.xpose.msra.mxu0 0.0
        %840 = vmatprep.subr.mxu0 0.0
        %841 = vmatpush1.xpose.msra.mxu0 0.0
        %842 = vmatprep.subr.mxu0 0.0
        %843 = vmatpush1.xpose.msra.mxu0 0.0
        %844 = vmatprep.subr.mxu0 0.0
        %845 = vmatpush1.xpose.msra.mxu0 0.0
        %846 = vmatprep.subr.mxu0 0.0
        %847 = vmatpush1.xpose.msra.mxu0 0.0
        %848 = vmatprep.subr.mxu0 0.0
        %849 = vmatpush1.xpose.msra.mxu0 0.0
        %850 = vmatprep.subr.mxu0 0.0
        %851 = vmatpush1.xpose.msra.mxu0 0.0
        %852 = vmatprep.subr.mxu0 0.0
        %853 = vmatpush1.xpose.msra.mxu0 0.0
        %854 = vmatprep.subr.mxu0 0.0
        %855 = vmatpush1.xpose.msra.mxu0 0.0
        %856 = vmatprep.subr.mxu0 0.0
        %857 = vmatpush1.xpose.msra.mxu0 0.0
        %858 = vmatprep.subr.mxu0 0.0
        %859 = vmatpush1.xpose.msra.mxu0 0.0
        %860 = vmatprep.subr.mxu0 0.0
        %861 = vmatpush1.xpose.msra.mxu0 0.0
        %862 = vmatprep.subr.mxu0 0.0
        %863 = vmatpush1.xpose.msra.mxu0 0.0
        %864 = vmatprep.subr.mxu0 0.0
        %865 = vmatpush1.xpose.msra.mxu0 0.0
        %866 = vmatprep.subr.mxu0 0.0
        %867 = vmatpush1.xpose.msra.mxu0 0.0
        %868 = vmatprep.subr.mxu0 0.0
        %869 = vmatpush1.xpose.msra.mxu0 0.0
        %870 = vmatprep.mubr.f32.mxu0 0.0
        %871 = vmatmul.mubr.f32.gmra.mrb[0].mxu0 %v801
        %v872 = vpop.f32.mrb[0].mxu0
        %v873 = vadd.f32 0.0, %v872
        %v874 = vpop.f32.mrb[0].mxu0
        %875 = vdwg.mxu0
        %v877 = vsel %vm647, %v474, 0
        %v880 = vsel %vm647, %v559, 0
        %882 = vmatprep.subr.mxu0 0.0
        %883 = vmatpush1.xpose.msra.mxu0 %v880
        %884 = vmatprep.subr.mxu0 0.0
        %885 = vmatpush1.xpose.msra.mxu0 0.0
        %886 = vmatprep.subr.mxu0 0.0
        %887 = vmatpush1.xpose.msra.mxu0 0.0
        %888 = vmatprep.subr.mxu0 0.0
        %889 = vmatpush1.xpose.msra.mxu0 0.0
        %890 = vmatprep.subr.mxu0 0.0
        %891 = vmatpush1.xpose.msra.mxu0 0.0
        %892 = vmatprep.subr.mxu0 0.0
        %893 = vmatpush1.xpose.msra.mxu0 0.0
        %894 = vmatprep.subr.mxu0 0.0
        %895 = vmatpush1.xpose.msra.mxu0 0.0
        %896 = vmatprep.subr.mxu0 0.0
        %897 = vmatpush1.xpose.msra.mxu0 0.0
        %898 = vmatprep.subr.mxu0 0.0
        %899 = vmatpush1.xpose.msra.mxu0 0.0
        %900 = vmatprep.subr.mxu0 0.0
        %901 = vmatpush1.xpose.msra.mxu0 0.0
        %902 = vmatprep.subr.mxu0 0.0
        %903 = vmatpush1.xpose.msra.mxu0 0.0
        %904 = vmatprep.subr.mxu0 0.0
        %905 = vmatpush1.xpose.msra.mxu0 0.0
        %906 = vmatprep.subr.mxu0 0.0
        %907 = vmatpush1.xpose.msra.mxu0 0.0
        %908 = vmatprep.subr.mxu0 0.0
        %909 = vmatpush1.xpose.msra.mxu0 0.0
        %910 = vmatprep.subr.mxu0 0.0
        %911 = vmatpush1.xpose.msra.mxu0 0.0
        %912 = vmatprep.subr.mxu0 0.0
        %913 = vmatpush1.xpose.msra.mxu0 0.0
        %914 = vmatprep.subr.mxu0 0.0
        %915 = vmatpush1.xpose.msra.mxu0 0.0
        %916 = vmatprep.subr.mxu0 0.0
        %917 = vmatpush1.xpose.msra.mxu0 0.0
        %918 = vmatprep.subr.mxu0 0.0
        %919 = vmatpush1.xpose.msra.mxu0 0.0
        %920 = vmatprep.subr.mxu0 0.0
        %921 = vmatpush1.xpose.msra.mxu0 0.0
        %922 = vmatprep.subr.mxu0 0.0
        %923 = vmatpush1.xpose.msra.mxu0 0.0
        %924 = vmatprep.subr.mxu0 0.0
        %925 = vmatpush1.xpose.msra.mxu0 0.0
        %926 = vmatprep.subr.mxu0 0.0
        %927 = vmatpush1.xpose.msra.mxu0 0.0
        %928 = vmatprep.subr.mxu0 0.0
        %929 = vmatpush1.xpose.msra.mxu0 0.0
        %930 = vmatprep.subr.mxu0 0.0
        %931 = vmatpush1.xpose.msra.mxu0 0.0
        %932 = vmatprep.subr.mxu0 0.0
        %933 = vmatpush1.xpose.msra.mxu0 0.0
        %934 = vmatprep.subr.mxu0 0.0
        %935 = vmatpush1.xpose.msra.mxu0 0.0
        %936 = vmatprep.subr.mxu0 0.0
        %937 = vmatpush1.xpose.msra.mxu0 0.0
        %938 = vmatprep.subr.mxu0 0.0
        %939 = vmatpush1.xpose.msra.mxu0 0.0
        %940 = vmatprep.subr.mxu0 0.0
        %941 = vmatpush1.xpose.msra.mxu0 0.0
        %942 = vmatprep.subr.mxu0 0.0
        %943 = vmatpush1.xpose.msra.mxu0 0.0
        %944 = vmatprep.subr.mxu0 0.0
        %945 = vmatpush1.xpose.msra.mxu0 0.0
        %946 = vmatprep.mubr.f32.mxu0 0.0
        %947 = vmatmul.mubr.f32.gmra.mrb[0].mxu0 %v877
        %v948 = vpop.f32.mrb[0].mxu0
        %v949 = vadd.f32 0.0, %v948
        %v950 = vpop.f32.mrb[0].mxu0
        %951 = vdwg.mxu0
        %v952 = vmul.f32 %v721, 0.35355338
        %v953 = vmul.f32 %v797, 0.35355338
        %v954 = vmul.f32 %v873, 0.35355338
        %v955 = vmul.f32 %v949, 0.35355338
        %v956 = vsel %vm647, %v952, -inf
        %957 = vmax.xlane.f32.xlu0 %v956
        %v958 = vpop.xlane.xlu0 %957
        %v959 = vsel %vm647, %v953, -inf
        %960 = vmax.xlane.f32.xlu0 %v959
        %v961 = vpop.xlane.xlu0 %960
        %v962 = vsel %vm647, %v954, -inf
        %963 = vmax.xlane.f32.xlu0 %v962
        %v964 = vpop.xlane.xlu0 %963
        %v965 = vsel %vm647, %v955, -inf
        %966 = vmax.xlane.f32.xlu0 %v965
        %v967 = vpop.xlane.xlu0 %966
        %v968 = vsub.f32 %v952, %v958
        %v969 = vsub.f32 %v953, %v961
        %v970 = vsub.f32 %v954, %v964
        %v971 = vsub.f32 %v955, %v967
        %v972 = vmul.f32 %v968, 1.442695
        %v973 = vpow.pop %v972
        %v974 = vmul.f32 %v969, 1.442695
        %v975 = vpow.pop %v974
        %v976 = vmul.f32 %v970, 1.442695
        %v977 = vpow.pop %v976
        %v978 = vmul.f32 %v971, 1.442695
        %v979 = vpow.pop %v978
        %v980 = vsel %vm647, %v973, 0.0
        %981 = vadd.xlane.f32.xlu0 %v980
        %v982 = vpop.xlane.xlu0 %981
        %v983 = vsel %vm647, %v975, 0.0
        %984 = vadd.xlane.f32.xlu0 %v983
        %v985 = vpop.xlane.xlu0 %984
        %v986 = vsel %vm647, %v977, 0.0
        %987 = vadd.xlane.f32.xlu0 %v986
        %v988 = vpop.xlane.xlu0 %987
        %v989 = vsel %vm647, %v979, 0.0
        %990 = vadd.xlane.f32.xlu0 %v989
        %v991 = vpop.xlane.xlu0 %990
        %v992 = vrcp.pop %v982
        %v993 = vrcp.pop %v985
        %v994 = vrcp.pop %v988
        %v995 = vrcp.pop %v991
        %v996 = vmul.f32 %v973, %v992
        %v997 = vmul.f32 %v975, %v993
        %v998 = vmul.f32 %v977, %v994
        %v999 = vmul.f32 %v979, %v995
        %v1001 = vsel %vm647, %v996, 0
        %1003 = vmatprep.subr.mxu0 0.0
        %1004 = vmatpush1.msra.mxu0 %v629
        %1005 = vmatprep.subr.mxu0 0.0
        %1006 = vmatpush1.msra.mxu0 0.0
        %1007 = vmatprep.subr.mxu0 0.0
        %1008 = vmatpush1.msra.mxu0 0.0
        %1009 = vmatprep.subr.mxu0 0.0
        %1010 = vmatpush1.msra.mxu0 0.0
        %1011 = vmatprep.subr.mxu0 0.0
        %1012 = vmatpush1.msra.mxu0 0.0
        %1013 = vmatprep.subr.mxu0 0.0
        %1014 = vmatpush1.msra.mxu0 0.0
        %1015 = vmatprep.subr.mxu0 0.0
        %1016 = vmatpush1.msra.mxu0 0.0
        %1017 = vmatprep.subr.mxu0 0.0
        %1018 = vmatpush1.msra.mxu0 0.0
        %1019 = vmatprep.subr.mxu0 0.0
        %1020 = vmatpush1.msra.mxu0 0.0
        %1021 = vmatprep.subr.mxu0 0.0
        %1022 = vmatpush1.msra.mxu0 0.0
        %1023 = vmatprep.subr.mxu0 0.0
        %1024 = vmatpush1.msra.mxu0 0.0
        %1025 = vmatprep.subr.mxu0 0.0
        %1026 = vmatpush1.msra.mxu0 0.0
        %1027 = vmatprep.subr.mxu0 0.0
        %1028 = vmatpush1.msra.mxu0 0.0
        %1029 = vmatprep.subr.mxu0 0.0
        %1030 = vmatpush1.msra.mxu0 0.0
        %1031 = vmatprep.subr.mxu0 0.0
        %1032 = vmatpush1.msra.mxu0 0.0
        %1033 = vmatprep.subr.mxu0 0.0
        %1034 = vmatpush1.msra.mxu0 0.0
        %1035 = vmatprep.subr.mxu0 0.0
        %1036 = vmatpush1.msra.mxu0 0.0
        %1037 = vmatprep.subr.mxu0 0.0
        %1038 = vmatpush1.msra.mxu0 0.0
        %1039 = vmatprep.subr.mxu0 0.0
        %1040 = vmatpush1.msra.mxu0 0.0
        %1041 = vmatprep.subr.mxu0 0.0
        %1042 = vmatpush1.msra.mxu0 0.0
        %1043 = vmatprep.subr.mxu0 0.0
        %1044 = vmatpush1.msra.mxu0 0.0
        %1045 = vmatprep.subr.mxu0 0.0
        %1046 = vmatpush1.msra.mxu0 0.0
        %1047 = vmatprep.subr.mxu0 0.0
        %1048 = vmatpush1.msra.mxu0 0.0
        %1049 = vmatprep.subr.mxu0 0.0
        %1050 = vmatpush1.msra.mxu0 0.0
        %1051 = vmatprep.subr.mxu0 0.0
        %1052 = vmatpush1.msra.mxu0 0.0
        %1053 = vmatprep.subr.mxu0 0.0
        %1054 = vmatpush1.msra.mxu0 0.0
        %1055 = vmatprep.subr.mxu0 0.0
        %1056 = vmatpush1.msra.mxu0 0.0
        %1057 = vmatprep.subr.mxu0 0.0
        %1058 = vmatpush1.msra.mxu0 0.0
        %1059 = vmatprep.subr.mxu0 0.0
        %1060 = vmatpush1.msra.mxu0 0.0
        %1061 = vmatprep.subr.mxu0 0.0
        %1062 = vmatpush1.msra.mxu0 0.0
        %1063 = vmatprep.subr.mxu0 0.0
        %1064 = vmatpush1.msra.mxu0 0.0
        %1065 = vmatprep.subr.mxu0 0.0
        %1066 = vmatpush1.msra.mxu0 0.0
        %1067 = vmatprep.mubr.f32.mxu0 0.0
        %1068 = vmatmul.mubr.f32.gmra.mrb[0].mxu0 %v1001
        %v1069 = vpop.f32.mrb[0].mxu0
        %v1070 = vadd.f32 0.0, %v1069
        %v1071 = vpop.f32.mrb[0].mxu0
        %1072 = vdwg.mxu0
        %v1074 = vsel %vm647, %v997, 0
        %1076 = vmatprep.subr.mxu0 0.0
        %1077 = vmatpush1.msra.mxu0 %v634
        %1078 = vmatprep.subr.mxu0 0.0
        %1079 = vmatpush1.msra.mxu0 0.0
        %1080 = vmatprep.subr.mxu0 0.0
        %1081 = vmatpush1.msra.mxu0 0.0
        %1082 = vmatprep.subr.mxu0 0.0
        %1083 = vmatpush1.msra.mxu0 0.0
        %1084 = vmatprep.subr.mxu0 0.0
        %1085 = vmatpush1.msra.mxu0 0.0
        %1086 = vmatprep.subr.mxu0 0.0
        %1087 = vmatpush1.msra.mxu0 0.0
        %1088 = vmatprep.subr.mxu0 0.0
        %1089 = vmatpush1.msra.mxu0 0.0
        %1090 = vmatprep.subr.mxu0 0.0
        %1091 = vmatpush1.msra.mxu0 0.0
        %1092 = vmatprep.subr.mxu0 0.0
        %1093 = vmatpush1.msra.mxu0 0.0
        %1094 = vmatprep.subr.mxu0 0.0
        %1095 = vmatpush1.msra.mxu0 0.0
        %1096 = vmatprep.subr.mxu0 0.0
        %1097 = vmatpush1.msra.mxu0 0.0
        %1098 = vmatprep.subr.mxu0 0.0
        %1099 = vmatpush1.msra.mxu0 0.0
        %1100 = vmatprep.subr.mxu0 0.0
        %1101 = vmatpush1.msra.mxu0 0.0
        %1102 = vmatprep.subr.mxu0 0.0
        %1103 = vmatpush1.msra.mxu0 0.0
        %1104 = vmatprep.subr.mxu0 0.0
        %1105 = vmatpush1.msra.mxu0 0.0
        %1106 = vmatprep.subr.mxu0 0.0
        %1107 = vmatpush1.msra.mxu0 0.0
        %1108 = vmatprep.subr.mxu0 0.0
        %1109 = vmatpush1.msra.mxu0 0.0
        %1110 = vmatprep.subr.mxu0 0.0
        %1111 = vmatpush1.msra.mxu0 0.0
        %1112 = vmatprep.subr.mxu0 0.0
        %1113 = vmatpush1.msra.mxu0 0.0
        %1114 = vmatprep.subr.mxu0 0.0
        %1115 = vmatpush1.msra.mxu0 0.0
        %1116 = vmatprep.subr.mxu0 0.0
        %1117 = vmatpush1.msra.mxu0 0.0
        %1118 = vmatprep.subr.mxu0 0.0
        %1119 = vmatpush1.msra.mxu0 0.0
        %1120 = vmatprep.subr.mxu0 0.0
        %1121 = vmatpush1.msra.mxu0 0.0
        %1122 = vmatprep.subr.mxu0 0.0
        %1123 = vmatpush1.msra.mxu0 0.0
        %1124 = vmatprep.subr.mxu0 0.0
        %1125 = vmatpush1.msra.mxu0 0.0
        %1126 = vmatprep.subr.mxu0 0.0
        %1127 = vmatpush1.msra.mxu0 0.0
        %1128 = vmatprep.subr.mxu0 0.0
        %1129 = vmatpush1.msra.mxu0 0.0
        %1130 = vmatprep.subr.mxu0 0.0
        %1131 = vmatpush1.msra.mxu0 0.0
        %1132 = vmatprep.subr.mxu0 0.0
        %1133 = vmatpush1.msra.mxu0 0.0
        %1134 = vmatprep.subr.mxu0 0.0
        %1135 = vmatpush1.msra.mxu0 0.0
        %1136 = vmatprep.subr.mxu0 0.0
        %1137 = vmatpush1.msra.mxu0 0.0
        %1138 = vmatprep.subr.mxu0 0.0
        %1139 = vmatpush1.msra.mxu0 0.0
        %1140 = vmatprep.mubr.f32.mxu0 0.0
        %1141 = vmatmul.mubr.f32.gmra.mrb[0].mxu0 %v1074
        %v1142 = vpop.f32.mrb[0].mxu0
        %v1143 = vadd.f32 0.0, %v1142
        %v1144 = vpop.f32.mrb[0].mxu0
        %1145 = vdwg.mxu0
        %v1147 = vsel %vm647, %v998, 0
        %1149 = vmatprep.subr.mxu0 0.0
        %1150 = vmatpush1.msra.mxu0 %v639
        %1151 = vmatprep.subr.mxu0 0.0
        %1152 = vmatpush1.msra.mxu0 0.0
        %1153 = vmatprep.subr.mxu0 0.0
        %1154 = vmatpush1.msra.mxu0 0.0
        %1155 = vmatprep.subr.mxu0 0.0
        %1156 = vmatpush1.msra.mxu0 0.0
        %1157 = vmatprep.subr.mxu0 0.0
        %1158 = vmatpush1.msra.mxu0 0.0
        %1159 = vmatprep.subr.mxu0 0.0
        %1160 = vmatpush1.msra.mxu0 0.0
        %1161 = vmatprep.subr.mxu0 0.0
        %1162 = vmatpush1.msra.mxu0 0.0
        %1163 = vmatprep.subr.mxu0 0.0
        %1164 = vmatpush1.msra.mxu0 0.0
        %1165 = vmatprep.subr.mxu0 0.0
        %1166 = vmatpush1.msra.mxu0 0.0
        %1167 = vmatprep.subr.mxu0 0.0
        %1168 = vmatpush1.msra.mxu0 0.0
        %1169 = vmatprep.subr.mxu0 0.0
        %1170 = vmatpush1.msra.mxu0 0.0
        %1171 = vmatprep.subr.mxu0 0.0
        %1172 = vmatpush1.msra.mxu0 0.0
        %1173 = vmatprep.subr.mxu0 0.0
        %1174 = vmatpush1.msra.mxu0 0.0
        %1175 = vmatprep.subr.mxu0 0.0
        %1176 = vmatpush1.msra.mxu0 0.0
        %1177 = vmatprep.subr.mxu0 0.0
        %1178 = vmatpush1.msra.mxu0 0.0
        %1179 = vmatprep.subr.mxu0 0.0
        %1180 = vmatpush1.msra.mxu0 0.0
        %1181 = vmatprep.subr.mxu0 0.0
        %1182 = vmatpush1.msra.mxu0 0.0
        %1183 = vmatprep.subr.mxu0 0.0
        %1184 = vmatpush1.msra.mxu0 0.0
        %1185 = vmatprep.subr.mxu0 0.0
        %1186 = vmatpush1.msra.mxu0 0.0
        %1187 = vmatprep.subr.mxu0 0.0
        %1188 = vmatpush1.msra.mxu0 0.0
        %1189 = vmatprep.subr.mxu0 0.0
        %1190 = vmatpush1.msra.mxu0 0.0
        %1191 = vmatprep.subr.mxu0 0.0
        %1192 = vmatpush1.msra.mxu0 0.0
        %1193 = vmatprep.subr.mxu0 0.0
        %1194 = vmatpush1.msra.mxu0 0.0
        %1195 = vmatprep.subr.mxu0 0.0
        %1196 = vmatpush1.msra.mxu0 0.0
        %1197 = vmatprep.subr.mxu0 0.0
        %1198 = vmatpush1.msra.mxu0 0.0
        %1199 = vmatprep.subr.mxu0 0.0
        %1200 = vmatpush1.msra.mxu0 0.0
        %1201 = vmatprep.subr.mxu0 0.0
        %1202 = vmatpush1.msra.mxu0 0.0
        %1203 = vmatprep.subr.mxu0 0.0
        %1204 = vmatpush1.msra.mxu0 0.0
        %1205 = vmatprep.subr.mxu0 0.0
        %1206 = vmatpush1.msra.mxu0 0.0
        %1207 = vmatprep.subr.mxu0 0.0
        %1208 = vmatpush1.msra.mxu0 0.0
        %1209 = vmatprep.subr.mxu0 0.0
        %1210 = vmatpush1.msra.mxu0 0.0
        %1211 = vmatprep.subr.mxu0 0.0
        %1212 = vmatpush1.msra.mxu0 0.0
        %1213 = vmatprep.mubr.f32.mxu0 0.0
        %1214 = vmatmul.mubr.f32.gmra.mrb[0].mxu0 %v1147
        %v1215 = vpop.f32.mrb[0].mxu0
        %v1216 = vadd.f32 0.0, %v1215
        %v1217 = vpop.f32.mrb[0].mxu0
        %1218 = vdwg.mxu0
        %v1220 = vsel %vm647, %v999, 0
        %1222 = vmatprep.subr.mxu0 0.0
        %1223 = vmatpush1.msra.mxu0 %v644
        %1224 = vmatprep.subr.mxu0 0.0
        %1225 = vmatpush1.msra.mxu0 0.0
        %1226 = vmatprep.subr.mxu0 0.0
        %1227 = vmatpush1.msra.mxu0 0.0
        %1228 = vmatprep.subr.mxu0 0.0
        %1229 = vmatpush1.msra.mxu0 0.0
        %1230 = vmatprep.subr.mxu0 0.0
        %1231 = vmatpush1.msra.mxu0 0.0
        %1232 = vmatprep.subr.mxu0 0.0
        %1233 = vmatpush1.msra.mxu0 0.0
        %1234 = vmatprep.subr.mxu0 0.0
        %1235 = vmatpush1.msra.mxu0 0.0
        %1236 = vmatprep.subr.mxu0 0.0
        %1237 = vmatpush1.msra.mxu0 0.0
        %1238 = vmatprep.subr.mxu0 0.0
        %1239 = vmatpush1.msra.mxu0 0.0
        %1240 = vmatprep.subr.mxu0 0.0
        %1241 = vmatpush1.msra.mxu0 0.0
        %1242 = vmatprep.subr.mxu0 0.0
        %1243 = vmatpush1.msra.mxu0 0.0
        %1244 = vmatprep.subr.mxu0 0.0
        %1245 = vmatpush1.msra.mxu0 0.0
        %1246 = vmatprep.subr.mxu0 0.0
        %1247 = vmatpush1.msra.mxu0 0.0
        %1248 = vmatprep.subr.mxu0 0.0
        %1249 = vmatpush1.msra.mxu0 0.0
        %1250 = vmatprep.subr.mxu0 0.0
        %1251 = vmatpush1.msra.mxu0 0.0
        %1252 = vmatprep.subr.mxu0 0.0
        %1253 = vmatpush1.msra.mxu0 0.0
        %1254 = vmatprep.subr.mxu0 0.0
        %1255 = vmatpush1.msra.mxu0 0.0
        %1256 = vmatprep.subr.mxu0 0.0
        %1257 = vmatpush1.msra.mxu0 0.0
        %1258 = vmatprep.subr.mxu0 0.0
        %1259 = vmatpush1.msra.mxu0 0.0
        %1260 = vmatprep.subr.mxu0 0.0
        %1261 = vmatpush1.msra.mxu0 0.0
        %1262 = vmatprep.subr.mxu0 0.0
        %1263 = vmatpush1.msra.mxu0 0.0
        %1264 = vmatprep.subr.mxu0 0.0
        %1265 = vmatpush1.msra.mxu0 0.0
        %1266 = vmatprep.subr.mxu0 0.0
        %1267 = vmatpush1.msra.mxu0 0.0
        %1268 = vmatprep.subr.mxu0 0.0
        %1269 = vmatpush1.msra.mxu0 0.0
        %1270 = vmatprep.subr.mxu0 0.0
        %1271 = vmatpush1.msra.mxu0 0.0
        %1272 = vmatprep.subr.mxu0 0.0
        %1273 = vmatpush1.msra.mxu0 0.0
        %1274 = vmatprep.subr.mxu0 0.0
        %1275 = vmatpush1.msra.mxu0 0.0
        %1276 = vmatprep.subr.mxu0 0.0
        %1277 = vmatpush1.msra.mxu0 0.0
        %1278 = vmatprep.subr.mxu0 0.0
        %1279 = vmatpush1.msra.mxu0 0.0
        %1280 = vmatprep.subr.mxu0 0.0
        %1281 = vmatpush1.msra.mxu0 0.0
        %1282 = vmatprep.subr.mxu0 0.0
        %1283 = vmatpush1.msra.mxu0 0.0
        %1284 = vmatprep.subr.mxu0 0.0
        %1285 = vmatpush1.msra.mxu0 0.0
        %1286 = vmatprep.mubr.f32.mxu0 0.0
        %1287 = vmatmul.mubr.f32.gmra.mrb[0].mxu0 %v1220
        %v1288 = vpop.f32.mrb[0].mxu0
        %v1289 = vadd.f32 0.0, %v1288
        %v1290 = vpop.f32.mrb[0].mxu0
        %1291 = vdwg.mxu0
        %s1292 = scalar_lea.vmem %s3, 32
        %v1293 = vld [vmem:[%s1292] sm:$0xff]
        %v1294 = vld [vmem:[%s1292 + $0x8] sm:$0xff]
        %v1295 = vld [vmem:[%s1292 + $0x10] sm:$0xff]
        %v1296 = vld [vmem:[%s1292 + $0x18] sm:$0xff]
        %s1297 = scalar_lea.vmem %s3, 160
        %v1298 = vld [vmem:[%s1297] sm:$0xff]
        %v1299 = vld [vmem:[%s1297 + $0x8] sm:$0xff]
        %v1300 = vld [vmem:[%s1297 + $0x10] sm:$0xff]
        %v1301 = vld [vmem:[%s1297 + $0x18] sm:$0xff]
        %s1302 = scalar_lea.vmem %s3, 288
        %v1303 = vld [vmem:[%s1302] sm:$0xff]
        %v1304 = vld [vmem:[%s1302 + $0x8] sm:$0xff]
        %v1305 = vld [vmem:[%s1302 + $0x10] sm:$0xff]
        %v1306 = vld [vmem:[%s1302 + $0x18] sm:$0xff]
        %s1307 = scalar_lea.vmem %s4, 8
        %v1308 = vld [vmem:[%s1307] sm:$0xff]
        %1309 = vmatprep.subr.mxu0 0.0
        %1310 = vmatpush1.msra.mxu0 %v1293
        %1311 = vmatprep.subr.mxu0 0.0
        %1312 = vmatpush1.msra.mxu0 %v1294
        %1313 = vmatprep.subr.mxu0 0.0
        %1314 = vmatpush1.msra.mxu0 %v1295
        %1315 = vmatprep.subr.mxu0 0.0
        %1316 = vmatpush1.msra.mxu0 %v1296
        %1317 = vmatprep.subr.mxu0 0.0
        %1318 = vmatpush1.msra.mxu0 0.0
        %1319 = vmatprep.subr.mxu0 0.0
        %1320 = vmatpush1.msra.mxu0 0.0
        %1321 = vmatprep.subr.mxu0 0.0
        %1322 = vmatpush1.msra.mxu0 0.0
        %1323 = vmatprep.subr.mxu0 0.0
        %1324 = vmatpush1.msra.mxu0 0.0
        %1325 = vmatprep.subr.mxu0 0.0
        %1326 = vmatpush1.msra.mxu0 0.0
        %1327 = vmatprep.subr.mxu0 0.0
        %1328 = vmatpush1.msra.mxu0 0.0
        %1329 = vmatprep.subr.mxu0 0.0
        %1330 = vmatpush1.msra.mxu0 0.0
        %1331 = vmatprep.subr.mxu0 0.0
        %1332 = vmatpush1.msra.mxu0 0.0
        %1333 = vmatprep.subr.mxu0 0.0
        %1334 = vmatpush1.msra.mxu0 0.0
        %1335 = vmatprep.subr.mxu0 0.0
        %1336 = vmatpush1.msra.mxu0 0.0
        %1337 = vmatprep.subr.mxu0 0.0
        %1338 = vmatpush1.msra.mxu0 0.0
        %1339 = vmatprep.subr.mxu0 0.0
        %1340 = vmatpush1.msra.mxu0 0.0
        %1341 = vmatprep.subr.mxu0 0.0
        %1342 = vmatpush1.msra.mxu0 0.0
        %1343 = vmatprep.subr.mxu0 0.0
        %1344 = vmatpush1.msra.mxu0 0.0
        %1345 = vmatprep.subr.mxu0 0.0
        %1346 = vmatpush1.msra.mxu0 0.0
        %1347 = vmatprep.subr.mxu0 0.0
        %1348 = vmatpush1.msra.mxu0 0.0
        %1349 = vmatprep.subr.mxu0 0.0
        %1350 = vmatpush1.msra.mxu0 0.0
        %1351 = vmatprep.subr.mxu0 0.0
        %1352 = vmatpush1.msra.mxu0 0.0
        %1353 = vmatprep.subr.mxu0 0.0
        %1354 = vmatpush1.msra.mxu0 0.0
        %1355 = vmatprep.subr.mxu0 0.0
        %1356 = vmatpush1.msra.mxu0 0.0
        %1357 = vmatprep.subr.mxu0 0.0
        %1358 = vmatpush1.msra.mxu0 0.0
        %1359 = vmatprep.subr.mxu0 0.0
        %1360 = vmatpush1.msra.mxu0 0.0
        %1361 = vmatprep.subr.mxu0 0.0
        %1362 = vmatpush1.msra.mxu0 0.0
        %1363 = vmatprep.subr.mxu0 0.0
        %1364 = vmatpush1.msra.mxu0 0.0
        %1365 = vmatprep.subr.mxu0 0.0
        %1366 = vmatpush1.msra.mxu0 0.0
        %1367 = vmatprep.subr.mxu0 0.0
        %1368 = vmatpush1.msra.mxu0 0.0
        %1369 = vmatprep.subr.mxu0 0.0
        %1370 = vmatpush1.msra.mxu0 0.0
        %1371 = vmatprep.subr.mxu0 0.0
        %1372 = vmatpush1.msra.mxu0 0.0
        %1373 = vmatprep.mubr.f32.mxu0 0.0
        %1374 = vmatmul.mubr.f32.gmra.mrb[0].mxu0 %v381
        %v1375 = vpop.f32.mrb[0].mxu0
        %v1376 = vadd.f32 0.0, %v1375
        %v1377 = vpop.f32.mrb[0].mxu0
        %1378 = vmatprep.mubr.f32.mxu0 0.0
        %1379 = vmatmul.mubr.f32.gmra.mrb[0].mxu0 %v384
        %v1380 = vpop.f32.mrb[0].mxu0
        %v1381 = vadd.f32 0.0, %v1380
        %v1382 = vpop.f32.mrb[0].mxu0
        %1383 = vmatprep.mubr.f32.mxu0 0.0
        %1384 = vmatmul.mubr.f32.gmra.mrb[0].mxu0 %v387
        %v1385 = vpop.f32.mrb[0].mxu0
        %v1386 = vadd.f32 0.0, %v1385
        %v1387 = vpop.f32.mrb[0].mxu0
        %1388 = vmatprep.mubr.f32.mxu0 0.0
        %1389 = vmatmul.mubr.f32.gmra.mrb[0].mxu0 %v390
        %v1390 = vpop.f32.mrb[0].mxu0
        %v1391 = vadd.f32 0.0, %v1390
        %v1392 = vpop.f32.mrb[0].mxu0
        %1393 = vdwg.mxu0
        %1394 = vmatprep.subr.mxu0 0.0
        %1395 = vmatpush1.msra.mxu0 %v1298
        %1396 = vmatprep.subr.mxu0 0.0
        %1397 = vmatpush1.msra.mxu0 %v1299
        %1398 = vmatprep.subr.mxu0 0.0
        %1399 = vmatpush1.msra.mxu0 %v1300
        %1400 = vmatprep.subr.mxu0 0.0
        %1401 = vmatpush1.msra.mxu0 %v1301
        %1402 = vmatprep.subr.mxu0 0.0
        %1403 = vmatpush1.msra.mxu0 0.0
        %1404 = vmatprep.subr.mxu0 0.0
        %1405 = vmatpush1.msra.mxu0 0.0
        %1406 = vmatprep.subr.mxu0 0.0
        %1407 = vmatpush1.msra.mxu0 0.0
        %1408 = vmatprep.subr.mxu0 0.0
        %1409 = vmatpush1.msra.mxu0 0.0
        %1410 = vmatprep.subr.mxu0 0.0
        %1411 = vmatpush1.msra.mxu0 0.0
        %1412 = vmatprep.subr.mxu0 0.0
        %1413 = vmatpush1.msra.mxu0 0.0
        %1414 = vmatprep.subr.mxu0 0.0
        %1415 = vmatpush1.msra.mxu0 0.0
        %1416 = vmatprep.subr.mxu0 0.0
        %1417 = vmatpush1.msra.mxu0 0.0
        %1418 = vmatprep.subr.mxu0 0.0
        %1419 = vmatpush1.msra.mxu0 0.0
        %1420 = vmatprep.subr.mxu0 0.0
        %1421 = vmatpush1.msra.mxu0 0.0
        %1422 = vmatprep.subr.mxu0 0.0
        %1423 = vmatpush1.msra.mxu0 0.0
        %1424 = vmatprep.subr.mxu0 0.0
        %1425 = vmatpush1.msra.mxu0 0.0
        %1426 = vmatprep.subr.mxu0 0.0
        %1427 = vmatpush1.msra.mxu0 0.0
        %1428 = vmatprep.subr.mxu0 0.0
        %1429 = vmatpush1.msra.mxu0 0.0
        %1430 = vmatprep.subr.mxu0 0.0
        %1431 = vmatpush1.msra.mxu0 0.0
        %1432 = vmatprep.subr.mxu0 0.0
        %1433 = vmatpush1.msra.mxu0 0.0
        %1434 = vmatprep.subr.mxu0 0.0
        %1435 = vmatpush1.msra.mxu0 0.0
        %1436 = vmatprep.subr.mxu0 0.0
        %1437 = vmatpush1.msra.mxu0 0.0
        %1438 = vmatprep.subr.mxu0 0.0
        %1439 = vmatpush1.msra.mxu0 0.0
        %1440 = vmatprep.subr.mxu0 0.0
        %1441 = vmatpush1.msra.mxu0 0.0
        %1442 = vmatprep.subr.mxu0 0.0
        %1443 = vmatpush1.msra.mxu0 0.0
        %1444 = vmatprep.subr.mxu0 0.0
        %1445 = vmatpush1.msra.mxu0 0.0
        %1446 = vmatprep.subr.mxu0 0.0
        %1447 = vmatpush1.msra.mxu0 0.0
        %1448 = vmatprep.subr.mxu0 0.0
        %1449 = vmatpush1.msra.mxu0 0.0
        %1450 = vmatprep.subr.mxu0 0.0
        %1451 = vmatpush1.msra.mxu0 0.0
        %1452 = vmatprep.subr.mxu0 0.0
        %1453 = vmatpush1.msra.mxu0 0.0
        %1454 = vmatprep.subr.mxu0 0.0
        %1455 = vmatpush1.msra.mxu0 0.0
        %1456 = vmatprep.subr.mxu0 0.0
        %1457 = vmatpush1.msra.mxu0 0.0
        %1458 = vmatprep.mubr.f32.mxu0 0.0
        %1459 = vmatmul.mubr.f32.gmra.mrb[0].mxu0 %v381
        %v1460 = vpop.f32.mrb[0].mxu0
        %v1461 = vadd.f32 0.0, %v1460
        %v1462 = vpop.f32.mrb[0].mxu0
        %1463 = vmatprep.mubr.f32.mxu0 0.0
        %1464 = vmatmul.mubr.f32.gmra.mrb[0].mxu0 %v384
        %v1465 = vpop.f32.mrb[0].mxu0
        %v1466 = vadd.f32 0.0, %v1465
        %v1467 = vpop.f32.mrb[0].mxu0
        %1468 = vmatprep.mubr.f32.mxu0 0.0
        %1469 = vmatmul.mubr.f32.gmra.mrb[0].mxu0 %v387
        %v1470 = vpop.f32.mrb[0].mxu0
        %v1471 = vadd.f32 0.0, %v1470
        %v1472 = vpop.f32.mrb[0].mxu0
        %1473 = vmatprep.mubr.f32.mxu0 0.0
        %1474 = vmatmul.mubr.f32.gmra.mrb[0].mxu0 %v390
        %v1475 = vpop.f32.mrb[0].mxu0
        %v1476 = vadd.f32 0.0, %v1475
        %v1477 = vpop.f32.mrb[0].mxu0
        %1478 = vdwg.mxu0
        %1479 = vmatprep.subr.mxu0 0.0
        %1480 = vmatpush1.msra.mxu0 %v1303
        %1481 = vmatprep.subr.mxu0 0.0
        %1482 = vmatpush1.msra.mxu0 %v1304
        %1483 = vmatprep.subr.mxu0 0.0
        %1484 = vmatpush1.msra.mxu0 %v1305
        %1485 = vmatprep.subr.mxu0 0.0
        %1486 = vmatpush1.msra.mxu0 %v1306
        %1487 = vmatprep.subr.mxu0 0.0
        %1488 = vmatpush1.msra.mxu0 0.0
        %1489 = vmatprep.subr.mxu0 0.0
        %1490 = vmatpush1.msra.mxu0 0.0
        %1491 = vmatprep.subr.mxu0 0.0
        %1492 = vmatpush1.msra.mxu0 0.0
        %1493 = vmatprep.subr.mxu0 0.0
        %1494 = vmatpush1.msra.mxu0 0.0
        %1495 = vmatprep.subr.mxu0 0.0
        %1496 = vmatpush1.msra.mxu0 0.0
        %1497 = vmatprep.subr.mxu0 0.0
        %1498 = vmatpush1.msra.mxu0 0.0
        %1499 = vmatprep.subr.mxu0 0.0
        %1500 = vmatpush1.msra.mxu0 0.0
        %1501 = vmatprep.subr.mxu0 0.0
        %1502 = vmatpush1.msra.mxu0 0.0
        %1503 = vmatprep.subr.mxu0 0.0
        %1504 = vmatpush1.msra.mxu0 0.0
        %1505 = vmatprep.subr.mxu0 0.0
        %1506 = vmatpush1.msra.mxu0 0.0
        %1507 = vmatprep.subr.mxu0 0.0
        %1508 = vmatpush1.msra.mxu0 0.0
        %1509 = vmatprep.subr.mxu0 0.0
        %1510 = vmatpush1.msra.mxu0 0.0
        %1511 = vmatprep.subr.mxu0 0.0
        %1512 = vmatpush1.msra.mxu0 0.0
        %1513 = vmatprep.subr.mxu0 0.0
        %1514 = vmatpush1.msra.mxu0 0.0
        %1515 = vmatprep.subr.mxu0 0.0
        %1516 = vmatpush1.msra.mxu0 0.0
        %1517 = vmatprep.subr.mxu0 0.0
        %1518 = vmatpush1.msra.mxu0 0.0
        %1519 = vmatprep.subr.mxu0 0.0
        %1520 = vmatpush1.msra.mxu0 0.0
        %1521 = vmatprep.subr.mxu0 0.0
        %1522 = vmatpush1.msra.mxu0 0.0
        %1523 = vmatprep.subr.mxu0 0.0
        %1524 = vmatpush1.msra.mxu0 0.0
        %1525 = vmatprep.subr.mxu0 0.0
        %1526 = vmatpush1.msra.mxu0 0.0
        %1527 = vmatprep.subr.mxu0 0.0
        %1528 = vmatpush1.msra.mxu0 0.0
        %1529 = vmatprep.subr.mxu0 0.0
        %1530 = vmatpush1.msra.mxu0 0.0
        %1531 = vmatprep.subr.mxu0 0.0
        %1532 = vmatpush1.msra.mxu0 0.0
        %1533 = vmatprep.subr.mxu0 0.0
        %1534 = vmatpush1.msra.mxu0 0.0
        %1535 = vmatprep.subr.mxu0 0.0
        %1536 = vmatpush1.msra.mxu0 0.0
        %1537 = vmatprep.subr.mxu0 0.0
        %1538 = vmatpush1.msra.mxu0 0.0
        %1539 = vmatprep.subr.mxu0 0.0
        %1540 = vmatpush1.msra.mxu0 0.0
        %1541 = vmatprep.subr.mxu0 0.0
        %1542 = vmatpush1.msra.mxu0 0.0
        %1543 = vmatprep.mubr.f32.mxu0 0.0
        %1544 = vmatmul.mubr.f32.gmra.mrb[0].mxu0 %v381
        %v1545 = vpop.f32.mrb[0].mxu0
        %v1546 = vadd.f32 0.0, %v1545
        %v1547 = vpop.f32.mrb[0].mxu0
        %1548 = vmatprep.mubr.f32.mxu0 0.0
        %1549 = vmatmul.mubr.f32.gmra.mrb[0].mxu0 %v384
        %v1550 = vpop.f32.mrb[0].mxu0
        %v1551 = vadd.f32 0.0, %v1550
        %v1552 = vpop.f32.mrb[0].mxu0
        %1553 = vmatprep.mubr.f32.mxu0 0.0
        %1554 = vmatmul.mubr.f32.gmra.mrb[0].mxu0 %v387
        %v1555 = vpop.f32.mrb[0].mxu0
        %v1556 = vadd.f32 0.0, %v1555
        %v1557 = vpop.f32.mrb[0].mxu0
        %1558 = vmatprep.mubr.f32.mxu0 0.0
        %1559 = vmatmul.mubr.f32.gmra.mrb[0].mxu0 %v390
        %v1560 = vpop.f32.mrb[0].mxu0
        %v1561 = vadd.f32 0.0, %v1560
        %v1562 = vpop.f32.mrb[0].mxu0
        %1563 = vdwg.mxu0
        %v1565 = vsel %vm647, %v1376, 0
        %v1568 = vsel %vm647, %v1461, 0
        %1570 = vmatprep.subr.mxu0 0.0
        %1571 = vmatpush1.xpose.msra.mxu0 %v1568
        %1572 = vmatprep.subr.mxu0 0.0
        %1573 = vmatpush1.xpose.msra.mxu0 0.0
        %1574 = vmatprep.subr.mxu0 0.0
        %1575 = vmatpush1.xpose.msra.mxu0 0.0
        %1576 = vmatprep.subr.mxu0 0.0
        %1577 = vmatpush1.xpose.msra.mxu0 0.0
        %1578 = vmatprep.subr.mxu0 0.0
        %1579 = vmatpush1.xpose.msra.mxu0 0.0
        %1580 = vmatprep.subr.mxu0 0.0
        %1581 = vmatpush1.xpose.msra.mxu0 0.0
        %1582 = vmatprep.subr.mxu0 0.0
        %1583 = vmatpush1.xpose.msra.mxu0 0.0
        %1584 = vmatprep.subr.mxu0 0.0
        %1585 = vmatpush1.xpose.msra.mxu0 0.0
        %1586 = vmatprep.subr.mxu0 0.0
        %1587 = vmatpush1.xpose.msra.mxu0 0.0
        %1588 = vmatprep.subr.mxu0 0.0
        %1589 = vmatpush1.xpose.msra.mxu0 0.0
        %1590 = vmatprep.subr.mxu0 0.0
        %1591 = vmatpush1.xpose.msra.mxu0 0.0
        %1592 = vmatprep.subr.mxu0 0.0
        %1593 = vmatpush1.xpose.msra.mxu0 0.0
        %1594 = vmatprep.subr.mxu0 0.0
        %1595 = vmatpush1.xpose.msra.mxu0 0.0
        %1596 = vmatprep.subr.mxu0 0.0
        %1597 = vmatpush1.xpose.msra.mxu0 0.0
        %1598 = vmatprep.subr.mxu0 0.0
        %1599 = vmatpush1.xpose.msra.mxu0 0.0
        %1600 = vmatprep.subr.mxu0 0.0
        %1601 = vmatpush1.xpose.msra.mxu0 0.0
        %1602 = vmatprep.subr.mxu0 0.0
        %1603 = vmatpush1.xpose.msra.mxu0 0.0
        %1604 = vmatprep.subr.mxu0 0.0
        %1605 = vmatpush1.xpose.msra.mxu0 0.0
        %1606 = vmatprep.subr.mxu0 0.0
        %1607 = vmatpush1.xpose.msra.mxu0 0.0
        %1608 = vmatprep.subr.mxu0 0.0
        %1609 = vmatpush1.xpose.msra.mxu0 0.0
        %1610 = vmatprep.subr.mxu0 0.0
        %1611 = vmatpush1.xpose.msra.mxu0 0.0
        %1612 = vmatprep.subr.mxu0 0.0
        %1613 = vmatpush1.xpose.msra.mxu0 0.0
        %1614 = vmatprep.subr.mxu0 0.0
        %1615 = vmatpush1.xpose.msra.mxu0 0.0
        %1616 = vmatprep.subr.mxu0 0.0
        %1617 = vmatpush1.xpose.msra.mxu0 0.0
        %1618 = vmatprep.subr.mxu0 0.0
        %1619 = vmatpush1.xpose.msra.mxu0 0.0
        %1620 = vmatprep.subr.mxu0 0.0
        %1621 = vmatpush1.xpose.msra.mxu0 0.0
        %1622 = vmatprep.subr.mxu0 0.0
        %1623 = vmatpush1.xpose.msra.mxu0 0.0
        %1624 = vmatprep.subr.mxu0 0.0
        %1625 = vmatpush1.xpose.msra.mxu0 0.0
        %1626 = vmatprep.subr.mxu0 0.0
        %1627 = vmatpush1.xpose.msra.mxu0 0.0
        %1628 = vmatprep.subr.mxu0 0.0
        %1629 = vmatpush1.xpose.msra.mxu0 0.0
        %1630 = vmatprep.subr.mxu0 0.0
        %1631 = vmatpush1.xpose.msra.mxu0 0.0
        %1632 = vmatprep.subr.mxu0 0.0
        %1633 = vmatpush1.xpose.msra.mxu0 0.0
        %1634 = vmatprep.mubr.f32.mxu0 0.0
        %1635 = vmatmul.mubr.f32.gmra.mrb[0].mxu0 %v1565
        %v1636 = vpop.f32.mrb[0].mxu0
        %v1637 = vadd.f32 0.0, %v1636
        %v1638 = vpop.f32.mrb[0].mxu0
        %1639 = vdwg.mxu0
        %v1641 = vsel %vm647, %v1381, 0
        %v1644 = vsel %vm647, %v1466, 0
        %1646 = vmatprep.subr.mxu0 0.0
        %1647 = vmatpush1.xpose.msra.mxu0 %v1644
        %1648 = vmatprep.subr.mxu0 0.0
        %1649 = vmatpush1.xpose.msra.mxu0 0.0
        %1650 = vmatprep.subr.mxu0 0.0
        %1651 = vmatpush1.xpose.msra.mxu0 0.0
        %1652 = vmatprep.subr.mxu0 0.0
        %1653 = vmatpush1.xpose.msra.mxu0 0.0
        %1654 = vmatprep.subr.mxu0 0.0
        %1655 = vmatpush1.xpose.msra.mxu0 0.0
        %1656 = vmatprep.subr.mxu0 0.0
        %1657 = vmatpush1.xpose.msra.mxu0 0.0
        %1658 = vmatprep.subr.mxu0 0.0
        %1659 = vmatpush1.xpose.msra.mxu0 0.0
        %1660 = vmatprep.subr.mxu0 0.0
        %1661 = vmatpush1.xpose.msra.mxu0 0.0
        %1662 = vmatprep.subr.mxu0 0.0
        %1663 = vmatpush1.xpose.msra.mxu0 0.0
        %1664 = vmatprep.subr.mxu0 0.0
        %1665 = vmatpush1.xpose.msra.mxu0 0.0
        %1666 = vmatprep.subr.mxu0 0.0
        %1667 = vmatpush1.xpose.msra.mxu0 0.0
        %1668 = vmatprep.subr.mxu0 0.0
        %1669 = vmatpush1.xpose.msra.mxu0 0.0
        %1670 = vmatprep.subr.mxu0 0.0
        %1671 = vmatpush1.xpose.msra.mxu0 0.0
        %1672 = vmatprep.subr.mxu0 0.0
        %1673 = vmatpush1.xpose.msra.mxu0 0.0
        %1674 = vmatprep.subr.mxu0 0.0
        %1675 = vmatpush1.xpose.msra.mxu0 0.0
        %1676 = vmatprep.subr.mxu0 0.0
        %1677 = vmatpush1.xpose.msra.mxu0 0.0
        %1678 = vmatprep.subr.mxu0 0.0
        %1679 = vmatpush1.xpose.msra.mxu0 0.0
        %1680 = vmatprep.subr.mxu0 0.0
        %1681 = vmatpush1.xpose.msra.mxu0 0.0
        %1682 = vmatprep.subr.mxu0 0.0
        %1683 = vmatpush1.xpose.msra.mxu0 0.0
        %1684 = vmatprep.subr.mxu0 0.0
        %1685 = vmatpush1.xpose.msra.mxu0 0.0
        %1686 = vmatprep.subr.mxu0 0.0
        %1687 = vmatpush1.xpose.msra.mxu0 0.0
        %1688 = vmatprep.subr.mxu0 0.0
        %1689 = vmatpush1.xpose.msra.mxu0 0.0
        %1690 = vmatprep.subr.mxu0 0.0
        %1691 = vmatpush1.xpose.msra.mxu0 0.0
        %1692 = vmatprep.subr.mxu0 0.0
        %1693 = vmatpush1.xpose.msra.mxu0 0.0
        %1694 = vmatprep.subr.mxu0 0.0
        %1695 = vmatpush1.xpose.msra.mxu0 0.0
        %1696 = vmatprep.subr.mxu0 0.0
        %1697 = vmatpush1.xpose.msra.mxu0 0.0
        %1698 = vmatprep.subr.mxu0 0.0
        %1699 = vmatpush1.xpose.msra.mxu0 0.0
        %1700 = vmatprep.subr.mxu0 0.0
        %1701 = vmatpush1.xpose.msra.mxu0 0.0
        %1702 = vmatprep.subr.mxu0 0.0
        %1703 = vmatpush1.xpose.msra.mxu0 0.0
        %1704 = vmatprep.subr.mxu0 0.0
        %1705 = vmatpush1.xpose.msra.mxu0 0.0
        %1706 = vmatprep.subr.mxu0 0.0
        %1707 = vmatpush1.xpose.msra.mxu0 0.0
        %1708 = vmatprep.subr.mxu0 0.0
        %1709 = vmatpush1.xpose.msra.mxu0 0.0
        %1710 = vmatprep.mubr.f32.mxu0 0.0
        %1711 = vmatmul.mubr.f32.gmra.mrb[0].mxu0 %v1641
        %v1712 = vpop.f32.mrb[0].mxu0
        %v1713 = vadd.f32 0.0, %v1712
        %v1714 = vpop.f32.mrb[0].mxu0
        %1715 = vdwg.mxu0
        %v1717 = vsel %vm647, %v1386, 0
        %v1720 = vsel %vm647, %v1471, 0
        %1722 = vmatprep.subr.mxu0 0.0
        %1723 = vmatpush1.xpose.msra.mxu0 %v1720
        %1724 = vmatprep.subr.mxu0 0.0
        %1725 = vmatpush1.xpose.msra.mxu0 0.0
        %1726 = vmatprep.subr.mxu0 0.0
        %1727 = vmatpush1.xpose.msra.mxu0 0.0
        %1728 = vmatprep.subr.mxu0 0.0
        %1729 = vmatpush1.xpose.msra.mxu0 0.0
        %1730 = vmatprep.subr.mxu0 0.0
        %1731 = vmatpush1.xpose.msra.mxu0 0.0
        %1732 = vmatprep.subr.mxu0 0.0
        %1733 = vmatpush1.xpose.msra.mxu0 0.0
        %1734 = vmatprep.subr.mxu0 0.0
        %1735 = vmatpush1.xpose.msra.mxu0 0.0
        %1736 = vmatprep.subr.mxu0 0.0
        %1737 = vmatpush1.xpose.msra.mxu0 0.0
        %1738 = vmatprep.subr.mxu0 0.0
        %1739 = vmatpush1.xpose.msra.mxu0 0.0
        %1740 = vmatprep.subr.mxu0 0.0
        %1741 = vmatpush1.xpose.msra.mxu0 0.0
        %1742 = vmatprep.subr.mxu0 0.0
        %1743 = vmatpush1.xpose.msra.mxu0 0.0
        %1744 = vmatprep.subr.mxu0 0.0
        %1745 = vmatpush1.xpose.msra.mxu0 0.0
        %1746 = vmatprep.subr.mxu0 0.0
        %1747 = vmatpush1.xpose.msra.mxu0 0.0
        %1748 = vmatprep.subr.mxu0 0.0
        %1749 = vmatpush1.xpose.msra.mxu0 0.0
        %1750 = vmatprep.subr.mxu0 0.0
        %1751 = vmatpush1.xpose.msra.mxu0 0.0
        %1752 = vmatprep.subr.mxu0 0.0
        %1753 = vmatpush1.xpose.msra.mxu0 0.0
        %1754 = vmatprep.subr.mxu0 0.0
        %1755 = vmatpush1.xpose.msra.mxu0 0.0
        %1756 = vmatprep.subr.mxu0 0.0
        %1757 = vmatpush1.xpose.msra.mxu0 0.0
        %1758 = vmatprep.subr.mxu0 0.0
        %1759 = vmatpush1.xpose.msra.mxu0 0.0
        %1760 = vmatprep.subr.mxu0 0.0
        %1761 = vmatpush1.xpose.msra.mxu0 0.0
        %1762 = vmatprep.subr.mxu0 0.0
        %1763 = vmatpush1.xpose.msra.mxu0 0.0
        %1764 = vmatprep.subr.mxu0 0.0
        %1765 = vmatpush1.xpose.msra.mxu0 0.0
        %1766 = vmatprep.subr.mxu0 0.0
        %1767 = vmatpush1.xpose.msra.mxu0 0.0
        %1768 = vmatprep.subr.mxu0 0.0
        %1769 = vmatpush1.xpose.msra.mxu0 0.0
        %1770 = vmatprep.subr.mxu0 0.0
        %1771 = vmatpush1.xpose.msra.mxu0 0.0
        %1772 = vmatprep.subr.mxu0 0.0
        %1773 = vmatpush1.xpose.msra.mxu0 0.0
        %1774 = vmatprep.subr.mxu0 0.0
        %1775 = vmatpush1.xpose.msra.mxu0 0.0
        %1776 = vmatprep.subr.mxu0 0.0
        %1777 = vmatpush1.xpose.msra.mxu0 0.0
        %1778 = vmatprep.subr.mxu0 0.0
        %1779 = vmatpush1.xpose.msra.mxu0 0.0
        %1780 = vmatprep.subr.mxu0 0.0
        %1781 = vmatpush1.xpose.msra.mxu0 0.0
        %1782 = vmatprep.subr.mxu0 0.0
        %1783 = vmatpush1.xpose.msra.mxu0 0.0
        %1784 = vmatprep.subr.mxu0 0.0
        %1785 = vmatpush1.xpose.msra.mxu0 0.0
        %1786 = vmatprep.mubr.f32.mxu0 0.0
        %1787 = vmatmul.mubr.f32.gmra.mrb[0].mxu0 %v1717
        %v1788 = vpop.f32.mrb[0].mxu0
        %v1789 = vadd.f32 0.0, %v1788
        %v1790 = vpop.f32.mrb[0].mxu0
        %1791 = vdwg.mxu0
        %v1793 = vsel %vm647, %v1391, 0
        %v1796 = vsel %vm647, %v1476, 0
        %1798 = vmatprep.subr.mxu0 0.0
        %1799 = vmatpush1.xpose.msra.mxu0 %v1796
        %1800 = vmatprep.subr.mxu0 0.0
        %1801 = vmatpush1.xpose.msra.mxu0 0.0
        %1802 = vmatprep.subr.mxu0 0.0
        %1803 = vmatpush1.xpose.msra.mxu0 0.0
        %1804 = vmatprep.subr.mxu0 0.0
        %1805 = vmatpush1.xpose.msra.mxu0 0.0
        %1806 = vmatprep.subr.mxu0 0.0
        %1807 = vmatpush1.xpose.msra.mxu0 0.0
        %1808 = vmatprep.subr.mxu0 0.0
        %1809 = vmatpush1.xpose.msra.mxu0 0.0
        %1810 = vmatprep.subr.mxu0 0.0
        %1811 = vmatpush1.xpose.msra.mxu0 0.0
        %1812 = vmatprep.subr.mxu0 0.0
        %1813 = vmatpush1.xpose.msra.mxu0 0.0
        %1814 = vmatprep.subr.mxu0 0.0
        %1815 = vmatpush1.xpose.msra.mxu0 0.0
        %1816 = vmatprep.subr.mxu0 0.0
        %1817 = vmatpush1.xpose.msra.mxu0 0.0
        %1818 = vmatprep.subr.mxu0 0.0
        %1819 = vmatpush1.xpose.msra.mxu0 0.0
        %1820 = vmatprep.subr.mxu0 0.0
        %1821 = vmatpush1.xpose.msra.mxu0 0.0
        %1822 = vmatprep.subr.mxu0 0.0
        %1823 = vmatpush1.xpose.msra.mxu0 0.0
        %1824 = vmatprep.subr.mxu0 0.0
        %1825 = vmatpush1.xpose.msra.mxu0 0.0
        %1826 = vmatprep.subr.mxu0 0.0
        %1827 = vmatpush1.xpose.msra.mxu0 0.0
        %1828 = vmatprep.subr.mxu0 0.0
        %1829 = vmatpush1.xpose.msra.mxu0 0.0
        %1830 = vmatprep.subr.mxu0 0.0
        %1831 = vmatpush1.xpose.msra.mxu0 0.0
        %1832 = vmatprep.subr.mxu0 0.0
        %1833 = vmatpush1.xpose.msra.mxu0 0.0
        %1834 = vmatprep.subr.mxu0 0.0
        %1835 = vmatpush1.xpose.msra.mxu0 0.0
        %1836 = vmatprep.subr.mxu0 0.0
        %1837 = vmatpush1.xpose.msra.mxu0 0.0
        %1838 = vmatprep.subr.mxu0 0.0
        %1839 = vmatpush1.xpose.msra.mxu0 0.0
        %1840 = vmatprep.subr.mxu0 0.0
        %1841 = vmatpush1.xpose.msra.mxu0 0.0
        %1842 = vmatprep.subr.mxu0 0.0
        %1843 = vmatpush1.xpose.msra.mxu0 0.0
        %1844 = vmatprep.subr.mxu0 0.0
        %1845 = vmatpush1.xpose.msra.mxu0 0.0
        %1846 = vmatprep.subr.mxu0 0.0
        %1847 = vmatpush1.xpose.msra.mxu0 0.0
        %1848 = vmatprep.subr.mxu0 0.0
        %1849 = vmatpush1.xpose.msra.mxu0 0.0
        %1850 = vmatprep.subr.mxu0 0.0
        %1851 = vmatpush1.xpose.msra.mxu0 0.0
        %1852 = vmatprep.subr.mxu0 0.0
        %1853 = vmatpush1.xpose.msra.mxu0 0.0
        %1854 = vmatprep.subr.mxu0 0.0
        %1855 = vmatpush1.xpose.msra.mxu0 0.0
        %1856 = vmatprep.subr.mxu0 0.0
        %1857 = vmatpush1.xpose.msra.mxu0 0.0
        %1858 = vmatprep.subr.mxu0 0.0
        %1859 = vmatpush1.xpose.msra.mxu0 0.0
        %1860 = vmatprep.subr.mxu0 0.0
        %1861 = vmatpush1.xpose.msra.mxu0 0.0
        %1862 = vmatprep.mubr.f32.mxu0 0.0
        %1863 = vmatmul.mubr.f32.gmra.mrb[0].mxu0 %v1793
        %v1864 = vpop.f32.mrb[0].mxu0
        %v1865 = vadd.f32 0.0, %v1864
        %v1866 = vpop.f32.mrb[0].mxu0
        %1867 = vdwg.mxu0
        %v1868 = vmul.f32 %v1637, 0.35355338
        %v1869 = vmul.f32 %v1713, 0.35355338
        %v1870 = vmul.f32 %v1789, 0.35355338
        %v1871 = vmul.f32 %v1865, 0.35355338
        %v1872 = vsel %vm647, %v1868, -inf
        %1873 = vmax.xlane.f32.xlu0 %v1872
        %v1874 = vpop.xlane.xlu0 %1873
        %v1875 = vsel %vm647, %v1869, -inf
        %1876 = vmax.xlane.f32.xlu0 %v1875
        %v1877 = vpop.xlane.xlu0 %1876
        %v1878 = vsel %vm647, %v1870, -inf
        %1879 = vmax.xlane.f32.xlu0 %v1878
        %v1880 = vpop.xlane.xlu0 %1879
        %v1881 = vsel %vm647, %v1871, -inf
        %1882 = vmax.xlane.f32.xlu0 %v1881
        %v1883 = vpop.xlane.xlu0 %1882
        %v1884 = vsub.f32 %v1868, %v1874
        %v1885 = vsub.f32 %v1869, %v1877
        %v1886 = vsub.f32 %v1870, %v1880
        %v1887 = vsub.f32 %v1871, %v1883
        %v1888 = vmul.f32 %v1884, 1.442695
        %v1889 = vpow.pop %v1888
        %v1890 = vmul.f32 %v1885, 1.442695
        %v1891 = vpow.pop %v1890
        %v1892 = vmul.f32 %v1886, 1.442695
        %v1893 = vpow.pop %v1892
        %v1894 = vmul.f32 %v1887, 1.442695
        %v1895 = vpow.pop %v1894
        %v1896 = vsel %vm647, %v1889, 0.0
        %1897 = vadd.xlane.f32.xlu0 %v1896
        %v1898 = vpop.xlane.xlu0 %1897
        %v1899 = vsel %vm647, %v1891, 0.0
        %1900 = vadd.xlane.f32.xlu0 %v1899
        %v1901 = vpop.xlane.xlu0 %1900
        %v1902 = vsel %vm647, %v1893, 0.0
        %1903 = vadd.xlane.f32.xlu0 %v1902
        %v1904 = vpop.xlane.xlu0 %1903
        %v1905 = vsel %vm647, %v1895, 0.0
        %1906 = vadd.xlane.f32.xlu0 %v1905
        %v1907 = vpop.xlane.xlu0 %1906
        %v1908 = vrcp.pop %v1898
        %v1909 = vrcp.pop %v1901
        %v1910 = vrcp.pop %v1904
        %v1911 = vrcp.pop %v1907
        %v1912 = vmul.f32 %v1889, %v1908
        %v1913 = vmul.f32 %v1891, %v1909
        %v1914 = vmul.f32 %v1893, %v1910
        %v1915 = vmul.f32 %v1895, %v1911
        %v1917 = vsel %vm647, %v1912, 0
        %1919 = vmatprep.subr.mxu0 0.0
        %1920 = vmatpush1.msra.mxu0 %v1546
        %1921 = vmatprep.subr.mxu0 0.0
        %1922 = vmatpush1.msra.mxu0 0.0
        %1923 = vmatprep.subr.mxu0 0.0
        %1924 = vmatpush1.msra.mxu0 0.0
        %1925 = vmatprep.subr.mxu0 0.0
        %1926 = vmatpush1.msra.mxu0 0.0
        %1927 = vmatprep.subr.mxu0 0.0
        %1928 = vmatpush1.msra.mxu0 0.0
        %1929 = vmatprep.subr.mxu0 0.0
        %1930 = vmatpush1.msra.mxu0 0.0
        %1931 = vmatprep.subr.mxu0 0.0
        %1932 = vmatpush1.msra.mxu0 0.0
        %1933 = vmatprep.subr.mxu0 0.0
        %1934 = vmatpush1.msra.mxu0 0.0
        %1935 = vmatprep.subr.mxu0 0.0
        %1936 = vmatpush1.msra.mxu0 0.0
        %1937 = vmatprep.subr.mxu0 0.0
        %1938 = vmatpush1.msra.mxu0 0.0
        %1939 = vmatprep.subr.mxu0 0.0
        %1940 = vmatpush1.msra.mxu0 0.0
        %1941 = vmatprep.subr.mxu0 0.0
        %1942 = vmatpush1.msra.mxu0 0.0
        %1943 = vmatprep.subr.mxu0 0.0
        %1944 = vmatpush1.msra.mxu0 0.0
        %1945 = vmatprep.subr.mxu0 0.0
        %1946 = vmatpush1.msra.mxu0 0.0
        %1947 = vmatprep.subr.mxu0 0.0
        %1948 = vmatpush1.msra.mxu0 0.0
        %1949 = vmatprep.subr.mxu0 0.0
        %1950 = vmatpush1.msra.mxu0 0.0
        %1951 = vmatprep.subr.mxu0 0.0
        %1952 = vmatpush1.msra.mxu0 0.0
        %1953 = vmatprep.subr.mxu0 0.0
        %1954 = vmatpush1.msra.mxu0 0.0
        %1955 = vmatprep.subr.mxu0 0.0
        %1956 = vmatpush1.msra.mxu0 0.0
        %1957 = vmatprep.subr.mxu0 0.0
        %1958 = vmatpush1.msra.mxu0 0.0
        %1959 = vmatprep.subr.mxu0 0.0
        %1960 = vmatpush1.msra.mxu0 0.0
        %1961 = vmatprep.subr.mxu0 0.0
        %1962 = vmatpush1.msra.mxu0 0.0
        %1963 = vmatprep.subr.mxu0 0.0
        %1964 = vmatpush1.msra.mxu0 0.0
        %1965 = vmatprep.subr.mxu0 0.0
        %1966 = vmatpush1.msra.mxu0 0.0
        %1967 = vmatprep.subr.mxu0 0.0
        %1968 = vmatpush1.msra.mxu0 0.0
        %1969 = vmatprep.subr.mxu0 0.0
        %1970 = vmatpush1.msra.mxu0 0.0
        %1971 = vmatprep.subr.mxu0 0.0
        %1972 = vmatpush1.msra.mxu0 0.0
        %1973 = vmatprep.subr.mxu0 0.0
        %1974 = vmatpush1.msra.mxu0 0.0
        %1975 = vmatprep.subr.mxu0 0.0
        %1976 = vmatpush1.msra.mxu0 0.0
        %1977 = vmatprep.subr.mxu0 0.0
        %1978 = vmatpush1.msra.mxu0 0.0
        %1979 = vmatprep.subr.mxu0 0.0
        %1980 = vmatpush1.msra.mxu0 0.0
        %1981 = vmatprep.subr.mxu0 0.0
        %1982 = vmatpush1.msra.mxu0 0.0
        %1983 = vmatprep.mubr.f32.mxu0 0.0
        %1984 = vmatmul.mubr.f32.gmra.mrb[0].mxu0 %v1917
        %v1985 = vpop.f32.mrb[0].mxu0
        %v1986 = vadd.f32 0.0, %v1985
        %v1987 = vpop.f32.mrb[0].mxu0
        %1988 = vdwg.mxu0
        %v1990 = vsel %vm647, %v1913, 0
        %1992 = vmatprep.subr.mxu0 0.0
        %1993 = vmatpush1.msra.mxu0 %v1551
        %1994 = vmatprep.subr.mxu0 0.0
        %1995 = vmatpush1.msra.mxu0 0.0
        %1996 = vmatprep.subr.mxu0 0.0
        %1997 = vmatpush1.msra.mxu0 0.0
        %1998 = vmatprep.subr.mxu0 0.0
        %1999 = vmatpush1.msra.mxu0 0.0
        %2000 = vmatprep.subr.mxu0 0.0
        %2001 = vmatpush1.msra.mxu0 0.0
        %2002 = vmatprep.subr.mxu0 0.0
        %2003 = vmatpush1.msra.mxu0 0.0
        %2004 = vmatprep.subr.mxu0 0.0
        %2005 = vmatpush1.msra.mxu0 0.0
        %2006 = vmatprep.subr.mxu0 0.0
        %2007 = vmatpush1.msra.mxu0 0.0
        %2008 = vmatprep.subr.mxu0 0.0
        %2009 = vmatpush1.msra.mxu0 0.0
        %2010 = vmatprep.subr.mxu0 0.0
        %2011 = vmatpush1.msra.mxu0 0.0
        %2012 = vmatprep.subr.mxu0 0.0
        %2013 = vmatpush1.msra.mxu0 0.0
        %2014 = vmatprep.subr.mxu0 0.0
        %2015 = vmatpush1.msra.mxu0 0.0
        %2016 = vmatprep.subr.mxu0 0.0
        %2017 = vmatpush1.msra.mxu0 0.0
        %2018 = vmatprep.subr.mxu0 0.0
        %2019 = vmatpush1.msra.mxu0 0.0
        %2020 = vmatprep.subr.mxu0 0.0
        %2021 = vmatpush1.msra.mxu0 0.0
        %2022 = vmatprep.subr.mxu0 0.0
        %2023 = vmatpush1.msra.mxu0 0.0
        %2024 = vmatprep.subr.mxu0 0.0
        %2025 = vmatpush1.msra.mxu0 0.0
        %2026 = vmatprep.subr.mxu0 0.0
        %2027 = vmatpush1.msra.mxu0 0.0
        %2028 = vmatprep.subr.mxu0 0.0
        %2029 = vmatpush1.msra.mxu0 0.0
        %2030 = vmatprep.subr.mxu0 0.0
        %2031 = vmatpush1.msra.mxu0 0.0
        %2032 = vmatprep.subr.mxu0 0.0
        %2033 = vmatpush1.msra.mxu0 0.0
        %2034 = vmatprep.subr.mxu0 0.0
        %2035 = vmatpush1.msra.mxu0 0.0
        %2036 = vmatprep.subr.mxu0 0.0
        %2037 = vmatpush1.msra.mxu0 0.0
        %2038 = vmatprep.subr.mxu0 0.0
        %2039 = vmatpush1.msra.mxu0 0.0
        %2040 = vmatprep.subr.mxu0 0.0
        %2041 = vmatpush1.msra.mxu0 0.0
        %2042 = vmatprep.subr.mxu0 0.0
        %2043 = vmatpush1.msra.mxu0 0.0
        %2044 = vmatprep.subr.mxu0 0.0
        %2045 = vmatpush1.msra.mxu0 0.0
        %2046 = vmatprep.subr.mxu0 0.0
        %2047 = vmatpush1.msra.mxu0 0.0
        %2048 = vmatprep.subr.mxu0 0.0
        %2049 = vmatpush1.msra.mxu0 0.0
        %2050 = vmatprep.subr.mxu0 0.0
        %2051 = vmatpush1.msra.mxu0 0.0
        %2052 = vmatprep.subr.mxu0 0.0
        %2053 = vmatpush1.msra.mxu0 0.0
        %2054 = vmatprep.subr.mxu0 0.0
        %2055 = vmatpush1.msra.mxu0 0.0
        %2056 = vmatprep.mubr.f32.mxu0 0.0
        %2057 = vmatmul.mubr.f32.gmra.mrb[0].mxu0 %v1990
        %v2058 = vpop.f32.mrb[0].mxu0
        %v2059 = vadd.f32 0.0, %v2058
        %v2060 = vpop.f32.mrb[0].mxu0
        %2061 = vdwg.mxu0
        %v2063 = vsel %vm647, %v1914, 0
        %2065 = vmatprep.subr.mxu0 0.0
        %2066 = vmatpush1.msra.mxu0 %v1556
        %2067 = vmatprep.subr.mxu0 0.0
        %2068 = vmatpush1.msra.mxu0 0.0
        %2069 = vmatprep.subr.mxu0 0.0
        %2070 = vmatpush1.msra.mxu0 0.0
        %2071 = vmatprep.subr.mxu0 0.0
        %2072 = vmatpush1.msra.mxu0 0.0
        %2073 = vmatprep.subr.mxu0 0.0
        %2074 = vmatpush1.msra.mxu0 0.0
        %2075 = vmatprep.subr.mxu0 0.0
        %2076 = vmatpush1.msra.mxu0 0.0
        %2077 = vmatprep.subr.mxu0 0.0
        %2078 = vmatpush1.msra.mxu0 0.0
        %2079 = vmatprep.subr.mxu0 0.0
        %2080 = vmatpush1.msra.mxu0 0.0
        %2081 = vmatprep.subr.mxu0 0.0
        %2082 = vmatpush1.msra.mxu0 0.0
        %2083 = vmatprep.subr.mxu0 0.0
        %2084 = vmatpush1.msra.mxu0 0.0
        %2085 = vmatprep.subr.mxu0 0.0
        %2086 = vmatpush1.msra.mxu0 0.0
        %2087 = vmatprep.subr.mxu0 0.0
        %2088 = vmatpush1.msra.mxu0 0.0
        %2089 = vmatprep.subr.mxu0 0.0
        %2090 = vmatpush1.msra.mxu0 0.0
        %2091 = vmatprep.subr.mxu0 0.0
        %2092 = vmatpush1.msra.mxu0 0.0
        %2093 = vmatprep.subr.mxu0 0.0
        %2094 = vmatpush1.msra.mxu0 0.0
        %2095 = vmatprep.subr.mxu0 0.0
        %2096 = vmatpush1.msra.mxu0 0.0
        %2097 = vmatprep.subr.mxu0 0.0
        %2098 = vmatpush1.msra.mxu0 0.0
        %2099 = vmatprep.subr.mxu0 0.0
        %2100 = vmatpush1.msra.mxu0 0.0
        %2101 = vmatprep.subr.mxu0 0.0
        %2102 = vmatpush1.msra.mxu0 0.0
        %2103 = vmatprep.subr.mxu0 0.0
        %2104 = vmatpush1.msra.mxu0 0.0
        %2105 = vmatprep.subr.mxu0 0.0
        %2106 = vmatpush1.msra.mxu0 0.0
        %2107 = vmatprep.subr.mxu0 0.0
        %2108 = vmatpush1.msra.mxu0 0.0
        %2109 = vmatprep.subr.mxu0 0.0
        %2110 = vmatpush1.msra.mxu0 0.0
        %2111 = vmatprep.subr.mxu0 0.0
        %2112 = vmatpush1.msra.mxu0 0.0
        %2113 = vmatprep.subr.mxu0 0.0
        %2114 = vmatpush1.msra.mxu0 0.0
        %2115 = vmatprep.subr.mxu0 0.0
        %2116 = vmatpush1.msra.mxu0 0.0
        %2117 = vmatprep.subr.mxu0 0.0
        %2118 = vmatpush1.msra.mxu0 0.0
        %2119 = vmatprep.subr.mxu0 0.0
        %2120 = vmatpush1.msra.mxu0 0.0
        %2121 = vmatprep.subr.mxu0 0.0
        %2122 = vmatpush1.msra.mxu0 0.0
        %2123 = vmatprep.subr.mxu0 0.0
        %2124 = vmatpush1.msra.mxu0 0.0
        %2125 = vmatprep.subr.mxu0 0.0
        %2126 = vmatpush1.msra.mxu0 0.0
        %2127 = vmatprep.subr.mxu0 0.0
        %2128 = vmatpush1.msra.mxu0 0.0
        %2129 = vmatprep.mubr.f32.mxu0 0.0
        %2130 = vmatmul.mubr.f32.gmra.mrb[0].mxu0 %v2063
        %v2131 = vpop.f32.mrb[0].mxu0
        %v2132 = vadd.f32 0.0, %v2131
        %v2133 = vpop.f32.mrb[0].mxu0
        %2134 = vdwg.mxu0
        %v2136 = vsel %vm647, %v1915, 0
        %2138 = vmatprep.subr.mxu0 0.0
        %2139 = vmatpush1.msra.mxu0 %v1561
        %2140 = vmatprep.subr.mxu0 0.0
        %2141 = vmatpush1.msra.mxu0 0.0
        %2142 = vmatprep.subr.mxu0 0.0
        %2143 = vmatpush1.msra.mxu0 0.0
        %2144 = vmatprep.subr.mxu0 0.0
        %2145 = vmatpush1.msra.mxu0 0.0
        %2146 = vmatprep.subr.mxu0 0.0
        %2147 = vmatpush1.msra.mxu0 0.0
        %2148 = vmatprep.subr.mxu0 0.0
        %2149 = vmatpush1.msra.mxu0 0.0
        %2150 = vmatprep.subr.mxu0 0.0
        %2151 = vmatpush1.msra.mxu0 0.0
        %2152 = vmatprep.subr.mxu0 0.0
        %2153 = vmatpush1.msra.mxu0 0.0
        %2154 = vmatprep.subr.mxu0 0.0
        %2155 = vmatpush1.msra.mxu0 0.0
        %2156 = vmatprep.subr.mxu0 0.0
        %2157 = vmatpush1.msra.mxu0 0.0
        %2158 = vmatprep.subr.mxu0 0.0
        %2159 = vmatpush1.msra.mxu0 0.0
        %2160 = vmatprep.subr.mxu0 0.0
        %2161 = vmatpush1.msra.mxu0 0.0
        %2162 = vmatprep.subr.mxu0 0.0
        %2163 = vmatpush1.msra.mxu0 0.0
        %2164 = vmatprep.subr.mxu0 0.0
        %2165 = vmatpush1.msra.mxu0 0.0
        %2166 = vmatprep.subr.mxu0 0.0
        %2167 = vmatpush1.msra.mxu0 0.0
        %2168 = vmatprep.subr.mxu0 0.0
        %2169 = vmatpush1.msra.mxu0 0.0
        %2170 = vmatprep.subr.mxu0 0.0
        %2171 = vmatpush1.msra.mxu0 0.0
        %2172 = vmatprep.subr.mxu0 0.0
        %2173 = vmatpush1.msra.mxu0 0.0
        %2174 = vmatprep.subr.mxu0 0.0
        %2175 = vmatpush1.msra.mxu0 0.0
        %2176 = vmatprep.subr.mxu0 0.0
        %2177 = vmatpush1.msra.mxu0 0.0
        %2178 = vmatprep.subr.mxu0 0.0
        %2179 = vmatpush1.msra.mxu0 0.0
        %2180 = vmatprep.subr.mxu0 0.0
        %2181 = vmatpush1.msra.mxu0 0.0
        %2182 = vmatprep.subr.mxu0 0.0
        %2183 = vmatpush1.msra.mxu0 0.0
        %2184 = vmatprep.subr.mxu0 0.0
        %2185 = vmatpush1.msra.mxu0 0.0
        %2186 = vmatprep.subr.mxu0 0.0
        %2187 = vmatpush1.msra.mxu0 0.0
        %2188 = vmatprep.subr.mxu0 0.0
        %2189 = vmatpush1.msra.mxu0 0.0
        %2190 = vmatprep.subr.mxu0 0.0
        %2191 = vmatpush1.msra.mxu0 0.0
        %2192 = vmatprep.subr.mxu0 0.0
        %2193 = vmatpush1.msra.mxu0 0.0
        %2194 = vmatprep.subr.mxu0 0.0
        %2195 = vmatpush1.msra.mxu0 0.0
        %2196 = vmatprep.subr.mxu0 0.0
        %2197 = vmatpush1.msra.mxu0 0.0
        %2198 = vmatprep.subr.mxu0 0.0
        %2199 = vmatpush1.msra.mxu0 0.0
        %2200 = vmatprep.subr.mxu0 0.0
        %2201 = vmatpush1.msra.mxu0 0.0
        %2202 = vmatprep.mubr.f32.mxu0 0.0
        %2203 = vmatmul.mubr.f32.gmra.mrb[0].mxu0 %v2136
        %v2204 = vpop.f32.mrb[0].mxu0
        %v2205 = vadd.f32 0.0, %v2204
        %v2206 = vpop.f32.mrb[0].mxu0
        %2207 = vdwg.mxu0
        %v2209 = vsel %vm647, %v1986, 0
        %v2212 = vsel %vm647, %v2059, 0
        %v2215 = vsel %vm647, %v2132, 0
        %v2218 = vsel %vm647, %v2205, 0
        %2220 = vmatprep.subr.mxu0 0.0
        %2221 = vmatpush1.msra.mxu0 %v1308
        %2222 = vmatprep.subr.mxu0 0.0
        %2223 = vmatpush1.msra.mxu0 0.0
        %2224 = vmatprep.subr.mxu0 0.0
        %2225 = vmatpush1.msra.mxu0 0.0
        %2226 = vmatprep.subr.mxu0 0.0
        %2227 = vmatpush1.msra.mxu0 0.0
        %2228 = vmatprep.subr.mxu0 0.0
        %2229 = vmatpush1.msra.mxu0 0.0
        %2230 = vmatprep.subr.mxu0 0.0
        %2231 = vmatpush1.msra.mxu0 0.0
        %2232 = vmatprep.subr.mxu0 0.0
        %2233 = vmatpush1.msra.mxu0 0.0
        %2234 = vmatprep.subr.mxu0 0.0
        %2235 = vmatpush1.msra.mxu0 0.0
        %2236 = vmatprep.subr.mxu0 0.0
        %2237 = vmatpush1.msra.mxu0 0.0
        %2238 = vmatprep.subr.mxu0 0.0
        %2239 = vmatpush1.msra.mxu0 0.0
        %2240 = vmatprep.subr.mxu0 0.0
        %2241 = vmatpush1.msra.mxu0 0.0
        %2242 = vmatprep.subr.mxu0 0.0
        %2243 = vmatpush1.msra.mxu0 0.0
        %2244 = vmatprep.subr.mxu0 0.0
        %2245 = vmatpush1.msra.mxu0 0.0
        %2246 = vmatprep.subr.mxu0 0.0
        %2247 = vmatpush1.msra.mxu0 0.0
        %2248 = vmatprep.subr.mxu0 0.0
        %2249 = vmatpush1.msra.mxu0 0.0
        %2250 = vmatprep.subr.mxu0 0.0
        %2251 = vmatpush1.msra.mxu0 0.0
        %2252 = vmatprep.subr.mxu0 0.0
        %2253 = vmatpush1.msra.mxu0 0.0
        %2254 = vmatprep.subr.mxu0 0.0
        %2255 = vmatpush1.msra.mxu0 0.0
        %2256 = vmatprep.subr.mxu0 0.0
        %2257 = vmatpush1.msra.mxu0 0.0
        %2258 = vmatprep.subr.mxu0 0.0
        %2259 = vmatpush1.msra.mxu0 0.0
        %2260 = vmatprep.subr.mxu0 0.0
        %2261 = vmatpush1.msra.mxu0 0.0
        %2262 = vmatprep.subr.mxu0 0.0
        %2263 = vmatpush1.msra.mxu0 0.0
        %2264 = vmatprep.subr.mxu0 0.0
        %2265 = vmatpush1.msra.mxu0 0.0
        %2266 = vmatprep.subr.mxu0 0.0
        %2267 = vmatpush1.msra.mxu0 0.0
        %2268 = vmatprep.subr.mxu0 0.0
        %2269 = vmatpush1.msra.mxu0 0.0
        %2270 = vmatprep.subr.mxu0 0.0
        %2271 = vmatpush1.msra.mxu0 0.0
        %2272 = vmatprep.subr.mxu0 0.0
        %2273 = vmatpush1.msra.mxu0 0.0
        %2274 = vmatprep.subr.mxu0 0.0
        %2275 = vmatpush1.msra.mxu0 0.0
        %2276 = vmatprep.subr.mxu0 0.0
        %2277 = vmatpush1.msra.mxu0 0.0
        %2278 = vmatprep.subr.mxu0 0.0
        %2279 = vmatpush1.msra.mxu0 0.0
        %2280 = vmatprep.subr.mxu0 0.0
        %2281 = vmatpush1.msra.mxu0 0.0
        %2282 = vmatprep.subr.mxu0 0.0
        %2283 = vmatpush1.msra.mxu0 0.0
        %2284 = vmatprep.mubr.f32.mxu0 0.0
        %2285 = vmatmul.mubr.f32.gmra.mrb[0].mxu0 %v2209
        %v2286 = vpop.f32.mrb[0].mxu0
        %v2287 = vadd.f32 0.0, %v2286
        %v2288 = vpop.f32.mrb[0].mxu0
        %2289 = vmatprep.mubr.f32.mxu0 0.0
        %2290 = vmatmul.mubr.f32.gmra.mrb[0].mxu0 %v2212
        %v2291 = vpop.f32.mrb[0].mxu0
        %v2292 = vadd.f32 0.0, %v2291
        %v2293 = vpop.f32.mrb[0].mxu0
        %2294 = vmatprep.mubr.f32.mxu0 0.0
        %2295 = vmatmul.mubr.f32.gmra.mrb[0].mxu0 %v2215
        %v2296 = vpop.f32.mrb[0].mxu0
        %v2297 = vadd.f32 0.0, %v2296
        %v2298 = vpop.f32.mrb[0].mxu0
        %2299 = vmatprep.mubr.f32.mxu0 0.0
        %2300 = vmatmul.mubr.f32.gmra.mrb[0].mxu0 %v2218
        %v2301 = vpop.f32.mrb[0].mxu0
        %v2302 = vadd.f32 0.0, %v2301
        %v2303 = vpop.f32.mrb[0].mxu0
        %2304 = vdwg.mxu0
        %v2306 = vsel %vm647, %v1070, 0
        %v2309 = vsel %vm647, %v1143, 0
        %v2312 = vsel %vm647, %v1216, 0
        %v2315 = vsel %vm647, %v1289, 0
        %2317 = vmatprep.subr.mxu0 0.0
        %2318 = vmatpush1.msra.mxu0 %v379
        %2319 = vmatprep.subr.mxu0 0.0
        %2320 = vmatpush1.msra.mxu0 0.0
        %2321 = vmatprep.subr.mxu0 0.0
        %2322 = vmatpush1.msra.mxu0 0.0
        %2323 = vmatprep.subr.mxu0 0.0
        %2324 = vmatpush1.msra.mxu0 0.0
        %2325 = vmatprep.subr.mxu0 0.0
        %2326 = vmatpush1.msra.mxu0 0.0
        %2327 = vmatprep.subr.mxu0 0.0
        %2328 = vmatpush1.msra.mxu0 0.0
        %2329 = vmatprep.subr.mxu0 0.0
        %2330 = vmatpush1.msra.mxu0 0.0
        %2331 = vmatprep.subr.mxu0 0.0
        %2332 = vmatpush1.msra.mxu0 0.0
        %2333 = vmatprep.subr.mxu0 0.0
        %2334 = vmatpush1.msra.mxu0 0.0
        %2335 = vmatprep.subr.mxu0 0.0
        %2336 = vmatpush1.msra.mxu0 0.0
        %2337 = vmatprep.subr.mxu0 0.0
        %2338 = vmatpush1.msra.mxu0 0.0
        %2339 = vmatprep.subr.mxu0 0.0
        %2340 = vmatpush1.msra.mxu0 0.0
        %2341 = vmatprep.subr.mxu0 0.0
        %2342 = vmatpush1.msra.mxu0 0.0
        %2343 = vmatprep.subr.mxu0 0.0
        %2344 = vmatpush1.msra.mxu0 0.0
        %2345 = vmatprep.subr.mxu0 0.0
        %2346 = vmatpush1.msra.mxu0 0.0
        %2347 = vmatprep.subr.mxu0 0.0
        %2348 = vmatpush1.msra.mxu0 0.0
        %2349 = vmatprep.subr.mxu0 0.0
        %2350 = vmatpush1.msra.mxu0 0.0
        %2351 = vmatprep.subr.mxu0 0.0
        %2352 = vmatpush1.msra.mxu0 0.0
        %2353 = vmatprep.subr.mxu0 0.0
        %2354 = vmatpush1.msra.mxu0 0.0
        %2355 = vmatprep.subr.mxu0 0.0
        %2356 = vmatpush1.msra.mxu0 0.0
        %2357 = vmatprep.subr.mxu0 0.0
        %2358 = vmatpush1.msra.mxu0 0.0
        %2359 = vmatprep.subr.mxu0 0.0
        %2360 = vmatpush1.msra.mxu0 0.0
        %2361 = vmatprep.subr.mxu0 0.0
        %2362 = vmatpush1.msra.mxu0 0.0
        %2363 = vmatprep.subr.mxu0 0.0
        %2364 = vmatpush1.msra.mxu0 0.0
        %2365 = vmatprep.subr.mxu0 0.0
        %2366 = vmatpush1.msra.mxu0 0.0
        %2367 = vmatprep.subr.mxu0 0.0
        %2368 = vmatpush1.msra.mxu0 0.0
        %2369 = vmatprep.subr.mxu0 0.0
        %2370 = vmatpush1.msra.mxu0 0.0
        %2371 = vmatprep.subr.mxu0 0.0
        %2372 = vmatpush1.msra.mxu0 0.0
        %2373 = vmatprep.subr.mxu0 0.0
        %2374 = vmatpush1.msra.mxu0 0.0
        %2375 = vmatprep.subr.mxu0 0.0
        %2376 = vmatpush1.msra.mxu0 0.0
        %2377 = vmatprep.subr.mxu0 0.0
        %2378 = vmatpush1.msra.mxu0 0.0
        %2379 = vmatprep.subr.mxu0 0.0
        %2380 = vmatpush1.msra.mxu0 0.0
        %2381 = vmatprep.mubr.f32.mxu0 0.0
        %2382 = vmatmul.mubr.f32.gmra.mrb[0].mxu0 %v2306
        %v2383 = vpop.f32.mrb[0].mxu0
        %v2384 = vadd.f32 %v2287, %v2383
        %v2385 = vpop.f32.mrb[0].mxu0
        %2386 = vmatprep.mubr.f32.mxu0 0.0
        %2387 = vmatmul.mubr.f32.gmra.mrb[0].mxu0 %v2309
        %v2388 = vpop.f32.mrb[0].mxu0
        %v2389 = vadd.f32 %v2292, %v2388
        %v2390 = vpop.f32.mrb[0].mxu0
        %2391 = vmatprep.mubr.f32.mxu0 0.0
        %2392 = vmatmul.mubr.f32.gmra.mrb[0].mxu0 %v2312
        %v2393 = vpop.f32.mrb[0].mxu0
        %v2394 = vadd.f32 %v2297, %v2393
        %v2395 = vpop.f32.mrb[0].mxu0
        %2396 = vmatprep.mubr.f32.mxu0 0.0
        %2397 = vmatmul.mubr.f32.gmra.mrb[0].mxu0 %v2315
        %v2398 = vpop.f32.mrb[0].mxu0
        %v2399 = vadd.f32 %v2302, %v2398
        %v2400 = vpop.f32.mrb[0].mxu0
        %2401 = vdwg.mxu0
        %s2402 = scalar_lea.vmem %s3, 64
        %v2403 = vld [vmem:[%s2402] sm:$0xff]
        %v2404 = vld [vmem:[%s2402 + $0x8] sm:$0xff]
        %v2405 = vld [vmem:[%s2402 + $0x10] sm:$0xff]
        %v2406 = vld [vmem:[%s2402 + $0x18] sm:$0xff]
        %s2407 = scalar_lea.vmem %s3, 192
        %v2408 = vld [vmem:[%s2407] sm:$0xff]
        %v2409 = vld [vmem:[%s2407 + $0x8] sm:$0xff]
        %v2410 = vld [vmem:[%s2407 + $0x10] sm:$0xff]
        %v2411 = vld [vmem:[%s2407 + $0x18] sm:$0xff]
        %s2412 = scalar_lea.vmem %s3, 320
        %v2413 = vld [vmem:[%s2412] sm:$0xff]
        %v2414 = vld [vmem:[%s2412 + $0x8] sm:$0xff]
        %v2415 = vld [vmem:[%s2412 + $0x10] sm:$0xff]
        %v2416 = vld [vmem:[%s2412 + $0x18] sm:$0xff]
        %s2417 = scalar_lea.vmem %s4, 16
        %v2418 = vld [vmem:[%s2417] sm:$0xff]
        %2419 = vmatprep.subr.mxu0 0.0
        %2420 = vmatpush1.msra.mxu0 %v2403
        %2421 = vmatprep.subr.mxu0 0.0
        %2422 = vmatpush1.msra.mxu0 %v2404
        %2423 = vmatprep.subr.mxu0 0.0
        %2424 = vmatpush1.msra.mxu0 %v2405
        %2425 = vmatprep.subr.mxu0 0.0
        %2426 = vmatpush1.msra.mxu0 %v2406
        %2427 = vmatprep.subr.mxu0 0.0
        %2428 = vmatpush1.msra.mxu0 0.0
        %2429 = vmatprep.subr.mxu0 0.0
        %2430 = vmatpush1.msra.mxu0 0.0
        %2431 = vmatprep.subr.mxu0 0.0
        %2432 = vmatpush1.msra.mxu0 0.0
        %2433 = vmatprep.subr.mxu0 0.0
        %2434 = vmatpush1.msra.mxu0 0.0
        %2435 = vmatprep.subr.mxu0 0.0
        %2436 = vmatpush1.msra.mxu0 0.0
        %2437 = vmatprep.subr.mxu0 0.0
        %2438 = vmatpush1.msra.mxu0 0.0
        %2439 = vmatprep.subr.mxu0 0.0
        %2440 = vmatpush1.msra.mxu0 0.0
        %2441 = vmatprep.subr.mxu0 0.0
        %2442 = vmatpush1.msra.mxu0 0.0
        %2443 = vmatprep.subr.mxu0 0.0
        %2444 = vmatpush1.msra.mxu0 0.0
        %2445 = vmatprep.subr.mxu0 0.0
        %2446 = vmatpush1.msra.mxu0 0.0
        %2447 = vmatprep.subr.mxu0 0.0
        %2448 = vmatpush1.msra.mxu0 0.0
        %2449 = vmatprep.subr.mxu0 0.0
        %2450 = vmatpush1.msra.mxu0 0.0
        %2451 = vmatprep.subr.mxu0 0.0
        %2452 = vmatpush1.msra.mxu0 0.0
        %2453 = vmatprep.subr.mxu0 0.0
        %2454 = vmatpush1.msra.mxu0 0.0
        %2455 = vmatprep.subr.mxu0 0.0
        %2456 = vmatpush1.msra.mxu0 0.0
        %2457 = vmatprep.subr.mxu0 0.0
        %2458 = vmatpush1.msra.mxu0 0.0
        %2459 = vmatprep.subr.mxu0 0.0
        %2460 = vmatpush1.msra.mxu0 0.0
        %2461 = vmatprep.subr.mxu0 0.0
        %2462 = vmatpush1.msra.mxu0 0.0
        %2463 = vmatprep.subr.mxu0 0.0
        %2464 = vmatpush1.msra.mxu0 0.0
        %2465 = vmatprep.subr.mxu0 0.0
        %2466 = vmatpush1.msra.mxu0 0.0
        %2467 = vmatprep.subr.mxu0 0.0
        %2468 = vmatpush1.msra.mxu0 0.0
        %2469 = vmatprep.subr.mxu0 0.0
        %2470 = vmatpush1.msra.mxu0 0.0
        %2471 = vmatprep.subr.mxu0 0.0
        %2472 = vmatpush1.msra.mxu0 0.0
        %2473 = vmatprep.subr.mxu0 0.0
        %2474 = vmatpush1.msra.mxu0 0.0
        %2475 = vmatprep.subr.mxu0 0.0
        %2476 = vmatpush1.msra.mxu0 0.0
        %2477 = vmatprep.subr.mxu0 0.0
        %2478 = vmatpush1.msra.mxu0 0.0
        %2479 = vmatprep.subr.mxu0 0.0
        %2480 = vmatpush1.msra.mxu0 0.0
        %2481 = vmatprep.subr.mxu0 0.0
        %2482 = vmatpush1.msra.mxu0 0.0
        %2483 = vmatprep.mubr.f32.mxu0 0.0
        %2484 = vmatmul.mubr.f32.gmra.mrb[0].mxu0 %v381
        %v2485 = vpop.f32.mrb[0].mxu0
        %v2486 = vadd.f32 0.0, %v2485
        %v2487 = vpop.f32.mrb[0].mxu0
        %2488 = vmatprep.mubr.f32.mxu0 0.0
        %2489 = vmatmul.mubr.f32.gmra.mrb[0].mxu0 %v384
        %v2490 = vpop.f32.mrb[0].mxu0
        %v2491 = vadd.f32 0.0, %v2490
        %v2492 = vpop.f32.mrb[0].mxu0
        %2493 = vmatprep.mubr.f32.mxu0 0.0
        %2494 = vmatmul.mubr.f32.gmra.mrb[0].mxu0 %v387
        %v2495 = vpop.f32.mrb[0].mxu0
        %v2496 = vadd.f32 0.0, %v2495
        %v2497 = vpop.f32.mrb[0].mxu0
        %2498 = vmatprep.mubr.f32.mxu0 0.0
        %2499 = vmatmul.mubr.f32.gmra.mrb[0].mxu0 %v390
        %v2500 = vpop.f32.mrb[0].mxu0
        %v2501 = vadd.f32 0.0, %v2500
        %v2502 = vpop.f32.mrb[0].mxu0
        %2503 = vdwg.mxu0
        %2504 = vmatprep.subr.mxu0 0.0
        %2505 = vmatpush1.msra.mxu0 %v2408
        %2506 = vmatprep.subr.mxu0 0.0
        %2507 = vmatpush1.msra.mxu0 %v2409
        %2508 = vmatprep.subr.mxu0 0.0
        %2509 = vmatpush1.msra.mxu0 %v2410
        %2510 = vmatprep.subr.mxu0 0.0
        %2511 = vmatpush1.msra.mxu0 %v2411
        %2512 = vmatprep.subr.mxu0 0.0
        %2513 = vmatpush1.msra.mxu0 0.0
        %2514 = vmatprep.subr.mxu0 0.0
        %2515 = vmatpush1.msra.mxu0 0.0
        %2516 = vmatprep.subr.mxu0 0.0
        %2517 = vmatpush1.msra.mxu0 0.0
        %2518 = vmatprep.subr.mxu0 0.0
        %2519 = vmatpush1.msra.mxu0 0.0
        %2520 = vmatprep.subr.mxu0 0.0
        %2521 = vmatpush1.msra.mxu0 0.0
        %2522 = vmatprep.subr.mxu0 0.0
        %2523 = vmatpush1.msra.mxu0 0.0
        %2524 = vmatprep.subr.mxu0 0.0
        %2525 = vmatpush1.msra.mxu0 0.0
        %2526 = vmatprep.subr.mxu0 0.0
        %2527 = vmatpush1.msra.mxu0 0.0
        %2528 = vmatprep.subr.mxu0 0.0
        %2529 = vmatpush1.msra.mxu0 0.0
        %2530 = vmatprep.subr.mxu0 0.0
        %2531 = vmatpush1.msra.mxu0 0.0
        %2532 = vmatprep.subr.mxu0 0.0
        %2533 = vmatpush1.msra.mxu0 0.0
        %2534 = vmatprep.subr.mxu0 0.0
        %2535 = vmatpush1.msra.mxu0 0.0
        %2536 = vmatprep.subr.mxu0 0.0
        %2537 = vmatpush1.msra.mxu0 0.0
        %2538 = vmatprep.subr.mxu0 0.0
        %2539 = vmatpush1.msra.mxu0 0.0
        %2540 = vmatprep.subr.mxu0 0.0
        %2541 = vmatpush1.msra.mxu0 0.0
        %2542 = vmatprep.subr.mxu0 0.0
        %2543 = vmatpush1.msra.mxu0 0.0
        %2544 = vmatprep.subr.mxu0 0.0
        %2545 = vmatpush1.msra.mxu0 0.0
        %2546 = vmatprep.subr.mxu0 0.0
        %2547 = vmatpush1.msra.mxu0 0.0
        %2548 = vmatprep.subr.mxu0 0.0
        %2549 = vmatpush1.msra.mxu0 0.0
        %2550 = vmatprep.subr.mxu0 0.0
        %2551 = vmatpush1.msra.mxu0 0.0
        %2552 = vmatprep.subr.mxu0 0.0
        %2553 = vmatpush1.msra.mxu0 0.0
        %2554 = vmatprep.subr.mxu0 0.0
        %2555 = vmatpush1.msra.mxu0 0.0
        %2556 = vmatprep.subr.mxu0 0.0
        %2557 = vmatpush1.msra.mxu0 0.0
        %2558 = vmatprep.subr.mxu0 0.0
        %2559 = vmatpush1.msra.mxu0 0.0
        %2560 = vmatprep.subr.mxu0 0.0
        %2561 = vmatpush1.msra.mxu0 0.0
        %2562 = vmatprep.subr.mxu0 0.0
        %2563 = vmatpush1.msra.mxu0 0.0
        %2564 = vmatprep.subr.mxu0 0.0
        %2565 = vmatpush1.msra.mxu0 0.0
        %2566 = vmatprep.subr.mxu0 0.0
        %2567 = vmatpush1.msra.mxu0 0.0
        %2568 = vmatprep.mubr.f32.mxu0 0.0
        %2569 = vmatmul.mubr.f32.gmra.mrb[0].mxu0 %v381
        %v2570 = vpop.f32.mrb[0].mxu0
        %v2571 = vadd.f32 0.0, %v2570
        %v2572 = vpop.f32.mrb[0].mxu0
        %2573 = vmatprep.mubr.f32.mxu0 0.0
        %2574 = vmatmul.mubr.f32.gmra.mrb[0].mxu0 %v384
        %v2575 = vpop.f32.mrb[0].mxu0
        %v2576 = vadd.f32 0.0, %v2575
        %v2577 = vpop.f32.mrb[0].mxu0
        %2578 = vmatprep.mubr.f32.mxu0 0.0
        %2579 = vmatmul.mubr.f32.gmra.mrb[0].mxu0 %v387
        %v2580 = vpop.f32.mrb[0].mxu0
        %v2581 = vadd.f32 0.0, %v2580
        %v2582 = vpop.f32.mrb[0].mxu0
        %2583 = vmatprep.mubr.f32.mxu0 0.0
        %2584 = vmatmul.mubr.f32.gmra.mrb[0].mxu0 %v390
        %v2585 = vpop.f32.mrb[0].mxu0
        %v2586 = vadd.f32 0.0, %v2585
        %v2587 = vpop.f32.mrb[0].mxu0
        %2588 = vdwg.mxu0
        %2589 = vmatprep.subr.mxu0 0.0
        %2590 = vmatpush1.msra.mxu0 %v2413
        %2591 = vmatprep.subr.mxu0 0.0
        %2592 = vmatpush1.msra.mxu0 %v2414
        %2593 = vmatprep.subr.mxu0 0.0
        %2594 = vmatpush1.msra.mxu0 %v2415
        %2595 = vmatprep.subr.mxu0 0.0
        %2596 = vmatpush1.msra.mxu0 %v2416
        %2597 = vmatprep.subr.mxu0 0.0
        %2598 = vmatpush1.msra.mxu0 0.0
        %2599 = vmatprep.subr.mxu0 0.0
        %2600 = vmatpush1.msra.mxu0 0.0
        %2601 = vmatprep.subr.mxu0 0.0
        %2602 = vmatpush1.msra.mxu0 0.0
        %2603 = vmatprep.subr.mxu0 0.0
        %2604 = vmatpush1.msra.mxu0 0.0
        %2605 = vmatprep.subr.mxu0 0.0
        %2606 = vmatpush1.msra.mxu0 0.0
        %2607 = vmatprep.subr.mxu0 0.0
        %2608 = vmatpush1.msra.mxu0 0.0
        %2609 = vmatprep.subr.mxu0 0.0
        %2610 = vmatpush1.msra.mxu0 0.0
        %2611 = vmatprep.subr.mxu0 0.0
        %2612 = vmatpush1.msra.mxu0 0.0
        %2613 = vmatprep.subr.mxu0 0.0
        %2614 = vmatpush1.msra.mxu0 0.0
        %2615 = vmatprep.subr.mxu0 0.0
        %2616 = vmatpush1.msra.mxu0 0.0
        %2617 = vmatprep.subr.mxu0 0.0
        %2618 = vmatpush1.msra.mxu0 0.0
        %2619 = vmatprep.subr.mxu0 0.0
        %2620 = vmatpush1.msra.mxu0 0.0
        %2621 = vmatprep.subr.mxu0 0.0
        %2622 = vmatpush1.msra.mxu0 0.0
        %2623 = vmatprep.subr.mxu0 0.0
        %2624 = vmatpush1.msra.mxu0 0.0
        %2625 = vmatprep.subr.mxu0 0.0
        %2626 = vmatpush1.msra.mxu0 0.0
        %2627 = vmatprep.subr.mxu0 0.0
        %2628 = vmatpush1.msra.mxu0 0.0
        %2629 = vmatprep.subr.mxu0 0.0
        %2630 = vmatpush1.msra.mxu0 0.0
        %2631 = vmatprep.subr.mxu0 0.0
        %2632 = vmatpush1.msra.mxu0 0.0
        %2633 = vmatprep.subr.mxu0 0.0
        %2634 = vmatpush1.msra.mxu0 0.0
        %2635 = vmatprep.subr.mxu0 0.0
        %2636 = vmatpush1.msra.mxu0 0.0
        %2637 = vmatprep.subr.mxu0 0.0
        %2638 = vmatpush1.msra.mxu0 0.0
        %2639 = vmatprep.subr.mxu0 0.0
        %2640 = vmatpush1.msra.mxu0 0.0
        %2641 = vmatprep.subr.mxu0 0.0
        %2642 = vmatpush1.msra.mxu0 0.0
        %2643 = vmatprep.subr.mxu0 0.0
        %2644 = vmatpush1.msra.mxu0 0.0
        %2645 = vmatprep.subr.mxu0 0.0
        %2646 = vmatpush1.msra.mxu0 0.0
        %2647 = vmatprep.subr.mxu0 0.0
        %2648 = vmatpush1.msra.mxu0 0.0
        %2649 = vmatprep.subr.mxu0 0.0
        %2650 = vmatpush1.msra.mxu0 0.0
        %2651 = vmatprep.subr.mxu0 0.0
        %2652 = vmatpush1.msra.mxu0 0.0
        %2653 = vmatprep.mubr.f32.mxu0 0.0
        %2654 = vmatmul.mubr.f32.gmra.mrb[0].mxu0 %v381
        %v2655 = vpop.f32.mrb[0].mxu0
        %v2656 = vadd.f32 0.0, %v2655
        %v2657 = vpop.f32.mrb[0].mxu0
        %2658 = vmatprep.mubr.f32.mxu0 0.0
        %2659 = vmatmul.mubr.f32.gmra.mrb[0].mxu0 %v384
        %v2660 = vpop.f32.mrb[0].mxu0
        %v2661 = vadd.f32 0.0, %v2660
        %v2662 = vpop.f32.mrb[0].mxu0
        %2663 = vmatprep.mubr.f32.mxu0 0.0
        %2664 = vmatmul.mubr.f32.gmra.mrb[0].mxu0 %v387
        %v2665 = vpop.f32.mrb[0].mxu0
        %v2666 = vadd.f32 0.0, %v2665
        %v2667 = vpop.f32.mrb[0].mxu0
        %2668 = vmatprep.mubr.f32.mxu0 0.0
        %2669 = vmatmul.mubr.f32.gmra.mrb[0].mxu0 %v390
        %v2670 = vpop.f32.mrb[0].mxu0
        %v2671 = vadd.f32 0.0, %v2670
        %v2672 = vpop.f32.mrb[0].mxu0
        %2673 = vdwg.mxu0
        %v2675 = vsel %vm647, %v2486, 0
        %v2678 = vsel %vm647, %v2571, 0
        %2680 = vmatprep.subr.mxu0 0.0
        %2681 = vmatpush1.xpose.msra.mxu0 %v2678
        %2682 = vmatprep.subr.mxu0 0.0
        %2683 = vmatpush1.xpose.msra.mxu0 0.0
        %2684 = vmatprep.subr.mxu0 0.0
        %2685 = vmatpush1.xpose.msra.mxu0 0.0
        %2686 = vmatprep.subr.mxu0 0.0
        %2687 = vmatpush1.xpose.msra.mxu0 0.0
        %2688 = vmatprep.subr.mxu0 0.0
        %2689 = vmatpush1.xpose.msra.mxu0 0.0
        %2690 = vmatprep.subr.mxu0 0.0
        %2691 = vmatpush1.xpose.msra.mxu0 0.0
        %2692 = vmatprep.subr.mxu0 0.0
        %2693 = vmatpush1.xpose.msra.mxu0 0.0
        %2694 = vmatprep.subr.mxu0 0.0
        %2695 = vmatpush1.xpose.msra.mxu0 0.0
        %2696 = vmatprep.subr.mxu0 0.0
        %2697 = vmatpush1.xpose.msra.mxu0 0.0
        %2698 = vmatprep.subr.mxu0 0.0
        %2699 = vmatpush1.xpose.msra.mxu0 0.0
        %2700 = vmatprep.subr.mxu0 0.0
        %2701 = vmatpush1.xpose.msra.mxu0 0.0
        %2702 = vmatprep.subr.mxu0 0.0
        %2703 = vmatpush1.xpose.msra.mxu0 0.0
        %2704 = vmatprep.subr.mxu0 0.0
        %2705 = vmatpush1.xpose.msra.mxu0 0.0
        %2706 = vmatprep.subr.mxu0 0.0
        %2707 = vmatpush1.xpose.msra.mxu0 0.0
        %2708 = vmatprep.subr.mxu0 0.0
        %2709 = vmatpush1.xpose.msra.mxu0 0.0
        %2710 = vmatprep.subr.mxu0 0.0
        %2711 = vmatpush1.xpose.msra.mxu0 0.0
        %2712 = vmatprep.subr.mxu0 0.0
        %2713 = vmatpush1.xpose.msra.mxu0 0.0
        %2714 = vmatprep.subr.mxu0 0.0
        %2715 = vmatpush1.xpose.msra.mxu0 0.0
        %2716 = vmatprep.subr.mxu0 0.0
        %2717 = vmatpush1.xpose.msra.mxu0 0.0
        %2718 = vmatprep.subr.mxu0 0.0
        %2719 = vmatpush1.xpose.msra.mxu0 0.0
        %2720 = vmatprep.subr.mxu0 0.0
        %2721 = vmatpush1.xpose.msra.mxu0 0.0
        %2722 = vmatprep.subr.mxu0 0.0
        %2723 = vmatpush1.xpose.msra.mxu0 0.0
        %2724 = vmatprep.subr.mxu0 0.0
        %2725 = vmatpush1.xpose.msra.mxu0 0.0
        %2726 = vmatprep.subr.mxu0 0.0
        %2727 = vmatpush1.xpose.msra.mxu0 0.0
        %2728 = vmatprep.subr.mxu0 0.0
        %2729 = vmatpush1.xpose.msra.mxu0 0.0
        %2730 = vmatprep.subr.mxu0 0.0
        %2731 = vmatpush1.xpose.msra.mxu0 0.0
        %2732 = vmatprep.subr.mxu0 0.0
        %2733 = vmatpush1.xpose.msra.mxu0 0.0
        %2734 = vmatprep.subr.mxu0 0.0
        %2735 = vmatpush1.xpose.msra.mxu0 0.0
        %2736 = vmatprep.subr.mxu0 0.0
        %2737 = vmatpush1.xpose.msra.mxu0 0.0
        %2738 = vmatprep.subr.mxu0 0.0
        %2739 = vmatpush1.xpose.msra.mxu0 0.0
        %2740 = vmatprep.subr.mxu0 0.0
        %2741 = vmatpush1.xpose.msra.mxu0 0.0
        %2742 = vmatprep.subr.mxu0 0.0
        %2743 = vmatpush1.xpose.msra.mxu0 0.0
        %2744 = vmatprep.mubr.f32.mxu0 0.0
        %2745 = vmatmul.mubr.f32.gmra.mrb[0].mxu0 %v2675
        %v2746 = vpop.f32.mrb[0].mxu0
        %v2747 = vadd.f32 0.0, %v2746
        %v2748 = vpop.f32.mrb[0].mxu0
        %2749 = vdwg.mxu0
        %v2751 = vsel %vm647, %v2491, 0
        %v2754 = vsel %vm647, %v2576, 0
        %2756 = vmatprep.subr.mxu0 0.0
        %2757 = vmatpush1.xpose.msra.mxu0 %v2754
        %2758 = vmatprep.subr.mxu0 0.0
        %2759 = vmatpush1.xpose.msra.mxu0 0.0
        %2760 = vmatprep.subr.mxu0 0.0
        %2761 = vmatpush1.xpose.msra.mxu0 0.0
        %2762 = vmatprep.subr.mxu0 0.0
        %2763 = vmatpush1.xpose.msra.mxu0 0.0
        %2764 = vmatprep.subr.mxu0 0.0
        %2765 = vmatpush1.xpose.msra.mxu0 0.0
        %2766 = vmatprep.subr.mxu0 0.0
        %2767 = vmatpush1.xpose.msra.mxu0 0.0
        %2768 = vmatprep.subr.mxu0 0.0
        %2769 = vmatpush1.xpose.msra.mxu0 0.0
        %2770 = vmatprep.subr.mxu0 0.0
        %2771 = vmatpush1.xpose.msra.mxu0 0.0
        %2772 = vmatprep.subr.mxu0 0.0
        %2773 = vmatpush1.xpose.msra.mxu0 0.0
        %2774 = vmatprep.subr.mxu0 0.0
        %2775 = vmatpush1.xpose.msra.mxu0 0.0
        %2776 = vmatprep.subr.mxu0 0.0
        %2777 = vmatpush1.xpose.msra.mxu0 0.0
        %2778 = vmatprep.subr.mxu0 0.0
        %2779 = vmatpush1.xpose.msra.mxu0 0.0
        %2780 = vmatprep.subr.mxu0 0.0
        %2781 = vmatpush1.xpose.msra.mxu0 0.0
        %2782 = vmatprep.subr.mxu0 0.0
        %2783 = vmatpush1.xpose.msra.mxu0 0.0
        %2784 = vmatprep.subr.mxu0 0.0
        %2785 = vmatpush1.xpose.msra.mxu0 0.0
        %2786 = vmatprep.subr.mxu0 0.0
        %2787 = vmatpush1.xpose.msra.mxu0 0.0
        %2788 = vmatprep.subr.mxu0 0.0
        %2789 = vmatpush1.xpose.msra.mxu0 0.0
        %2790 = vmatprep.subr.mxu0 0.0
        %2791 = vmatpush1.xpose.msra.mxu0 0.0
        %2792 = vmatprep.subr.mxu0 0.0
        %2793 = vmatpush1.xpose.msra.mxu0 0.0
        %2794 = vmatprep.subr.mxu0 0.0
        %2795 = vmatpush1.xpose.msra.mxu0 0.0
        %2796 = vmatprep.subr.mxu0 0.0
        %2797 = vmatpush1.xpose.msra.mxu0 0.0
        %2798 = vmatprep.subr.mxu0 0.0
        %2799 = vmatpush1.xpose.msra.mxu0 0.0
        %2800 = vmatprep.subr.mxu0 0.0
        %2801 = vmatpush1.xpose.msra.mxu0 0.0
        %2802 = vmatprep.subr.mxu0 0.0
        %2803 = vmatpush1.xpose.msra.mxu0 0.0
        %2804 = vmatprep.subr.mxu0 0.0
        %2805 = vmatpush1.xpose.msra.mxu0 0.0
        %2806 = vmatprep.subr.mxu0 0.0
        %2807 = vmatpush1.xpose.msra.mxu0 0.0
        %2808 = vmatprep.subr.mxu0 0.0
        %2809 = vmatpush1.xpose.msra.mxu0 0.0
        %2810 = vmatprep.subr.mxu0 0.0
        %2811 = vmatpush1.xpose.msra.mxu0 0.0
        %2812 = vmatprep.subr.mxu0 0.0
        %2813 = vmatpush1.xpose.msra.mxu0 0.0
        %2814 = vmatprep.subr.mxu0 0.0
        %2815 = vmatpush1.xpose.msra.mxu0 0.0
        %2816 = vmatprep.subr.mxu0 0.0
        %2817 = vmatpush1.xpose.msra.mxu0 0.0
        %2818 = vmatprep.subr.mxu0 0.0
        %2819 = vmatpush1.xpose.msra.mxu0 0.0
        %2820 = vmatprep.mubr.f32.mxu0 0.0
        %2821 = vmatmul.mubr.f32.gmra.mrb[0].mxu0 %v2751
        %v2822 = vpop.f32.mrb[0].mxu0
        %v2823 = vadd.f32 0.0, %v2822
        %v2824 = vpop.f32.mrb[0].mxu0
        %2825 = vdwg.mxu0
        %v2827 = vsel %vm647, %v2496, 0
        %v2830 = vsel %vm647, %v2581, 0
        %2832 = vmatprep.subr.mxu0 0.0
        %2833 = vmatpush1.xpose.msra.mxu0 %v2830
        %2834 = vmatprep.subr.mxu0 0.0
        %2835 = vmatpush1.xpose.msra.mxu0 0.0
        %2836 = vmatprep.subr.mxu0 0.0
        %2837 = vmatpush1.xpose.msra.mxu0 0.0
        %2838 = vmatprep.subr.mxu0 0.0
        %2839 = vmatpush1.xpose.msra.mxu0 0.0
        %2840 = vmatprep.subr.mxu0 0.0
        %2841 = vmatpush1.xpose.msra.mxu0 0.0
        %2842 = vmatprep.subr.mxu0 0.0
        %2843 = vmatpush1.xpose.msra.mxu0 0.0
        %2844 = vmatprep.subr.mxu0 0.0
        %2845 = vmatpush1.xpose.msra.mxu0 0.0
        %2846 = vmatprep.subr.mxu0 0.0
        %2847 = vmatpush1.xpose.msra.mxu0 0.0
        %2848 = vmatprep.subr.mxu0 0.0
        %2849 = vmatpush1.xpose.msra.mxu0 0.0
        %2850 = vmatprep.subr.mxu0 0.0
        %2851 = vmatpush1.xpose.msra.mxu0 0.0
        %2852 = vmatprep.subr.mxu0 0.0
        %2853 = vmatpush1.xpose.msra.mxu0 0.0
        %2854 = vmatprep.subr.mxu0 0.0
        %2855 = vmatpush1.xpose.msra.mxu0 0.0
        %2856 = vmatprep.subr.mxu0 0.0
        %2857 = vmatpush1.xpose.msra.mxu0 0.0
        %2858 = vmatprep.subr.mxu0 0.0
        %2859 = vmatpush1.xpose.msra.mxu0 0.0
        %2860 = vmatprep.subr.mxu0 0.0
        %2861 = vmatpush1.xpose.msra.mxu0 0.0
        %2862 = vmatprep.subr.mxu0 0.0
        %2863 = vmatpush1.xpose.msra.mxu0 0.0
        %2864 = vmatprep.subr.mxu0 0.0
        %2865 = vmatpush1.xpose.msra.mxu0 0.0
        %2866 = vmatprep.subr.mxu0 0.0
        %2867 = vmatpush1.xpose.msra.mxu0 0.0
        %2868 = vmatprep.subr.mxu0 0.0
        %2869 = vmatpush1.xpose.msra.mxu0 0.0
        %2870 = vmatprep.subr.mxu0 0.0
        %2871 = vmatpush1.xpose.msra.mxu0 0.0
        %2872 = vmatprep.subr.mxu0 0.0
        %2873 = vmatpush1.xpose.msra.mxu0 0.0
        %2874 = vmatprep.subr.mxu0 0.0
        %2875 = vmatpush1.xpose.msra.mxu0 0.0
        %2876 = vmatprep.subr.mxu0 0.0
        %2877 = vmatpush1.xpose.msra.mxu0 0.0
        %2878 = vmatprep.subr.mxu0 0.0
        %2879 = vmatpush1.xpose.msra.mxu0 0.0
        %2880 = vmatprep.subr.mxu0 0.0
        %2881 = vmatpush1.xpose.msra.mxu0 0.0
        %2882 = vmatprep.subr.mxu0 0.0
        %2883 = vmatpush1.xpose.msra.mxu0 0.0
        %2884 = vmatprep.subr.mxu0 0.0
        %2885 = vmatpush1.xpose.msra.mxu0 0.0
        %2886 = vmatprep.subr.mxu0 0.0
        %2887 = vmatpush1.xpose.msra.mxu0 0.0
        %2888 = vmatprep.subr.mxu0 0.0
        %2889 = vmatpush1.xpose.msra.mxu0 0.0
        %2890 = vmatprep.subr.mxu0 0.0
        %2891 = vmatpush1.xpose.msra.mxu0 0.0
        %2892 = vmatprep.subr.mxu0 0.0
        %2893 = vmatpush1.xpose.msra.mxu0 0.0
        %2894 = vmatprep.subr.mxu0 0.0
        %2895 = vmatpush1.xpose.msra.mxu0 0.0
        %2896 = vmatprep.mubr.f32.mxu0 0.0
        %2897 = vmatmul.mubr.f32.gmra.mrb[0].mxu0 %v2827
        %v2898 = vpop.f32.mrb[0].mxu0
        %v2899 = vadd.f32 0.0, %v2898
        %v2900 = vpop.f32.mrb[0].mxu0
        %2901 = vdwg.mxu0
        %v2903 = vsel %vm647, %v2501, 0
        %v2906 = vsel %vm647, %v2586, 0
        %2908 = vmatprep.subr.mxu0 0.0
        %2909 = vmatpush1.xpose.msra.mxu0 %v2906
        %2910 = vmatprep.subr.mxu0 0.0
        %2911 = vmatpush1.xpose.msra.mxu0 0.0
        %2912 = vmatprep.subr.mxu0 0.0
        %2913 = vmatpush1.xpose.msra.mxu0 0.0
        %2914 = vmatprep.subr.mxu0 0.0
        %2915 = vmatpush1.xpose.msra.mxu0 0.0
        %2916 = vmatprep.subr.mxu0 0.0
        %2917 = vmatpush1.xpose.msra.mxu0 0.0
        %2918 = vmatprep.subr.mxu0 0.0
        %2919 = vmatpush1.xpose.msra.mxu0 0.0
        %2920 = vmatprep.subr.mxu0 0.0
        %2921 = vmatpush1.xpose.msra.mxu0 0.0
        %2922 = vmatprep.subr.mxu0 0.0
        %2923 = vmatpush1.xpose.msra.mxu0 0.0
        %2924 = vmatprep.subr.mxu0 0.0
        %2925 = vmatpush1.xpose.msra.mxu0 0.0
        %2926 = vmatprep.subr.mxu0 0.0
        %2927 = vmatpush1.xpose.msra.mxu0 0.0
        %2928 = vmatprep.subr.mxu0 0.0
        %2929 = vmatpush1.xpose.msra.mxu0 0.0
        %2930 = vmatprep.subr.mxu0 0.0
        %2931 = vmatpush1.xpose.msra.mxu0 0.0
        %2932 = vmatprep.subr.mxu0 0.0
        %2933 = vmatpush1.xpose.msra.mxu0 0.0
        %2934 = vmatprep.subr.mxu0 0.0
        %2935 = vmatpush1.xpose.msra.mxu0 0.0
        %2936 = vmatprep.subr.mxu0 0.0
        %2937 = vmatpush1.xpose.msra.mxu0 0.0
        %2938 = vmatprep.subr.mxu0 0.0
        %2939 = vmatpush1.xpose.msra.mxu0 0.0
        %2940 = vmatprep.subr.mxu0 0.0
        %2941 = vmatpush1.xpose.msra.mxu0 0.0
        %2942 = vmatprep.subr.mxu0 0.0
        %2943 = vmatpush1.xpose.msra.mxu0 0.0
        %2944 = vmatprep.subr.mxu0 0.0
        %2945 = vmatpush1.xpose.msra.mxu0 0.0
        %2946 = vmatprep.subr.mxu0 0.0
        %2947 = vmatpush1.xpose.msra.mxu0 0.0
        %2948 = vmatprep.subr.mxu0 0.0
        %2949 = vmatpush1.xpose.msra.mxu0 0.0
        %2950 = vmatprep.subr.mxu0 0.0
        %2951 = vmatpush1.xpose.msra.mxu0 0.0
        %2952 = vmatprep.subr.mxu0 0.0
        %2953 = vmatpush1.xpose.msra.mxu0 0.0
        %2954 = vmatprep.subr.mxu0 0.0
        %2955 = vmatpush1.xpose.msra.mxu0 0.0
        %2956 = vmatprep.subr.mxu0 0.0
        %2957 = vmatpush1.xpose.msra.mxu0 0.0
        %2958 = vmatprep.subr.mxu0 0.0
        %2959 = vmatpush1.xpose.msra.mxu0 0.0
        %2960 = vmatprep.subr.mxu0 0.0
        %2961 = vmatpush1.xpose.msra.mxu0 0.0
        %2962 = vmatprep.subr.mxu0 0.0
        %2963 = vmatpush1.xpose.msra.mxu0 0.0
        %2964 = vmatprep.subr.mxu0 0.0
        %2965 = vmatpush1.xpose.msra.mxu0 0.0
        %2966 = vmatprep.subr.mxu0 0.0
        %2967 = vmatpush1.xpose.msra.mxu0 0.0
        %2968 = vmatprep.subr.mxu0 0.0
        %2969 = vmatpush1.xpose.msra.mxu0 0.0
        %2970 = vmatprep.subr.mxu0 0.0
        %2971 = vmatpush1.xpose.msra.mxu0 0.0
        %2972 = vmatprep.mubr.f32.mxu0 0.0
        %2973 = vmatmul.mubr.f32.gmra.mrb[0].mxu0 %v2903
        %v2974 = vpop.f32.mrb[0].mxu0
        %v2975 = vadd.f32 0.0, %v2974
        %v2976 = vpop.f32.mrb[0].mxu0
        %2977 = vdwg.mxu0
        %v2978 = vmul.f32 %v2747, 0.35355338
        %v2979 = vmul.f32 %v2823, 0.35355338
        %v2980 = vmul.f32 %v2899, 0.35355338
        %v2981 = vmul.f32 %v2975, 0.35355338
        %v2982 = vsel %vm647, %v2978, -inf
        %2983 = vmax.xlane.f32.xlu0 %v2982
        %v2984 = vpop.xlane.xlu0 %2983
        %v2985 = vsel %vm647, %v2979, -inf
        %2986 = vmax.xlane.f32.xlu0 %v2985
        %v2987 = vpop.xlane.xlu0 %2986
        %v2988 = vsel %vm647, %v2980, -inf
        %2989 = vmax.xlane.f32.xlu0 %v2988
        %v2990 = vpop.xlane.xlu0 %2989
        %v2991 = vsel %vm647, %v2981, -inf
        %2992 = vmax.xlane.f32.xlu0 %v2991
        %v2993 = vpop.xlane.xlu0 %2992
        %v2994 = vsub.f32 %v2978, %v2984
        %v2995 = vsub.f32 %v2979, %v2987
        %v2996 = vsub.f32 %v2980, %v2990
        %v2997 = vsub.f32 %v2981, %v2993
        %v2998 = vmul.f32 %v2994, 1.442695
        %v2999 = vpow.pop %v2998
        %v3000 = vmul.f32 %v2995, 1.442695
        %v3001 = vpow.pop %v3000
        %v3002 = vmul.f32 %v2996, 1.442695
        %v3003 = vpow.pop %v3002
        %v3004 = vmul.f32 %v2997, 1.442695
        %v3005 = vpow.pop %v3004
        %v3006 = vsel %vm647, %v2999, 0.0
        %3007 = vadd.xlane.f32.xlu0 %v3006
        %v3008 = vpop.xlane.xlu0 %3007
        %v3009 = vsel %vm647, %v3001, 0.0
        %3010 = vadd.xlane.f32.xlu0 %v3009
        %v3011 = vpop.xlane.xlu0 %3010
        %v3012 = vsel %vm647, %v3003, 0.0
        %3013 = vadd.xlane.f32.xlu0 %v3012
        %v3014 = vpop.xlane.xlu0 %3013
        %v3015 = vsel %vm647, %v3005, 0.0
        %3016 = vadd.xlane.f32.xlu0 %v3015
        %v3017 = vpop.xlane.xlu0 %3016
        %v3018 = vrcp.pop %v3008
        %v3019 = vrcp.pop %v3011
        %v3020 = vrcp.pop %v3014
        %v3021 = vrcp.pop %v3017
        %v3022 = vmul.f32 %v2999, %v3018
        %v3023 = vmul.f32 %v3001, %v3019
        %v3024 = vmul.f32 %v3003, %v3020
        %v3025 = vmul.f32 %v3005, %v3021
        %v3027 = vsel %vm647, %v3022, 0
        %3029 = vmatprep.subr.mxu0 0.0
        %3030 = vmatpush1.msra.mxu0 %v2656
        %3031 = vmatprep.subr.mxu0 0.0
        %3032 = vmatpush1.msra.mxu0 0.0
        %3033 = vmatprep.subr.mxu0 0.0
        %3034 = vmatpush1.msra.mxu0 0.0
        %3035 = vmatprep.subr.mxu0 0.0
        %3036 = vmatpush1.msra.mxu0 0.0
        %3037 = vmatprep.subr.mxu0 0.0
        %3038 = vmatpush1.msra.mxu0 0.0
        %3039 = vmatprep.subr.mxu0 0.0
        %3040 = vmatpush1.msra.mxu0 0.0
        %3041 = vmatprep.subr.mxu0 0.0
        %3042 = vmatpush1.msra.mxu0 0.0
        %3043 = vmatprep.subr.mxu0 0.0
        %3044 = vmatpush1.msra.mxu0 0.0
        %3045 = vmatprep.subr.mxu0 0.0
        %3046 = vmatpush1.msra.mxu0 0.0
        %3047 = vmatprep.subr.mxu0 0.0
        %3048 = vmatpush1.msra.mxu0 0.0
        %3049 = vmatprep.subr.mxu0 0.0
        %3050 = vmatpush1.msra.mxu0 0.0
        %3051 = vmatprep.subr.mxu0 0.0
        %3052 = vmatpush1.msra.mxu0 0.0
        %3053 = vmatprep.subr.mxu0 0.0
        %3054 = vmatpush1.msra.mxu0 0.0
        %3055 = vmatprep.subr.mxu0 0.0
        %3056 = vmatpush1.msra.mxu0 0.0
        %3057 = vmatprep.subr.mxu0 0.0
        %3058 = vmatpush1.msra.mxu0 0.0
        %3059 = vmatprep.subr.mxu0 0.0
        %3060 = vmatpush1.msra.mxu0 0.0
        %3061 = vmatprep.subr.mxu0 0.0
        %3062 = vmatpush1.msra.mxu0 0.0
        %3063 = vmatprep.subr.mxu0 0.0
        %3064 = vmatpush1.msra.mxu0 0.0
        %3065 = vmatprep.subr.mxu0 0.0
        %3066 = vmatpush1.msra.mxu0 0.0
        %3067 = vmatprep.subr.mxu0 0.0
        %3068 = vmatpush1.msra.mxu0 0.0
        %3069 = vmatprep.subr.mxu0 0.0
        %3070 = vmatpush1.msra.mxu0 0.0
        %3071 = vmatprep.subr.mxu0 0.0
        %3072 = vmatpush1.msra.mxu0 0.0
        %3073 = vmatprep.subr.mxu0 0.0
        %3074 = vmatpush1.msra.mxu0 0.0
        %3075 = vmatprep.subr.mxu0 0.0
        %3076 = vmatpush1.msra.mxu0 0.0
        %3077 = vmatprep.subr.mxu0 0.0
        %3078 = vmatpush1.msra.mxu0 0.0
        %3079 = vmatprep.subr.mxu0 0.0
        %3080 = vmatpush1.msra.mxu0 0.0
        %3081 = vmatprep.subr.mxu0 0.0
        %3082 = vmatpush1.msra.mxu0 0.0
        %3083 = vmatprep.subr.mxu0 0.0
        %3084 = vmatpush1.msra.mxu0 0.0
        %3085 = vmatprep.subr.mxu0 0.0
        %3086 = vmatpush1.msra.mxu0 0.0
        %3087 = vmatprep.subr.mxu0 0.0
        %3088 = vmatpush1.msra.mxu0 0.0
        %3089 = vmatprep.subr.mxu0 0.0
        %3090 = vmatpush1.msra.mxu0 0.0
        %3091 = vmatprep.subr.mxu0 0.0
        %3092 = vmatpush1.msra.mxu0 0.0
        %3093 = vmatprep.mubr.f32.mxu0 0.0
        %3094 = vmatmul.mubr.f32.gmra.mrb[0].mxu0 %v3027
        %v3095 = vpop.f32.mrb[0].mxu0
        %v3096 = vadd.f32 0.0, %v3095
        %v3097 = vpop.f32.mrb[0].mxu0
        %3098 = vdwg.mxu0
        %v3100 = vsel %vm647, %v3023, 0
        %3102 = vmatprep.subr.mxu0 0.0
        %3103 = vmatpush1.msra.mxu0 %v2661
        %3104 = vmatprep.subr.mxu0 0.0
        %3105 = vmatpush1.msra.mxu0 0.0
        %3106 = vmatprep.subr.mxu0 0.0
        %3107 = vmatpush1.msra.mxu0 0.0
        %3108 = vmatprep.subr.mxu0 0.0
        %3109 = vmatpush1.msra.mxu0 0.0
        %3110 = vmatprep.subr.mxu0 0.0
        %3111 = vmatpush1.msra.mxu0 0.0
        %3112 = vmatprep.subr.mxu0 0.0
        %3113 = vmatpush1.msra.mxu0 0.0
        %3114 = vmatprep.subr.mxu0 0.0
        %3115 = vmatpush1.msra.mxu0 0.0
        %3116 = vmatprep.subr.mxu0 0.0
        %3117 = vmatpush1.msra.mxu0 0.0
        %3118 = vmatprep.subr.mxu0 0.0
        %3119 = vmatpush1.msra.mxu0 0.0
        %3120 = vmatprep.subr.mxu0 0.0
        %3121 = vmatpush1.msra.mxu0 0.0
        %3122 = vmatprep.subr.mxu0 0.0
        %3123 = vmatpush1.msra.mxu0 0.0
        %3124 = vmatprep.subr.mxu0 0.0
        %3125 = vmatpush1.msra.mxu0 0.0
        %3126 = vmatprep.subr.mxu0 0.0
        %3127 = vmatpush1.msra.mxu0 0.0
        %3128 = vmatprep.subr.mxu0 0.0
        %3129 = vmatpush1.msra.mxu0 0.0
        %3130 = vmatprep.subr.mxu0 0.0
        %3131 = vmatpush1.msra.mxu0 0.0
        %3132 = vmatprep.subr.mxu0 0.0
        %3133 = vmatpush1.msra.mxu0 0.0
        %3134 = vmatprep.subr.mxu0 0.0
        %3135 = vmatpush1.msra.mxu0 0.0
        %3136 = vmatprep.subr.mxu0 0.0
        %3137 = vmatpush1.msra.mxu0 0.0
        %3138 = vmatprep.subr.mxu0 0.0
        %3139 = vmatpush1.msra.mxu0 0.0
        %3140 = vmatprep.subr.mxu0 0.0
        %3141 = vmatpush1.msra.mxu0 0.0
        %3142 = vmatprep.subr.mxu0 0.0
        %3143 = vmatpush1.msra.mxu0 0.0
        %3144 = vmatprep.subr.mxu0 0.0
        %3145 = vmatpush1.msra.mxu0 0.0
        %3146 = vmatprep.subr.mxu0 0.0
        %3147 = vmatpush1.msra.mxu0 0.0
        %3148 = vmatprep.subr.mxu0 0.0
        %3149 = vmatpush1.msra.mxu0 0.0
        %3150 = vmatprep.subr.mxu0 0.0
        %3151 = vmatpush1.msra.mxu0 0.0
        %3152 = vmatprep.subr.mxu0 0.0
        %3153 = vmatpush1.msra.mxu0 0.0
        %3154 = vmatprep.subr.mxu0 0.0
        %3155 = vmatpush1.msra.mxu0 0.0
        %3156 = vmatprep.subr.mxu0 0.0
        %3157 = vmatpush1.msra.mxu0 0.0
        %3158 = vmatprep.subr.mxu0 0.0
        %3159 = vmatpush1.msra.mxu0 0.0
        %3160 = vmatprep.subr.mxu0 0.0
        %3161 = vmatpush1.msra.mxu0 0.0
        %3162 = vmatprep.subr.mxu0 0.0
        %3163 = vmatpush1.msra.mxu0 0.0
        %3164 = vmatprep.subr.mxu0 0.0
        %3165 = vmatpush1.msra.mxu0 0.0
        %3166 = vmatprep.mubr.f32.mxu0 0.0
        %3167 = vmatmul.mubr.f32.gmra.mrb[0].mxu0 %v3100
        %v3168 = vpop.f32.mrb[0].mxu0
        %v3169 = vadd.f32 0.0, %v3168
        %v3170 = vpop.f32.mrb[0].mxu0
        %3171 = vdwg.mxu0
        %v3173 = vsel %vm647, %v3024, 0
        %3175 = vmatprep.subr.mxu0 0.0
        %3176 = vmatpush1.msra.mxu0 %v2666
        %3177 = vmatprep.subr.mxu0 0.0
        %3178 = vmatpush1.msra.mxu0 0.0
        %3179 = vmatprep.subr.mxu0 0.0
        %3180 = vmatpush1.msra.mxu0 0.0
        %3181 = vmatprep.subr.mxu0 0.0
        %3182 = vmatpush1.msra.mxu0 0.0
        %3183 = vmatprep.subr.mxu0 0.0
        %3184 = vmatpush1.msra.mxu0 0.0
        %3185 = vmatprep.subr.mxu0 0.0
        %3186 = vmatpush1.msra.mxu0 0.0
        %3187 = vmatprep.subr.mxu0 0.0
        %3188 = vmatpush1.msra.mxu0 0.0
        %3189 = vmatprep.subr.mxu0 0.0
        %3190 = vmatpush1.msra.mxu0 0.0
        %3191 = vmatprep.subr.mxu0 0.0
        %3192 = vmatpush1.msra.mxu0 0.0
        %3193 = vmatprep.subr.mxu0 0.0
        %3194 = vmatpush1.msra.mxu0 0.0
        %3195 = vmatprep.subr.mxu0 0.0
        %3196 = vmatpush1.msra.mxu0 0.0
        %3197 = vmatprep.subr.mxu0 0.0
        %3198 = vmatpush1.msra.mxu0 0.0
        %3199 = vmatprep.subr.mxu0 0.0
        %3200 = vmatpush1.msra.mxu0 0.0
        %3201 = vmatprep.subr.mxu0 0.0
        %3202 = vmatpush1.msra.mxu0 0.0
        %3203 = vmatprep.subr.mxu0 0.0
        %3204 = vmatpush1.msra.mxu0 0.0
        %3205 = vmatprep.subr.mxu0 0.0
        %3206 = vmatpush1.msra.mxu0 0.0
        %3207 = vmatprep.subr.mxu0 0.0
        %3208 = vmatpush1.msra.mxu0 0.0
        %3209 = vmatprep.subr.mxu0 0.0
        %3210 = vmatpush1.msra.mxu0 0.0
        %3211 = vmatprep.subr.mxu0 0.0
        %3212 = vmatpush1.msra.mxu0 0.0
        %3213 = vmatprep.subr.mxu0 0.0
        %3214 = vmatpush1.msra.mxu0 0.0
        %3215 = vmatprep.subr.mxu0 0.0
        %3216 = vmatpush1.msra.mxu0 0.0
        %3217 = vmatprep.subr.mxu0 0.0
        %3218 = vmatpush1.msra.mxu0 0.0
        %3219 = vmatprep.subr.mxu0 0.0
        %3220 = vmatpush1.msra.mxu0 0.0
        %3221 = vmatprep.subr.mxu0 0.0
        %3222 = vmatpush1.msra.mxu0 0.0
        %3223 = vmatprep.subr.mxu0 0.0
        %3224 = vmatpush1.msra.mxu0 0.0
        %3225 = vmatprep.subr.mxu0 0.0
        %3226 = vmatpush1.msra.mxu0 0.0
        %3227 = vmatprep.subr.mxu0 0.0
        %3228 = vmatpush1.msra.mxu0 0.0
        %3229 = vmatprep.subr.mxu0 0.0
        %3230 = vmatpush1.msra.mxu0 0.0
        %3231 = vmatprep.subr.mxu0 0.0
        %3232 = vmatpush1.msra.mxu0 0.0
        %3233 = vmatprep.subr.mxu0 0.0
        %3234 = vmatpush1.msra.mxu0 0.0
        %3235 = vmatprep.subr.mxu0 0.0
        %3236 = vmatpush1.msra.mxu0 0.0
        %3237 = vmatprep.subr.mxu0 0.0
        %3238 = vmatpush1.msra.mxu0 0.0
        %3239 = vmatprep.mubr.f32.mxu0 0.0
        %3240 = vmatmul.mubr.f32.gmra.mrb[0].mxu0 %v3173
        %v3241 = vpop.f32.mrb[0].mxu0
        %v3242 = vadd.f32 0.0, %v3241
        %v3243 = vpop.f32.mrb[0].mxu0
        %3244 = vdwg.mxu0
        %v3246 = vsel %vm647, %v3025, 0
        %3248 = vmatprep.subr.mxu0 0.0
        %3249 = vmatpush1.msra.mxu0 %v2671
        %3250 = vmatprep.subr.mxu0 0.0
        %3251 = vmatpush1.msra.mxu0 0.0
        %3252 = vmatprep.subr.mxu0 0.0
        %3253 = vmatpush1.msra.mxu0 0.0
        %3254 = vmatprep.subr.mxu0 0.0
        %3255 = vmatpush1.msra.mxu0 0.0
        %3256 = vmatprep.subr.mxu0 0.0
        %3257 = vmatpush1.msra.mxu0 0.0
        %3258 = vmatprep.subr.mxu0 0.0
        %3259 = vmatpush1.msra.mxu0 0.0
        %3260 = vmatprep.subr.mxu0 0.0
        %3261 = vmatpush1.msra.mxu0 0.0
        %3262 = vmatprep.subr.mxu0 0.0
        %3263 = vmatpush1.msra.mxu0 0.0
        %3264 = vmatprep.subr.mxu0 0.0
        %3265 = vmatpush1.msra.mxu0 0.0
        %3266 = vmatprep.subr.mxu0 0.0
        %3267 = vmatpush1.msra.mxu0 0.0
        %3268 = vmatprep.subr.mxu0 0.0
        %3269 = vmatpush1.msra.mxu0 0.0
        %3270 = vmatprep.subr.mxu0 0.0
        %3271 = vmatpush1.msra.mxu0 0.0
        %3272 = vmatprep.subr.mxu0 0.0
        %3273 = vmatpush1.msra.mxu0 0.0
        %3274 = vmatprep.subr.mxu0 0.0
        %3275 = vmatpush1.msra.mxu0 0.0
        %3276 = vmatprep.subr.mxu0 0.0
        %3277 = vmatpush1.msra.mxu0 0.0
        %3278 = vmatprep.subr.mxu0 0.0
        %3279 = vmatpush1.msra.mxu0 0.0
        %3280 = vmatprep.subr.mxu0 0.0
        %3281 = vmatpush1.msra.mxu0 0.0
        %3282 = vmatprep.subr.mxu0 0.0
        %3283 = vmatpush1.msra.mxu0 0.0
        %3284 = vmatprep.subr.mxu0 0.0
        %3285 = vmatpush1.msra.mxu0 0.0
        %3286 = vmatprep.subr.mxu0 0.0
        %3287 = vmatpush1.msra.mxu0 0.0
        %3288 = vmatprep.subr.mxu0 0.0
        %3289 = vmatpush1.msra.mxu0 0.0
        %3290 = vmatprep.subr.mxu0 0.0
        %3291 = vmatpush1.msra.mxu0 0.0
        %3292 = vmatprep.subr.mxu0 0.0
        %3293 = vmatpush1.msra.mxu0 0.0
        %3294 = vmatprep.subr.mxu0 0.0
        %3295 = vmatpush1.msra.mxu0 0.0
        %3296 = vmatprep.subr.mxu0 0.0
        %3297 = vmatpush1.msra.mxu0 0.0
        %3298 = vmatprep.subr.mxu0 0.0
        %3299 = vmatpush1.msra.mxu0 0.0
        %3300 = vmatprep.subr.mxu0 0.0
        %3301 = vmatpush1.msra.mxu0 0.0
        %3302 = vmatprep.subr.mxu0 0.0
        %3303 = vmatpush1.msra.mxu0 0.0
        %3304 = vmatprep.subr.mxu0 0.0
        %3305 = vmatpush1.msra.mxu0 0.0
        %3306 = vmatprep.subr.mxu0 0.0
        %3307 = vmatpush1.msra.mxu0 0.0
        %3308 = vmatprep.subr.mxu0 0.0
        %3309 = vmatpush1.msra.mxu0 0.0
        %3310 = vmatprep.subr.mxu0 0.0
        %3311 = vmatpush1.msra.mxu0 0.0
        %3312 = vmatprep.mubr.f32.mxu0 0.0
        %3313 = vmatmul.mubr.f32.gmra.mrb[0].mxu0 %v3246
        %v3314 = vpop.f32.mrb[0].mxu0
        %v3315 = vadd.f32 0.0, %v3314
        %v3316 = vpop.f32.mrb[0].mxu0
        %3317 = vdwg.mxu0
        %v3319 = vsel %vm647, %v3096, 0
        %v3322 = vsel %vm647, %v3169, 0
        %v3325 = vsel %vm647, %v3242, 0
        %v3328 = vsel %vm647, %v3315, 0
        %3330 = vmatprep.subr.mxu0 0.0
        %3331 = vmatpush1.msra.mxu0 %v2418
        %3332 = vmatprep.subr.mxu0 0.0
        %3333 = vmatpush1.msra.mxu0 0.0
        %3334 = vmatprep.subr.mxu0 0.0
        %3335 = vmatpush1.msra.mxu0 0.0
        %3336 = vmatprep.subr.mxu0 0.0
        %3337 = vmatpush1.msra.mxu0 0.0
        %3338 = vmatprep.subr.mxu0 0.0
        %3339 = vmatpush1.msra.mxu0 0.0
        %3340 = vmatprep.subr.mxu0 0.0
        %3341 = vmatpush1.msra.mxu0 0.0
        %3342 = vmatprep.subr.mxu0 0.0
        %3343 = vmatpush1.msra.mxu0 0.0
        %3344 = vmatprep.subr.mxu0 0.0
        %3345 = vmatpush1.msra.mxu0 0.0
        %3346 = vmatprep.subr.mxu0 0.0
        %3347 = vmatpush1.msra.mxu0 0.0
        %3348 = vmatprep.subr.mxu0 0.0
        %3349 = vmatpush1.msra.mxu0 0.0
        %3350 = vmatprep.subr.mxu0 0.0
        %3351 = vmatpush1.msra.mxu0 0.0
        %3352 = vmatprep.subr.mxu0 0.0
        %3353 = vmatpush1.msra.mxu0 0.0
        %3354 = vmatprep.subr.mxu0 0.0
        %3355 = vmatpush1.msra.mxu0 0.0
        %3356 = vmatprep.subr.mxu0 0.0
        %3357 = vmatpush1.msra.mxu0 0.0
        %3358 = vmatprep.subr.mxu0 0.0
        %3359 = vmatpush1.msra.mxu0 0.0
        %3360 = vmatprep.subr.mxu0 0.0
        %3361 = vmatpush1.msra.mxu0 0.0
        %3362 = vmatprep.subr.mxu0 0.0
        %3363 = vmatpush1.msra.mxu0 0.0
        %3364 = vmatprep.subr.mxu0 0.0
        %3365 = vmatpush1.msra.mxu0 0.0
        %3366 = vmatprep.subr.mxu0 0.0
        %3367 = vmatpush1.msra.mxu0 0.0
        %3368 = vmatprep.subr.mxu0 0.0
        %3369 = vmatpush1.msra.mxu0 0.0
        %3370 = vmatprep.subr.mxu0 0.0
        %3371 = vmatpush1.msra.mxu0 0.0
        %3372 = vmatprep.subr.mxu0 0.0
        %3373 = vmatpush1.msra.mxu0 0.0
        %3374 = vmatprep.subr.mxu0 0.0
        %3375 = vmatpush1.msra.mxu0 0.0
        %3376 = vmatprep.subr.mxu0 0.0
        %3377 = vmatpush1.msra.mxu0 0.0
        %3378 = vmatprep.subr.mxu0 0.0
        %3379 = vmatpush1.msra.mxu0 0.0
        %3380 = vmatprep.subr.mxu0 0.0
        %3381 = vmatpush1.msra.mxu0 0.0
        %3382 = vmatprep.subr.mxu0 0.0
        %3383 = vmatpush1.msra.mxu0 0.0
        %3384 = vmatprep.subr.mxu0 0.0
        %3385 = vmatpush1.msra.mxu0 0.0
        %3386 = vmatprep.subr.mxu0 0.0
        %3387 = vmatpush1.msra.mxu0 0.0
        %3388 = vmatprep.subr.mxu0 0.0
        %3389 = vmatpush1.msra.mxu0 0.0
        %3390 = vmatprep.subr.mxu0 0.0
        %3391 = vmatpush1.msra.mxu0 0.0
        %3392 = vmatprep.subr.mxu0 0.0
        %3393 = vmatpush1.msra.mxu0 0.0
        %3394 = vmatprep.mubr.f32.mxu0 0.0
        %3395 = vmatmul.mubr.f32.gmra.mrb[0].mxu0 %v3319
        %v3396 = vpop.f32.mrb[0].mxu0
        %v3397 = vadd.f32 0.0, %v3396
        %v3398 = vpop.f32.mrb[0].mxu0
        %3399 = vmatprep.mubr.f32.mxu0 0.0
        %3400 = vmatmul.mubr.f32.gmra.mrb[0].mxu0 %v3322
        %v3401 = vpop.f32.mrb[0].mxu0
        %v3402 = vadd.f32 0.0, %v3401
        %v3403 = vpop.f32.mrb[0].mxu0
        %3404 = vmatprep.mubr.f32.mxu0 0.0
        %3405 = vmatmul.mubr.f32.gmra.mrb[0].mxu0 %v3325
        %v3406 = vpop.f32.mrb[0].mxu0
        %v3407 = vadd.f32 0.0, %v3406
        %v3408 = vpop.f32.mrb[0].mxu0
        %3409 = vmatprep.mubr.f32.mxu0 0.0
        %3410 = vmatmul.mubr.f32.gmra.mrb[0].mxu0 %v3328
        %v3411 = vpop.f32.mrb[0].mxu0
        %v3412 = vadd.f32 0.0, %v3411
        %v3413 = vpop.f32.mrb[0].mxu0
        %3414 = vdwg.mxu0
        %v3415 = vadd.f32 %v2384, %v3397
        %v3416 = vadd.f32 %v2389, %v3402
        %v3417 = vadd.f32 %v2394, %v3407
        %v3418 = vadd.f32 %v2399, %v3412
        %s3419 = scalar_lea.vmem %s3, 96
        %v3420 = vld [vmem:[%s3419] sm:$0xff]
        %v3421 = vld [vmem:[%s3419 + $0x8] sm:$0xff]
        %v3422 = vld [vmem:[%s3419 + $0x10] sm:$0xff]
        %v3423 = vld [vmem:[%s3419 + $0x18] sm:$0xff]
        %s3424 = scalar_lea.vmem %s3, 224
        %v3425 = vld [vmem:[%s3424] sm:$0xff]
        %v3426 = vld [vmem:[%s3424 + $0x8] sm:$0xff]
        %v3427 = vld [vmem:[%s3424 + $0x10] sm:$0xff]
        %v3428 = vld [vmem:[%s3424 + $0x18] sm:$0xff]
        %s3429 = scalar_lea.vmem %s3, 352
        %v3430 = vld [vmem:[%s3429] sm:$0xff]
        %v3431 = vld [vmem:[%s3429 + $0x8] sm:$0xff]
        %v3432 = vld [vmem:[%s3429 + $0x10] sm:$0xff]
        %v3433 = vld [vmem:[%s3429 + $0x18] sm:$0xff]
        %s3434 = scalar_lea.vmem %s4, 24
        %v3435 = vld [vmem:[%s3434] sm:$0xff]
        %3436 = vmatprep.subr.mxu0 0.0
        %3437 = vmatpush1.msra.mxu0 %v3420
        %3438 = vmatprep.subr.mxu0 0.0
        %3439 = vmatpush1.msra.mxu0 %v3421
        %3440 = vmatprep.subr.mxu0 0.0
        %3441 = vmatpush1.msra.mxu0 %v3422
        %3442 = vmatprep.subr.mxu0 0.0
        %3443 = vmatpush1.msra.mxu0 %v3423
        %3444 = vmatprep.subr.mxu0 0.0
        %3445 = vmatpush1.msra.mxu0 0.0
        %3446 = vmatprep.subr.mxu0 0.0
        %3447 = vmatpush1.msra.mxu0 0.0
        %3448 = vmatprep.subr.mxu0 0.0
        %3449 = vmatpush1.msra.mxu0 0.0
        %3450 = vmatprep.subr.mxu0 0.0
        %3451 = vmatpush1.msra.mxu0 0.0
        %3452 = vmatprep.subr.mxu0 0.0
        %3453 = vmatpush1.msra.mxu0 0.0
        %3454 = vmatprep.subr.mxu0 0.0
        %3455 = vmatpush1.msra.mxu0 0.0
        %3456 = vmatprep.subr.mxu0 0.0
        %3457 = vmatpush1.msra.mxu0 0.0
        %3458 = vmatprep.subr.mxu0 0.0
        %3459 = vmatpush1.msra.mxu0 0.0
        %3460 = vmatprep.subr.mxu0 0.0
        %3461 = vmatpush1.msra.mxu0 0.0
        %3462 = vmatprep.subr.mxu0 0.0
        %3463 = vmatpush1.msra.mxu0 0.0
        %3464 = vmatprep.subr.mxu0 0.0
        %3465 = vmatpush1.msra.mxu0 0.0
        %3466 = vmatprep.subr.mxu0 0.0
        %3467 = vmatpush1.msra.mxu0 0.0
        %3468 = vmatprep.subr.mxu0 0.0
        %3469 = vmatpush1.msra.mxu0 0.0
        %3470 = vmatprep.subr.mxu0 0.0
        %3471 = vmatpush1.msra.mxu0 0.0
        %3472 = vmatprep.subr.mxu0 0.0
        %3473 = vmatpush1.msra.mxu0 0.0
        %3474 = vmatprep.subr.mxu0 0.0
        %3475 = vmatpush1.msra.mxu0 0.0
        %3476 = vmatprep.subr.mxu0 0.0
        %3477 = vmatpush1.msra.mxu0 0.0
        %3478 = vmatprep.subr.mxu0 0.0
        %3479 = vmatpush1.msra.mxu0 0.0
        %3480 = vmatprep.subr.mxu0 0.0
        %3481 = vmatpush1.msra.mxu0 0.0
        %3482 = vmatprep.subr.mxu0 0.0
        %3483 = vmatpush1.msra.mxu0 0.0
        %3484 = vmatprep.subr.mxu0 0.0
        %3485 = vmatpush1.msra.mxu0 0.0
        %3486 = vmatprep.subr.mxu0 0.0
        %3487 = vmatpush1.msra.mxu0 0.0
        %3488 = vmatprep.subr.mxu0 0.0
        %3489 = vmatpush1.msra.mxu0 0.0
        %3490 = vmatprep.subr.mxu0 0.0
        %3491 = vmatpush1.msra.mxu0 0.0
        %3492 = vmatprep.subr.mxu0 0.0
        %3493 = vmatpush1.msra.mxu0 0.0
        %3494 = vmatprep.subr.mxu0 0.0
        %3495 = vmatpush1.msra.mxu0 0.0
        %3496 = vmatprep.subr.mxu0 0.0
        %3497 = vmatpush1.msra.mxu0 0.0
        %3498 = vmatprep.subr.mxu0 0.0
        %3499 = vmatpush1.msra.mxu0 0.0
        %3500 = vmatprep.mubr.f32.mxu0 0.0
        %3501 = vmatmul.mubr.f32.gmra.mrb[0].mxu0 %v381
        %v3502 = vpop.f32.mrb[0].mxu0
        %v3503 = vadd.f32 0.0, %v3502
        %v3504 = vpop.f32.mrb[0].mxu0
        %3505 = vmatprep.mubr.f32.mxu0 0.0
        %3506 = vmatmul.mubr.f32.gmra.mrb[0].mxu0 %v384
        %v3507 = vpop.f32.mrb[0].mxu0
        %v3508 = vadd.f32 0.0, %v3507
        %v3509 = vpop.f32.mrb[0].mxu0
        %3510 = vmatprep.mubr.f32.mxu0 0.0
        %3511 = vmatmul.mubr.f32.gmra.mrb[0].mxu0 %v387
        %v3512 = vpop.f32.mrb[0].mxu0
        %v3513 = vadd.f32 0.0, %v3512
        %v3514 = vpop.f32.mrb[0].mxu0
        %3515 = vmatprep.mubr.f32.mxu0 0.0
        %3516 = vmatmul.mubr.f32.gmra.mrb[0].mxu0 %v390
        %v3517 = vpop.f32.mrb[0].mxu0
        %v3518 = vadd.f32 0.0, %v3517
        %v3519 = vpop.f32.mrb[0].mxu0
        %3520 = vdwg.mxu0
        %3521 = vmatprep.subr.mxu0 0.0
        %3522 = vmatpush1.msra.mxu0 %v3425
        %3523 = vmatprep.subr.mxu0 0.0
        %3524 = vmatpush1.msra.mxu0 %v3426
        %3525 = vmatprep.subr.mxu0 0.0
        %3526 = vmatpush1.msra.mxu0 %v3427
        %3527 = vmatprep.subr.mxu0 0.0
        %3528 = vmatpush1.msra.mxu0 %v3428
        %3529 = vmatprep.subr.mxu0 0.0
        %3530 = vmatpush1.msra.mxu0 0.0
        %3531 = vmatprep.subr.mxu0 0.0
        %3532 = vmatpush1.msra.mxu0 0.0
        %3533 = vmatprep.subr.mxu0 0.0
        %3534 = vmatpush1.msra.mxu0 0.0
        %3535 = vmatprep.subr.mxu0 0.0
        %3536 = vmatpush1.msra.mxu0 0.0
        %3537 = vmatprep.subr.mxu0 0.0
        %3538 = vmatpush1.msra.mxu0 0.0
        %3539 = vmatprep.subr.mxu0 0.0
        %3540 = vmatpush1.msra.mxu0 0.0
        %3541 = vmatprep.subr.mxu0 0.0
        %3542 = vmatpush1.msra.mxu0 0.0
        %3543 = vmatprep.subr.mxu0 0.0
        %3544 = vmatpush1.msra.mxu0 0.0
        %3545 = vmatprep.subr.mxu0 0.0
        %3546 = vmatpush1.msra.mxu0 0.0
        %3547 = vmatprep.subr.mxu0 0.0
        %3548 = vmatpush1.msra.mxu0 0.0
        %3549 = vmatprep.subr.mxu0 0.0
        %3550 = vmatpush1.msra.mxu0 0.0
        %3551 = vmatprep.subr.mxu0 0.0
        %3552 = vmatpush1.msra.mxu0 0.0
        %3553 = vmatprep.subr.mxu0 0.0
        %3554 = vmatpush1.msra.mxu0 0.0
        %3555 = vmatprep.subr.mxu0 0.0
        %3556 = vmatpush1.msra.mxu0 0.0
        %3557 = vmatprep.subr.mxu0 0.0
        %3558 = vmatpush1.msra.mxu0 0.0
        %3559 = vmatprep.subr.mxu0 0.0
        %3560 = vmatpush1.msra.mxu0 0.0
        %3561 = vmatprep.subr.mxu0 0.0
        %3562 = vmatpush1.msra.mxu0 0.0
        %3563 = vmatprep.subr.mxu0 0.0
        %3564 = vmatpush1.msra.mxu0 0.0
        %3565 = vmatprep.subr.mxu0 0.0
        %3566 = vmatpush1.msra.mxu0 0.0
        %3567 = vmatprep.subr.mxu0 0.0
        %3568 = vmatpush1.msra.mxu0 0.0
        %3569 = vmatprep.subr.mxu0 0.0
        %3570 = vmatpush1.msra.mxu0 0.0
        %3571 = vmatprep.subr.mxu0 0.0
        %3572 = vmatpush1.msra.mxu0 0.0
        %3573 = vmatprep.subr.mxu0 0.0
        %3574 = vmatpush1.msra.mxu0 0.0
        %3575 = vmatprep.subr.mxu0 0.0
        %3576 = vmatpush1.msra.mxu0 0.0
        %3577 = vmatprep.subr.mxu0 0.0
        %3578 = vmatpush1.msra.mxu0 0.0
        %3579 = vmatprep.subr.mxu0 0.0
        %3580 = vmatpush1.msra.mxu0 0.0
        %3581 = vmatprep.subr.mxu0 0.0
        %3582 = vmatpush1.msra.mxu0 0.0
        %3583 = vmatprep.subr.mxu0 0.0
        %3584 = vmatpush1.msra.mxu0 0.0
        %3585 = vmatprep.mubr.f32.mxu0 0.0
        %3586 = vmatmul.mubr.f32.gmra.mrb[0].mxu0 %v381
        %v3587 = vpop.f32.mrb[0].mxu0
        %v3588 = vadd.f32 0.0, %v3587
        %v3589 = vpop.f32.mrb[0].mxu0
        %3590 = vmatprep.mubr.f32.mxu0 0.0
        %3591 = vmatmul.mubr.f32.gmra.mrb[0].mxu0 %v384
        %v3592 = vpop.f32.mrb[0].mxu0
        %v3593 = vadd.f32 0.0, %v3592
        %v3594 = vpop.f32.mrb[0].mxu0
        %3595 = vmatprep.mubr.f32.mxu0 0.0
        %3596 = vmatmul.mubr.f32.gmra.mrb[0].mxu0 %v387
        %v3597 = vpop.f32.mrb[0].mxu0
        %v3598 = vadd.f32 0.0, %v3597
        %v3599 = vpop.f32.mrb[0].mxu0
        %3600 = vmatprep.mubr.f32.mxu0 0.0
        %3601 = vmatmul.mubr.f32.gmra.mrb[0].mxu0 %v390
        %v3602 = vpop.f32.mrb[0].mxu0
        %v3603 = vadd.f32 0.0, %v3602
        %v3604 = vpop.f32.mrb[0].mxu0
        %3605 = vdwg.mxu0
        %3606 = vmatprep.subr.mxu0 0.0
        %3607 = vmatpush1.msra.mxu0 %v3430
        %3608 = vmatprep.subr.mxu0 0.0
        %3609 = vmatpush1.msra.mxu0 %v3431
        %3610 = vmatprep.subr.mxu0 0.0
        %3611 = vmatpush1.msra.mxu0 %v3432
        %3612 = vmatprep.subr.mxu0 0.0
        %3613 = vmatpush1.msra.mxu0 %v3433
        %3614 = vmatprep.subr.mxu0 0.0
        %3615 = vmatpush1.msra.mxu0 0.0
        %3616 = vmatprep.subr.mxu0 0.0
        %3617 = vmatpush1.msra.mxu0 0.0
        %3618 = vmatprep.subr.mxu0 0.0
        %3619 = vmatpush1.msra.mxu0 0.0
        %3620 = vmatprep.subr.mxu0 0.0
        %3621 = vmatpush1.msra.mxu0 0.0
        %3622 = vmatprep.subr.mxu0 0.0
        %3623 = vmatpush1.msra.mxu0 0.0
        %3624 = vmatprep.subr.mxu0 0.0
        %3625 = vmatpush1.msra.mxu0 0.0
        %3626 = vmatprep.subr.mxu0 0.0
        %3627 = vmatpush1.msra.mxu0 0.0
        %3628 = vmatprep.subr.mxu0 0.0
        %3629 = vmatpush1.msra.mxu0 0.0
        %3630 = vmatprep.subr.mxu0 0.0
        %3631 = vmatpush1.msra.mxu0 0.0
        %3632 = vmatprep.subr.mxu0 0.0
        %3633 = vmatpush1.msra.mxu0 0.0
        %3634 = vmatprep.subr.mxu0 0.0
        %3635 = vmatpush1.msra.mxu0 0.0
        %3636 = vmatprep.subr.mxu0 0.0
        %3637 = vmatpush1.msra.mxu0 0.0
        %3638 = vmatprep.subr.mxu0 0.0
        %3639 = vmatpush1.msra.mxu0 0.0
        %3640 = vmatprep.subr.mxu0 0.0
        %3641 = vmatpush1.msra.mxu0 0.0
        %3642 = vmatprep.subr.mxu0 0.0
        %3643 = vmatpush1.msra.mxu0 0.0
        %3644 = vmatprep.subr.mxu0 0.0
        %3645 = vmatpush1.msra.mxu0 0.0
        %3646 = vmatprep.subr.mxu0 0.0
        %3647 = vmatpush1.msra.mxu0 0.0
        %3648 = vmatprep.subr.mxu0 0.0
        %3649 = vmatpush1.msra.mxu0 0.0
        %3650 = vmatprep.subr.mxu0 0.0
        %3651 = vmatpush1.msra.mxu0 0.0
        %3652 = vmatprep.subr.mxu0 0.0
        %3653 = vmatpush1.msra.mxu0 0.0
        %3654 = vmatprep.subr.mxu0 0.0
        %3655 = vmatpush1.msra.mxu0 0.0
        %3656 = vmatprep.subr.mxu0 0.0
        %3657 = vmatpush1.msra.mxu0 0.0
        %3658 = vmatprep.subr.mxu0 0.0
        %3659 = vmatpush1.msra.mxu0 0.0
        %3660 = vmatprep.subr.mxu0 0.0
        %3661 = vmatpush1.msra.mxu0 0.0
        %3662 = vmatprep.subr.mxu0 0.0
        %3663 = vmatpush1.msra.mxu0 0.0
        %3664 = vmatprep.subr.mxu0 0.0
        %3665 = vmatpush1.msra.mxu0 0.0
        %3666 = vmatprep.subr.mxu0 0.0
        %3667 = vmatpush1.msra.mxu0 0.0
        %3668 = vmatprep.subr.mxu0 0.0
        %3669 = vmatpush1.msra.mxu0 0.0
        %3670 = vmatprep.mubr.f32.mxu0 0.0
        %3671 = vmatmul.mubr.f32.gmra.mrb[0].mxu0 %v381
        %v3672 = vpop.f32.mrb[0].mxu0
        %v3673 = vadd.f32 0.0, %v3672
        %v3674 = vpop.f32.mrb[0].mxu0
        %3675 = vmatprep.mubr.f32.mxu0 0.0
        %3676 = vmatmul.mubr.f32.gmra.mrb[0].mxu0 %v384
        %v3677 = vpop.f32.mrb[0].mxu0
        %v3678 = vadd.f32 0.0, %v3677
        %v3679 = vpop.f32.mrb[0].mxu0
        %3680 = vmatprep.mubr.f32.mxu0 0.0
        %3681 = vmatmul.mubr.f32.gmra.mrb[0].mxu0 %v387
        %v3682 = vpop.f32.mrb[0].mxu0
        %v3683 = vadd.f32 0.0, %v3682
        %v3684 = vpop.f32.mrb[0].mxu0
        %3685 = vmatprep.mubr.f32.mxu0 0.0
        %3686 = vmatmul.mubr.f32.gmra.mrb[0].mxu0 %v390
        %v3687 = vpop.f32.mrb[0].mxu0
        %v3688 = vadd.f32 0.0, %v3687
        %v3689 = vpop.f32.mrb[0].mxu0
        %3690 = vdwg.mxu0
        %v3692 = vsel %vm647, %v3503, 0
        %v3695 = vsel %vm647, %v3588, 0
        %3697 = vmatprep.subr.mxu0 0.0
        %3698 = vmatpush1.xpose.msra.mxu0 %v3695
        %3699 = vmatprep.subr.mxu0 0.0
        %3700 = vmatpush1.xpose.msra.mxu0 0.0
        %3701 = vmatprep.subr.mxu0 0.0
        %3702 = vmatpush1.xpose.msra.mxu0 0.0
        %3703 = vmatprep.subr.mxu0 0.0
        %3704 = vmatpush1.xpose.msra.mxu0 0.0
        %3705 = vmatprep.subr.mxu0 0.0
        %3706 = vmatpush1.xpose.msra.mxu0 0.0
        %3707 = vmatprep.subr.mxu0 0.0
        %3708 = vmatpush1.xpose.msra.mxu0 0.0
        %3709 = vmatprep.subr.mxu0 0.0
        %3710 = vmatpush1.xpose.msra.mxu0 0.0
        %3711 = vmatprep.subr.mxu0 0.0
        %3712 = vmatpush1.xpose.msra.mxu0 0.0
        %3713 = vmatprep.subr.mxu0 0.0
        %3714 = vmatpush1.xpose.msra.mxu0 0.0
        %3715 = vmatprep.subr.mxu0 0.0
        %3716 = vmatpush1.xpose.msra.mxu0 0.0
        %3717 = vmatprep.subr.mxu0 0.0
        %3718 = vmatpush1.xpose.msra.mxu0 0.0
        %3719 = vmatprep.subr.mxu0 0.0
        %3720 = vmatpush1.xpose.msra.mxu0 0.0
        %3721 = vmatprep.subr.mxu0 0.0
        %3722 = vmatpush1.xpose.msra.mxu0 0.0
        %3723 = vmatprep.subr.mxu0 0.0
        %3724 = vmatpush1.xpose.msra.mxu0 0.0
        %3725 = vmatprep.subr.mxu0 0.0
        %3726 = vmatpush1.xpose.msra.mxu0 0.0
        %3727 = vmatprep.subr.mxu0 0.0
        %3728 = vmatpush1.xpose.msra.mxu0 0.0
        %3729 = vmatprep.subr.mxu0 0.0
        %3730 = vmatpush1.xpose.msra.mxu0 0.0
        %3731 = vmatprep.subr.mxu0 0.0
        %3732 = vmatpush1.xpose.msra.mxu0 0.0
        %3733 = vmatprep.subr.mxu0 0.0
        %3734 = vmatpush1.xpose.msra.mxu0 0.0
        %3735 = vmatprep.subr.mxu0 0.0
        %3736 = vmatpush1.xpose.msra.mxu0 0.0
        %3737 = vmatprep.subr.mxu0 0.0
        %3738 = vmatpush1.xpose.msra.mxu0 0.0
        %3739 = vmatprep.subr.mxu0 0.0
        %3740 = vmatpush1.xpose.msra.mxu0 0.0
        %3741 = vmatprep.subr.mxu0 0.0
        %3742 = vmatpush1.xpose.msra.mxu0 0.0
        %3743 = vmatprep.subr.mxu0 0.0
        %3744 = vmatpush1.xpose.msra.mxu0 0.0
        %3745 = vmatprep.subr.mxu0 0.0
        %3746 = vmatpush1.xpose.msra.mxu0 0.0
        %3747 = vmatprep.subr.mxu0 0.0
        %3748 = vmatpush1.xpose.msra.mxu0 0.0
        %3749 = vmatprep.subr.mxu0 0.0
        %3750 = vmatpush1.xpose.msra.mxu0 0.0
        %3751 = vmatprep.subr.mxu0 0.0
        %3752 = vmatpush1.xpose.msra.mxu0 0.0
        %3753 = vmatprep.subr.mxu0 0.0
        %3754 = vmatpush1.xpose.msra.mxu0 0.0
        %3755 = vmatprep.subr.mxu0 0.0
        %3756 = vmatpush1.xpose.msra.mxu0 0.0
        %3757 = vmatprep.subr.mxu0 0.0
        %3758 = vmatpush1.xpose.msra.mxu0 0.0
        %3759 = vmatprep.subr.mxu0 0.0
        %3760 = vmatpush1.xpose.msra.mxu0 0.0
        %3761 = vmatprep.mubr.f32.mxu0 0.0
        %3762 = vmatmul.mubr.f32.gmra.mrb[0].mxu0 %v3692
        %v3763 = vpop.f32.mrb[0].mxu0
        %v3764 = vadd.f32 0.0, %v3763
        %v3765 = vpop.f32.mrb[0].mxu0
        %3766 = vdwg.mxu0
        %v3768 = vsel %vm647, %v3508, 0
        %v3771 = vsel %vm647, %v3593, 0
        %3773 = vmatprep.subr.mxu0 0.0
        %3774 = vmatpush1.xpose.msra.mxu0 %v3771
        %3775 = vmatprep.subr.mxu0 0.0
        %3776 = vmatpush1.xpose.msra.mxu0 0.0
        %3777 = vmatprep.subr.mxu0 0.0
        %3778 = vmatpush1.xpose.msra.mxu0 0.0
        %3779 = vmatprep.subr.mxu0 0.0
        %3780 = vmatpush1.xpose.msra.mxu0 0.0
        %3781 = vmatprep.subr.mxu0 0.0
        %3782 = vmatpush1.xpose.msra.mxu0 0.0
        %3783 = vmatprep.subr.mxu0 0.0
        %3784 = vmatpush1.xpose.msra.mxu0 0.0
        %3785 = vmatprep.subr.mxu0 0.0
        %3786 = vmatpush1.xpose.msra.mxu0 0.0
        %3787 = vmatprep.subr.mxu0 0.0
        %3788 = vmatpush1.xpose.msra.mxu0 0.0
        %3789 = vmatprep.subr.mxu0 0.0
        %3790 = vmatpush1.xpose.msra.mxu0 0.0
        %3791 = vmatprep.subr.mxu0 0.0
        %3792 = vmatpush1.xpose.msra.mxu0 0.0
        %3793 = vmatprep.subr.mxu0 0.0
        %3794 = vmatpush1.xpose.msra.mxu0 0.0
        %3795 = vmatprep.subr.mxu0 0.0
        %3796 = vmatpush1.xpose.msra.mxu0 0.0
        %3797 = vmatprep.subr.mxu0 0.0
        %3798 = vmatpush1.xpose.msra.mxu0 0.0
        %3799 = vmatprep.subr.mxu0 0.0
        %3800 = vmatpush1.xpose.msra.mxu0 0.0
        %3801 = vmatprep.subr.mxu0 0.0
        %3802 = vmatpush1.xpose.msra.mxu0 0.0
        %3803 = vmatprep.subr.mxu0 0.0
        %3804 = vmatpush1.xpose.msra.mxu0 0.0
        %3805 = vmatprep.subr.mxu0 0.0
        %3806 = vmatpush1.xpose.msra.mxu0 0.0
        %3807 = vmatprep.subr.mxu0 0.0
        %3808 = vmatpush1.xpose.msra.mxu0 0.0
        %3809 = vmatprep.subr.mxu0 0.0
        %3810 = vmatpush1.xpose.msra.mxu0 0.0
        %3811 = vmatprep.subr.mxu0 0.0
        %3812 = vmatpush1.xpose.msra.mxu0 0.0
        %3813 = vmatprep.subr.mxu0 0.0
        %3814 = vmatpush1.xpose.msra.mxu0 0.0
        %3815 = vmatprep.subr.mxu0 0.0
        %3816 = vmatpush1.xpose.msra.mxu0 0.0
        %3817 = vmatprep.subr.mxu0 0.0
        %3818 = vmatpush1.xpose.msra.mxu0 0.0
        %3819 = vmatprep.subr.mxu0 0.0
        %3820 = vmatpush1.xpose.msra.mxu0 0.0
        %3821 = vmatprep.subr.mxu0 0.0
        %3822 = vmatpush1.xpose.msra.mxu0 0.0
        %3823 = vmatprep.subr.mxu0 0.0
        %3824 = vmatpush1.xpose.msra.mxu0 0.0
        %3825 = vmatprep.subr.mxu0 0.0
        %3826 = vmatpush1.xpose.msra.mxu0 0.0
        %3827 = vmatprep.subr.mxu0 0.0
        %3828 = vmatpush1.xpose.msra.mxu0 0.0
        %3829 = vmatprep.subr.mxu0 0.0
        %3830 = vmatpush1.xpose.msra.mxu0 0.0
        %3831 = vmatprep.subr.mxu0 0.0
        %3832 = vmatpush1.xpose.msra.mxu0 0.0
        %3833 = vmatprep.subr.mxu0 0.0
        %3834 = vmatpush1.xpose.msra.mxu0 0.0
        %3835 = vmatprep.subr.mxu0 0.0
        %3836 = vmatpush1.xpose.msra.mxu0 0.0
        %3837 = vmatprep.mubr.f32.mxu0 0.0
        %3838 = vmatmul.mubr.f32.gmra.mrb[0].mxu0 %v3768
        %v3839 = vpop.f32.mrb[0].mxu0
        %v3840 = vadd.f32 0.0, %v3839
        %v3841 = vpop.f32.mrb[0].mxu0
        %3842 = vdwg.mxu0
        %v3844 = vsel %vm647, %v3513, 0
        %v3847 = vsel %vm647, %v3598, 0
        %3849 = vmatprep.subr.mxu0 0.0
        %3850 = vmatpush1.xpose.msra.mxu0 %v3847
        %3851 = vmatprep.subr.mxu0 0.0
        %3852 = vmatpush1.xpose.msra.mxu0 0.0
        %3853 = vmatprep.subr.mxu0 0.0
        %3854 = vmatpush1.xpose.msra.mxu0 0.0
        %3855 = vmatprep.subr.mxu0 0.0
        %3856 = vmatpush1.xpose.msra.mxu0 0.0
        %3857 = vmatprep.subr.mxu0 0.0
        %3858 = vmatpush1.xpose.msra.mxu0 0.0
        %3859 = vmatprep.subr.mxu0 0.0
        %3860 = vmatpush1.xpose.msra.mxu0 0.0
        %3861 = vmatprep.subr.mxu0 0.0
        %3862 = vmatpush1.xpose.msra.mxu0 0.0
        %3863 = vmatprep.subr.mxu0 0.0
        %3864 = vmatpush1.xpose.msra.mxu0 0.0
        %3865 = vmatprep.subr.mxu0 0.0
        %3866 = vmatpush1.xpose.msra.mxu0 0.0
        %3867 = vmatprep.subr.mxu0 0.0
        %3868 = vmatpush1.xpose.msra.mxu0 0.0
        %3869 = vmatprep.subr.mxu0 0.0
        %3870 = vmatpush1.xpose.msra.mxu0 0.0
        %3871 = vmatprep.subr.mxu0 0.0
        %3872 = vmatpush1.xpose.msra.mxu0 0.0
        %3873 = vmatprep.subr.mxu0 0.0
        %3874 = vmatpush1.xpose.msra.mxu0 0.0
        %3875 = vmatprep.subr.mxu0 0.0
        %3876 = vmatpush1.xpose.msra.mxu0 0.0
        %3877 = vmatprep.subr.mxu0 0.0
        %3878 = vmatpush1.xpose.msra.mxu0 0.0
        %3879 = vmatprep.subr.mxu0 0.0
        %3880 = vmatpush1.xpose.msra.mxu0 0.0
        %3881 = vmatprep.subr.mxu0 0.0
        %3882 = vmatpush1.xpose.msra.mxu0 0.0
        %3883 = vmatprep.subr.mxu0 0.0
        %3884 = vmatpush1.xpose.msra.mxu0 0.0
        %3885 = vmatprep.subr.mxu0 0.0
        %3886 = vmatpush1.xpose.msra.mxu0 0.0
        %3887 = vmatprep.subr.mxu0 0.0
        %3888 = vmatpush1.xpose.msra.mxu0 0.0
        %3889 = vmatprep.subr.mxu0 0.0
        %3890 = vmatpush1.xpose.msra.mxu0 0.0
        %3891 = vmatprep.subr.mxu0 0.0
        %3892 = vmatpush1.xpose.msra.mxu0 0.0
        %3893 = vmatprep.subr.mxu0 0.0
        %3894 = vmatpush1.xpose.msra.mxu0 0.0
        %3895 = vmatprep.subr.mxu0 0.0
        %3896 = vmatpush1.xpose.msra.mxu0 0.0
        %3897 = vmatprep.subr.mxu0 0.0
        %3898 = vmatpush1.xpose.msra.mxu0 0.0
        %3899 = vmatprep.subr.mxu0 0.0
        %3900 = vmatpush1.xpose.msra.mxu0 0.0
        %3901 = vmatprep.subr.mxu0 0.0
        %3902 = vmatpush1.xpose.msra.mxu0 0.0
        %3903 = vmatprep.subr.mxu0 0.0
        %3904 = vmatpush1.xpose.msra.mxu0 0.0
        %3905 = vmatprep.subr.mxu0 0.0
        %3906 = vmatpush1.xpose.msra.mxu0 0.0
        %3907 = vmatprep.subr.mxu0 0.0
        %3908 = vmatpush1.xpose.msra.mxu0 0.0
        %3909 = vmatprep.subr.mxu0 0.0
        %3910 = vmatpush1.xpose.msra.mxu0 0.0
        %3911 = vmatprep.subr.mxu0 0.0
        %3912 = vmatpush1.xpose.msra.mxu0 0.0
        %3913 = vmatprep.mubr.f32.mxu0 0.0
        %3914 = vmatmul.mubr.f32.gmra.mrb[0].mxu0 %v3844
        %v3915 = vpop.f32.mrb[0].mxu0
        %v3916 = vadd.f32 0.0, %v3915
        %v3917 = vpop.f32.mrb[0].mxu0
        %3918 = vdwg.mxu0
        %v3920 = vsel %vm647, %v3518, 0
        %v3923 = vsel %vm647, %v3603, 0
        %3925 = vmatprep.subr.mxu0 0.0
        %3926 = vmatpush1.xpose.msra.mxu0 %v3923
        %3927 = vmatprep.subr.mxu0 0.0
        %3928 = vmatpush1.xpose.msra.mxu0 0.0
        %3929 = vmatprep.subr.mxu0 0.0
        %3930 = vmatpush1.xpose.msra.mxu0 0.0
        %3931 = vmatprep.subr.mxu0 0.0
        %3932 = vmatpush1.xpose.msra.mxu0 0.0
        %3933 = vmatprep.subr.mxu0 0.0
        %3934 = vmatpush1.xpose.msra.mxu0 0.0
        %3935 = vmatprep.subr.mxu0 0.0
        %3936 = vmatpush1.xpose.msra.mxu0 0.0
        %3937 = vmatprep.subr.mxu0 0.0
        %3938 = vmatpush1.xpose.msra.mxu0 0.0
        %3939 = vmatprep.subr.mxu0 0.0
        %3940 = vmatpush1.xpose.msra.mxu0 0.0
        %3941 = vmatprep.subr.mxu0 0.0
        %3942 = vmatpush1.xpose.msra.mxu0 0.0
        %3943 = vmatprep.subr.mxu0 0.0
        %3944 = vmatpush1.xpose.msra.mxu0 0.0
        %3945 = vmatprep.subr.mxu0 0.0
        %3946 = vmatpush1.xpose.msra.mxu0 0.0
        %3947 = vmatprep.subr.mxu0 0.0
        %3948 = vmatpush1.xpose.msra.mxu0 0.0
        %3949 = vmatprep.subr.mxu0 0.0
        %3950 = vmatpush1.xpose.msra.mxu0 0.0
        %3951 = vmatprep.subr.mxu0 0.0
        %3952 = vmatpush1.xpose.msra.mxu0 0.0
        %3953 = vmatprep.subr.mxu0 0.0
        %3954 = vmatpush1.xpose.msra.mxu0 0.0
        %3955 = vmatprep.subr.mxu0 0.0
        %3956 = vmatpush1.xpose.msra.mxu0 0.0
        %3957 = vmatprep.subr.mxu0 0.0
        %3958 = vmatpush1.xpose.msra.mxu0 0.0
        %3959 = vmatprep.subr.mxu0 0.0
        %3960 = vmatpush1.xpose.msra.mxu0 0.0
        %3961 = vmatprep.subr.mxu0 0.0
        %3962 = vmatpush1.xpose.msra.mxu0 0.0
        %3963 = vmatprep.subr.mxu0 0.0
        %3964 = vmatpush1.xpose.msra.mxu0 0.0
        %3965 = vmatprep.subr.mxu0 0.0
        %3966 = vmatpush1.xpose.msra.mxu0 0.0
        %3967 = vmatprep.subr.mxu0 0.0
        %3968 = vmatpush1.xpose.msra.mxu0 0.0
        %3969 = vmatprep.subr.mxu0 0.0
        %3970 = vmatpush1.xpose.msra.mxu0 0.0
        %3971 = vmatprep.subr.mxu0 0.0
        %3972 = vmatpush1.xpose.msra.mxu0 0.0
        %3973 = vmatprep.subr.mxu0 0.0
        %3974 = vmatpush1.xpose.msra.mxu0 0.0
        %3975 = vmatprep.subr.mxu0 0.0
        %3976 = vmatpush1.xpose.msra.mxu0 0.0
        %3977 = vmatprep.subr.mxu0 0.0
        %3978 = vmatpush1.xpose.msra.mxu0 0.0
        %3979 = vmatprep.subr.mxu0 0.0
        %3980 = vmatpush1.xpose.msra.mxu0 0.0
        %3981 = vmatprep.subr.mxu0 0.0
        %3982 = vmatpush1.xpose.msra.mxu0 0.0
        %3983 = vmatprep.subr.mxu0 0.0
        %3984 = vmatpush1.xpose.msra.mxu0 0.0
        %3985 = vmatprep.subr.mxu0 0.0
        %3986 = vmatpush1.xpose.msra.mxu0 0.0
        %3987 = vmatprep.subr.mxu0 0.0
        %3988 = vmatpush1.xpose.msra.mxu0 0.0
        %3989 = vmatprep.mubr.f32.mxu0 0.0
        %3990 = vmatmul.mubr.f32.gmra.mrb[0].mxu0 %v3920
        %v3991 = vpop.f32.mrb[0].mxu0
        %v3992 = vadd.f32 0.0, %v3991
        %v3993 = vpop.f32.mrb[0].mxu0
        %3994 = vdwg.mxu0
        %v3995 = vmul.f32 %v3764, 0.35355338
        %v3996 = vmul.f32 %v3840, 0.35355338
        %v3997 = vmul.f32 %v3916, 0.35355338
        %v3998 = vmul.f32 %v3992, 0.35355338
        %v3999 = vsel %vm647, %v3995, -inf
        %4000 = vmax.xlane.f32.xlu0 %v3999
        %v4001 = vpop.xlane.xlu0 %4000
        %v4002 = vsel %vm647, %v3996, -inf
        %4003 = vmax.xlane.f32.xlu0 %v4002
        %v4004 = vpop.xlane.xlu0 %4003
        %v4005 = vsel %vm647, %v3997, -inf
        %4006 = vmax.xlane.f32.xlu0 %v4005
        %v4007 = vpop.xlane.xlu0 %4006
        %v4008 = vsel %vm647, %v3998, -inf
        %4009 = vmax.xlane.f32.xlu0 %v4008
        %v4010 = vpop.xlane.xlu0 %4009
        %v4011 = vsub.f32 %v3995, %v4001
        %v4012 = vsub.f32 %v3996, %v4004
        %v4013 = vsub.f32 %v3997, %v4007
        %v4014 = vsub.f32 %v3998, %v4010
        %v4015 = vmul.f32 %v4011, 1.442695
        %v4016 = vpow.pop %v4015
        %v4017 = vmul.f32 %v4012, 1.442695
        %v4018 = vpow.pop %v4017
        %v4019 = vmul.f32 %v4013, 1.442695
        %v4020 = vpow.pop %v4019
        %v4021 = vmul.f32 %v4014, 1.442695
        %v4022 = vpow.pop %v4021
        %v4023 = vsel %vm647, %v4016, 0.0
        %4024 = vadd.xlane.f32.xlu0 %v4023
        %v4025 = vpop.xlane.xlu0 %4024
        %v4026 = vsel %vm647, %v4018, 0.0
        %4027 = vadd.xlane.f32.xlu0 %v4026
        %v4028 = vpop.xlane.xlu0 %4027
        %v4029 = vsel %vm647, %v4020, 0.0
        %4030 = vadd.xlane.f32.xlu0 %v4029
        %v4031 = vpop.xlane.xlu0 %4030
        %v4032 = vsel %vm647, %v4022, 0.0
        %4033 = vadd.xlane.f32.xlu0 %v4032
        %v4034 = vpop.xlane.xlu0 %4033
        %v4035 = vrcp.pop %v4025
        %v4036 = vrcp.pop %v4028
        %v4037 = vrcp.pop %v4031
        %v4038 = vrcp.pop %v4034
        %v4039 = vmul.f32 %v4016, %v4035
        %v4040 = vmul.f32 %v4018, %v4036
        %v4041 = vmul.f32 %v4020, %v4037
        %v4042 = vmul.f32 %v4022, %v4038
        %v4044 = vsel %vm647, %v4039, 0
        %4046 = vmatprep.subr.mxu0 0.0
        %4047 = vmatpush1.msra.mxu0 %v3673
        %4048 = vmatprep.subr.mxu0 0.0
        %4049 = vmatpush1.msra.mxu0 0.0
        %4050 = vmatprep.subr.mxu0 0.0
        %4051 = vmatpush1.msra.mxu0 0.0
        %4052 = vmatprep.subr.mxu0 0.0
        %4053 = vmatpush1.msra.mxu0 0.0
        %4054 = vmatprep.subr.mxu0 0.0
        %4055 = vmatpush1.msra.mxu0 0.0
        %4056 = vmatprep.subr.mxu0 0.0
        %4057 = vmatpush1.msra.mxu0 0.0
        %4058 = vmatprep.subr.mxu0 0.0
        %4059 = vmatpush1.msra.mxu0 0.0
        %4060 = vmatprep.subr.mxu0 0.0
        %4061 = vmatpush1.msra.mxu0 0.0
        %4062 = vmatprep.subr.mxu0 0.0
        %4063 = vmatpush1.msra.mxu0 0.0
        %4064 = vmatprep.subr.mxu0 0.0
        %4065 = vmatpush1.msra.mxu0 0.0
        %4066 = vmatprep.subr.mxu0 0.0
        %4067 = vmatpush1.msra.mxu0 0.0
        %4068 = vmatprep.subr.mxu0 0.0
        %4069 = vmatpush1.msra.mxu0 0.0
        %4070 = vmatprep.subr.mxu0 0.0
        %4071 = vmatpush1.msra.mxu0 0.0
        %4072 = vmatprep.subr.mxu0 0.0
        %4073 = vmatpush1.msra.mxu0 0.0
        %4074 = vmatprep.subr.mxu0 0.0
        %4075 = vmatpush1.msra.mxu0 0.0
        %4076 = vmatprep.subr.mxu0 0.0
        %4077 = vmatpush1.msra.mxu0 0.0
        %4078 = vmatprep.subr.mxu0 0.0
        %4079 = vmatpush1.msra.mxu0 0.0
        %4080 = vmatprep.subr.mxu0 0.0
        %4081 = vmatpush1.msra.mxu0 0.0
        %4082 = vmatprep.subr.mxu0 0.0
        %4083 = vmatpush1.msra.mxu0 0.0
        %4084 = vmatprep.subr.mxu0 0.0
        %4085 = vmatpush1.msra.mxu0 0.0
        %4086 = vmatprep.subr.mxu0 0.0
        %4087 = vmatpush1.msra.mxu0 0.0
        %4088 = vmatprep.subr.mxu0 0.0
        %4089 = vmatpush1.msra.mxu0 0.0
        %4090 = vmatprep.subr.mxu0 0.0
        %4091 = vmatpush1.msra.mxu0 0.0
        %4092 = vmatprep.subr.mxu0 0.0
        %4093 = vmatpush1.msra.mxu0 0.0
        %4094 = vmatprep.subr.mxu0 0.0
        %4095 = vmatpush1.msra.mxu0 0.0
        %4096 = vmatprep.subr.mxu0 0.0
        %4097 = vmatpush1.msra.mxu0 0.0
        %4098 = vmatprep.subr.mxu0 0.0
        %4099 = vmatpush1.msra.mxu0 0.0
        %4100 = vmatprep.subr.mxu0 0.0
        %4101 = vmatpush1.msra.mxu0 0.0
        %4102 = vmatprep.subr.mxu0 0.0
        %4103 = vmatpush1.msra.mxu0 0.0
        %4104 = vmatprep.subr.mxu0 0.0
        %4105 = vmatpush1.msra.mxu0 0.0
        %4106 = vmatprep.subr.mxu0 0.0
        %4107 = vmatpush1.msra.mxu0 0.0
        %4108 = vmatprep.subr.mxu0 0.0
        %4109 = vmatpush1.msra.mxu0 0.0
        %4110 = vmatprep.mubr.f32.mxu0 0.0
        %4111 = vmatmul.mubr.f32.gmra.mrb[0].mxu0 %v4044
        %v4112 = vpop.f32.mrb[0].mxu0
        %v4113 = vadd.f32 0.0, %v4112
        %v4114 = vpop.f32.mrb[0].mxu0
        %4115 = vdwg.mxu0
        %v4117 = vsel %vm647, %v4040, 0
        %4119 = vmatprep.subr.mxu0 0.0
        %4120 = vmatpush1.msra.mxu0 %v3678
        %4121 = vmatprep.subr.mxu0 0.0
        %4122 = vmatpush1.msra.mxu0 0.0
        %4123 = vmatprep.subr.mxu0 0.0
        %4124 = vmatpush1.msra.mxu0 0.0
        %4125 = vmatprep.subr.mxu0 0.0
        %4126 = vmatpush1.msra.mxu0 0.0
        %4127 = vmatprep.subr.mxu0 0.0
        %4128 = vmatpush1.msra.mxu0 0.0
        %4129 = vmatprep.subr.mxu0 0.0
        %4130 = vmatpush1.msra.mxu0 0.0
        %4131 = vmatprep.subr.mxu0 0.0
        %4132 = vmatpush1.msra.mxu0 0.0
        %4133 = vmatprep.subr.mxu0 0.0
        %4134 = vmatpush1.msra.mxu0 0.0
        %4135 = vmatprep.subr.mxu0 0.0
        %4136 = vmatpush1.msra.mxu0 0.0
        %4137 = vmatprep.subr.mxu0 0.0
        %4138 = vmatpush1.msra.mxu0 0.0
        %4139 = vmatprep.subr.mxu0 0.0
        %4140 = vmatpush1.msra.mxu0 0.0
        %4141 = vmatprep.subr.mxu0 0.0
        %4142 = vmatpush1.msra.mxu0 0.0
        %4143 = vmatprep.subr.mxu0 0.0
        %4144 = vmatpush1.msra.mxu0 0.0
        %4145 = vmatprep.subr.mxu0 0.0
        %4146 = vmatpush1.msra.mxu0 0.0
        %4147 = vmatprep.subr.mxu0 0.0
        %4148 = vmatpush1.msra.mxu0 0.0
        %4149 = vmatprep.subr.mxu0 0.0
        %4150 = vmatpush1.msra.mxu0 0.0
        %4151 = vmatprep.subr.mxu0 0.0
        %4152 = vmatpush1.msra.mxu0 0.0
        %4153 = vmatprep.subr.mxu0 0.0
        %4154 = vmatpush1.msra.mxu0 0.0
        %4155 = vmatprep.subr.mxu0 0.0
        %4156 = vmatpush1.msra.mxu0 0.0
        %4157 = vmatprep.subr.mxu0 0.0
        %4158 = vmatpush1.msra.mxu0 0.0
        %4159 = vmatprep.subr.mxu0 0.0
        %4160 = vmatpush1.msra.mxu0 0.0
        %4161 = vmatprep.subr.mxu0 0.0
        %4162 = vmatpush1.msra.mxu0 0.0
        %4163 = vmatprep.subr.mxu0 0.0
        %4164 = vmatpush1.msra.mxu0 0.0
        %4165 = vmatprep.subr.mxu0 0.0
        %4166 = vmatpush1.msra.mxu0 0.0
        %4167 = vmatprep.subr.mxu0 0.0
        %4168 = vmatpush1.msra.mxu0 0.0
        %4169 = vmatprep.subr.mxu0 0.0
        %4170 = vmatpush1.msra.mxu0 0.0
        %4171 = vmatprep.subr.mxu0 0.0
        %4172 = vmatpush1.msra.mxu0 0.0
        %4173 = vmatprep.subr.mxu0 0.0
        %4174 = vmatpush1.msra.mxu0 0.0
        %4175 = vmatprep.subr.mxu0 0.0
        %4176 = vmatpush1.msra.mxu0 0.0
        %4177 = vmatprep.subr.mxu0 0.0
        %4178 = vmatpush1.msra.mxu0 0.0
        %4179 = vmatprep.subr.mxu0 0.0
        %4180 = vmatpush1.msra.mxu0 0.0
        %4181 = vmatprep.subr.mxu0 0.0
        %4182 = vmatpush1.msra.mxu0 0.0
        %4183 = vmatprep.mubr.f32.mxu0 0.0
        %4184 = vmatmul.mubr.f32.gmra.mrb[0].mxu0 %v4117
        %v4185 = vpop.f32.mrb[0].mxu0
        %v4186 = vadd.f32 0.0, %v4185
        %v4187 = vpop.f32.mrb[0].mxu0
        %4188 = vdwg.mxu0
        %v4190 = vsel %vm647, %v4041, 0
        %4192 = vmatprep.subr.mxu0 0.0
        %4193 = vmatpush1.msra.mxu0 %v3683
        %4194 = vmatprep.subr.mxu0 0.0
        %4195 = vmatpush1.msra.mxu0 0.0
        %4196 = vmatprep.subr.mxu0 0.0
        %4197 = vmatpush1.msra.mxu0 0.0
        %4198 = vmatprep.subr.mxu0 0.0
        %4199 = vmatpush1.msra.mxu0 0.0
        %4200 = vmatprep.subr.mxu0 0.0
        %4201 = vmatpush1.msra.mxu0 0.0
        %4202 = vmatprep.subr.mxu0 0.0
        %4203 = vmatpush1.msra.mxu0 0.0
        %4204 = vmatprep.subr.mxu0 0.0
        %4205 = vmatpush1.msra.mxu0 0.0
        %4206 = vmatprep.subr.mxu0 0.0
        %4207 = vmatpush1.msra.mxu0 0.0
        %4208 = vmatprep.subr.mxu0 0.0
        %4209 = vmatpush1.msra.mxu0 0.0
        %4210 = vmatprep.subr.mxu0 0.0
        %4211 = vmatpush1.msra.mxu0 0.0
        %4212 = vmatprep.subr.mxu0 0.0
        %4213 = vmatpush1.msra.mxu0 0.0
        %4214 = vmatprep.subr.mxu0 0.0
        %4215 = vmatpush1.msra.mxu0 0.0
        %4216 = vmatprep.subr.mxu0 0.0
        %4217 = vmatpush1.msra.mxu0 0.0
        %4218 = vmatprep.subr.mxu0 0.0
        %4219 = vmatpush1.msra.mxu0 0.0
        %4220 = vmatprep.subr.mxu0 0.0
        %4221 = vmatpush1.msra.mxu0 0.0
        %4222 = vmatprep.subr.mxu0 0.0
        %4223 = vmatpush1.msra.mxu0 0.0
        %4224 = vmatprep.subr.mxu0 0.0
        %4225 = vmatpush1.msra.mxu0 0.0
        %4226 = vmatprep.subr.mxu0 0.0
        %4227 = vmatpush1.msra.mxu0 0.0
        %4228 = vmatprep.subr.mxu0 0.0
        %4229 = vmatpush1.msra.mxu0 0.0
        %4230 = vmatprep.subr.mxu0 0.0
        %4231 = vmatpush1.msra.mxu0 0.0
        %4232 = vmatprep.subr.mxu0 0.0
        %4233 = vmatpush1.msra.mxu0 0.0
        %4234 = vmatprep.subr.mxu0 0.0
        %4235 = vmatpush1.msra.mxu0 0.0
        %4236 = vmatprep.subr.mxu0 0.0
        %4237 = vmatpush1.msra.mxu0 0.0
        %4238 = vmatprep.subr.mxu0 0.0
        %4239 = vmatpush1.msra.mxu0 0.0
        %4240 = vmatprep.subr.mxu0 0.0
        %4241 = vmatpush1.msra.mxu0 0.0
        %4242 = vmatprep.subr.mxu0 0.0
        %4243 = vmatpush1.msra.mxu0 0.0
        %4244 = vmatprep.subr.mxu0 0.0
        %4245 = vmatpush1.msra.mxu0 0.0
        %4246 = vmatprep.subr.mxu0 0.0
        %4247 = vmatpush1.msra.mxu0 0.0
        %4248 = vmatprep.subr.mxu0 0.0
        %4249 = vmatpush1.msra.mxu0 0.0
        %4250 = vmatprep.subr.mxu0 0.0
        %4251 = vmatpush1.msra.mxu0 0.0
        %4252 = vmatprep.subr.mxu0 0.0
        %4253 = vmatpush1.msra.mxu0 0.0
        %4254 = vmatprep.subr.mxu0 0.0
        %4255 = vmatpush1.msra.mxu0 0.0
        %4256 = vmatprep.mubr.f32.mxu0 0.0
        %4257 = vmatmul.mubr.f32.gmra.mrb[0].mxu0 %v4190
        %v4258 = vpop.f32.mrb[0].mxu0
        %v4259 = vadd.f32 0.0, %v4258
        %v4260 = vpop.f32.mrb[0].mxu0
        %4261 = vdwg.mxu0
        %v4263 = vsel %vm647, %v4042, 0
        %4265 = vmatprep.subr.mxu0 0.0
        %4266 = vmatpush1.msra.mxu0 %v3688
        %4267 = vmatprep.subr.mxu0 0.0
        %4268 = vmatpush1.msra.mxu0 0.0
        %4269 = vmatprep.subr.mxu0 0.0
        %4270 = vmatpush1.msra.mxu0 0.0
        %4271 = vmatprep.subr.mxu0 0.0
        %4272 = vmatpush1.msra.mxu0 0.0
        %4273 = vmatprep.subr.mxu0 0.0
        %4274 = vmatpush1.msra.mxu0 0.0
        %4275 = vmatprep.subr.mxu0 0.0
        %4276 = vmatpush1.msra.mxu0 0.0
        %4277 = vmatprep.subr.mxu0 0.0
        %4278 = vmatpush1.msra.mxu0 0.0
        %4279 = vmatprep.subr.mxu0 0.0
        %4280 = vmatpush1.msra.mxu0 0.0
        %4281 = vmatprep.subr.mxu0 0.0
        %4282 = vmatpush1.msra.mxu0 0.0
        %4283 = vmatprep.subr.mxu0 0.0
        %4284 = vmatpush1.msra.mxu0 0.0
        %4285 = vmatprep.subr.mxu0 0.0
        %4286 = vmatpush1.msra.mxu0 0.0
        %4287 = vmatprep.subr.mxu0 0.0
        %4288 = vmatpush1.msra.mxu0 0.0
        %4289 = vmatprep.subr.mxu0 0.0
        %4290 = vmatpush1.msra.mxu0 0.0
        %4291 = vmatprep.subr.mxu0 0.0
        %4292 = vmatpush1.msra.mxu0 0.0
        %4293 = vmatprep.subr.mxu0 0.0
        %4294 = vmatpush1.msra.mxu0 0.0
        %4295 = vmatprep.subr.mxu0 0.0
        %4296 = vmatpush1.msra.mxu0 0.0
        %4297 = vmatprep.subr.mxu0 0.0
        %4298 = vmatpush1.msra.mxu0 0.0
        %4299 = vmatprep.subr.mxu0 0.0
        %4300 = vmatpush1.msra.mxu0 0.0
        %4301 = vmatprep.subr.mxu0 0.0
        %4302 = vmatpush1.msra.mxu0 0.0
        %4303 = vmatprep.subr.mxu0 0.0
        %4304 = vmatpush1.msra.mxu0 0.0
        %4305 = vmatprep.subr.mxu0 0.0
        %4306 = vmatpush1.msra.mxu0 0.0
        %4307 = vmatprep.subr.mxu0 0.0
        %4308 = vmatpush1.msra.mxu0 0.0
        %4309 = vmatprep.subr.mxu0 0.0
        %4310 = vmatpush1.msra.mxu0 0.0
        %4311 = vmatprep.subr.mxu0 0.0
        %4312 = vmatpush1.msra.mxu0 0.0
        %4313 = vmatprep.subr.mxu0 0.0
        %4314 = vmatpush1.msra.mxu0 0.0
        %4315 = vmatprep.subr.mxu0 0.0
        %4316 = vmatpush1.msra.mxu0 0.0
        %4317 = vmatprep.subr.mxu0 0.0
        %4318 = vmatpush1.msra.mxu0 0.0
        %4319 = vmatprep.subr.mxu0 0.0
        %4320 = vmatpush1.msra.mxu0 0.0
        %4321 = vmatprep.subr.mxu0 0.0
        %4322 = vmatpush1.msra.mxu0 0.0
        %4323 = vmatprep.subr.mxu0 0.0
        %4324 = vmatpush1.msra.mxu0 0.0
        %4325 = vmatprep.subr.mxu0 0.0
        %4326 = vmatpush1.msra.mxu0 0.0
        %4327 = vmatprep.subr.mxu0 0.0
        %4328 = vmatpush1.msra.mxu0 0.0
        %4329 = vmatprep.mubr.f32.mxu0 0.0
        %4330 = vmatmul.mubr.f32.gmra.mrb[0].mxu0 %v4263
        %v4331 = vpop.f32.mrb[0].mxu0
        %v4332 = vadd.f32 0.0, %v4331
        %v4333 = vpop.f32.mrb[0].mxu0
        %4334 = vdwg.mxu0
        %v4336 = vsel %vm647, %v4113, 0
        %v4339 = vsel %vm647, %v4186, 0
        %v4342 = vsel %vm647, %v4259, 0
        %v4345 = vsel %vm647, %v4332, 0
        %4347 = vmatprep.subr.mxu0 0.0
        %4348 = vmatpush1.msra.mxu0 %v3435
        %4349 = vmatprep.subr.mxu0 0.0
        %4350 = vmatpush1.msra.mxu0 0.0
        %4351 = vmatprep.subr.mxu0 0.0
        %4352 = vmatpush1.msra.mxu0 0.0
        %4353 = vmatprep.subr.mxu0 0.0
        %4354 = vmatpush1.msra.mxu0 0.0
        %4355 = vmatprep.subr.mxu0 0.0
        %4356 = vmatpush1.msra.mxu0 0.0
        %4357 = vmatprep.subr.mxu0 0.0
        %4358 = vmatpush1.msra.mxu0 0.0
        %4359 = vmatprep.subr.mxu0 0.0
        %4360 = vmatpush1.msra.mxu0 0.0
        %4361 = vmatprep.subr.mxu0 0.0
        %4362 = vmatpush1.msra.mxu0 0.0
        %4363 = vmatprep.subr.mxu0 0.0
        %4364 = vmatpush1.msra.mxu0 0.0
        %4365 = vmatprep.subr.mxu0 0.0
        %4366 = vmatpush1.msra.mxu0 0.0
        %4367 = vmatprep.subr.mxu0 0.0
        %4368 = vmatpush1.msra.mxu0 0.0
        %4369 = vmatprep.subr.mxu0 0.0
        %4370 = vmatpush1.msra.mxu0 0.0
        %4371 = vmatprep.subr.mxu0 0.0
        %4372 = vmatpush1.msra.mxu0 0.0
        %4373 = vmatprep.subr.mxu0 0.0
        %4374 = vmatpush1.msra.mxu0 0.0
        %4375 = vmatprep.subr.mxu0 0.0
        %4376 = vmatpush1.msra.mxu0 0.0
        %4377 = vmatprep.subr.mxu0 0.0
        %4378 = vmatpush1.msra.mxu0 0.0
        %4379 = vmatprep.subr.mxu0 0.0
        %4380 = vmatpush1.msra.mxu0 0.0
        %4381 = vmatprep.subr.mxu0 0.0
        %4382 = vmatpush1.msra.mxu0 0.0
        %4383 = vmatprep.subr.mxu0 0.0
        %4384 = vmatpush1.msra.mxu0 0.0
        %4385 = vmatprep.subr.mxu0 0.0
        %4386 = vmatpush1.msra.mxu0 0.0
        %4387 = vmatprep.subr.mxu0 0.0
        %4388 = vmatpush1.msra.mxu0 0.0
        %4389 = vmatprep.subr.mxu0 0.0
        %4390 = vmatpush1.msra.mxu0 0.0
        %4391 = vmatprep.subr.mxu0 0.0
        %4392 = vmatpush1.msra.mxu0 0.0
        %4393 = vmatprep.subr.mxu0 0.0
        %4394 = vmatpush1.msra.mxu0 0.0
        %4395 = vmatprep.subr.mxu0 0.0
        %4396 = vmatpush1.msra.mxu0 0.0
        %4397 = vmatprep.subr.mxu0 0.0
        %4398 = vmatpush1.msra.mxu0 0.0
        %4399 = vmatprep.subr.mxu0 0.0
        %4400 = vmatpush1.msra.mxu0 0.0
        %4401 = vmatprep.subr.mxu0 0.0
        %4402 = vmatpush1.msra.mxu0 0.0
        %4403 = vmatprep.subr.mxu0 0.0
        %4404 = vmatpush1.msra.mxu0 0.0
        %4405 = vmatprep.subr.mxu0 0.0
        %4406 = vmatpush1.msra.mxu0 0.0
        %4407 = vmatprep.subr.mxu0 0.0
        %4408 = vmatpush1.msra.mxu0 0.0
        %4409 = vmatprep.subr.mxu0 0.0
        %4410 = vmatpush1.msra.mxu0 0.0
        %4411 = vmatprep.mubr.f32.mxu0 0.0
        %4412 = vmatmul.mubr.f32.gmra.mrb[0].mxu0 %v4336
        %v4413 = vpop.f32.mrb[0].mxu0
        %v4414 = vadd.f32 0.0, %v4413
        %v4415 = vpop.f32.mrb[0].mxu0
        %4416 = vmatprep.mubr.f32.mxu0 0.0
        %4417 = vmatmul.mubr.f32.gmra.mrb[0].mxu0 %v4339
        %v4418 = vpop.f32.mrb[0].mxu0
        %v4419 = vadd.f32 0.0, %v4418
        %v4420 = vpop.f32.mrb[0].mxu0
        %4421 = vmatprep.mubr.f32.mxu0 0.0
        %4422 = vmatmul.mubr.f32.gmra.mrb[0].mxu0 %v4342
        %v4423 = vpop.f32.mrb[0].mxu0
        %v4424 = vadd.f32 0.0, %v4423
        %v4425 = vpop.f32.mrb[0].mxu0
        %4426 = vmatprep.mubr.f32.mxu0 0.0
        %4427 = vmatmul.mubr.f32.gmra.mrb[0].mxu0 %v4345
        %v4428 = vpop.f32.mrb[0].mxu0
        %v4429 = vadd.f32 0.0, %v4428
        %v4430 = vpop.f32.mrb[0].mxu0
        %4431 = vdwg.mxu0
        %v4432 = vadd.f32 %v3415, %v4414
        %v4433 = vadd.f32 %v3416, %v4419
        %v4434 = vadd.f32 %v3417, %v4424
        %v4435 = vadd.f32 %v3418, %v4429
        %v4436 = vlaneseq
        %v4437 = vshrl.u32 %v4436, 7
        %v4438 = vsub.s32 0, %v4437
        %v4439 = vrot.slane %v291, %v4438
        %v4440 = vadd.f32 %v4432, %v4439
        %v4441 = vadd.f32 %v4433, %v4439
        %v4442 = vadd.f32 %v4434, %v4439
        %v4443 = vadd.f32 %v4435, %v4439
        %v4444 = vadd.f32 %v4440, %v275
        %v4445 = vadd.f32 %v4441, %v276
        %v4446 = vadd.f32 %v4442, %v277
        %v4447 = vadd.f32 %v4443, %v278
        %v4448 = vsel %vm295, %v4444, 0.0
        %4449 = vadd.xlane.f32.xlu0 %v4448
        %v4450 = vpop.xlane.xlu0 %4449
        %v4451 = vsel %vm295, %v4445, 0.0
        %4452 = vadd.xlane.f32.xlu0 %v4451
        %v4453 = vpop.xlane.xlu0 %4452
        %v4454 = vsel %vm295, %v4446, 0.0
        %4455 = vadd.xlane.f32.xlu0 %v4454
        %v4456 = vpop.xlane.xlu0 %4455
        %v4457 = vsel %vm295, %v4447, 0.0
        %4458 = vadd.xlane.f32.xlu0 %v4457
        %v4459 = vpop.xlane.xlu0 %4458
        %v4460 = vmul.f32 %v4450, %v308
        %v4461 = vmul.f32 %v4453, %v308
        %v4462 = vmul.f32 %v4456, %v308
        %v4463 = vmul.f32 %v4459, %v308
        %v4464 = vsub.f32 %v4444, %v4460
        %v4465 = vsub.f32 %v4445, %v4461
        %v4466 = vsub.f32 %v4446, %v4462
        %v4467 = vsub.f32 %v4447, %v4463
        %v4468 = vmul.f32 %v4464, %v4464
        %v4469 = vmul.f32 %v4465, %v4465
        %v4470 = vmul.f32 %v4466, %v4466
        %v4471 = vmul.f32 %v4467, %v4467
        %v4472 = vsel %vm295, %v4468, 0.0
        %4473 = vadd.xlane.f32.xlu0 %v4472
        %v4474 = vpop.xlane.xlu0 %4473
        %v4475 = vsel %vm295, %v4469, 0.0
        %4476 = vadd.xlane.f32.xlu0 %v4475
        %v4477 = vpop.xlane.xlu0 %4476
        %v4478 = vsel %vm295, %v4470, 0.0
        %4479 = vadd.xlane.f32.xlu0 %v4478
        %v4480 = vpop.xlane.xlu0 %4479
        %v4481 = vsel %vm295, %v4471, 0.0
        %4482 = vadd.xlane.f32.xlu0 %v4481
        %v4483 = vpop.xlane.xlu0 %4482
        %v4484 = vmul.f32 %v4474, %v308
        %v4485 = vmul.f32 %v4477, %v308
        %v4486 = vmul.f32 %v4480, %v308
        %v4487 = vmul.f32 %v4483, %v308
        %v4488 = vadd.f32 %v4484, 1e-05
        %v4489 = vadd.f32 %v4485, 1e-05
        %v4490 = vadd.f32 %v4486, 1e-05
        %v4491 = vadd.f32 %v4487, 1e-05
        %v4492 = vrsqrt.pop %v4488
        %v4493 = vrsqrt.pop %v4489
        %v4494 = vrsqrt.pop %v4490
        %v4495 = vrsqrt.pop %v4491
        %v4496 = vmul.f32 %v4464, %v4492
        %v4497 = vmul.f32 %v4465, %v4493
        %v4498 = vmul.f32 %v4466, %v4494
        %v4499 = vmul.f32 %v4467, %v4495
        %v4500 = vlaneseq
        %v4501 = vshrl.u32 %v4500, 7
        %v4502 = vsub.s32 0, %v4501
        %v4503 = vrot.slane %v285, %v4502
        %v4504 = vmul.f32 %v4496, %v4503
        %v4505 = vmul.f32 %v4497, %v4503
        %v4506 = vmul.f32 %v4498, %v4503
        %v4507 = vmul.f32 %v4499, %v4503
        %v4508 = vlaneseq
        %v4509 = vshrl.u32 %v4508, 7
        %v4510 = vsub.s32 0, %v4509
        %v4511 = vrot.slane %v286, %v4510
        %v4512 = vadd.f32 %v4504, %v4511
        %v4513 = vadd.f32 %v4505, %v4511
        %v4514 = vadd.f32 %v4506, %v4511
        %v4515 = vadd.f32 %v4507, %v4511
        %s4516 = scalar_lea.vmem %s3, 384
        %v4517 = vld [vmem:[%s4516] sm:$0xff]
        %v4518 = vld [vmem:[%s4516 + $0x8] sm:$0xff]
        %v4519 = vld [vmem:[%s4516 + $0x10] sm:$0xff]
        %v4520 = vld [vmem:[%s4516 + $0x18] sm:$0xff]
        %s4521 = scalar_lea.vmem %s3, 512
        %v4522 = vld [vmem:[%s4521] sm:$0xff]
        %v4523 = vld [vmem:[%s4521 + $0x8] sm:$0xff]
        %v4524 = vld [vmem:[%s4521 + $0x10] sm:$0xff]
        %v4525 = vld [vmem:[%s4521 + $0x18] sm:$0xff]
        %s4526 = scalar_lea.vmem %s3, 640
        %v4527 = vld [vmem:[%s4526] sm:$0xff]
        %v4528 = vld [vmem:[%s4526 + $0x8] sm:$0xff]
        %v4529 = vld [vmem:[%s4526 + $0x10] sm:$0xff]
        %v4530 = vld [vmem:[%s4526 + $0x18] sm:$0xff]
        %s4531 = scalar_lea.vmem %s4, 32
        %v4532 = vld [vmem:[%s4531] sm:$0xff]
        %v4534 = vsel %vm295, %v4512, 0
        %v4537 = vsel %vm295, %v4513, 0
        %v4540 = vsel %vm295, %v4514, 0
        %v4543 = vsel %vm295, %v4515, 0
        %4545 = vmatprep.subr.mxu0 0.0
        %4546 = vmatpush1.msra.mxu0 %v4517
        %4547 = vmatprep.subr.mxu0 0.0
        %4548 = vmatpush1.msra.mxu0 %v4518
        %4549 = vmatprep.subr.mxu0 0.0
        %4550 = vmatpush1.msra.mxu0 %v4519
        %4551 = vmatprep.subr.mxu0 0.0
        %4552 = vmatpush1.msra.mxu0 %v4520
        %4553 = vmatprep.subr.mxu0 0.0
        %4554 = vmatpush1.msra.mxu0 0.0
        %4555 = vmatprep.subr.mxu0 0.0
        %4556 = vmatpush1.msra.mxu0 0.0
        %4557 = vmatprep.subr.mxu0 0.0
        %4558 = vmatpush1.msra.mxu0 0.0
        %4559 = vmatprep.subr.mxu0 0.0
        %4560 = vmatpush1.msra.mxu0 0.0
        %4561 = vmatprep.subr.mxu0 0.0
        %4562 = vmatpush1.msra.mxu0 0.0
        %4563 = vmatprep.subr.mxu0 0.0
        %4564 = vmatpush1.msra.mxu0 0.0
        %4565 = vmatprep.subr.mxu0 0.0
        %4566 = vmatpush1.msra.mxu0 0.0
        %4567 = vmatprep.subr.mxu0 0.0
        %4568 = vmatpush1.msra.mxu0 0.0
        %4569 = vmatprep.subr.mxu0 0.0
        %4570 = vmatpush1.msra.mxu0 0.0
        %4571 = vmatprep.subr.mxu0 0.0
        %4572 = vmatpush1.msra.mxu0 0.0
        %4573 = vmatprep.subr.mxu0 0.0
        %4574 = vmatpush1.msra.mxu0 0.0
        %4575 = vmatprep.subr.mxu0 0.0
        %4576 = vmatpush1.msra.mxu0 0.0
        %4577 = vmatprep.subr.mxu0 0.0
        %4578 = vmatpush1.msra.mxu0 0.0
        %4579 = vmatprep.subr.mxu0 0.0
        %4580 = vmatpush1.msra.mxu0 0.0
        %4581 = vmatprep.subr.mxu0 0.0
        %4582 = vmatpush1.msra.mxu0 0.0
        %4583 = vmatprep.subr.mxu0 0.0
        %4584 = vmatpush1.msra.mxu0 0.0
        %4585 = vmatprep.subr.mxu0 0.0
        %4586 = vmatpush1.msra.mxu0 0.0
        %4587 = vmatprep.subr.mxu0 0.0
        %4588 = vmatpush1.msra.mxu0 0.0
        %4589 = vmatprep.subr.mxu0 0.0
        %4590 = vmatpush1.msra.mxu0 0.0
        %4591 = vmatprep.subr.mxu0 0.0
        %4592 = vmatpush1.msra.mxu0 0.0
        %4593 = vmatprep.subr.mxu0 0.0
        %4594 = vmatpush1.msra.mxu0 0.0
        %4595 = vmatprep.subr.mxu0 0.0
        %4596 = vmatpush1.msra.mxu0 0.0
        %4597 = vmatprep.subr.mxu0 0.0
        %4598 = vmatpush1.msra.mxu0 0.0
        %4599 = vmatprep.subr.mxu0 0.0
        %4600 = vmatpush1.msra.mxu0 0.0
        %4601 = vmatprep.subr.mxu0 0.0
        %4602 = vmatpush1.msra.mxu0 0.0
        %4603 = vmatprep.subr.mxu0 0.0
        %4604 = vmatpush1.msra.mxu0 0.0
        %4605 = vmatprep.subr.mxu0 0.0
        %4606 = vmatpush1.msra.mxu0 0.0
        %4607 = vmatprep.subr.mxu0 0.0
        %4608 = vmatpush1.msra.mxu0 0.0
        %4609 = vmatprep.mubr.f32.mxu0 0.0
        %4610 = vmatmul.mubr.f32.gmra.mrb[0].mxu0 %v4534
        %v4611 = vpop.f32.mrb[0].mxu0
        %v4612 = vadd.f32 0.0, %v4611
        %v4613 = vpop.f32.mrb[0].mxu0
        %4614 = vmatprep.mubr.f32.mxu0 0.0
        %4615 = vmatmul.mubr.f32.gmra.mrb[0].mxu0 %v4537
        %v4616 = vpop.f32.mrb[0].mxu0
        %v4617 = vadd.f32 0.0, %v4616
        %v4618 = vpop.f32.mrb[0].mxu0
        %4619 = vmatprep.mubr.f32.mxu0 0.0
        %4620 = vmatmul.mubr.f32.gmra.mrb[0].mxu0 %v4540
        %v4621 = vpop.f32.mrb[0].mxu0
        %v4622 = vadd.f32 0.0, %v4621
        %v4623 = vpop.f32.mrb[0].mxu0
        %4624 = vmatprep.mubr.f32.mxu0 0.0
        %4625 = vmatmul.mubr.f32.gmra.mrb[0].mxu0 %v4543
        %v4626 = vpop.f32.mrb[0].mxu0
        %v4627 = vadd.f32 0.0, %v4626
        %v4628 = vpop.f32.mrb[0].mxu0
        %4629 = vdwg.mxu0
        %v4631 = vsel %vm295, %v279, 0
        %v4634 = vsel %vm295, %v280, 0
        %v4637 = vsel %vm295, %v281, 0
        %v4640 = vsel %vm295, %v282, 0
        %4642 = vmatprep.subr.mxu0 0.0
        %4643 = vmatpush1.msra.mxu0 %v4522
        %4644 = vmatprep.subr.mxu0 0.0
        %4645 = vmatpush1.msra.mxu0 %v4523
        %4646 = vmatprep.subr.mxu0 0.0
        %4647 = vmatpush1.msra.mxu0 %v4524
        %4648 = vmatprep.subr.mxu0 0.0
        %4649 = vmatpush1.msra.mxu0 %v4525
        %4650 = vmatprep.subr.mxu0 0.0
        %4651 = vmatpush1.msra.mxu0 0.0
        %4652 = vmatprep.subr.mxu0 0.0
        %4653 = vmatpush1.msra.mxu0 0.0
        %4654 = vmatprep.subr.mxu0 0.0
        %4655 = vmatpush1.msra.mxu0 0.0
        %4656 = vmatprep.subr.mxu0 0.0
        %4657 = vmatpush1.msra.mxu0 0.0
        %4658 = vmatprep.subr.mxu0 0.0
        %4659 = vmatpush1.msra.mxu0 0.0
        %4660 = vmatprep.subr.mxu0 0.0
        %4661 = vmatpush1.msra.mxu0 0.0
        %4662 = vmatprep.subr.mxu0 0.0
        %4663 = vmatpush1.msra.mxu0 0.0
        %4664 = vmatprep.subr.mxu0 0.0
        %4665 = vmatpush1.msra.mxu0 0.0
        %4666 = vmatprep.subr.mxu0 0.0
        %4667 = vmatpush1.msra.mxu0 0.0
        %4668 = vmatprep.subr.mxu0 0.0
        %4669 = vmatpush1.msra.mxu0 0.0
        %4670 = vmatprep.subr.mxu0 0.0
        %4671 = vmatpush1.msra.mxu0 0.0
        %4672 = vmatprep.subr.mxu0 0.0
        %4673 = vmatpush1.msra.mxu0 0.0
        %4674 = vmatprep.subr.mxu0 0.0
        %4675 = vmatpush1.msra.mxu0 0.0
        %4676 = vmatprep.subr.mxu0 0.0
        %4677 = vmatpush1.msra.mxu0 0.0
        %4678 = vmatprep.subr.mxu0 0.0
        %4679 = vmatpush1.msra.mxu0 0.0
        %4680 = vmatprep.subr.mxu0 0.0
        %4681 = vmatpush1.msra.mxu0 0.0
        %4682 = vmatprep.subr.mxu0 0.0
        %4683 = vmatpush1.msra.mxu0 0.0
        %4684 = vmatprep.subr.mxu0 0.0
        %4685 = vmatpush1.msra.mxu0 0.0
        %4686 = vmatprep.subr.mxu0 0.0
        %4687 = vmatpush1.msra.mxu0 0.0
        %4688 = vmatprep.subr.mxu0 0.0
        %4689 = vmatpush1.msra.mxu0 0.0
        %4690 = vmatprep.subr.mxu0 0.0
        %4691 = vmatpush1.msra.mxu0 0.0
        %4692 = vmatprep.subr.mxu0 0.0
        %4693 = vmatpush1.msra.mxu0 0.0
        %4694 = vmatprep.subr.mxu0 0.0
        %4695 = vmatpush1.msra.mxu0 0.0
        %4696 = vmatprep.subr.mxu0 0.0
        %4697 = vmatpush1.msra.mxu0 0.0
        %4698 = vmatprep.subr.mxu0 0.0
        %4699 = vmatpush1.msra.mxu0 0.0
        %4700 = vmatprep.subr.mxu0 0.0
        %4701 = vmatpush1.msra.mxu0 0.0
        %4702 = vmatprep.subr.mxu0 0.0
        %4703 = vmatpush1.msra.mxu0 0.0
        %4704 = vmatprep.subr.mxu0 0.0
        %4705 = vmatpush1.msra.mxu0 0.0
        %4706 = vmatprep.mubr.f32.mxu0 0.0
        %4707 = vmatmul.mubr.f32.gmra.mrb[0].mxu0 %v4631
        %v4708 = vpop.f32.mrb[0].mxu0
        %v4709 = vadd.f32 0.0, %v4708
        %v4710 = vpop.f32.mrb[0].mxu0
        %4711 = vmatprep.mubr.f32.mxu0 0.0
        %4712 = vmatmul.mubr.f32.gmra.mrb[0].mxu0 %v4634
        %v4713 = vpop.f32.mrb[0].mxu0
        %v4714 = vadd.f32 0.0, %v4713
        %v4715 = vpop.f32.mrb[0].mxu0
        %4716 = vmatprep.mubr.f32.mxu0 0.0
        %4717 = vmatmul.mubr.f32.gmra.mrb[0].mxu0 %v4637
        %v4718 = vpop.f32.mrb[0].mxu0
        %v4719 = vadd.f32 0.0, %v4718
        %v4720 = vpop.f32.mrb[0].mxu0
        %4721 = vmatprep.mubr.f32.mxu0 0.0
        %4722 = vmatmul.mubr.f32.gmra.mrb[0].mxu0 %v4640
        %v4723 = vpop.f32.mrb[0].mxu0
        %v4724 = vadd.f32 0.0, %v4723
        %v4725 = vpop.f32.mrb[0].mxu0
        %4726 = vdwg.mxu0
        %4727 = vmatprep.subr.mxu0 0.0
        %4728 = vmatpush1.msra.mxu0 %v4527
        %4729 = vmatprep.subr.mxu0 0.0
        %4730 = vmatpush1.msra.mxu0 %v4528
        %4731 = vmatprep.subr.mxu0 0.0
        %4732 = vmatpush1.msra.mxu0 %v4529
        %4733 = vmatprep.subr.mxu0 0.0
        %4734 = vmatpush1.msra.mxu0 %v4530
        %4735 = vmatprep.subr.mxu0 0.0
        %4736 = vmatpush1.msra.mxu0 0.0
        %4737 = vmatprep.subr.mxu0 0.0
        %4738 = vmatpush1.msra.mxu0 0.0
        %4739 = vmatprep.subr.mxu0 0.0
        %4740 = vmatpush1.msra.mxu0 0.0
        %4741 = vmatprep.subr.mxu0 0.0
        %4742 = vmatpush1.msra.mxu0 0.0
        %4743 = vmatprep.subr.mxu0 0.0
        %4744 = vmatpush1.msra.mxu0 0.0
        %4745 = vmatprep.subr.mxu0 0.0
        %4746 = vmatpush1.msra.mxu0 0.0
        %4747 = vmatprep.subr.mxu0 0.0
        %4748 = vmatpush1.msra.mxu0 0.0
        %4749 = vmatprep.subr.mxu0 0.0
        %4750 = vmatpush1.msra.mxu0 0.0
        %4751 = vmatprep.subr.mxu0 0.0
        %4752 = vmatpush1.msra.mxu0 0.0
        %4753 = vmatprep.subr.mxu0 0.0
        %4754 = vmatpush1.msra.mxu0 0.0
        %4755 = vmatprep.subr.mxu0 0.0
        %4756 = vmatpush1.msra.mxu0 0.0
        %4757 = vmatprep.subr.mxu0 0.0
        %4758 = vmatpush1.msra.mxu0 0.0
        %4759 = vmatprep.subr.mxu0 0.0
        %4760 = vmatpush1.msra.mxu0 0.0
        %4761 = vmatprep.subr.mxu0 0.0
        %4762 = vmatpush1.msra.mxu0 0.0
        %4763 = vmatprep.subr.mxu0 0.0
        %4764 = vmatpush1.msra.mxu0 0.0
        %4765 = vmatprep.subr.mxu0 0.0
        %4766 = vmatpush1.msra.mxu0 0.0
        %4767 = vmatprep.subr.mxu0 0.0
        %4768 = vmatpush1.msra.mxu0 0.0
        %4769 = vmatprep.subr.mxu0 0.0
        %4770 = vmatpush1.msra.mxu0 0.0
        %4771 = vmatprep.subr.mxu0 0.0
        %4772 = vmatpush1.msra.mxu0 0.0
        %4773 = vmatprep.subr.mxu0 0.0
        %4774 = vmatpush1.msra.mxu0 0.0
        %4775 = vmatprep.subr.mxu0 0.0
        %4776 = vmatpush1.msra.mxu0 0.0
        %4777 = vmatprep.subr.mxu0 0.0
        %4778 = vmatpush1.msra.mxu0 0.0
        %4779 = vmatprep.subr.mxu0 0.0
        %4780 = vmatpush1.msra.mxu0 0.0
        %4781 = vmatprep.subr.mxu0 0.0
        %4782 = vmatpush1.msra.mxu0 0.0
        %4783 = vmatprep.subr.mxu0 0.0
        %4784 = vmatpush1.msra.mxu0 0.0
        %4785 = vmatprep.subr.mxu0 0.0
        %4786 = vmatpush1.msra.mxu0 0.0
        %4787 = vmatprep.subr.mxu0 0.0
        %4788 = vmatpush1.msra.mxu0 0.0
        %4789 = vmatprep.subr.mxu0 0.0
        %4790 = vmatpush1.msra.mxu0 0.0
        %4791 = vmatprep.mubr.f32.mxu0 0.0
        %4792 = vmatmul.mubr.f32.gmra.mrb[0].mxu0 %v4631
        %v4793 = vpop.f32.mrb[0].mxu0
        %v4794 = vadd.f32 0.0, %v4793
        %v4795 = vpop.f32.mrb[0].mxu0
        %4796 = vmatprep.mubr.f32.mxu0 0.0
        %4797 = vmatmul.mubr.f32.gmra.mrb[0].mxu0 %v4634
        %v4798 = vpop.f32.mrb[0].mxu0
        %v4799 = vadd.f32 0.0, %v4798
        %v4800 = vpop.f32.mrb[0].mxu0
        %4801 = vmatprep.mubr.f32.mxu0 0.0
        %4802 = vmatmul.mubr.f32.gmra.mrb[0].mxu0 %v4637
        %v4803 = vpop.f32.mrb[0].mxu0
        %v4804 = vadd.f32 0.0, %v4803
        %v4805 = vpop.f32.mrb[0].mxu0
        %4806 = vmatprep.mubr.f32.mxu0 0.0
        %4807 = vmatmul.mubr.f32.gmra.mrb[0].mxu0 %v4640
        %v4808 = vpop.f32.mrb[0].mxu0
        %v4809 = vadd.f32 0.0, %v4808
        %v4810 = vpop.f32.mrb[0].mxu0
        %4811 = vdwg.mxu0
        %v4813 = vsel %vm647, %v4612, 0
        %v4816 = vsel %vm647, %v4709, 0
        %4818 = vmatprep.subr.mxu0 0.0
        %4819 = vmatpush1.xpose.msra.mxu0 %v4816
        %4820 = vmatprep.subr.mxu0 0.0
        %4821 = vmatpush1.xpose.msra.mxu0 0.0
        %4822 = vmatprep.subr.mxu0 0.0
        %4823 = vmatpush1.xpose.msra.mxu0 0.0
        %4824 = vmatprep.subr.mxu0 0.0
        %4825 = vmatpush1.xpose.msra.mxu0 0.0
        %4826 = vmatprep.subr.mxu0 0.0
        %4827 = vmatpush1.xpose.msra.mxu0 0.0
        %4828 = vmatprep.subr.mxu0 0.0
        %4829 = vmatpush1.xpose.msra.mxu0 0.0
        %4830 = vmatprep.subr.mxu0 0.0
        %4831 = vmatpush1.xpose.msra.mxu0 0.0
        %4832 = vmatprep.subr.mxu0 0.0
        %4833 = vmatpush1.xpose.msra.mxu0 0.0
        %4834 = vmatprep.subr.mxu0 0.0
        %4835 = vmatpush1.xpose.msra.mxu0 0.0
        %4836 = vmatprep.subr.mxu0 0.0
        %4837 = vmatpush1.xpose.msra.mxu0 0.0
        %4838 = vmatprep.subr.mxu0 0.0
        %4839 = vmatpush1.xpose.msra.mxu0 0.0
        %4840 = vmatprep.subr.mxu0 0.0
        %4841 = vmatpush1.xpose.msra.mxu0 0.0
        %4842 = vmatprep.subr.mxu0 0.0
        %4843 = vmatpush1.xpose.msra.mxu0 0.0
        %4844 = vmatprep.subr.mxu0 0.0
        %4845 = vmatpush1.xpose.msra.mxu0 0.0
        %4846 = vmatprep.subr.mxu0 0.0
        %4847 = vmatpush1.xpose.msra.mxu0 0.0
        %4848 = vmatprep.subr.mxu0 0.0
        %4849 = vmatpush1.xpose.msra.mxu0 0.0
        %4850 = vmatprep.subr.mxu0 0.0
        %4851 = vmatpush1.xpose.msra.mxu0 0.0
        %4852 = vmatprep.subr.mxu0 0.0
        %4853 = vmatpush1.xpose.msra.mxu0 0.0
        %4854 = vmatprep.subr.mxu0 0.0
        %4855 = vmatpush1.xpose.msra.mxu0 0.0
        %4856 = vmatprep.subr.mxu0 0.0
        %4857 = vmatpush1.xpose.msra.mxu0 0.0
        %4858 = vmatprep.subr.mxu0 0.0
        %4859 = vmatpush1.xpose.msra.mxu0 0.0
        %4860 = vmatprep.subr.mxu0 0.0
        %4861 = vmatpush1.xpose.msra.mxu0 0.0
        %4862 = vmatprep.subr.mxu0 0.0
        %4863 = vmatpush1.xpose.msra.mxu0 0.0
        %4864 = vmatprep.subr.mxu0 0.0
        %4865 = vmatpush1.xpose.msra.mxu0 0.0
        %4866 = vmatprep.subr.mxu0 0.0
        %4867 = vmatpush1.xpose.msra.mxu0 0.0
        %4868 = vmatprep.subr.mxu0 0.0
        %4869 = vmatpush1.xpose.msra.mxu0 0.0
        %4870 = vmatprep.subr.mxu0 0.0
        %4871 = vmatpush1.xpose.msra.mxu0 0.0
        %4872 = vmatprep.subr.mxu0 0.0
        %4873 = vmatpush1.xpose.msra.mxu0 0.0
        %4874 = vmatprep.subr.mxu0 0.0
        %4875 = vmatpush1.xpose.msra.mxu0 0.0
        %4876 = vmatprep.subr.mxu0 0.0
        %4877 = vmatpush1.xpose.msra.mxu0 0.0
        %4878 = vmatprep.subr.mxu0 0.0
        %4879 = vmatpush1.xpose.msra.mxu0 0.0
        %4880 = vmatprep.subr.mxu0 0.0
        %4881 = vmatpush1.xpose.msra.mxu0 0.0
        %4882 = vmatprep.mubr.f32.mxu0 0.0
        %4883 = vmatmul.mubr.f32.gmra.mrb[0].mxu0 %v4813
        %v4884 = vpop.f32.mrb[0].mxu0
        %v4885 = vadd.f32 0.0, %v4884
        %v4886 = vpop.f32.mrb[0].mxu0
        %4887 = vdwg.mxu0
        %v4889 = vsel %vm647, %v4617, 0
        %v4892 = vsel %vm647, %v4714, 0
        %4894 = vmatprep.subr.mxu0 0.0
        %4895 = vmatpush1.xpose.msra.mxu0 %v4892
        %4896 = vmatprep.subr.mxu0 0.0
        %4897 = vmatpush1.xpose.msra.mxu0 0.0
        %4898 = vmatprep.subr.mxu0 0.0
        %4899 = vmatpush1.xpose.msra.mxu0 0.0
        %4900 = vmatprep.subr.mxu0 0.0
        %4901 = vmatpush1.xpose.msra.mxu0 0.0
        %4902 = vmatprep.subr.mxu0 0.0
        %4903 = vmatpush1.xpose.msra.mxu0 0.0
        %4904 = vmatprep.subr.mxu0 0.0
        %4905 = vmatpush1.xpose.msra.mxu0 0.0
        %4906 = vmatprep.subr.mxu0 0.0
        %4907 = vmatpush1.xpose.msra.mxu0 0.0
        %4908 = vmatprep.subr.mxu0 0.0
        %4909 = vmatpush1.xpose.msra.mxu0 0.0
        %4910 = vmatprep.subr.mxu0 0.0
        %4911 = vmatpush1.xpose.msra.mxu0 0.0
        %4912 = vmatprep.subr.mxu0 0.0
        %4913 = vmatpush1.xpose.msra.mxu0 0.0
        %4914 = vmatprep.subr.mxu0 0.0
        %4915 = vmatpush1.xpose.msra.mxu0 0.0
        %4916 = vmatprep.subr.mxu0 0.0
        %4917 = vmatpush1.xpose.msra.mxu0 0.0
        %4918 = vmatprep.subr.mxu0 0.0
        %4919 = vmatpush1.xpose.msra.mxu0 0.0
        %4920 = vmatprep.subr.mxu0 0.0
        %4921 = vmatpush1.xpose.msra.mxu0 0.0
        %4922 = vmatprep.subr.mxu0 0.0
        %4923 = vmatpush1.xpose.msra.mxu0 0.0
        %4924 = vmatprep.subr.mxu0 0.0
        %4925 = vmatpush1.xpose.msra.mxu0 0.0
        %4926 = vmatprep.subr.mxu0 0.0
        %4927 = vmatpush1.xpose.msra.mxu0 0.0
        %4928 = vmatprep.subr.mxu0 0.0
        %4929 = vmatpush1.xpose.msra.mxu0 0.0
        %4930 = vmatprep.subr.mxu0 0.0
        %4931 = vmatpush1.xpose.msra.mxu0 0.0
        %4932 = vmatprep.subr.mxu0 0.0
        %4933 = vmatpush1.xpose.msra.mxu0 0.0
        %4934 = vmatprep.subr.mxu0 0.0
        %4935 = vmatpush1.xpose.msra.mxu0 0.0
        %4936 = vmatprep.subr.mxu0 0.0
        %4937 = vmatpush1.xpose.msra.mxu0 0.0
        %4938 = vmatprep.subr.mxu0 0.0
        %4939 = vmatpush1.xpose.msra.mxu0 0.0
        %4940 = vmatprep.subr.mxu0 0.0
        %4941 = vmatpush1.xpose.msra.mxu0 0.0
        %4942 = vmatprep.subr.mxu0 0.0
        %4943 = vmatpush1.xpose.msra.mxu0 0.0
        %4944 = vmatprep.subr.mxu0 0.0
        %4945 = vmatpush1.xpose.msra.mxu0 0.0
        %4946 = vmatprep.subr.mxu0 0.0
        %4947 = vmatpush1.xpose.msra.mxu0 0.0
        %4948 = vmatprep.subr.mxu0 0.0
        %4949 = vmatpush1.xpose.msra.mxu0 0.0
        %4950 = vmatprep.subr.mxu0 0.0
        %4951 = vmatpush1.xpose.msra.mxu0 0.0
        %4952 = vmatprep.subr.mxu0 0.0
        %4953 = vmatpush1.xpose.msra.mxu0 0.0
        %4954 = vmatprep.subr.mxu0 0.0
        %4955 = vmatpush1.xpose.msra.mxu0 0.0
        %4956 = vmatprep.subr.mxu0 0.0
        %4957 = vmatpush1.xpose.msra.mxu0 0.0
        %4958 = vmatprep.mubr.f32.mxu0 0.0
        %4959 = vmatmul.mubr.f32.gmra.mrb[0].mxu0 %v4889
        %v4960 = vpop.f32.mrb[0].mxu0
        %v4961 = vadd.f32 0.0, %v4960
        %v4962 = vpop.f32.mrb[0].mxu0
        %4963 = vdwg.mxu0
        %v4965 = vsel %vm647, %v4622, 0
        %v4968 = vsel %vm647, %v4719, 0
        %4970 = vmatprep.subr.mxu0 0.0
        %4971 = vmatpush1.xpose.msra.mxu0 %v4968
        %4972 = vmatprep.subr.mxu0 0.0
        %4973 = vmatpush1.xpose.msra.mxu0 0.0
        %4974 = vmatprep.subr.mxu0 0.0
        %4975 = vmatpush1.xpose.msra.mxu0 0.0
        %4976 = vmatprep.subr.mxu0 0.0
        %4977 = vmatpush1.xpose.msra.mxu0 0.0
        %4978 = vmatprep.subr.mxu0 0.0
        %4979 = vmatpush1.xpose.msra.mxu0 0.0
        %4980 = vmatprep.subr.mxu0 0.0
        %4981 = vmatpush1.xpose.msra.mxu0 0.0
        %4982 = vmatprep.subr.mxu0 0.0
        %4983 = vmatpush1.xpose.msra.mxu0 0.0
        %4984 = vmatprep.subr.mxu0 0.0
        %4985 = vmatpush1.xpose.msra.mxu0 0.0
        %4986 = vmatprep.subr.mxu0 0.0
        %4987 = vmatpush1.xpose.msra.mxu0 0.0
        %4988 = vmatprep.subr.mxu0 0.0
        %4989 = vmatpush1.xpose.msra.mxu0 0.0
        %4990 = vmatprep.subr.mxu0 0.0
        %4991 = vmatpush1.xpose.msra.mxu0 0.0
        %4992 = vmatprep.subr.mxu0 0.0
        %4993 = vmatpush1.xpose.msra.mxu0 0.0
        %4994 = vmatprep.subr.mxu0 0.0
        %4995 = vmatpush1.xpose.msra.mxu0 0.0
        %4996 = vmatprep.subr.mxu0 0.0
        %4997 = vmatpush1.xpose.msra.mxu0 0.0
        %4998 = vmatprep.subr.mxu0 0.0
        %4999 = vmatpush1.xpose.msra.mxu0 0.0
        %5000 = vmatprep.subr.mxu0 0.0
        %5001 = vmatpush1.xpose.msra.mxu0 0.0
        %5002 = vmatprep.subr.mxu0 0.0
        %5003 = vmatpush1.xpose.msra.mxu0 0.0
        %5004 = vmatprep.subr.mxu0 0.0
        %5005 = vmatpush1.xpose.msra.mxu0 0.0
        %5006 = vmatprep.subr.mxu0 0.0
        %5007 = vmatpush1.xpose.msra.mxu0 0.0
        %5008 = vmatprep.subr.mxu0 0.0
        %5009 = vmatpush1.xpose.msra.mxu0 0.0
        %5010 = vmatprep.subr.mxu0 0.0
        %5011 = vmatpush1.xpose.msra.mxu0 0.0
        %5012 = vmatprep.subr.mxu0 0.0
        %5013 = vmatpush1.xpose.msra.mxu0 0.0
        %5014 = vmatprep.subr.mxu0 0.0
        %5015 = vmatpush1.xpose.msra.mxu0 0.0
        %5016 = vmatprep.subr.mxu0 0.0
        %5017 = vmatpush1.xpose.msra.mxu0 0.0
        %5018 = vmatprep.subr.mxu0 0.0
        %5019 = vmatpush1.xpose.msra.mxu0 0.0
        %5020 = vmatprep.subr.mxu0 0.0
        %5021 = vmatpush1.xpose.msra.mxu0 0.0
        %5022 = vmatprep.subr.mxu0 0.0
        %5023 = vmatpush1.xpose.msra.mxu0 0.0
        %5024 = vmatprep.subr.mxu0 0.0
        %5025 = vmatpush1.xpose.msra.mxu0 0.0
        %5026 = vmatprep.subr.mxu0 0.0
        %5027 = vmatpush1.xpose.msra.mxu0 0.0
        %5028 = vmatprep.subr.mxu0 0.0
        %5029 = vmatpush1.xpose.msra.mxu0 0.0
        %5030 = vmatprep.subr.mxu0 0.0
        %5031 = vmatpush1.xpose.msra.mxu0 0.0
        %5032 = vmatprep.subr.mxu0 0.0
        %5033 = vmatpush1.xpose.msra.mxu0 0.0
        %5034 = vmatprep.mubr.f32.mxu0 0.0
        %5035 = vmatmul.mubr.f32.gmra.mrb[0].mxu0 %v4965
        %v5036 = vpop.f32.mrb[0].mxu0
        %v5037 = vadd.f32 0.0, %v5036
        %v5038 = vpop.f32.mrb[0].mxu0
        %5039 = vdwg.mxu0
        %v5041 = vsel %vm647, %v4627, 0
        %v5044 = vsel %vm647, %v4724, 0
        %5046 = vmatprep.subr.mxu0 0.0
        %5047 = vmatpush1.xpose.msra.mxu0 %v5044
        %5048 = vmatprep.subr.mxu0 0.0
        %5049 = vmatpush1.xpose.msra.mxu0 0.0
        %5050 = vmatprep.subr.mxu0 0.0
        %5051 = vmatpush1.xpose.msra.mxu0 0.0
        %5052 = vmatprep.subr.mxu0 0.0
        %5053 = vmatpush1.xpose.msra.mxu0 0.0
        %5054 = vmatprep.subr.mxu0 0.0
        %5055 = vmatpush1.xpose.msra.mxu0 0.0
        %5056 = vmatprep.subr.mxu0 0.0
        %5057 = vmatpush1.xpose.msra.mxu0 0.0
        %5058 = vmatprep.subr.mxu0 0.0
        %5059 = vmatpush1.xpose.msra.mxu0 0.0
        %5060 = vmatprep.subr.mxu0 0.0
        %5061 = vmatpush1.xpose.msra.mxu0 0.0
        %5062 = vmatprep.subr.mxu0 0.0
        %5063 = vmatpush1.xpose.msra.mxu0 0.0
        %5064 = vmatprep.subr.mxu0 0.0
        %5065 = vmatpush1.xpose.msra.mxu0 0.0
        %5066 = vmatprep.subr.mxu0 0.0
        %5067 = vmatpush1.xpose.msra.mxu0 0.0
        %5068 = vmatprep.subr.mxu0 0.0
        %5069 = vmatpush1.xpose.msra.mxu0 0.0
        %5070 = vmatprep.subr.mxu0 0.0
        %5071 = vmatpush1.xpose.msra.mxu0 0.0
        %5072 = vmatprep.subr.mxu0 0.0
        %5073 = vmatpush1.xpose.msra.mxu0 0.0
        %5074 = vmatprep.subr.mxu0 0.0
        %5075 = vmatpush1.xpose.msra.mxu0 0.0
        %5076 = vmatprep.subr.mxu0 0.0
        %5077 = vmatpush1.xpose.msra.mxu0 0.0
        %5078 = vmatprep.subr.mxu0 0.0
        %5079 = vmatpush1.xpose.msra.mxu0 0.0
        %5080 = vmatprep.subr.mxu0 0.0
        %5081 = vmatpush1.xpose.msra.mxu0 0.0
        %5082 = vmatprep.subr.mxu0 0.0
        %5083 = vmatpush1.xpose.msra.mxu0 0.0
        %5084 = vmatprep.subr.mxu0 0.0
        %5085 = vmatpush1.xpose.msra.mxu0 0.0
        %5086 = vmatprep.subr.mxu0 0.0
        %5087 = vmatpush1.xpose.msra.mxu0 0.0
        %5088 = vmatprep.subr.mxu0 0.0
        %5089 = vmatpush1.xpose.msra.mxu0 0.0
        %5090 = vmatprep.subr.mxu0 0.0
        %5091 = vmatpush1.xpose.msra.mxu0 0.0
        %5092 = vmatprep.subr.mxu0 0.0
        %5093 = vmatpush1.xpose.msra.mxu0 0.0
        %5094 = vmatprep.subr.mxu0 0.0
        %5095 = vmatpush1.xpose.msra.mxu0 0.0
        %5096 = vmatprep.subr.mxu0 0.0
        %5097 = vmatpush1.xpose.msra.mxu0 0.0
        %5098 = vmatprep.subr.mxu0 0.0
        %5099 = vmatpush1.xpose.msra.mxu0 0.0
        %5100 = vmatprep.subr.mxu0 0.0
        %5101 = vmatpush1.xpose.msra.mxu0 0.0
        %5102 = vmatprep.subr.mxu0 0.0
        %5103 = vmatpush1.xpose.msra.mxu0 0.0
        %5104 = vmatprep.subr.mxu0 0.0
        %5105 = vmatpush1.xpose.msra.mxu0 0.0
        %5106 = vmatprep.subr.mxu0 0.0
        %5107 = vmatpush1.xpose.msra.mxu0 0.0
        %5108 = vmatprep.subr.mxu0 0.0
        %5109 = vmatpush1.xpose.msra.mxu0 0.0
        %5110 = vmatprep.mubr.f32.mxu0 0.0
        %5111 = vmatmul.mubr.f32.gmra.mrb[0].mxu0 %v5041
        %v5112 = vpop.f32.mrb[0].mxu0
        %v5113 = vadd.f32 0.0, %v5112
        %v5114 = vpop.f32.mrb[0].mxu0
        %5115 = vdwg.mxu0
        %v5116 = vmul.f32 %v4885, 0.35355338
        %v5117 = vmul.f32 %v4961, 0.35355338
        %v5118 = vmul.f32 %v5037, 0.35355338
        %v5119 = vmul.f32 %v5113, 0.35355338
        %v5120 = vsel %vm647, %v5116, -inf
        %5121 = vmax.xlane.f32.xlu0 %v5120
        %v5122 = vpop.xlane.xlu0 %5121
        %v5123 = vsel %vm647, %v5117, -inf
        %5124 = vmax.xlane.f32.xlu0 %v5123
        %v5125 = vpop.xlane.xlu0 %5124
        %v5126 = vsel %vm647, %v5118, -inf
        %5127 = vmax.xlane.f32.xlu0 %v5126
        %v5128 = vpop.xlane.xlu0 %5127
        %v5129 = vsel %vm647, %v5119, -inf
        %5130 = vmax.xlane.f32.xlu0 %v5129
        %v5131 = vpop.xlane.xlu0 %5130
        %v5132 = vsub.f32 %v5116, %v5122
        %v5133 = vsub.f32 %v5117, %v5125
        %v5134 = vsub.f32 %v5118, %v5128
        %v5135 = vsub.f32 %v5119, %v5131
        %v5136 = vmul.f32 %v5132, 1.442695
        %v5137 = vpow.pop %v5136
        %v5138 = vmul.f32 %v5133, 1.442695
        %v5139 = vpow.pop %v5138
        %v5140 = vmul.f32 %v5134, 1.442695
        %v5141 = vpow.pop %v5140
        %v5142 = vmul.f32 %v5135, 1.442695
        %v5143 = vpow.pop %v5142
        %v5144 = vsel %vm647, %v5137, 0.0
        %5145 = vadd.xlane.f32.xlu0 %v5144
        %v5146 = vpop.xlane.xlu0 %5145
        %v5147 = vsel %vm647, %v5139, 0.0
        %5148 = vadd.xlane.f32.xlu0 %v5147
        %v5149 = vpop.xlane.xlu0 %5148
        %v5150 = vsel %vm647, %v5141, 0.0
        %5151 = vadd.xlane.f32.xlu0 %v5150
        %v5152 = vpop.xlane.xlu0 %5151
        %v5153 = vsel %vm647, %v5143, 0.0
        %5154 = vadd.xlane.f32.xlu0 %v5153
        %v5155 = vpop.xlane.xlu0 %5154
        %v5156 = vrcp.pop %v5146
        %v5157 = vrcp.pop %v5149
        %v5158 = vrcp.pop %v5152
        %v5159 = vrcp.pop %v5155
        %v5160 = vmul.f32 %v5137, %v5156
        %v5161 = vmul.f32 %v5139, %v5157
        %v5162 = vmul.f32 %v5141, %v5158
        %v5163 = vmul.f32 %v5143, %v5159
        %v5165 = vsel %vm647, %v5160, 0
        %5167 = vmatprep.subr.mxu0 0.0
        %5168 = vmatpush1.msra.mxu0 %v4794
        %5169 = vmatprep.subr.mxu0 0.0
        %5170 = vmatpush1.msra.mxu0 0.0
        %5171 = vmatprep.subr.mxu0 0.0
        %5172 = vmatpush1.msra.mxu0 0.0
        %5173 = vmatprep.subr.mxu0 0.0
        %5174 = vmatpush1.msra.mxu0 0.0
        %5175 = vmatprep.subr.mxu0 0.0
        %5176 = vmatpush1.msra.mxu0 0.0
        %5177 = vmatprep.subr.mxu0 0.0
        %5178 = vmatpush1.msra.mxu0 0.0
        %5179 = vmatprep.subr.mxu0 0.0
        %5180 = vmatpush1.msra.mxu0 0.0
        %5181 = vmatprep.subr.mxu0 0.0
        %5182 = vmatpush1.msra.mxu0 0.0
        %5183 = vmatprep.subr.mxu0 0.0
        %5184 = vmatpush1.msra.mxu0 0.0
        %5185 = vmatprep.subr.mxu0 0.0
        %5186 = vmatpush1.msra.mxu0 0.0
        %5187 = vmatprep.subr.mxu0 0.0
        %5188 = vmatpush1.msra.mxu0 0.0
        %5189 = vmatprep.subr.mxu0 0.0
        %5190 = vmatpush1.msra.mxu0 0.0
        %5191 = vmatprep.subr.mxu0 0.0
        %5192 = vmatpush1.msra.mxu0 0.0
        %5193 = vmatprep.subr.mxu0 0.0
        %5194 = vmatpush1.msra.mxu0 0.0
        %5195 = vmatprep.subr.mxu0 0.0
        %5196 = vmatpush1.msra.mxu0 0.0
        %5197 = vmatprep.subr.mxu0 0.0
        %5198 = vmatpush1.msra.mxu0 0.0
        %5199 = vmatprep.subr.mxu0 0.0
        %5200 = vmatpush1.msra.mxu0 0.0
        %5201 = vmatprep.subr.mxu0 0.0
        %5202 = vmatpush1.msra.mxu0 0.0
        %5203 = vmatprep.subr.mxu0 0.0
        %5204 = vmatpush1.msra.mxu0 0.0
        %5205 = vmatprep.subr.mxu0 0.0
        %5206 = vmatpush1.msra.mxu0 0.0
        %5207 = vmatprep.subr.mxu0 0.0
        %5208 = vmatpush1.msra.mxu0 0.0
        %5209 = vmatprep.subr.mxu0 0.0
        %5210 = vmatpush1.msra.mxu0 0.0
        %5211 = vmatprep.subr.mxu0 0.0
        %5212 = vmatpush1.msra.mxu0 0.0
        %5213 = vmatprep.subr.mxu0 0.0
        %5214 = vmatpush1.msra.mxu0 0.0
        %5215 = vmatprep.subr.mxu0 0.0
        %5216 = vmatpush1.msra.mxu0 0.0
        %5217 = vmatprep.subr.mxu0 0.0
        %5218 = vmatpush1.msra.mxu0 0.0
        %5219 = vmatprep.subr.mxu0 0.0
        %5220 = vmatpush1.msra.mxu0 0.0
        %5221 = vmatprep.subr.mxu0 0.0
        %5222 = vmatpush1.msra.mxu0 0.0
        %5223 = vmatprep.subr.mxu0 0.0
        %5224 = vmatpush1.msra.mxu0 0.0
        %5225 = vmatprep.subr.mxu0 0.0
        %5226 = vmatpush1.msra.mxu0 0.0
        %5227 = vmatprep.subr.mxu0 0.0
        %5228 = vmatpush1.msra.mxu0 0.0
        %5229 = vmatprep.subr.mxu0 0.0
        %5230 = vmatpush1.msra.mxu0 0.0
        %5231 = vmatprep.mubr.f32.mxu0 0.0
        %5232 = vmatmul.mubr.f32.gmra.mrb[0].mxu0 %v5165
        %v5233 = vpop.f32.mrb[0].mxu0
        %v5234 = vadd.f32 0.0, %v5233
        %v5235 = vpop.f32.mrb[0].mxu0
        %5236 = vdwg.mxu0
        %v5238 = vsel %vm647, %v5161, 0
        %5240 = vmatprep.subr.mxu0 0.0
        %5241 = vmatpush1.msra.mxu0 %v4799
        %5242 = vmatprep.subr.mxu0 0.0
        %5243 = vmatpush1.msra.mxu0 0.0
        %5244 = vmatprep.subr.mxu0 0.0
        %5245 = vmatpush1.msra.mxu0 0.0
        %5246 = vmatprep.subr.mxu0 0.0
        %5247 = vmatpush1.msra.mxu0 0.0
        %5248 = vmatprep.subr.mxu0 0.0
        %5249 = vmatpush1.msra.mxu0 0.0
        %5250 = vmatprep.subr.mxu0 0.0
        %5251 = vmatpush1.msra.mxu0 0.0
        %5252 = vmatprep.subr.mxu0 0.0
        %5253 = vmatpush1.msra.mxu0 0.0
        %5254 = vmatprep.subr.mxu0 0.0
        %5255 = vmatpush1.msra.mxu0 0.0
        %5256 = vmatprep.subr.mxu0 0.0
        %5257 = vmatpush1.msra.mxu0 0.0
        %5258 = vmatprep.subr.mxu0 0.0
        %5259 = vmatpush1.msra.mxu0 0.0
        %5260 = vmatprep.subr.mxu0 0.0
        %5261 = vmatpush1.msra.mxu0 0.0
        %5262 = vmatprep.subr.mxu0 0.0
        %5263 = vmatpush1.msra.mxu0 0.0
        %5264 = vmatprep.subr.mxu0 0.0
        %5265 = vmatpush1.msra.mxu0 0.0
        %5266 = vmatprep.subr.mxu0 0.0
        %5267 = vmatpush1.msra.mxu0 0.0
        %5268 = vmatprep.subr.mxu0 0.0
        %5269 = vmatpush1.msra.mxu0 0.0
        %5270 = vmatprep.subr.mxu0 0.0
        %5271 = vmatpush1.msra.mxu0 0.0
        %5272 = vmatprep.subr.mxu0 0.0
        %5273 = vmatpush1.msra.mxu0 0.0
        %5274 = vmatprep.subr.mxu0 0.0
        %5275 = vmatpush1.msra.mxu0 0.0
        %5276 = vmatprep.subr.mxu0 0.0
        %5277 = vmatpush1.msra.mxu0 0.0
        %5278 = vmatprep.subr.mxu0 0.0
        %5279 = vmatpush1.msra.mxu0 0.0
        %5280 = vmatprep.subr.mxu0 0.0
        %5281 = vmatpush1.msra.mxu0 0.0
        %5282 = vmatprep.subr.mxu0 0.0
        %5283 = vmatpush1.msra.mxu0 0.0
        %5284 = vmatprep.subr.mxu0 0.0
        %5285 = vmatpush1.msra.mxu0 0.0
        %5286 = vmatprep.subr.mxu0 0.0
        %5287 = vmatpush1.msra.mxu0 0.0
        %5288 = vmatprep.subr.mxu0 0.0
        %5289 = vmatpush1.msra.mxu0 0.0
        %5290 = vmatprep.subr.mxu0 0.0
        %5291 = vmatpush1.msra.mxu0 0.0
        %5292 = vmatprep.subr.mxu0 0.0
        %5293 = vmatpush1.msra.mxu0 0.0
        %5294 = vmatprep.subr.mxu0 0.0
        %5295 = vmatpush1.msra.mxu0 0.0
        %5296 = vmatprep.subr.mxu0 0.0
        %5297 = vmatpush1.msra.mxu0 0.0
        %5298 = vmatprep.subr.mxu0 0.0
        %5299 = vmatpush1.msra.mxu0 0.0
        %5300 = vmatprep.subr.mxu0 0.0
        %5301 = vmatpush1.msra.mxu0 0.0
        %5302 = vmatprep.subr.mxu0 0.0
        %5303 = vmatpush1.msra.mxu0 0.0
        %5304 = vmatprep.mubr.f32.mxu0 0.0
        %5305 = vmatmul.mubr.f32.gmra.mrb[0].mxu0 %v5238
        %v5306 = vpop.f32.mrb[0].mxu0
        %v5307 = vadd.f32 0.0, %v5306
        %v5308 = vpop.f32.mrb[0].mxu0
        %5309 = vdwg.mxu0
        %v5311 = vsel %vm647, %v5162, 0
        %5313 = vmatprep.subr.mxu0 0.0
        %5314 = vmatpush1.msra.mxu0 %v4804
        %5315 = vmatprep.subr.mxu0 0.0
        %5316 = vmatpush1.msra.mxu0 0.0
        %5317 = vmatprep.subr.mxu0 0.0
        %5318 = vmatpush1.msra.mxu0 0.0
        %5319 = vmatprep.subr.mxu0 0.0
        %5320 = vmatpush1.msra.mxu0 0.0
        %5321 = vmatprep.subr.mxu0 0.0
        %5322 = vmatpush1.msra.mxu0 0.0
        %5323 = vmatprep.subr.mxu0 0.0
        %5324 = vmatpush1.msra.mxu0 0.0
        %5325 = vmatprep.subr.mxu0 0.0
        %5326 = vmatpush1.msra.mxu0 0.0
        %5327 = vmatprep.subr.mxu0 0.0
        %5328 = vmatpush1.msra.mxu0 0.0
        %5329 = vmatprep.subr.mxu0 0.0
        %5330 = vmatpush1.msra.mxu0 0.0
        %5331 = vmatprep.subr.mxu0 0.0
        %5332 = vmatpush1.msra.mxu0 0.0
        %5333 = vmatprep.subr.mxu0 0.0
        %5334 = vmatpush1.msra.mxu0 0.0
        %5335 = vmatprep.subr.mxu0 0.0
        %5336 = vmatpush1.msra.mxu0 0.0
        %5337 = vmatprep.subr.mxu0 0.0
        %5338 = vmatpush1.msra.mxu0 0.0
        %5339 = vmatprep.subr.mxu0 0.0
        %5340 = vmatpush1.msra.mxu0 0.0
        %5341 = vmatprep.subr.mxu0 0.0
        %5342 = vmatpush1.msra.mxu0 0.0
        %5343 = vmatprep.subr.mxu0 0.0
        %5344 = vmatpush1.msra.mxu0 0.0
        %5345 = vmatprep.subr.mxu0 0.0
        %5346 = vmatpush1.msra.mxu0 0.0
        %5347 = vmatprep.subr.mxu0 0.0
        %5348 = vmatpush1.msra.mxu0 0.0
        %5349 = vmatprep.subr.mxu0 0.0
        %5350 = vmatpush1.msra.mxu0 0.0
        %5351 = vmatprep.subr.mxu0 0.0
        %5352 = vmatpush1.msra.mxu0 0.0
        %5353 = vmatprep.subr.mxu0 0.0
        %5354 = vmatpush1.msra.mxu0 0.0
        %5355 = vmatprep.subr.mxu0 0.0
        %5356 = vmatpush1.msra.mxu0 0.0
        %5357 = vmatprep.subr.mxu0 0.0
        %5358 = vmatpush1.msra.mxu0 0.0
        %5359 = vmatprep.subr.mxu0 0.0
        %5360 = vmatpush1.msra.mxu0 0.0
        %5361 = vmatprep.subr.mxu0 0.0
        %5362 = vmatpush1.msra.mxu0 0.0
        %5363 = vmatprep.subr.mxu0 0.0
        %5364 = vmatpush1.msra.mxu0 0.0
        %5365 = vmatprep.subr.mxu0 0.0
        %5366 = vmatpush1.msra.mxu0 0.0
        %5367 = vmatprep.subr.mxu0 0.0
        %5368 = vmatpush1.msra.mxu0 0.0
        %5369 = vmatprep.subr.mxu0 0.0
        %5370 = vmatpush1.msra.mxu0 0.0
        %5371 = vmatprep.subr.mxu0 0.0
        %5372 = vmatpush1.msra.mxu0 0.0
        %5373 = vmatprep.subr.mxu0 0.0
        %5374 = vmatpush1.msra.mxu0 0.0
        %5375 = vmatprep.subr.mxu0 0.0
        %5376 = vmatpush1.msra.mxu0 0.0
        %5377 = vmatprep.mubr.f32.mxu0 0.0
        %5378 = vmatmul.mubr.f32.gmra.mrb[0].mxu0 %v5311
        %v5379 = vpop.f32.mrb[0].mxu0
        %v5380 = vadd.f32 0.0, %v5379
        %v5381 = vpop.f32.mrb[0].mxu0
        %5382 = vdwg.mxu0
        %v5384 = vsel %vm647, %v5163, 0
        %5386 = vmatprep.subr.mxu0 0.0
        %5387 = vmatpush1.msra.mxu0 %v4809
        %5388 = vmatprep.subr.mxu0 0.0
        %5389 = vmatpush1.msra.mxu0 0.0
        %5390 = vmatprep.subr.mxu0 0.0
        %5391 = vmatpush1.msra.mxu0 0.0
        %5392 = vmatprep.subr.mxu0 0.0
        %5393 = vmatpush1.msra.mxu0 0.0
        %5394 = vmatprep.subr.mxu0 0.0
        %5395 = vmatpush1.msra.mxu0 0.0
        %5396 = vmatprep.subr.mxu0 0.0
        %5397 = vmatpush1.msra.mxu0 0.0
        %5398 = vmatprep.subr.mxu0 0.0
        %5399 = vmatpush1.msra.mxu0 0.0
        %5400 = vmatprep.subr.mxu0 0.0
        %5401 = vmatpush1.msra.mxu0 0.0
        %5402 = vmatprep.subr.mxu0 0.0
        %5403 = vmatpush1.msra.mxu0 0.0
        %5404 = vmatprep.subr.mxu0 0.0
        %5405 = vmatpush1.msra.mxu0 0.0
        %5406 = vmatprep.subr.mxu0 0.0
        %5407 = vmatpush1.msra.mxu0 0.0
        %5408 = vmatprep.subr.mxu0 0.0
        %5409 = vmatpush1.msra.mxu0 0.0
        %5410 = vmatprep.subr.mxu0 0.0
        %5411 = vmatpush1.msra.mxu0 0.0
        %5412 = vmatprep.subr.mxu0 0.0
        %5413 = vmatpush1.msra.mxu0 0.0
        %5414 = vmatprep.subr.mxu0 0.0
        %5415 = vmatpush1.msra.mxu0 0.0
        %5416 = vmatprep.subr.mxu0 0.0
        %5417 = vmatpush1.msra.mxu0 0.0
        %5418 = vmatprep.subr.mxu0 0.0
        %5419 = vmatpush1.msra.mxu0 0.0
        %5420 = vmatprep.subr.mxu0 0.0
        %5421 = vmatpush1.msra.mxu0 0.0
        %5422 = vmatprep.subr.mxu0 0.0
        %5423 = vmatpush1.msra.mxu0 0.0
        %5424 = vmatprep.subr.mxu0 0.0
        %5425 = vmatpush1.msra.mxu0 0.0
        %5426 = vmatprep.subr.mxu0 0.0
        %5427 = vmatpush1.msra.mxu0 0.0
        %5428 = vmatprep.subr.mxu0 0.0
        %5429 = vmatpush1.msra.mxu0 0.0
        %5430 = vmatprep.subr.mxu0 0.0
        %5431 = vmatpush1.msra.mxu0 0.0
        %5432 = vmatprep.subr.mxu0 0.0
        %5433 = vmatpush1.msra.mxu0 0.0
        %5434 = vmatprep.subr.mxu0 0.0
        %5435 = vmatpush1.msra.mxu0 0.0
        %5436 = vmatprep.subr.mxu0 0.0
        %5437 = vmatpush1.msra.mxu0 0.0
        %5438 = vmatprep.subr.mxu0 0.0
        %5439 = vmatpush1.msra.mxu0 0.0
        %5440 = vmatprep.subr.mxu0 0.0
        %5441 = vmatpush1.msra.mxu0 0.0
        %5442 = vmatprep.subr.mxu0 0.0
        %5443 = vmatpush1.msra.mxu0 0.0
        %5444 = vmatprep.subr.mxu0 0.0
        %5445 = vmatpush1.msra.mxu0 0.0
        %5446 = vmatprep.subr.mxu0 0.0
        %5447 = vmatpush1.msra.mxu0 0.0
        %5448 = vmatprep.subr.mxu0 0.0
        %5449 = vmatpush1.msra.mxu0 0.0
        %5450 = vmatprep.mubr.f32.mxu0 0.0
        %5451 = vmatmul.mubr.f32.gmra.mrb[0].mxu0 %v5384
        %v5452 = vpop.f32.mrb[0].mxu0
        %v5453 = vadd.f32 0.0, %v5452
        %v5454 = vpop.f32.mrb[0].mxu0
        %5455 = vdwg.mxu0
        %s5456 = scalar_lea.vmem %s3, 416
        %v5457 = vld [vmem:[%s5456] sm:$0xff]
        %v5458 = vld [vmem:[%s5456 + $0x8] sm:$0xff]
        %v5459 = vld [vmem:[%s5456 + $0x10] sm:$0xff]
        %v5460 = vld [vmem:[%s5456 + $0x18] sm:$0xff]
        %s5461 = scalar_lea.vmem %s3, 544
        %v5462 = vld [vmem:[%s5461] sm:$0xff]
        %v5463 = vld [vmem:[%s5461 + $0x8] sm:$0xff]
        %v5464 = vld [vmem:[%s5461 + $0x10] sm:$0xff]
        %v5465 = vld [vmem:[%s5461 + $0x18] sm:$0xff]
        %s5466 = scalar_lea.vmem %s3, 672
        %v5467 = vld [vmem:[%s5466] sm:$0xff]
        %v5468 = vld [vmem:[%s5466 + $0x8] sm:$0xff]
        %v5469 = vld [vmem:[%s5466 + $0x10] sm:$0xff]
        %v5470 = vld [vmem:[%s5466 + $0x18] sm:$0xff]
        %s5471 = scalar_lea.vmem %s4, 40
        %v5472 = vld [vmem:[%s5471] sm:$0xff]
        %5473 = vmatprep.subr.mxu0 0.0
        %5474 = vmatpush1.msra.mxu0 %v5457
        %5475 = vmatprep.subr.mxu0 0.0
        %5476 = vmatpush1.msra.mxu0 %v5458
        %5477 = vmatprep.subr.mxu0 0.0
        %5478 = vmatpush1.msra.mxu0 %v5459
        %5479 = vmatprep.subr.mxu0 0.0
        %5480 = vmatpush1.msra.mxu0 %v5460
        %5481 = vmatprep.subr.mxu0 0.0
        %5482 = vmatpush1.msra.mxu0 0.0
        %5483 = vmatprep.subr.mxu0 0.0
        %5484 = vmatpush1.msra.mxu0 0.0
        %5485 = vmatprep.subr.mxu0 0.0
        %5486 = vmatpush1.msra.mxu0 0.0
        %5487 = vmatprep.subr.mxu0 0.0
        %5488 = vmatpush1.msra.mxu0 0.0
        %5489 = vmatprep.subr.mxu0 0.0
        %5490 = vmatpush1.msra.mxu0 0.0
        %5491 = vmatprep.subr.mxu0 0.0
        %5492 = vmatpush1.msra.mxu0 0.0
        %5493 = vmatprep.subr.mxu0 0.0
        %5494 = vmatpush1.msra.mxu0 0.0
        %5495 = vmatprep.subr.mxu0 0.0
        %5496 = vmatpush1.msra.mxu0 0.0
        %5497 = vmatprep.subr.mxu0 0.0
        %5498 = vmatpush1.msra.mxu0 0.0
        %5499 = vmatprep.subr.mxu0 0.0
        %5500 = vmatpush1.msra.mxu0 0.0
        %5501 = vmatprep.subr.mxu0 0.0
        %5502 = vmatpush1.msra.mxu0 0.0
        %5503 = vmatprep.subr.mxu0 0.0
        %5504 = vmatpush1.msra.mxu0 0.0
        %5505 = vmatprep.subr.mxu0 0.0
        %5506 = vmatpush1.msra.mxu0 0.0
        %5507 = vmatprep.subr.mxu0 0.0
        %5508 = vmatpush1.msra.mxu0 0.0
        %5509 = vmatprep.subr.mxu0 0.0
        %5510 = vmatpush1.msra.mxu0 0.0
        %5511 = vmatprep.subr.mxu0 0.0
        %5512 = vmatpush1.msra.mxu0 0.0
        %5513 = vmatprep.subr.mxu0 0.0
        %5514 = vmatpush1.msra.mxu0 0.0
        %5515 = vmatprep.subr.mxu0 0.0
        %5516 = vmatpush1.msra.mxu0 0.0
        %5517 = vmatprep.subr.mxu0 0.0
        %5518 = vmatpush1.msra.mxu0 0.0
        %5519 = vmatprep.subr.mxu0 0.0
        %5520 = vmatpush1.msra.mxu0 0.0
        %5521 = vmatprep.subr.mxu0 0.0
        %5522 = vmatpush1.msra.mxu0 0.0
        %5523 = vmatprep.subr.mxu0 0.0
        %5524 = vmatpush1.msra.mxu0 0.0
        %5525 = vmatprep.subr.mxu0 0.0
        %5526 = vmatpush1.msra.mxu0 0.0
        %5527 = vmatprep.subr.mxu0 0.0
        %5528 = vmatpush1.msra.mxu0 0.0
        %5529 = vmatprep.subr.mxu0 0.0
        %5530 = vmatpush1.msra.mxu0 0.0
        %5531 = vmatprep.subr.mxu0 0.0
        %5532 = vmatpush1.msra.mxu0 0.0
        %5533 = vmatprep.subr.mxu0 0.0
        %5534 = vmatpush1.msra.mxu0 0.0
        %5535 = vmatprep.subr.mxu0 0.0
        %5536 = vmatpush1.msra.mxu0 0.0
        %5537 = vmatprep.mubr.f32.mxu0 0.0
        %5538 = vmatmul.mubr.f32.gmra.mrb[0].mxu0 %v4534
        %v5539 = vpop.f32.mrb[0].mxu0
        %v5540 = vadd.f32 0.0, %v5539
        %v5541 = vpop.f32.mrb[0].mxu0
        %5542 = vmatprep.mubr.f32.mxu0 0.0
        %5543 = vmatmul.mubr.f32.gmra.mrb[0].mxu0 %v4537
        %v5544 = vpop.f32.mrb[0].mxu0
        %v5545 = vadd.f32 0.0, %v5544
        %v5546 = vpop.f32.mrb[0].mxu0
        %5547 = vmatprep.mubr.f32.mxu0 0.0
        %5548 = vmatmul.mubr.f32.gmra.mrb[0].mxu0 %v4540
        %v5549 = vpop.f32.mrb[0].mxu0
        %v5550 = vadd.f32 0.0, %v5549
        %v5551 = vpop.f32.mrb[0].mxu0
        %5552 = vmatprep.mubr.f32.mxu0 0.0
        %5553 = vmatmul.mubr.f32.gmra.mrb[0].mxu0 %v4543
        %v5554 = vpop.f32.mrb[0].mxu0
        %v5555 = vadd.f32 0.0, %v5554
        %v5556 = vpop.f32.mrb[0].mxu0
        %5557 = vdwg.mxu0
        %5558 = vmatprep.subr.mxu0 0.0
        %5559 = vmatpush1.msra.mxu0 %v5462
        %5560 = vmatprep.subr.mxu0 0.0
        %5561 = vmatpush1.msra.mxu0 %v5463
        %5562 = vmatprep.subr.mxu0 0.0
        %5563 = vmatpush1.msra.mxu0 %v5464
        %5564 = vmatprep.subr.mxu0 0.0
        %5565 = vmatpush1.msra.mxu0 %v5465
        %5566 = vmatprep.subr.mxu0 0.0
        %5567 = vmatpush1.msra.mxu0 0.0
        %5568 = vmatprep.subr.mxu0 0.0
        %5569 = vmatpush1.msra.mxu0 0.0
        %5570 = vmatprep.subr.mxu0 0.0
        %5571 = vmatpush1.msra.mxu0 0.0
        %5572 = vmatprep.subr.mxu0 0.0
        %5573 = vmatpush1.msra.mxu0 0.0
        %5574 = vmatprep.subr.mxu0 0.0
        %5575 = vmatpush1.msra.mxu0 0.0
        %5576 = vmatprep.subr.mxu0 0.0
        %5577 = vmatpush1.msra.mxu0 0.0
        %5578 = vmatprep.subr.mxu0 0.0
        %5579 = vmatpush1.msra.mxu0 0.0
        %5580 = vmatprep.subr.mxu0 0.0
        %5581 = vmatpush1.msra.mxu0 0.0
        %5582 = vmatprep.subr.mxu0 0.0
        %5583 = vmatpush1.msra.mxu0 0.0
        %5584 = vmatprep.subr.mxu0 0.0
        %5585 = vmatpush1.msra.mxu0 0.0
        %5586 = vmatprep.subr.mxu0 0.0
        %5587 = vmatpush1.msra.mxu0 0.0
        %5588 = vmatprep.subr.mxu0 0.0
        %5589 = vmatpush1.msra.mxu0 0.0
        %5590 = vmatprep.subr.mxu0 0.0
        %5591 = vmatpush1.msra.mxu0 0.0
        %5592 = vmatprep.subr.mxu0 0.0
        %5593 = vmatpush1.msra.mxu0 0.0
        %5594 = vmatprep.subr.mxu0 0.0
        %5595 = vmatpush1.msra.mxu0 0.0
        %5596 = vmatprep.subr.mxu0 0.0
        %5597 = vmatpush1.msra.mxu0 0.0
        %5598 = vmatprep.subr.mxu0 0.0
        %5599 = vmatpush1.msra.mxu0 0.0
        %5600 = vmatprep.subr.mxu0 0.0
        %5601 = vmatpush1.msra.mxu0 0.0
        %5602 = vmatprep.subr.mxu0 0.0
        %5603 = vmatpush1.msra.mxu0 0.0
        %5604 = vmatprep.subr.mxu0 0.0
        %5605 = vmatpush1.msra.mxu0 0.0
        %5606 = vmatprep.subr.mxu0 0.0
        %5607 = vmatpush1.msra.mxu0 0.0
        %5608 = vmatprep.subr.mxu0 0.0
        %5609 = vmatpush1.msra.mxu0 0.0
        %5610 = vmatprep.subr.mxu0 0.0
        %5611 = vmatpush1.msra.mxu0 0.0
        %5612 = vmatprep.subr.mxu0 0.0
        %5613 = vmatpush1.msra.mxu0 0.0
        %5614 = vmatprep.subr.mxu0 0.0
        %5615 = vmatpush1.msra.mxu0 0.0
        %5616 = vmatprep.subr.mxu0 0.0
        %5617 = vmatpush1.msra.mxu0 0.0
        %5618 = vmatprep.subr.mxu0 0.0
        %5619 = vmatpush1.msra.mxu0 0.0
        %5620 = vmatprep.subr.mxu0 0.0
        %5621 = vmatpush1.msra.mxu0 0.0
        %5622 = vmatprep.mubr.f32.mxu0 0.0
        %5623 = vmatmul.mubr.f32.gmra.mrb[0].mxu0 %v4631
        %v5624 = vpop.f32.mrb[0].mxu0
        %v5625 = vadd.f32 0.0, %v5624
        %v5626 = vpop.f32.mrb[0].mxu0
        %5627 = vmatprep.mubr.f32.mxu0 0.0
        %5628 = vmatmul.mubr.f32.gmra.mrb[0].mxu0 %v4634
        %v5629 = vpop.f32.mrb[0].mxu0
        %v5630 = vadd.f32 0.0, %v5629
        %v5631 = vpop.f32.mrb[0].mxu0
        %5632 = vmatprep.mubr.f32.mxu0 0.0
        %5633 = vmatmul.mubr.f32.gmra.mrb[0].mxu0 %v4637
        %v5634 = vpop.f32.mrb[0].mxu0
        %v5635 = vadd.f32 0.0, %v5634
        %v5636 = vpop.f32.mrb[0].mxu0
        %5637 = vmatprep.mubr.f32.mxu0 0.0
        %5638 = vmatmul.mubr.f32.gmra.mrb[0].mxu0 %v4640
        %v5639 = vpop.f32.mrb[0].mxu0
        %v5640 = vadd.f32 0.0, %v5639
        %v5641 = vpop.f32.mrb[0].mxu0
        %5642 = vdwg.mxu0
        %5643 = vmatprep.subr.mxu0 0.0
        %5644 = vmatpush1.msra.mxu0 %v5467
        %5645 = vmatprep.subr.mxu0 0.0
        %5646 = vmatpush1.msra.mxu0 %v5468
        %5647 = vmatprep.subr.mxu0 0.0
        %5648 = vmatpush1.msra.mxu0 %v5469
        %5649 = vmatprep.subr.mxu0 0.0
        %5650 = vmatpush1.msra.mxu0 %v5470
        %5651 = vmatprep.subr.mxu0 0.0
        %5652 = vmatpush1.msra.mxu0 0.0
        %5653 = vmatprep.subr.mxu0 0.0
        %5654 = vmatpush1.msra.mxu0 0.0
        %5655 = vmatprep.subr.mxu0 0.0
        %5656 = vmatpush1.msra.mxu0 0.0
        %5657 = vmatprep.subr.mxu0 0.0
        %5658 = vmatpush1.msra.mxu0 0.0
        %5659 = vmatprep.subr.mxu0 0.0
        %5660 = vmatpush1.msra.mxu0 0.0
        %5661 = vmatprep.subr.mxu0 0.0
        %5662 = vmatpush1.msra.mxu0 0.0
        %5663 = vmatprep.subr.mxu0 0.0
        %5664 = vmatpush1.msra.mxu0 0.0
        %5665 = vmatprep.subr.mxu0 0.0
        %5666 = vmatpush1.msra.mxu0 0.0
        %5667 = vmatprep.subr.mxu0 0.0
        %5668 = vmatpush1.msra.mxu0 0.0
        %5669 = vmatprep.subr.mxu0 0.0
        %5670 = vmatpush1.msra.mxu0 0.0
        %5671 = vmatprep.subr.mxu0 0.0
        %5672 = vmatpush1.msra.mxu0 0.0
        %5673 = vmatprep.subr.mxu0 0.0
        %5674 = vmatpush1.msra.mxu0 0.0
        %5675 = vmatprep.subr.mxu0 0.0
        %5676 = vmatpush1.msra.mxu0 0.0
        %5677 = vmatprep.subr.mxu0 0.0
        %5678 = vmatpush1.msra.mxu0 0.0
        %5679 = vmatprep.subr.mxu0 0.0
        %5680 = vmatpush1.msra.mxu0 0.0
        %5681 = vmatprep.subr.mxu0 0.0
        %5682 = vmatpush1.msra.mxu0 0.0
        %5683 = vmatprep.subr.mxu0 0.0
        %5684 = vmatpush1.msra.mxu0 0.0
        %5685 = vmatprep.subr.mxu0 0.0
        %5686 = vmatpush1.msra.mxu0 0.0
        %5687 = vmatprep.subr.mxu0 0.0
        %5688 = vmatpush1.msra.mxu0 0.0
        %5689 = vmatprep.subr.mxu0 0.0
        %5690 = vmatpush1.msra.mxu0 0.0
        %5691 = vmatprep.subr.mxu0 0.0
        %5692 = vmatpush1.msra.mxu0 0.0
        %5693 = vmatprep.subr.mxu0 0.0
        %5694 = vmatpush1.msra.mxu0 0.0
        %5695 = vmatprep.subr.mxu0 0.0
        %5696 = vmatpush1.msra.mxu0 0.0
        %5697 = vmatprep.subr.mxu0 0.0
        %5698 = vmatpush1.msra.mxu0 0.0
        %5699 = vmatprep.subr.mxu0 0.0
        %5700 = vmatpush1.msra.mxu0 0.0
        %5701 = vmatprep.subr.mxu0 0.0
        %5702 = vmatpush1.msra.mxu0 0.0
        %5703 = vmatprep.subr.mxu0 0.0
        %5704 = vmatpush1.msra.mxu0 0.0
        %5705 = vmatprep.subr.mxu0 0.0
        %5706 = vmatpush1.msra.mxu0 0.0
        %5707 = vmatprep.mubr.f32.mxu0 0.0
        %5708 = vmatmul.mubr.f32.gmra.mrb[0].mxu0 %v4631
        %v5709 = vpop.f32.mrb[0].mxu0
        %v5710 = vadd.f32 0.0, %v5709
        %v5711 = vpop.f32.mrb[0].mxu0
        %5712 = vmatprep.mubr.f32.mxu0 0.0
        %5713 = vmatmul.mubr.f32.gmra.mrb[0].mxu0 %v4634
        %v5714 = vpop.f32.mrb[0].mxu0
        %v5715 = vadd.f32 0.0, %v5714
        %v5716 = vpop.f32.mrb[0].mxu0
        %5717 = vmatprep.mubr.f32.mxu0 0.0
        %5718 = vmatmul.mubr.f32.gmra.mrb[0].mxu0 %v4637
        %v5719 = vpop.f32.mrb[0].mxu0
        %v5720 = vadd.f32 0.0, %v5719
        %v5721 = vpop.f32.mrb[0].mxu0
        %5722 = vmatprep.mubr.f32.mxu0 0.0
        %5723 = vmatmul.mubr.f32.gmra.mrb[0].mxu0 %v4640
        %v5724 = vpop.f32.mrb[0].mxu0
        %v5725 = vadd.f32 0.0, %v5724
        %v5726 = vpop.f32.mrb[0].mxu0
        %5727 = vdwg.mxu0
        %v5729 = vsel %vm647, %v5540, 0
        %v5732 = vsel %vm647, %v5625, 0
        %5734 = vmatprep.subr.mxu0 0.0
        %5735 = vmatpush1.xpose.msra.mxu0 %v5732
        %5736 = vmatprep.subr.mxu0 0.0
        %5737 = vmatpush1.xpose.msra.mxu0 0.0
        %5738 = vmatprep.subr.mxu0 0.0
        %5739 = vmatpush1.xpose.msra.mxu0 0.0
        %5740 = vmatprep.subr.mxu0 0.0
        %5741 = vmatpush1.xpose.msra.mxu0 0.0
        %5742 = vmatprep.subr.mxu0 0.0
        %5743 = vmatpush1.xpose.msra.mxu0 0.0
        %5744 = vmatprep.subr.mxu0 0.0
        %5745 = vmatpush1.xpose.msra.mxu0 0.0
        %5746 = vmatprep.subr.mxu0 0.0
        %5747 = vmatpush1.xpose.msra.mxu0 0.0
        %5748 = vmatprep.subr.mxu0 0.0
        %5749 = vmatpush1.xpose.msra.mxu0 0.0
        %5750 = vmatprep.subr.mxu0 0.0
        %5751 = vmatpush1.xpose.msra.mxu0 0.0
        %5752 = vmatprep.subr.mxu0 0.0
        %5753 = vmatpush1.xpose.msra.mxu0 0.0
        %5754 = vmatprep.subr.mxu0 0.0
        %5755 = vmatpush1.xpose.msra.mxu0 0.0
        %5756 = vmatprep.subr.mxu0 0.0
        %5757 = vmatpush1.xpose.msra.mxu0 0.0
        %5758 = vmatprep.subr.mxu0 0.0
        %5759 = vmatpush1.xpose.msra.mxu0 0.0
        %5760 = vmatprep.subr.mxu0 0.0
        %5761 = vmatpush1.xpose.msra.mxu0 0.0
        %5762 = vmatprep.subr.mxu0 0.0
        %5763 = vmatpush1.xpose.msra.mxu0 0.0
        %5764 = vmatprep.subr.mxu0 0.0
        %5765 = vmatpush1.xpose.msra.mxu0 0.0
        %5766 = vmatprep.subr.mxu0 0.0
        %5767 = vmatpush1.xpose.msra.mxu0 0.0
        %5768 = vmatprep.subr.mxu0 0.0
        %5769 = vmatpush1.xpose.msra.mxu0 0.0
        %5770 = vmatprep.subr.mxu0 0.0
        %5771 = vmatpush1.xpose.msra.mxu0 0.0
        %5772 = vmatprep.subr.mxu0 0.0
        %5773 = vmatpush1.xpose.msra.mxu0 0.0
        %5774 = vmatprep.subr.mxu0 0.0
        %5775 = vmatpush1.xpose.msra.mxu0 0.0
        %5776 = vmatprep.subr.mxu0 0.0
        %5777 = vmatpush1.xpose.msra.mxu0 0.0
        %5778 = vmatprep.subr.mxu0 0.0
        %5779 = vmatpush1.xpose.msra.mxu0 0.0
        %5780 = vmatprep.subr.mxu0 0.0
        %5781 = vmatpush1.xpose.msra.mxu0 0.0
        %5782 = vmatprep.subr.mxu0 0.0
        %5783 = vmatpush1.xpose.msra.mxu0 0.0
        %5784 = vmatprep.subr.mxu0 0.0
        %5785 = vmatpush1.xpose.msra.mxu0 0.0
        %5786 = vmatprep.subr.mxu0 0.0
        %5787 = vmatpush1.xpose.msra.mxu0 0.0
        %5788 = vmatprep.subr.mxu0 0.0
        %5789 = vmatpush1.xpose.msra.mxu0 0.0
        %5790 = vmatprep.subr.mxu0 0.0
        %5791 = vmatpush1.xpose.msra.mxu0 0.0
        %5792 = vmatprep.subr.mxu0 0.0
        %5793 = vmatpush1.xpose.msra.mxu0 0.0
        %5794 = vmatprep.subr.mxu0 0.0
        %5795 = vmatpush1.xpose.msra.mxu0 0.0
        %5796 = vmatprep.subr.mxu0 0.0
        %5797 = vmatpush1.xpose.msra.mxu0 0.0
        %5798 = vmatprep.mubr.f32.mxu0 0.0
        %5799 = vmatmul.mubr.f32.gmra.mrb[0].mxu0 %v5729
        %v5800 = vpop.f32.mrb[0].mxu0
        %v5801 = vadd.f32 0.0, %v5800
        %v5802 = vpop.f32.mrb[0].mxu0
        %5803 = vdwg.mxu0
        %v5805 = vsel %vm647, %v5545, 0
        %v5808 = vsel %vm647, %v5630, 0
        %5810 = vmatprep.subr.mxu0 0.0
        %5811 = vmatpush1.xpose.msra.mxu0 %v5808
        %5812 = vmatprep.subr.mxu0 0.0
        %5813 = vmatpush1.xpose.msra.mxu0 0.0
        %5814 = vmatprep.subr.mxu0 0.0
        %5815 = vmatpush1.xpose.msra.mxu0 0.0
        %5816 = vmatprep.subr.mxu0 0.0
        %5817 = vmatpush1.xpose.msra.mxu0 0.0
        %5818 = vmatprep.subr.mxu0 0.0
        %5819 = vmatpush1.xpose.msra.mxu0 0.0
        %5820 = vmatprep.subr.mxu0 0.0
        %5821 = vmatpush1.xpose.msra.mxu0 0.0
        %5822 = vmatprep.subr.mxu0 0.0
        %5823 = vmatpush1.xpose.msra.mxu0 0.0
        %5824 = vmatprep.subr.mxu0 0.0
        %5825 = vmatpush1.xpose.msra.mxu0 0.0
        %5826 = vmatprep.subr.mxu0 0.0
        %5827 = vmatpush1.xpose.msra.mxu0 0.0
        %5828 = vmatprep.subr.mxu0 0.0
        %5829 = vmatpush1.xpose.msra.mxu0 0.0
        %5830 = vmatprep.subr.mxu0 0.0
        %5831 = vmatpush1.xpose.msra.mxu0 0.0
        %5832 = vmatprep.subr.mxu0 0.0
        %5833 = vmatpush1.xpose.msra.mxu0 0.0
        %5834 = vmatprep.subr.mxu0 0.0
        %5835 = vmatpush1.xpose.msra.mxu0 0.0
        %5836 = vmatprep.subr.mxu0 0.0
        %5837 = vmatpush1.xpose.msra.mxu0 0.0
        %5838 = vmatprep.subr.mxu0 0.0
        %5839 = vmatpush1.xpose.msra.mxu0 0.0
        %5840 = vmatprep.subr.mxu0 0.0
        %5841 = vmatpush1.xpose.msra.mxu0 0.0
        %5842 = vmatprep.subr.mxu0 0.0
        %5843 = vmatpush1.xpose.msra.mxu0 0.0
        %5844 = vmatprep.subr.mxu0 0.0
        %5845 = vmatpush1.xpose.msra.mxu0 0.0
        %5846 = vmatprep.subr.mxu0 0.0
        %5847 = vmatpush1.xpose.msra.mxu0 0.0
        %5848 = vmatprep.subr.mxu0 0.0
        %5849 = vmatpush1.xpose.msra.mxu0 0.0
        %5850 = vmatprep.subr.mxu0 0.0
        %5851 = vmatpush1.xpose.msra.mxu0 0.0
        %5852 = vmatprep.subr.mxu0 0.0
        %5853 = vmatpush1.xpose.msra.mxu0 0.0
        %5854 = vmatprep.subr.mxu0 0.0
        %5855 = vmatpush1.xpose.msra.mxu0 0.0
        %5856 = vmatprep.subr.mxu0 0.0
        %5857 = vmatpush1.xpose.msra.mxu0 0.0
        %5858 = vmatprep.subr.mxu0 0.0
        %5859 = vmatpush1.xpose.msra.mxu0 0.0
        %5860 = vmatprep.subr.mxu0 0.0
        %5861 = vmatpush1.xpose.msra.mxu0 0.0
        %5862 = vmatprep.subr.mxu0 0.0
        %5863 = vmatpush1.xpose.msra.mxu0 0.0
        %5864 = vmatprep.subr.mxu0 0.0
        %5865 = vmatpush1.xpose.msra.mxu0 0.0
        %5866 = vmatprep.subr.mxu0 0.0
        %5867 = vmatpush1.xpose.msra.mxu0 0.0
        %5868 = vmatprep.subr.mxu0 0.0
        %5869 = vmatpush1.xpose.msra.mxu0 0.0
        %5870 = vmatprep.subr.mxu0 0.0
        %5871 = vmatpush1.xpose.msra.mxu0 0.0
        %5872 = vmatprep.subr.mxu0 0.0
        %5873 = vmatpush1.xpose.msra.mxu0 0.0
        %5874 = vmatprep.mubr.f32.mxu0 0.0
        %5875 = vmatmul.mubr.f32.gmra.mrb[0].mxu0 %v5805
        %v5876 = vpop.f32.mrb[0].mxu0
        %v5877 = vadd.f32 0.0, %v5876
        %v5878 = vpop.f32.mrb[0].mxu0
        %5879 = vdwg.mxu0
        %v5881 = vsel %vm647, %v5550, 0
        %v5884 = vsel %vm647, %v5635, 0
        %5886 = vmatprep.subr.mxu0 0.0
        %5887 = vmatpush1.xpose.msra.mxu0 %v5884
        %5888 = vmatprep.subr.mxu0 0.0
        %5889 = vmatpush1.xpose.msra.mxu0 0.0
        %5890 = vmatprep.subr.mxu0 0.0
        %5891 = vmatpush1.xpose.msra.mxu0 0.0
        %5892 = vmatprep.subr.mxu0 0.0
        %5893 = vmatpush1.xpose.msra.mxu0 0.0
        %5894 = vmatprep.subr.mxu0 0.0
        %5895 = vmatpush1.xpose.msra.mxu0 0.0
        %5896 = vmatprep.subr.mxu0 0.0
        %5897 = vmatpush1.xpose.msra.mxu0 0.0
        %5898 = vmatprep.subr.mxu0 0.0
        %5899 = vmatpush1.xpose.msra.mxu0 0.0
        %5900 = vmatprep.subr.mxu0 0.0
        %5901 = vmatpush1.xpose.msra.mxu0 0.0
        %5902 = vmatprep.subr.mxu0 0.0
        %5903 = vmatpush1.xpose.msra.mxu0 0.0
        %5904 = vmatprep.subr.mxu0 0.0
        %5905 = vmatpush1.xpose.msra.mxu0 0.0
        %5906 = vmatprep.subr.mxu0 0.0
        %5907 = vmatpush1.xpose.msra.mxu0 0.0
        %5908 = vmatprep.subr.mxu0 0.0
        %5909 = vmatpush1.xpose.msra.mxu0 0.0
        %5910 = vmatprep.subr.mxu0 0.0
        %5911 = vmatpush1.xpose.msra.mxu0 0.0
        %5912 = vmatprep.subr.mxu0 0.0
        %5913 = vmatpush1.xpose.msra.mxu0 0.0
        %5914 = vmatprep.subr.mxu0 0.0
        %5915 = vmatpush1.xpose.msra.mxu0 0.0
        %5916 = vmatprep.subr.mxu0 0.0
        %5917 = vmatpush1.xpose.msra.mxu0 0.0
        %5918 = vmatprep.subr.mxu0 0.0
        %5919 = vmatpush1.xpose.msra.mxu0 0.0
        %5920 = vmatprep.subr.mxu0 0.0
        %5921 = vmatpush1.xpose.msra.mxu0 0.0
        %5922 = vmatprep.subr.mxu0 0.0
        %5923 = vmatpush1.xpose.msra.mxu0 0.0
        %5924 = vmatprep.subr.mxu0 0.0
        %5925 = vmatpush1.xpose.msra.mxu0 0.0
        %5926 = vmatprep.subr.mxu0 0.0
        %5927 = vmatpush1.xpose.msra.mxu0 0.0
        %5928 = vmatprep.subr.mxu0 0.0
        %5929 = vmatpush1.xpose.msra.mxu0 0.0
        %5930 = vmatprep.subr.mxu0 0.0
        %5931 = vmatpush1.xpose.msra.mxu0 0.0
        %5932 = vmatprep.subr.mxu0 0.0
        %5933 = vmatpush1.xpose.msra.mxu0 0.0
        %5934 = vmatprep.subr.mxu0 0.0
        %5935 = vmatpush1.xpose.msra.mxu0 0.0
        %5936 = vmatprep.subr.mxu0 0.0
        %5937 = vmatpush1.xpose.msra.mxu0 0.0
        %5938 = vmatprep.subr.mxu0 0.0
        %5939 = vmatpush1.xpose.msra.mxu0 0.0
        %5940 = vmatprep.subr.mxu0 0.0
        %5941 = vmatpush1.xpose.msra.mxu0 0.0
        %5942 = vmatprep.subr.mxu0 0.0
        %5943 = vmatpush1.xpose.msra.mxu0 0.0
        %5944 = vmatprep.subr.mxu0 0.0
        %5945 = vmatpush1.xpose.msra.mxu0 0.0
        %5946 = vmatprep.subr.mxu0 0.0
        %5947 = vmatpush1.xpose.msra.mxu0 0.0
        %5948 = vmatprep.subr.mxu0 0.0
        %5949 = vmatpush1.xpose.msra.mxu0 0.0
        %5950 = vmatprep.mubr.f32.mxu0 0.0
        %5951 = vmatmul.mubr.f32.gmra.mrb[0].mxu0 %v5881
        %v5952 = vpop.f32.mrb[0].mxu0
        %v5953 = vadd.f32 0.0, %v5952
        %v5954 = vpop.f32.mrb[0].mxu0
        %5955 = vdwg.mxu0
        %v5957 = vsel %vm647, %v5555, 0
        %v5960 = vsel %vm647, %v5640, 0
        %5962 = vmatprep.subr.mxu0 0.0
        %5963 = vmatpush1.xpose.msra.mxu0 %v5960
        %5964 = vmatprep.subr.mxu0 0.0
        %5965 = vmatpush1.xpose.msra.mxu0 0.0
        %5966 = vmatprep.subr.mxu0 0.0
        %5967 = vmatpush1.xpose.msra.mxu0 0.0
        %5968 = vmatprep.subr.mxu0 0.0
        %5969 = vmatpush1.xpose.msra.mxu0 0.0
        %5970 = vmatprep.subr.mxu0 0.0
        %5971 = vmatpush1.xpose.msra.mxu0 0.0
        %5972 = vmatprep.subr.mxu0 0.0
        %5973 = vmatpush1.xpose.msra.mxu0 0.0
        %5974 = vmatprep.subr.mxu0 0.0
        %5975 = vmatpush1.xpose.msra.mxu0 0.0
        %5976 = vmatprep.subr.mxu0 0.0
        %5977 = vmatpush1.xpose.msra.mxu0 0.0
        %5978 = vmatprep.subr.mxu0 0.0
        %5979 = vmatpush1.xpose.msra.mxu0 0.0
        %5980 = vmatprep.subr.mxu0 0.0
        %5981 = vmatpush1.xpose.msra.mxu0 0.0
        %5982 = vmatprep.subr.mxu0 0.0
        %5983 = vmatpush1.xpose.msra.mxu0 0.0
        %5984 = vmatprep.subr.mxu0 0.0
        %5985 = vmatpush1.xpose.msra.mxu0 0.0
        %5986 = vmatprep.subr.mxu0 0.0
        %5987 = vmatpush1.xpose.msra.mxu0 0.0
        %5988 = vmatprep.subr.mxu0 0.0
        %5989 = vmatpush1.xpose.msra.mxu0 0.0
        %5990 = vmatprep.subr.mxu0 0.0
        %5991 = vmatpush1.xpose.msra.mxu0 0.0
        %5992 = vmatprep.subr.mxu0 0.0
        %5993 = vmatpush1.xpose.msra.mxu0 0.0
        %5994 = vmatprep.subr.mxu0 0.0
        %5995 = vmatpush1.xpose.msra.mxu0 0.0
        %5996 = vmatprep.subr.mxu0 0.0
        %5997 = vmatpush1.xpose.msra.mxu0 0.0
        %5998 = vmatprep.subr.mxu0 0.0
        %5999 = vmatpush1.xpose.msra.mxu0 0.0
        %6000 = vmatprep.subr.mxu0 0.0
        %6001 = vmatpush1.xpose.msra.mxu0 0.0
        %6002 = vmatprep.subr.mxu0 0.0
        %6003 = vmatpush1.xpose.msra.mxu0 0.0
        %6004 = vmatprep.subr.mxu0 0.0
        %6005 = vmatpush1.xpose.msra.mxu0 0.0
        %6006 = vmatprep.subr.mxu0 0.0
        %6007 = vmatpush1.xpose.msra.mxu0 0.0
        %6008 = vmatprep.subr.mxu0 0.0
        %6009 = vmatpush1.xpose.msra.mxu0 0.0
        %6010 = vmatprep.subr.mxu0 0.0
        %6011 = vmatpush1.xpose.msra.mxu0 0.0
        %6012 = vmatprep.subr.mxu0 0.0
        %6013 = vmatpush1.xpose.msra.mxu0 0.0
        %6014 = vmatprep.subr.mxu0 0.0
        %6015 = vmatpush1.xpose.msra.mxu0 0.0
        %6016 = vmatprep.subr.mxu0 0.0
        %6017 = vmatpush1.xpose.msra.mxu0 0.0
        %6018 = vmatprep.subr.mxu0 0.0
        %6019 = vmatpush1.xpose.msra.mxu0 0.0
        %6020 = vmatprep.subr.mxu0 0.0
        %6021 = vmatpush1.xpose.msra.mxu0 0.0
        %6022 = vmatprep.subr.mxu0 0.0
        %6023 = vmatpush1.xpose.msra.mxu0 0.0
        %6024 = vmatprep.subr.mxu0 0.0
        %6025 = vmatpush1.xpose.msra.mxu0 0.0
        %6026 = vmatprep.mubr.f32.mxu0 0.0
        %6027 = vmatmul.mubr.f32.gmra.mrb[0].mxu0 %v5957
        %v6028 = vpop.f32.mrb[0].mxu0
        %v6029 = vadd.f32 0.0, %v6028
        %v6030 = vpop.f32.mrb[0].mxu0
        %6031 = vdwg.mxu0
        %v6032 = vmul.f32 %v5801, 0.35355338
        %v6033 = vmul.f32 %v5877, 0.35355338
        %v6034 = vmul.f32 %v5953, 0.35355338
        %v6035 = vmul.f32 %v6029, 0.35355338
        %v6036 = vsel %vm647, %v6032, -inf
        %6037 = vmax.xlane.f32.xlu0 %v6036
        %v6038 = vpop.xlane.xlu0 %6037
        %v6039 = vsel %vm647, %v6033, -inf
        %6040 = vmax.xlane.f32.xlu0 %v6039
        %v6041 = vpop.xlane.xlu0 %6040
        %v6042 = vsel %vm647, %v6034, -inf
        %6043 = vmax.xlane.f32.xlu0 %v6042
        %v6044 = vpop.xlane.xlu0 %6043
        %v6045 = vsel %vm647, %v6035, -inf
        %6046 = vmax.xlane.f32.xlu0 %v6045
        %v6047 = vpop.xlane.xlu0 %6046
        %v6048 = vsub.f32 %v6032, %v6038
        %v6049 = vsub.f32 %v6033, %v6041
        %v6050 = vsub.f32 %v6034, %v6044
        %v6051 = vsub.f32 %v6035, %v6047
        %v6052 = vmul.f32 %v6048, 1.442695
        %v6053 = vpow.pop %v6052
        %v6054 = vmul.f32 %v6049, 1.442695
        %v6055 = vpow.pop %v6054
        %v6056 = vmul.f32 %v6050, 1.442695
        %v6057 = vpow.pop %v6056
        %v6058 = vmul.f32 %v6051, 1.442695
        %v6059 = vpow.pop %v6058
        %v6060 = vsel %vm647, %v6053, 0.0
        %6061 = vadd.xlane.f32.xlu0 %v6060
        %v6062 = vpop.xlane.xlu0 %6061
        %v6063 = vsel %vm647, %v6055, 0.0
        %6064 = vadd.xlane.f32.xlu0 %v6063
        %v6065 = vpop.xlane.xlu0 %6064
        %v6066 = vsel %vm647, %v6057, 0.0
        %6067 = vadd.xlane.f32.xlu0 %v6066
        %v6068 = vpop.xlane.xlu0 %6067
        %v6069 = vsel %vm647, %v6059, 0.0
        %6070 = vadd.xlane.f32.xlu0 %v6069
        %v6071 = vpop.xlane.xlu0 %6070
        %v6072 = vrcp.pop %v6062
        %v6073 = vrcp.pop %v6065
        %v6074 = vrcp.pop %v6068
        %v6075 = vrcp.pop %v6071
        %v6076 = vmul.f32 %v6053, %v6072
        %v6077 = vmul.f32 %v6055, %v6073
        %v6078 = vmul.f32 %v6057, %v6074
        %v6079 = vmul.f32 %v6059, %v6075
        %v6081 = vsel %vm647, %v6076, 0
        %6083 = vmatprep.subr.mxu0 0.0
        %6084 = vmatpush1.msra.mxu0 %v5710
        %6085 = vmatprep.subr.mxu0 0.0
        %6086 = vmatpush1.msra.mxu0 0.0
        %6087 = vmatprep.subr.mxu0 0.0
        %6088 = vmatpush1.msra.mxu0 0.0
        %6089 = vmatprep.subr.mxu0 0.0
        %6090 = vmatpush1.msra.mxu0 0.0
        %6091 = vmatprep.subr.mxu0 0.0
        %6092 = vmatpush1.msra.mxu0 0.0
        %6093 = vmatprep.subr.mxu0 0.0
        %6094 = vmatpush1.msra.mxu0 0.0
        %6095 = vmatprep.subr.mxu0 0.0
        %6096 = vmatpush1.msra.mxu0 0.0
        %6097 = vmatprep.subr.mxu0 0.0
        %6098 = vmatpush1.msra.mxu0 0.0
        %6099 = vmatprep.subr.mxu0 0.0
        %6100 = vmatpush1.msra.mxu0 0.0
        %6101 = vmatprep.subr.mxu0 0.0
        %6102 = vmatpush1.msra.mxu0 0.0
        %6103 = vmatprep.subr.mxu0 0.0
        %6104 = vmatpush1.msra.mxu0 0.0
        %6105 = vmatprep.subr.mxu0 0.0
        %6106 = vmatpush1.msra.mxu0 0.0
        %6107 = vmatprep.subr.mxu0 0.0
        %6108 = vmatpush1.msra.mxu0 0.0
        %6109 = vmatprep.subr.mxu0 0.0
        %6110 = vmatpush1.msra.mxu0 0.0
        %6111 = vmatprep.subr.mxu0 0.0
        %6112 = vmatpush1.msra.mxu0 0.0
        %6113 = vmatprep.subr.mxu0 0.0
        %6114 = vmatpush1.msra.mxu0 0.0
        %6115 = vmatprep.subr.mxu0 0.0
        %6116 = vmatpush1.msra.mxu0 0.0
        %6117 = vmatprep.subr.mxu0 0.0
        %6118 = vmatpush1.msra.mxu0 0.0
        %6119 = vmatprep.subr.mxu0 0.0
        %6120 = vmatpush1.msra.mxu0 0.0
        %6121 = vmatprep.subr.mxu0 0.0
        %6122 = vmatpush1.msra.mxu0 0.0
        %6123 = vmatprep.subr.mxu0 0.0
        %6124 = vmatpush1.msra.mxu0 0.0
        %6125 = vmatprep.subr.mxu0 0.0
        %6126 = vmatpush1.msra.mxu0 0.0
        %6127 = vmatprep.subr.mxu0 0.0
        %6128 = vmatpush1.msra.mxu0 0.0
        %6129 = vmatprep.subr.mxu0 0.0
        %6130 = vmatpush1.msra.mxu0 0.0
        %6131 = vmatprep.subr.mxu0 0.0
        %6132 = vmatpush1.msra.mxu0 0.0
        %6133 = vmatprep.subr.mxu0 0.0
        %6134 = vmatpush1.msra.mxu0 0.0
        %6135 = vmatprep.subr.mxu0 0.0
        %6136 = vmatpush1.msra.mxu0 0.0
        %6137 = vmatprep.subr.mxu0 0.0
        %6138 = vmatpush1.msra.mxu0 0.0
        %6139 = vmatprep.subr.mxu0 0.0
        %6140 = vmatpush1.msra.mxu0 0.0
        %6141 = vmatprep.subr.mxu0 0.0
        %6142 = vmatpush1.msra.mxu0 0.0
        %6143 = vmatprep.subr.mxu0 0.0
        %6144 = vmatpush1.msra.mxu0 0.0
        %6145 = vmatprep.subr.mxu0 0.0
        %6146 = vmatpush1.msra.mxu0 0.0
        %6147 = vmatprep.mubr.f32.mxu0 0.0
        %6148 = vmatmul.mubr.f32.gmra.mrb[0].mxu0 %v6081
        %v6149 = vpop.f32.mrb[0].mxu0
        %v6150 = vadd.f32 0.0, %v6149
        %v6151 = vpop.f32.mrb[0].mxu0
        %6152 = vdwg.mxu0
        %v6154 = vsel %vm647, %v6077, 0
        %6156 = vmatprep.subr.mxu0 0.0
        %6157 = vmatpush1.msra.mxu0 %v5715
        %6158 = vmatprep.subr.mxu0 0.0
        %6159 = vmatpush1.msra.mxu0 0.0
        %6160 = vmatprep.subr.mxu0 0.0
        %6161 = vmatpush1.msra.mxu0 0.0
        %6162 = vmatprep.subr.mxu0 0.0
        %6163 = vmatpush1.msra.mxu0 0.0
        %6164 = vmatprep.subr.mxu0 0.0
        %6165 = vmatpush1.msra.mxu0 0.0
        %6166 = vmatprep.subr.mxu0 0.0
        %6167 = vmatpush1.msra.mxu0 0.0
        %6168 = vmatprep.subr.mxu0 0.0
        %6169 = vmatpush1.msra.mxu0 0.0
        %6170 = vmatprep.subr.mxu0 0.0
        %6171 = vmatpush1.msra.mxu0 0.0
        %6172 = vmatprep.subr.mxu0 0.0
        %6173 = vmatpush1.msra.mxu0 0.0
        %6174 = vmatprep.subr.mxu0 0.0
        %6175 = vmatpush1.msra.mxu0 0.0
        %6176 = vmatprep.subr.mxu0 0.0
        %6177 = vmatpush1.msra.mxu0 0.0
        %6178 = vmatprep.subr.mxu0 0.0
        %6179 = vmatpush1.msra.mxu0 0.0
        %6180 = vmatprep.subr.mxu0 0.0
        %6181 = vmatpush1.msra.mxu0 0.0
        %6182 = vmatprep.subr.mxu0 0.0
        %6183 = vmatpush1.msra.mxu0 0.0
        %6184 = vmatprep.subr.mxu0 0.0
        %6185 = vmatpush1.msra.mxu0 0.0
        %6186 = vmatprep.subr.mxu0 0.0
        %6187 = vmatpush1.msra.mxu0 0.0
        %6188 = vmatprep.subr.mxu0 0.0
        %6189 = vmatpush1.msra.mxu0 0.0
        %6190 = vmatprep.subr.mxu0 0.0
        %6191 = vmatpush1.msra.mxu0 0.0
        %6192 = vmatprep.subr.mxu0 0.0
        %6193 = vmatpush1.msra.mxu0 0.0
        %6194 = vmatprep.subr.mxu0 0.0
        %6195 = vmatpush1.msra.mxu0 0.0
        %6196 = vmatprep.subr.mxu0 0.0
        %6197 = vmatpush1.msra.mxu0 0.0
        %6198 = vmatprep.subr.mxu0 0.0
        %6199 = vmatpush1.msra.mxu0 0.0
        %6200 = vmatprep.subr.mxu0 0.0
        %6201 = vmatpush1.msra.mxu0 0.0
        %6202 = vmatprep.subr.mxu0 0.0
        %6203 = vmatpush1.msra.mxu0 0.0
        %6204 = vmatprep.subr.mxu0 0.0
        %6205 = vmatpush1.msra.mxu0 0.0
        %6206 = vmatprep.subr.mxu0 0.0
        %6207 = vmatpush1.msra.mxu0 0.0
        %6208 = vmatprep.subr.mxu0 0.0
        %6209 = vmatpush1.msra.mxu0 0.0
        %6210 = vmatprep.subr.mxu0 0.0
        %6211 = vmatpush1.msra.mxu0 0.0
        %6212 = vmatprep.subr.mxu0 0.0
        %6213 = vmatpush1.msra.mxu0 0.0
        %6214 = vmatprep.subr.mxu0 0.0
        %6215 = vmatpush1.msra.mxu0 0.0
        %6216 = vmatprep.subr.mxu0 0.0
        %6217 = vmatpush1.msra.mxu0 0.0
        %6218 = vmatprep.subr.mxu0 0.0
        %6219 = vmatpush1.msra.mxu0 0.0
        %6220 = vmatprep.mubr.f32.mxu0 0.0
        %6221 = vmatmul.mubr.f32.gmra.mrb[0].mxu0 %v6154
        %v6222 = vpop.f32.mrb[0].mxu0
        %v6223 = vadd.f32 0.0, %v6222
        %v6224 = vpop.f32.mrb[0].mxu0
        %6225 = vdwg.mxu0
        %v6227 = vsel %vm647, %v6078, 0
        %6229 = vmatprep.subr.mxu0 0.0
        %6230 = vmatpush1.msra.mxu0 %v5720
        %6231 = vmatprep.subr.mxu0 0.0
        %6232 = vmatpush1.msra.mxu0 0.0
        %6233 = vmatprep.subr.mxu0 0.0
        %6234 = vmatpush1.msra.mxu0 0.0
        %6235 = vmatprep.subr.mxu0 0.0
        %6236 = vmatpush1.msra.mxu0 0.0
        %6237 = vmatprep.subr.mxu0 0.0
        %6238 = vmatpush1.msra.mxu0 0.0
        %6239 = vmatprep.subr.mxu0 0.0
        %6240 = vmatpush1.msra.mxu0 0.0
        %6241 = vmatprep.subr.mxu0 0.0
        %6242 = vmatpush1.msra.mxu0 0.0
        %6243 = vmatprep.subr.mxu0 0.0
        %6244 = vmatpush1.msra.mxu0 0.0
        %6245 = vmatprep.subr.mxu0 0.0
        %6246 = vmatpush1.msra.mxu0 0.0
        %6247 = vmatprep.subr.mxu0 0.0
        %6248 = vmatpush1.msra.mxu0 0.0
        %6249 = vmatprep.subr.mxu0 0.0
        %6250 = vmatpush1.msra.mxu0 0.0
        %6251 = vmatprep.subr.mxu0 0.0
        %6252 = vmatpush1.msra.mxu0 0.0
        %6253 = vmatprep.subr.mxu0 0.0
        %6254 = vmatpush1.msra.mxu0 0.0
        %6255 = vmatprep.subr.mxu0 0.0
        %6256 = vmatpush1.msra.mxu0 0.0
        %6257 = vmatprep.subr.mxu0 0.0
        %6258 = vmatpush1.msra.mxu0 0.0
        %6259 = vmatprep.subr.mxu0 0.0
        %6260 = vmatpush1.msra.mxu0 0.0
        %6261 = vmatprep.subr.mxu0 0.0
        %6262 = vmatpush1.msra.mxu0 0.0
        %6263 = vmatprep.subr.mxu0 0.0
        %6264 = vmatpush1.msra.mxu0 0.0
        %6265 = vmatprep.subr.mxu0 0.0
        %6266 = vmatpush1.msra.mxu0 0.0
        %6267 = vmatprep.subr.mxu0 0.0
        %6268 = vmatpush1.msra.mxu0 0.0
        %6269 = vmatprep.subr.mxu0 0.0
        %6270 = vmatpush1.msra.mxu0 0.0
        %6271 = vmatprep.subr.mxu0 0.0
        %6272 = vmatpush1.msra.mxu0 0.0
        %6273 = vmatprep.subr.mxu0 0.0
        %6274 = vmatpush1.msra.mxu0 0.0
        %6275 = vmatprep.subr.mxu0 0.0
        %6276 = vmatpush1.msra.mxu0 0.0
        %6277 = vmatprep.subr.mxu0 0.0
        %6278 = vmatpush1.msra.mxu0 0.0
        %6279 = vmatprep.subr.mxu0 0.0
        %6280 = vmatpush1.msra.mxu0 0.0
        %6281 = vmatprep.subr.mxu0 0.0
        %6282 = vmatpush1.msra.mxu0 0.0
        %6283 = vmatprep.subr.mxu0 0.0
        %6284 = vmatpush1.msra.mxu0 0.0
        %6285 = vmatprep.subr.mxu0 0.0
        %6286 = vmatpush1.msra.mxu0 0.0
        %6287 = vmatprep.subr.mxu0 0.0
        %6288 = vmatpush1.msra.mxu0 0.0
        %6289 = vmatprep.subr.mxu0 0.0
        %6290 = vmatpush1.msra.mxu0 0.0
        %6291 = vmatprep.subr.mxu0 0.0
        %6292 = vmatpush1.msra.mxu0 0.0
        %6293 = vmatprep.mubr.f32.mxu0 0.0
        %6294 = vmatmul.mubr.f32.gmra.mrb[0].mxu0 %v6227
        %v6295 = vpop.f32.mrb[0].mxu0
        %v6296 = vadd.f32 0.0, %v6295
        %v6297 = vpop.f32.mrb[0].mxu0
        %6298 = vdwg.mxu0
        %v6300 = vsel %vm647, %v6079, 0
        %6302 = vmatprep.subr.mxu0 0.0
        %6303 = vmatpush1.msra.mxu0 %v5725
        %6304 = vmatprep.subr.mxu0 0.0
        %6305 = vmatpush1.msra.mxu0 0.0
        %6306 = vmatprep.subr.mxu0 0.0
        %6307 = vmatpush1.msra.mxu0 0.0
        %6308 = vmatprep.subr.mxu0 0.0
        %6309 = vmatpush1.msra.mxu0 0.0
        %6310 = vmatprep.subr.mxu0 0.0
        %6311 = vmatpush1.msra.mxu0 0.0
        %6312 = vmatprep.subr.mxu0 0.0
        %6313 = vmatpush1.msra.mxu0 0.0
        %6314 = vmatprep.subr.mxu0 0.0
        %6315 = vmatpush1.msra.mxu0 0.0
        %6316 = vmatprep.subr.mxu0 0.0
        %6317 = vmatpush1.msra.mxu0 0.0
        %6318 = vmatprep.subr.mxu0 0.0
        %6319 = vmatpush1.msra.mxu0 0.0
        %6320 = vmatprep.subr.mxu0 0.0
        %6321 = vmatpush1.msra.mxu0 0.0
        %6322 = vmatprep.subr.mxu0 0.0
        %6323 = vmatpush1.msra.mxu0 0.0
        %6324 = vmatprep.subr.mxu0 0.0
        %6325 = vmatpush1.msra.mxu0 0.0
        %6326 = vmatprep.subr.mxu0 0.0
        %6327 = vmatpush1.msra.mxu0 0.0
        %6328 = vmatprep.subr.mxu0 0.0
        %6329 = vmatpush1.msra.mxu0 0.0
        %6330 = vmatprep.subr.mxu0 0.0
        %6331 = vmatpush1.msra.mxu0 0.0
        %6332 = vmatprep.subr.mxu0 0.0
        %6333 = vmatpush1.msra.mxu0 0.0
        %6334 = vmatprep.subr.mxu0 0.0
        %6335 = vmatpush1.msra.mxu0 0.0
        %6336 = vmatprep.subr.mxu0 0.0
        %6337 = vmatpush1.msra.mxu0 0.0
        %6338 = vmatprep.subr.mxu0 0.0
        %6339 = vmatpush1.msra.mxu0 0.0
        %6340 = vmatprep.subr.mxu0 0.0
        %6341 = vmatpush1.msra.mxu0 0.0
        %6342 = vmatprep.subr.mxu0 0.0
        %6343 = vmatpush1.msra.mxu0 0.0
        %6344 = vmatprep.subr.mxu0 0.0
        %6345 = vmatpush1.msra.mxu0 0.0
        %6346 = vmatprep.subr.mxu0 0.0
        %6347 = vmatpush1.msra.mxu0 0.0
        %6348 = vmatprep.subr.mxu0 0.0
        %6349 = vmatpush1.msra.mxu0 0.0
        %6350 = vmatprep.subr.mxu0 0.0
        %6351 = vmatpush1.msra.mxu0 0.0
        %6352 = vmatprep.subr.mxu0 0.0
        %6353 = vmatpush1.msra.mxu0 0.0
        %6354 = vmatprep.subr.mxu0 0.0
        %6355 = vmatpush1.msra.mxu0 0.0
        %6356 = vmatprep.subr.mxu0 0.0
        %6357 = vmatpush1.msra.mxu0 0.0
        %6358 = vmatprep.subr.mxu0 0.0
        %6359 = vmatpush1.msra.mxu0 0.0
        %6360 = vmatprep.subr.mxu0 0.0
        %6361 = vmatpush1.msra.mxu0 0.0
        %6362 = vmatprep.subr.mxu0 0.0
        %6363 = vmatpush1.msra.mxu0 0.0
        %6364 = vmatprep.subr.mxu0 0.0
        %6365 = vmatpush1.msra.mxu0 0.0
        %6366 = vmatprep.mubr.f32.mxu0 0.0
        %6367 = vmatmul.mubr.f32.gmra.mrb[0].mxu0 %v6300
        %v6368 = vpop.f32.mrb[0].mxu0
        %v6369 = vadd.f32 0.0, %v6368
        %v6370 = vpop.f32.mrb[0].mxu0
        %6371 = vdwg.mxu0
        %v6373 = vsel %vm647, %v6150, 0
        %v6376 = vsel %vm647, %v6223, 0
        %v6379 = vsel %vm647, %v6296, 0
        %v6382 = vsel %vm647, %v6369, 0
        %6384 = vmatprep.subr.mxu0 0.0
        %6385 = vmatpush1.msra.mxu0 %v5472
        %6386 = vmatprep.subr.mxu0 0.0
        %6387 = vmatpush1.msra.mxu0 0.0
        %6388 = vmatprep.subr.mxu0 0.0
        %6389 = vmatpush1.msra.mxu0 0.0
        %6390 = vmatprep.subr.mxu0 0.0
        %6391 = vmatpush1.msra.mxu0 0.0
        %6392 = vmatprep.subr.mxu0 0.0
        %6393 = vmatpush1.msra.mxu0 0.0
        %6394 = vmatprep.subr.mxu0 0.0
        %6395 = vmatpush1.msra.mxu0 0.0
        %6396 = vmatprep.subr.mxu0 0.0
        %6397 = vmatpush1.msra.mxu0 0.0
        %6398 = vmatprep.subr.mxu0 0.0
        %6399 = vmatpush1.msra.mxu0 0.0
        %6400 = vmatprep.subr.mxu0 0.0
        %6401 = vmatpush1.msra.mxu0 0.0
        %6402 = vmatprep.subr.mxu0 0.0
        %6403 = vmatpush1.msra.mxu0 0.0
        %6404 = vmatprep.subr.mxu0 0.0
        %6405 = vmatpush1.msra.mxu0 0.0
        %6406 = vmatprep.subr.mxu0 0.0
        %6407 = vmatpush1.msra.mxu0 0.0
        %6408 = vmatprep.subr.mxu0 0.0
        %6409 = vmatpush1.msra.mxu0 0.0
        %6410 = vmatprep.subr.mxu0 0.0
        %6411 = vmatpush1.msra.mxu0 0.0
        %6412 = vmatprep.subr.mxu0 0.0
        %6413 = vmatpush1.msra.mxu0 0.0
        %6414 = vmatprep.subr.mxu0 0.0
        %6415 = vmatpush1.msra.mxu0 0.0
        %6416 = vmatprep.subr.mxu0 0.0
        %6417 = vmatpush1.msra.mxu0 0.0
        %6418 = vmatprep.subr.mxu0 0.0
        %6419 = vmatpush1.msra.mxu0 0.0
        %6420 = vmatprep.subr.mxu0 0.0
        %6421 = vmatpush1.msra.mxu0 0.0
        %6422 = vmatprep.subr.mxu0 0.0
        %6423 = vmatpush1.msra.mxu0 0.0
        %6424 = vmatprep.subr.mxu0 0.0
        %6425 = vmatpush1.msra.mxu0 0.0
        %6426 = vmatprep.subr.mxu0 0.0
        %6427 = vmatpush1.msra.mxu0 0.0
        %6428 = vmatprep.subr.mxu0 0.0
        %6429 = vmatpush1.msra.mxu0 0.0
        %6430 = vmatprep.subr.mxu0 0.0
        %6431 = vmatpush1.msra.mxu0 0.0
        %6432 = vmatprep.subr.mxu0 0.0
        %6433 = vmatpush1.msra.mxu0 0.0
        %6434 = vmatprep.subr.mxu0 0.0
        %6435 = vmatpush1.msra.mxu0 0.0
        %6436 = vmatprep.subr.mxu0 0.0
        %6437 = vmatpush1.msra.mxu0 0.0
        %6438 = vmatprep.subr.mxu0 0.0
        %6439 = vmatpush1.msra.mxu0 0.0
        %6440 = vmatprep.subr.mxu0 0.0
        %6441 = vmatpush1.msra.mxu0 0.0
        %6442 = vmatprep.subr.mxu0 0.0
        %6443 = vmatpush1.msra.mxu0 0.0
        %6444 = vmatprep.subr.mxu0 0.0
        %6445 = vmatpush1.msra.mxu0 0.0
        %6446 = vmatprep.subr.mxu0 0.0
        %6447 = vmatpush1.msra.mxu0 0.0
        %6448 = vmatprep.mubr.f32.mxu0 0.0
        %6449 = vmatmul.mubr.f32.gmra.mrb[0].mxu0 %v6373
        %v6450 = vpop.f32.mrb[0].mxu0
        %v6451 = vadd.f32 0.0, %v6450
        %v6452 = vpop.f32.mrb[0].mxu0
        %6453 = vmatprep.mubr.f32.mxu0 0.0
        %6454 = vmatmul.mubr.f32.gmra.mrb[0].mxu0 %v6376
        %v6455 = vpop.f32.mrb[0].mxu0
        %v6456 = vadd.f32 0.0, %v6455
        %v6457 = vpop.f32.mrb[0].mxu0
        %6458 = vmatprep.mubr.f32.mxu0 0.0
        %6459 = vmatmul.mubr.f32.gmra.mrb[0].mxu0 %v6379
        %v6460 = vpop.f32.mrb[0].mxu0
        %v6461 = vadd.f32 0.0, %v6460
        %v6462 = vpop.f32.mrb[0].mxu0
        %6463 = vmatprep.mubr.f32.mxu0 0.0
        %6464 = vmatmul.mubr.f32.gmra.mrb[0].mxu0 %v6382
        %v6465 = vpop.f32.mrb[0].mxu0
        %v6466 = vadd.f32 0.0, %v6465
        %v6467 = vpop.f32.mrb[0].mxu0
        %6468 = vdwg.mxu0
        %v6470 = vsel %vm647, %v5234, 0
        %v6473 = vsel %vm647, %v5307, 0
        %v6476 = vsel %vm647, %v5380, 0
        %v6479 = vsel %vm647, %v5453, 0
        %6481 = vmatprep.subr.mxu0 0.0
        %6482 = vmatpush1.msra.mxu0 %v4532
        %6483 = vmatprep.subr.mxu0 0.0
        %6484 = vmatpush1.msra.mxu0 0.0
        %6485 = vmatprep.subr.mxu0 0.0
        %6486 = vmatpush1.msra.mxu0 0.0
        %6487 = vmatprep.subr.mxu0 0.0
        %6488 = vmatpush1.msra.mxu0 0.0
        %6489 = vmatprep.subr.mxu0 0.0
        %6490 = vmatpush1.msra.mxu0 0.0
        %6491 = vmatprep.subr.mxu0 0.0
        %6492 = vmatpush1.msra.mxu0 0.0
        %6493 = vmatprep.subr.mxu0 0.0
        %6494 = vmatpush1.msra.mxu0 0.0
        %6495 = vmatprep.subr.mxu0 0.0
        %6496 = vmatpush1.msra.mxu0 0.0
        %6497 = vmatprep.subr.mxu0 0.0
        %6498 = vmatpush1.msra.mxu0 0.0
        %6499 = vmatprep.subr.mxu0 0.0
        %6500 = vmatpush1.msra.mxu0 0.0
        %6501 = vmatprep.subr.mxu0 0.0
        %6502 = vmatpush1.msra.mxu0 0.0
        %6503 = vmatprep.subr.mxu0 0.0
        %6504 = vmatpush1.msra.mxu0 0.0
        %6505 = vmatprep.subr.mxu0 0.0
        %6506 = vmatpush1.msra.mxu0 0.0
        %6507 = vmatprep.subr.mxu0 0.0
        %6508 = vmatpush1.msra.mxu0 0.0
        %6509 = vmatprep.subr.mxu0 0.0
        %6510 = vmatpush1.msra.mxu0 0.0
        %6511 = vmatprep.subr.mxu0 0.0
        %6512 = vmatpush1.msra.mxu0 0.0
        %6513 = vmatprep.subr.mxu0 0.0
        %6514 = vmatpush1.msra.mxu0 0.0
        %6515 = vmatprep.subr.mxu0 0.0
        %6516 = vmatpush1.msra.mxu0 0.0
        %6517 = vmatprep.subr.mxu0 0.0
        %6518 = vmatpush1.msra.mxu0 0.0
        %6519 = vmatprep.subr.mxu0 0.0
        %6520 = vmatpush1.msra.mxu0 0.0
        %6521 = vmatprep.subr.mxu0 0.0
        %6522 = vmatpush1.msra.mxu0 0.0
        %6523 = vmatprep.subr.mxu0 0.0
        %6524 = vmatpush1.msra.mxu0 0.0
        %6525 = vmatprep.subr.mxu0 0.0
        %6526 = vmatpush1.msra.mxu0 0.0
        %6527 = vmatprep.subr.mxu0 0.0
        %6528 = vmatpush1.msra.mxu0 0.0
        %6529 = vmatprep.subr.mxu0 0.0
        %6530 = vmatpush1.msra.mxu0 0.0
        %6531 = vmatprep.subr.mxu0 0.0
        %6532 = vmatpush1.msra.mxu0 0.0
        %6533 = vmatprep.subr.mxu0 0.0
        %6534 = vmatpush1.msra.mxu0 0.0
        %6535 = vmatprep.subr.mxu0 0.0
        %6536 = vmatpush1.msra.mxu0 0.0
        %6537 = vmatprep.subr.mxu0 0.0
        %6538 = vmatpush1.msra.mxu0 0.0
        %6539 = vmatprep.subr.mxu0 0.0
        %6540 = vmatpush1.msra.mxu0 0.0
        %6541 = vmatprep.subr.mxu0 0.0
        %6542 = vmatpush1.msra.mxu0 0.0
        %6543 = vmatprep.subr.mxu0 0.0
        %6544 = vmatpush1.msra.mxu0 0.0
        %6545 = vmatprep.mubr.f32.mxu0 0.0
        %6546 = vmatmul.mubr.f32.gmra.mrb[0].mxu0 %v6470
        %v6547 = vpop.f32.mrb[0].mxu0
        %v6548 = vadd.f32 %v6451, %v6547
        %v6549 = vpop.f32.mrb[0].mxu0
        %6550 = vmatprep.mubr.f32.mxu0 0.0
        %6551 = vmatmul.mubr.f32.gmra.mrb[0].mxu0 %v6473
        %v6552 = vpop.f32.mrb[0].mxu0
        %v6553 = vadd.f32 %v6456, %v6552
        %v6554 = vpop.f32.mrb[0].mxu0
        %6555 = vmatprep.mubr.f32.mxu0 0.0
        %6556 = vmatmul.mubr.f32.gmra.mrb[0].mxu0 %v6476
        %v6557 = vpop.f32.mrb[0].mxu0
        %v6558 = vadd.f32 %v6461, %v6557
        %v6559 = vpop.f32.mrb[0].mxu0
        %6560 = vmatprep.mubr.f32.mxu0 0.0
        %6561 = vmatmul.mubr.f32.gmra.mrb[0].mxu0 %v6479
        %v6562 = vpop.f32.mrb[0].mxu0
        %v6563 = vadd.f32 %v6466, %v6562
        %v6564 = vpop.f32.mrb[0].mxu0
        %6565 = vdwg.mxu0
        %s6566 = scalar_lea.vmem %s3, 448
        %v6567 = vld [vmem:[%s6566] sm:$0xff]
        %v6568 = vld [vmem:[%s6566 + $0x8] sm:$0xff]
        %v6569 = vld [vmem:[%s6566 + $0x10] sm:$0xff]
        %v6570 = vld [vmem:[%s6566 + $0x18] sm:$0xff]
        %s6571 = scalar_lea.vmem %s3, 576
        %v6572 = vld [vmem:[%s6571] sm:$0xff]
        %v6573 = vld [vmem:[%s6571 + $0x8] sm:$0xff]
        %v6574 = vld [vmem:[%s6571 + $0x10] sm:$0xff]
        %v6575 = vld [vmem:[%s6571 + $0x18] sm:$0xff]
        %s6576 = scalar_lea.vmem %s3, 704
        %v6577 = vld [vmem:[%s6576] sm:$0xff]
        %v6578 = vld [vmem:[%s6576 + $0x8] sm:$0xff]
        %v6579 = vld [vmem:[%s6576 + $0x10] sm:$0xff]
        %v6580 = vld [vmem:[%s6576 + $0x18] sm:$0xff]
        %s6581 = scalar_lea.vmem %s4, 48
        %v6582 = vld [vmem:[%s6581] sm:$0xff]
        %6583 = vmatprep.subr.mxu0 0.0
        %6584 = vmatpush1.msra.mxu0 %v6567
        %6585 = vmatprep.subr.mxu0 0.0
        %6586 = vmatpush1.msra.mxu0 %v6568
        %6587 = vmatprep.subr.mxu0 0.0
        %6588 = vmatpush1.msra.mxu0 %v6569
        %6589 = vmatprep.subr.mxu0 0.0
        %6590 = vmatpush1.msra.mxu0 %v6570
        %6591 = vmatprep.subr.mxu0 0.0
        %6592 = vmatpush1.msra.mxu0 0.0
        %6593 = vmatprep.subr.mxu0 0.0
        %6594 = vmatpush1.msra.mxu0 0.0
        %6595 = vmatprep.subr.mxu0 0.0
        %6596 = vmatpush1.msra.mxu0 0.0
        %6597 = vmatprep.subr.mxu0 0.0
        %6598 = vmatpush1.msra.mxu0 0.0
        %6599 = vmatprep.subr.mxu0 0.0
        %6600 = vmatpush1.msra.mxu0 0.0
        %6601 = vmatprep.subr.mxu0 0.0
        %6602 = vmatpush1.msra.mxu0 0.0
        %6603 = vmatprep.subr.mxu0 0.0
        %6604 = vmatpush1.msra.mxu0 0.0
        %6605 = vmatprep.subr.mxu0 0.0
        %6606 = vmatpush1.msra.mxu0 0.0
        %6607 = vmatprep.subr.mxu0 0.0
        %6608 = vmatpush1.msra.mxu0 0.0
        %6609 = vmatprep.subr.mxu0 0.0
        %6610 = vmatpush1.msra.mxu0 0.0
        %6611 = vmatprep.subr.mxu0 0.0
        %6612 = vmatpush1.msra.mxu0 0.0
        %6613 = vmatprep.subr.mxu0 0.0
        %6614 = vmatpush1.msra.mxu0 0.0
        %6615 = vmatprep.subr.mxu0 0.0
        %6616 = vmatpush1.msra.mxu0 0.0
        %6617 = vmatprep.subr.mxu0 0.0
        %6618 = vmatpush1.msra.mxu0 0.0
        %6619 = vmatprep.subr.mxu0 0.0
        %6620 = vmatpush1.msra.mxu0 0.0
        %6621 = vmatprep.subr.mxu0 0.0
        %6622 = vmatpush1.msra.mxu0 0.0
        %6623 = vmatprep.subr.mxu0 0.0
        %6624 = vmatpush1.msra.mxu0 0.0
        %6625 = vmatprep.subr.mxu0 0.0
        %6626 = vmatpush1.msra.mxu0 0.0
        %6627 = vmatprep.subr.mxu0 0.0
        %6628 = vmatpush1.msra.mxu0 0.0
        %6629 = vmatprep.subr.mxu0 0.0
        %6630 = vmatpush1.msra.mxu0 0.0
        %6631 = vmatprep.subr.mxu0 0.0
        %6632 = vmatpush1.msra.mxu0 0.0
        %6633 = vmatprep.subr.mxu0 0.0
        %6634 = vmatpush1.msra.mxu0 0.0
        %6635 = vmatprep.subr.mxu0 0.0
        %6636 = vmatpush1.msra.mxu0 0.0
        %6637 = vmatprep.subr.mxu0 0.0
        %6638 = vmatpush1.msra.mxu0 0.0
        %6639 = vmatprep.subr.mxu0 0.0
        %6640 = vmatpush1.msra.mxu0 0.0
        %6641 = vmatprep.subr.mxu0 0.0
        %6642 = vmatpush1.msra.mxu0 0.0
        %6643 = vmatprep.subr.mxu0 0.0
        %6644 = vmatpush1.msra.mxu0 0.0
        %6645 = vmatprep.subr.mxu0 0.0
        %6646 = vmatpush1.msra.mxu0 0.0
        %6647 = vmatprep.mubr.f32.mxu0 0.0
        %6648 = vmatmul.mubr.f32.gmra.mrb[0].mxu0 %v4534
        %v6649 = vpop.f32.mrb[0].mxu0
        %v6650 = vadd.f32 0.0, %v6649
        %v6651 = vpop.f32.mrb[0].mxu0
        %6652 = vmatprep.mubr.f32.mxu0 0.0
        %6653 = vmatmul.mubr.f32.gmra.mrb[0].mxu0 %v4537
        %v6654 = vpop.f32.mrb[0].mxu0
        %v6655 = vadd.f32 0.0, %v6654
        %v6656 = vpop.f32.mrb[0].mxu0
        %6657 = vmatprep.mubr.f32.mxu0 0.0
        %6658 = vmatmul.mubr.f32.gmra.mrb[0].mxu0 %v4540
        %v6659 = vpop.f32.mrb[0].mxu0
        %v6660 = vadd.f32 0.0, %v6659
        %v6661 = vpop.f32.mrb[0].mxu0
        %6662 = vmatprep.mubr.f32.mxu0 0.0
        %6663 = vmatmul.mubr.f32.gmra.mrb[0].mxu0 %v4543
        %v6664 = vpop.f32.mrb[0].mxu0
        %v6665 = vadd.f32 0.0, %v6664
        %v6666 = vpop.f32.mrb[0].mxu0
        %6667 = vdwg.mxu0
        %6668 = vmatprep.subr.mxu0 0.0
        %6669 = vmatpush1.msra.mxu0 %v6572
        %6670 = vmatprep.subr.mxu0 0.0
        %6671 = vmatpush1.msra.mxu0 %v6573
        %6672 = vmatprep.subr.mxu0 0.0
        %6673 = vmatpush1.msra.mxu0 %v6574
        %6674 = vmatprep.subr.mxu0 0.0
        %6675 = vmatpush1.msra.mxu0 %v6575
        %6676 = vmatprep.subr.mxu0 0.0
        %6677 = vmatpush1.msra.mxu0 0.0
        %6678 = vmatprep.subr.mxu0 0.0
        %6679 = vmatpush1.msra.mxu0 0.0
        %6680 = vmatprep.subr.mxu0 0.0
        %6681 = vmatpush1.msra.mxu0 0.0
        %6682 = vmatprep.subr.mxu0 0.0
        %6683 = vmatpush1.msra.mxu0 0.0
        %6684 = vmatprep.subr.mxu0 0.0
        %6685 = vmatpush1.msra.mxu0 0.0
        %6686 = vmatprep.subr.mxu0 0.0
        %6687 = vmatpush1.msra.mxu0 0.0
        %6688 = vmatprep.subr.mxu0 0.0
        %6689 = vmatpush1.msra.mxu0 0.0
        %6690 = vmatprep.subr.mxu0 0.0
        %6691 = vmatpush1.msra.mxu0 0.0
        %6692 = vmatprep.subr.mxu0 0.0
        %6693 = vmatpush1.msra.mxu0 0.0
        %6694 = vmatprep.subr.mxu0 0.0
        %6695 = vmatpush1.msra.mxu0 0.0
        %6696 = vmatprep.subr.mxu0 0.0
        %6697 = vmatpush1.msra.mxu0 0.0
        %6698 = vmatprep.subr.mxu0 0.0
        %6699 = vmatpush1.msra.mxu0 0.0
        %6700 = vmatprep.subr.mxu0 0.0
        %6701 = vmatpush1.msra.mxu0 0.0
        %6702 = vmatprep.subr.mxu0 0.0
        %6703 = vmatpush1.msra.mxu0 0.0
        %6704 = vmatprep.subr.mxu0 0.0
        %6705 = vmatpush1.msra.mxu0 0.0
        %6706 = vmatprep.subr.mxu0 0.0
        %6707 = vmatpush1.msra.mxu0 0.0
        %6708 = vmatprep.subr.mxu0 0.0
        %6709 = vmatpush1.msra.mxu0 0.0
        %6710 = vmatprep.subr.mxu0 0.0
        %6711 = vmatpush1.msra.mxu0 0.0
        %6712 = vmatprep.subr.mxu0 0.0
        %6713 = vmatpush1.msra.mxu0 0.0
        %6714 = vmatprep.subr.mxu0 0.0
        %6715 = vmatpush1.msra.mxu0 0.0
        %6716 = vmatprep.subr.mxu0 0.0
        %6717 = vmatpush1.msra.mxu0 0.0
        %6718 = vmatprep.subr.mxu0 0.0
        %6719 = vmatpush1.msra.mxu0 0.0
        %6720 = vmatprep.subr.mxu0 0.0
        %6721 = vmatpush1.msra.mxu0 0.0
        %6722 = vmatprep.subr.mxu0 0.0
        %6723 = vmatpush1.msra.mxu0 0.0
        %6724 = vmatprep.subr.mxu0 0.0
        %6725 = vmatpush1.msra.mxu0 0.0
        %6726 = vmatprep.subr.mxu0 0.0
        %6727 = vmatpush1.msra.mxu0 0.0
        %6728 = vmatprep.subr.mxu0 0.0
        %6729 = vmatpush1.msra.mxu0 0.0
        %6730 = vmatprep.subr.mxu0 0.0
        %6731 = vmatpush1.msra.mxu0 0.0
        %6732 = vmatprep.mubr.f32.mxu0 0.0
        %6733 = vmatmul.mubr.f32.gmra.mrb[0].mxu0 %v4631
        %v6734 = vpop.f32.mrb[0].mxu0
        %v6735 = vadd.f32 0.0, %v6734
        %v6736 = vpop.f32.mrb[0].mxu0
        %6737 = vmatprep.mubr.f32.mxu0 0.0
        %6738 = vmatmul.mubr.f32.gmra.mrb[0].mxu0 %v4634
        %v6739 = vpop.f32.mrb[0].mxu0
        %v6740 = vadd.f32 0.0, %v6739
        %v6741 = vpop.f32.mrb[0].mxu0
        %6742 = vmatprep.mubr.f32.mxu0 0.0
        %6743 = vmatmul.mubr.f32.gmra.mrb[0].mxu0 %v4637
        %v6744 = vpop.f32.mrb[0].mxu0
        %v6745 = vadd.f32 0.0, %v6744
        %v6746 = vpop.f32.mrb[0].mxu0
        %6747 = vmatprep.mubr.f32.mxu0 0.0
        %6748 = vmatmul.mubr.f32.gmra.mrb[0].mxu0 %v4640
        %v6749 = vpop.f32.mrb[0].mxu0
        %v6750 = vadd.f32 0.0, %v6749
        %v6751 = vpop.f32.mrb[0].mxu0
        %6752 = vdwg.mxu0
        %6753 = vmatprep.subr.mxu0 0.0
        %6754 = vmatpush1.msra.mxu0 %v6577
        %6755 = vmatprep.subr.mxu0 0.0
        %6756 = vmatpush1.msra.mxu0 %v6578
        %6757 = vmatprep.subr.mxu0 0.0
        %6758 = vmatpush1.msra.mxu0 %v6579
        %6759 = vmatprep.subr.mxu0 0.0
        %6760 = vmatpush1.msra.mxu0 %v6580
        %6761 = vmatprep.subr.mxu0 0.0
        %6762 = vmatpush1.msra.mxu0 0.0
        %6763 = vmatprep.subr.mxu0 0.0
        %6764 = vmatpush1.msra.mxu0 0.0
        %6765 = vmatprep.subr.mxu0 0.0
        %6766 = vmatpush1.msra.mxu0 0.0
        %6767 = vmatprep.subr.mxu0 0.0
        %6768 = vmatpush1.msra.mxu0 0.0
        %6769 = vmatprep.subr.mxu0 0.0
        %6770 = vmatpush1.msra.mxu0 0.0
        %6771 = vmatprep.subr.mxu0 0.0
        %6772 = vmatpush1.msra.mxu0 0.0
        %6773 = vmatprep.subr.mxu0 0.0
        %6774 = vmatpush1.msra.mxu0 0.0
        %6775 = vmatprep.subr.mxu0 0.0
        %6776 = vmatpush1.msra.mxu0 0.0
        %6777 = vmatprep.subr.mxu0 0.0
        %6778 = vmatpush1.msra.mxu0 0.0
        %6779 = vmatprep.subr.mxu0 0.0
        %6780 = vmatpush1.msra.mxu0 0.0
        %6781 = vmatprep.subr.mxu0 0.0
        %6782 = vmatpush1.msra.mxu0 0.0
        %6783 = vmatprep.subr.mxu0 0.0
        %6784 = vmatpush1.msra.mxu0 0.0
        %6785 = vmatprep.subr.mxu0 0.0
        %6786 = vmatpush1.msra.mxu0 0.0
        %6787 = vmatprep.subr.mxu0 0.0
        %6788 = vmatpush1.msra.mxu0 0.0
        %6789 = vmatprep.subr.mxu0 0.0
        %6790 = vmatpush1.msra.mxu0 0.0
        %6791 = vmatprep.subr.mxu0 0.0
        %6792 = vmatpush1.msra.mxu0 0.0
        %6793 = vmatprep.subr.mxu0 0.0
        %6794 = vmatpush1.msra.mxu0 0.0
        %6795 = vmatprep.subr.mxu0 0.0
        %6796 = vmatpush1.msra.mxu0 0.0
        %6797 = vmatprep.subr.mxu0 0.0
        %6798 = vmatpush1.msra.mxu0 0.0
        %6799 = vmatprep.subr.mxu0 0.0
        %6800 = vmatpush1.msra.mxu0 0.0
        %6801 = vmatprep.subr.mxu0 0.0
        %6802 = vmatpush1.msra.mxu0 0.0
        %6803 = vmatprep.subr.mxu0 0.0
        %6804 = vmatpush1.msra.mxu0 0.0
        %6805 = vmatprep.subr.mxu0 0.0
        %6806 = vmatpush1.msra.mxu0 0.0
        %6807 = vmatprep.subr.mxu0 0.0
        %6808 = vmatpush1.msra.mxu0 0.0
        %6809 = vmatprep.subr.mxu0 0.0
        %6810 = vmatpush1.msra.mxu0 0.0
        %6811 = vmatprep.subr.mxu0 0.0
        %6812 = vmatpush1.msra.mxu0 0.0
        %6813 = vmatprep.subr.mxu0 0.0
        %6814 = vmatpush1.msra.mxu0 0.0
        %6815 = vmatprep.subr.mxu0 0.0
        %6816 = vmatpush1.msra.mxu0 0.0
        %6817 = vmatprep.mubr.f32.mxu0 0.0
        %6818 = vmatmul.mubr.f32.gmra.mrb[0].mxu0 %v4631
        %v6819 = vpop.f32.mrb[0].mxu0
        %v6820 = vadd.f32 0.0, %v6819
        %v6821 = vpop.f32.mrb[0].mxu0
        %6822 = vmatprep.mubr.f32.mxu0 0.0
        %6823 = vmatmul.mubr.f32.gmra.mrb[0].mxu0 %v4634
        %v6824 = vpop.f32.mrb[0].mxu0
        %v6825 = vadd.f32 0.0, %v6824
        %v6826 = vpop.f32.mrb[0].mxu0
        %6827 = vmatprep.mubr.f32.mxu0 0.0
        %6828 = vmatmul.mubr.f32.gmra.mrb[0].mxu0 %v4637
        %v6829 = vpop.f32.mrb[0].mxu0
        %v6830 = vadd.f32 0.0, %v6829
        %v6831 = vpop.f32.mrb[0].mxu0
        %6832 = vmatprep.mubr.f32.mxu0 0.0
        %6833 = vmatmul.mubr.f32.gmra.mrb[0].mxu0 %v4640
        %v6834 = vpop.f32.mrb[0].mxu0
        %v6835 = vadd.f32 0.0, %v6834
        %v6836 = vpop.f32.mrb[0].mxu0
        %6837 = vdwg.mxu0
        %v6839 = vsel %vm647, %v6650, 0
        %v6842 = vsel %vm647, %v6735, 0
        %6844 = vmatprep.subr.mxu0 0.0
        %6845 = vmatpush1.xpose.msra.mxu0 %v6842
        %6846 = vmatprep.subr.mxu0 0.0
        %6847 = vmatpush1.xpose.msra.mxu0 0.0
        %6848 = vmatprep.subr.mxu0 0.0
        %6849 = vmatpush1.xpose.msra.mxu0 0.0
        %6850 = vmatprep.subr.mxu0 0.0
        %6851 = vmatpush1.xpose.msra.mxu0 0.0
        %6852 = vmatprep.subr.mxu0 0.0
        %6853 = vmatpush1.xpose.msra.mxu0 0.0
        %6854 = vmatprep.subr.mxu0 0.0
        %6855 = vmatpush1.xpose.msra.mxu0 0.0
        %6856 = vmatprep.subr.mxu0 0.0
        %6857 = vmatpush1.xpose.msra.mxu0 0.0
        %6858 = vmatprep.subr.mxu0 0.0
        %6859 = vmatpush1.xpose.msra.mxu0 0.0
        %6860 = vmatprep.subr.mxu0 0.0
        %6861 = vmatpush1.xpose.msra.mxu0 0.0
        %6862 = vmatprep.subr.mxu0 0.0
        %6863 = vmatpush1.xpose.msra.mxu0 0.0
        %6864 = vmatprep.subr.mxu0 0.0
        %6865 = vmatpush1.xpose.msra.mxu0 0.0
        %6866 = vmatprep.subr.mxu0 0.0
        %6867 = vmatpush1.xpose.msra.mxu0 0.0
        %6868 = vmatprep.subr.mxu0 0.0
        %6869 = vmatpush1.xpose.msra.mxu0 0.0
        %6870 = vmatprep.subr.mxu0 0.0
        %6871 = vmatpush1.xpose.msra.mxu0 0.0
        %6872 = vmatprep.subr.mxu0 0.0
        %6873 = vmatpush1.xpose.msra.mxu0 0.0
        %6874 = vmatprep.subr.mxu0 0.0
        %6875 = vmatpush1.xpose.msra.mxu0 0.0
        %6876 = vmatprep.subr.mxu0 0.0
        %6877 = vmatpush1.xpose.msra.mxu0 0.0
        %6878 = vmatprep.subr.mxu0 0.0
        %6879 = vmatpush1.xpose.msra.mxu0 0.0
        %6880 = vmatprep.subr.mxu0 0.0
        %6881 = vmatpush1.xpose.msra.mxu0 0.0
        %6882 = vmatprep.subr.mxu0 0.0
        %6883 = vmatpush1.xpose.msra.mxu0 0.0
        %6884 = vmatprep.subr.mxu0 0.0
        %6885 = vmatpush1.xpose.msra.mxu0 0.0
        %6886 = vmatprep.subr.mxu0 0.0
        %6887 = vmatpush1.xpose.msra.mxu0 0.0
        %6888 = vmatprep.subr.mxu0 0.0
        %6889 = vmatpush1.xpose.msra.mxu0 0.0
        %6890 = vmatprep.subr.mxu0 0.0
        %6891 = vmatpush1.xpose.msra.mxu0 0.0
        %6892 = vmatprep.subr.mxu0 0.0
        %6893 = vmatpush1.xpose.msra.mxu0 0.0
        %6894 = vmatprep.subr.mxu0 0.0
        %6895 = vmatpush1.xpose.msra.mxu0 0.0
        %6896 = vmatprep.subr.mxu0 0.0
        %6897 = vmatpush1.xpose.msra.mxu0 0.0
        %6898 = vmatprep.subr.mxu0 0.0
        %6899 = vmatpush1.xpose.msra.mxu0 0.0
        %6900 = vmatprep.subr.mxu0 0.0
        %6901 = vmatpush1.xpose.msra.mxu0 0.0
        %6902 = vmatprep.subr.mxu0 0.0
        %6903 = vmatpush1.xpose.msra.mxu0 0.0
        %6904 = vmatprep.subr.mxu0 0.0
        %6905 = vmatpush1.xpose.msra.mxu0 0.0
        %6906 = vmatprep.subr.mxu0 0.0
        %6907 = vmatpush1.xpose.msra.mxu0 0.0
        %6908 = vmatprep.mubr.f32.mxu0 0.0
        %6909 = vmatmul.mubr.f32.gmra.mrb[0].mxu0 %v6839
        %v6910 = vpop.f32.mrb[0].mxu0
        %v6911 = vadd.f32 0.0, %v6910
        %v6912 = vpop.f32.mrb[0].mxu0
        %6913 = vdwg.mxu0
        %v6915 = vsel %vm647, %v6655, 0
        %v6918 = vsel %vm647, %v6740, 0
        %6920 = vmatprep.subr.mxu0 0.0
        %6921 = vmatpush1.xpose.msra.mxu0 %v6918
        %6922 = vmatprep.subr.mxu0 0.0
        %6923 = vmatpush1.xpose.msra.mxu0 0.0
        %6924 = vmatprep.subr.mxu0 0.0
        %6925 = vmatpush1.xpose.msra.mxu0 0.0
        %6926 = vmatprep.subr.mxu0 0.0
        %6927 = vmatpush1.xpose.msra.mxu0 0.0
        %6928 = vmatprep.subr.mxu0 0.0
        %6929 = vmatpush1.xpose.msra.mxu0 0.0
        %6930 = vmatprep.subr.mxu0 0.0
        %6931 = vmatpush1.xpose.msra.mxu0 0.0
        %6932 = vmatprep.subr.mxu0 0.0
        %6933 = vmatpush1.xpose.msra.mxu0 0.0
        %6934 = vmatprep.subr.mxu0 0.0
        %6935 = vmatpush1.xpose.msra.mxu0 0.0
        %6936 = vmatprep.subr.mxu0 0.0
        %6937 = vmatpush1.xpose.msra.mxu0 0.0
        %6938 = vmatprep.subr.mxu0 0.0
        %6939 = vmatpush1.xpose.msra.mxu0 0.0
        %6940 = vmatprep.subr.mxu0 0.0
        %6941 = vmatpush1.xpose.msra.mxu0 0.0
        %6942 = vmatprep.subr.mxu0 0.0
        %6943 = vmatpush1.xpose.msra.mxu0 0.0
        %6944 = vmatprep.subr.mxu0 0.0
        %6945 = vmatpush1.xpose.msra.mxu0 0.0
        %6946 = vmatprep.subr.mxu0 0.0
        %6947 = vmatpush1.xpose.msra.mxu0 0.0
        %6948 = vmatprep.subr.mxu0 0.0
        %6949 = vmatpush1.xpose.msra.mxu0 0.0
        %6950 = vmatprep.subr.mxu0 0.0
        %6951 = vmatpush1.xpose.msra.mxu0 0.0
        %6952 = vmatprep.subr.mxu0 0.0
        %6953 = vmatpush1.xpose.msra.mxu0 0.0
        %6954 = vmatprep.subr.mxu0 0.0
        %6955 = vmatpush1.xpose.msra.mxu0 0.0
        %6956 = vmatprep.subr.mxu0 0.0
        %6957 = vmatpush1.xpose.msra.mxu0 0.0
        %6958 = vmatprep.subr.mxu0 0.0
        %6959 = vmatpush1.xpose.msra.mxu0 0.0
        %6960 = vmatprep.subr.mxu0 0.0
        %6961 = vmatpush1.xpose.msra.mxu0 0.0
        %6962 = vmatprep.subr.mxu0 0.0
        %6963 = vmatpush1.xpose.msra.mxu0 0.0
        %6964 = vmatprep.subr.mxu0 0.0
        %6965 = vmatpush1.xpose.msra.mxu0 0.0
        %6966 = vmatprep.subr.mxu0 0.0
        %6967 = vmatpush1.xpose.msra.mxu0 0.0
        %6968 = vmatprep.subr.mxu0 0.0
        %6969 = vmatpush1.xpose.msra.mxu0 0.0
        %6970 = vmatprep.subr.mxu0 0.0
        %6971 = vmatpush1.xpose.msra.mxu0 0.0
        %6972 = vmatprep.subr.mxu0 0.0
        %6973 = vmatpush1.xpose.msra.mxu0 0.0
        %6974 = vmatprep.subr.mxu0 0.0
        %6975 = vmatpush1.xpose.msra.mxu0 0.0
        %6976 = vmatprep.subr.mxu0 0.0
        %6977 = vmatpush1.xpose.msra.mxu0 0.0
        %6978 = vmatprep.subr.mxu0 0.0
        %6979 = vmatpush1.xpose.msra.mxu0 0.0
        %6980 = vmatprep.subr.mxu0 0.0
        %6981 = vmatpush1.xpose.msra.mxu0 0.0
        %6982 = vmatprep.subr.mxu0 0.0
        %6983 = vmatpush1.xpose.msra.mxu0 0.0
        %6984 = vmatprep.mubr.f32.mxu0 0.0
        %6985 = vmatmul.mubr.f32.gmra.mrb[0].mxu0 %v6915
        %v6986 = vpop.f32.mrb[0].mxu0
        %v6987 = vadd.f32 0.0, %v6986
        %v6988 = vpop.f32.mrb[0].mxu0
        %6989 = vdwg.mxu0
        %v6991 = vsel %vm647, %v6660, 0
        %v6994 = vsel %vm647, %v6745, 0
        %6996 = vmatprep.subr.mxu0 0.0
        %6997 = vmatpush1.xpose.msra.mxu0 %v6994
        %6998 = vmatprep.subr.mxu0 0.0
        %6999 = vmatpush1.xpose.msra.mxu0 0.0
        %7000 = vmatprep.subr.mxu0 0.0
        %7001 = vmatpush1.xpose.msra.mxu0 0.0
        %7002 = vmatprep.subr.mxu0 0.0
        %7003 = vmatpush1.xpose.msra.mxu0 0.0
        %7004 = vmatprep.subr.mxu0 0.0
        %7005 = vmatpush1.xpose.msra.mxu0 0.0
        %7006 = vmatprep.subr.mxu0 0.0
        %7007 = vmatpush1.xpose.msra.mxu0 0.0
        %7008 = vmatprep.subr.mxu0 0.0
        %7009 = vmatpush1.xpose.msra.mxu0 0.0
        %7010 = vmatprep.subr.mxu0 0.0
        %7011 = vmatpush1.xpose.msra.mxu0 0.0
        %7012 = vmatprep.subr.mxu0 0.0
        %7013 = vmatpush1.xpose.msra.mxu0 0.0
        %7014 = vmatprep.subr.mxu0 0.0
        %7015 = vmatpush1.xpose.msra.mxu0 0.0
        %7016 = vmatprep.subr.mxu0 0.0
        %7017 = vmatpush1.xpose.msra.mxu0 0.0
        %7018 = vmatprep.subr.mxu0 0.0
        %7019 = vmatpush1.xpose.msra.mxu0 0.0
        %7020 = vmatprep.subr.mxu0 0.0
        %7021 = vmatpush1.xpose.msra.mxu0 0.0
        %7022 = vmatprep.subr.mxu0 0.0
        %7023 = vmatpush1.xpose.msra.mxu0 0.0
        %7024 = vmatprep.subr.mxu0 0.0
        %7025 = vmatpush1.xpose.msra.mxu0 0.0
        %7026 = vmatprep.subr.mxu0 0.0
        %7027 = vmatpush1.xpose.msra.mxu0 0.0
        %7028 = vmatprep.subr.mxu0 0.0
        %7029 = vmatpush1.xpose.msra.mxu0 0.0
        %7030 = vmatprep.subr.mxu0 0.0
        %7031 = vmatpush1.xpose.msra.mxu0 0.0
        %7032 = vmatprep.subr.mxu0 0.0
        %7033 = vmatpush1.xpose.msra.mxu0 0.0
        %7034 = vmatprep.subr.mxu0 0.0
        %7035 = vmatpush1.xpose.msra.mxu0 0.0
        %7036 = vmatprep.subr.mxu0 0.0
        %7037 = vmatpush1.xpose.msra.mxu0 0.0
        %7038 = vmatprep.subr.mxu0 0.0
        %7039 = vmatpush1.xpose.msra.mxu0 0.0
        %7040 = vmatprep.subr.mxu0 0.0
        %7041 = vmatpush1.xpose.msra.mxu0 0.0
        %7042 = vmatprep.subr.mxu0 0.0
        %7043 = vmatpush1.xpose.msra.mxu0 0.0
        %7044 = vmatprep.subr.mxu0 0.0
        %7045 = vmatpush1.xpose.msra.mxu0 0.0
        %7046 = vmatprep.subr.mxu0 0.0
        %7047 = vmatpush1.xpose.msra.mxu0 0.0
        %7048 = vmatprep.subr.mxu0 0.0
        %7049 = vmatpush1.xpose.msra.mxu0 0.0
        %7050 = vmatprep.subr.mxu0 0.0
        %7051 = vmatpush1.xpose.msra.mxu0 0.0
        %7052 = vmatprep.subr.mxu0 0.0
        %7053 = vmatpush1.xpose.msra.mxu0 0.0
        %7054 = vmatprep.subr.mxu0 0.0
        %7055 = vmatpush1.xpose.msra.mxu0 0.0
        %7056 = vmatprep.subr.mxu0 0.0
        %7057 = vmatpush1.xpose.msra.mxu0 0.0
        %7058 = vmatprep.subr.mxu0 0.0
        %7059 = vmatpush1.xpose.msra.mxu0 0.0
        %7060 = vmatprep.mubr.f32.mxu0 0.0
        %7061 = vmatmul.mubr.f32.gmra.mrb[0].mxu0 %v6991
        %v7062 = vpop.f32.mrb[0].mxu0
        %v7063 = vadd.f32 0.0, %v7062
        %v7064 = vpop.f32.mrb[0].mxu0
        %7065 = vdwg.mxu0
        %v7067 = vsel %vm647, %v6665, 0
        %v7070 = vsel %vm647, %v6750, 0
        %7072 = vmatprep.subr.mxu0 0.0
        %7073 = vmatpush1.xpose.msra.mxu0 %v7070
        %7074 = vmatprep.subr.mxu0 0.0
        %7075 = vmatpush1.xpose.msra.mxu0 0.0
        %7076 = vmatprep.subr.mxu0 0.0
        %7077 = vmatpush1.xpose.msra.mxu0 0.0
        %7078 = vmatprep.subr.mxu0 0.0
        %7079 = vmatpush1.xpose.msra.mxu0 0.0
        %7080 = vmatprep.subr.mxu0 0.0
        %7081 = vmatpush1.xpose.msra.mxu0 0.0
        %7082 = vmatprep.subr.mxu0 0.0
        %7083 = vmatpush1.xpose.msra.mxu0 0.0
        %7084 = vmatprep.subr.mxu0 0.0
        %7085 = vmatpush1.xpose.msra.mxu0 0.0
        %7086 = vmatprep.subr.mxu0 0.0
        %7087 = vmatpush1.xpose.msra.mxu0 0.0
        %7088 = vmatprep.subr.mxu0 0.0
        %7089 = vmatpush1.xpose.msra.mxu0 0.0
        %7090 = vmatprep.subr.mxu0 0.0
        %7091 = vmatpush1.xpose.msra.mxu0 0.0
        %7092 = vmatprep.subr.mxu0 0.0
        %7093 = vmatpush1.xpose.msra.mxu0 0.0
        %7094 = vmatprep.subr.mxu0 0.0
        %7095 = vmatpush1.xpose.msra.mxu0 0.0
        %7096 = vmatprep.subr.mxu0 0.0
        %7097 = vmatpush1.xpose.msra.mxu0 0.0
        %7098 = vmatprep.subr.mxu0 0.0
        %7099 = vmatpush1.xpose.msra.mxu0 0.0
        %7100 = vmatprep.subr.mxu0 0.0
        %7101 = vmatpush1.xpose.msra.mxu0 0.0
        %7102 = vmatprep.subr.mxu0 0.0
        %7103 = vmatpush1.xpose.msra.mxu0 0.0
        %7104 = vmatprep.subr.mxu0 0.0
        %7105 = vmatpush1.xpose.msra.mxu0 0.0
        %7106 = vmatprep.subr.mxu0 0.0
        %7107 = vmatpush1.xpose.msra.mxu0 0.0
        %7108 = vmatprep.subr.mxu0 0.0
        %7109 = vmatpush1.xpose.msra.mxu0 0.0
        %7110 = vmatprep.subr.mxu0 0.0
        %7111 = vmatpush1.xpose.msra.mxu0 0.0
        %7112 = vmatprep.subr.mxu0 0.0
        %7113 = vmatpush1.xpose.msra.mxu0 0.0
        %7114 = vmatprep.subr.mxu0 0.0
        %7115 = vmatpush1.xpose.msra.mxu0 0.0
        %7116 = vmatprep.subr.mxu0 0.0
        %7117 = vmatpush1.xpose.msra.mxu0 0.0
        %7118 = vmatprep.subr.mxu0 0.0
        %7119 = vmatpush1.xpose.msra.mxu0 0.0
        %7120 = vmatprep.subr.mxu0 0.0
        %7121 = vmatpush1.xpose.msra.mxu0 0.0
        %7122 = vmatprep.subr.mxu0 0.0
        %7123 = vmatpush1.xpose.msra.mxu0 0.0
        %7124 = vmatprep.subr.mxu0 0.0
        %7125 = vmatpush1.xpose.msra.mxu0 0.0
        %7126 = vmatprep.subr.mxu0 0.0
        %7127 = vmatpush1.xpose.msra.mxu0 0.0
        %7128 = vmatprep.subr.mxu0 0.0
        %7129 = vmatpush1.xpose.msra.mxu0 0.0
        %7130 = vmatprep.subr.mxu0 0.0
        %7131 = vmatpush1.xpose.msra.mxu0 0.0
        %7132 = vmatprep.subr.mxu0 0.0
        %7133 = vmatpush1.xpose.msra.mxu0 0.0
        %7134 = vmatprep.subr.mxu0 0.0
        %7135 = vmatpush1.xpose.msra.mxu0 0.0
        %7136 = vmatprep.mubr.f32.mxu0 0.0
        %7137 = vmatmul.mubr.f32.gmra.mrb[0].mxu0 %v7067
        %v7138 = vpop.f32.mrb[0].mxu0
        %v7139 = vadd.f32 0.0, %v7138
        %v7140 = vpop.f32.mrb[0].mxu0
        %7141 = vdwg.mxu0
        %v7142 = vmul.f32 %v6911, 0.35355338
        %v7143 = vmul.f32 %v6987, 0.35355338
        %v7144 = vmul.f32 %v7063, 0.35355338
        %v7145 = vmul.f32 %v7139, 0.35355338
        %v7146 = vsel %vm647, %v7142, -inf
        %7147 = vmax.xlane.f32.xlu0 %v7146
        %v7148 = vpop.xlane.xlu0 %7147
        %v7149 = vsel %vm647, %v7143, -inf
        %7150 = vmax.xlane.f32.xlu0 %v7149
        %v7151 = vpop.xlane.xlu0 %7150
        %v7152 = vsel %vm647, %v7144, -inf
        %7153 = vmax.xlane.f32.xlu0 %v7152
        %v7154 = vpop.xlane.xlu0 %7153
        %v7155 = vsel %vm647, %v7145, -inf
        %7156 = vmax.xlane.f32.xlu0 %v7155
        %v7157 = vpop.xlane.xlu0 %7156
        %v7158 = vsub.f32 %v7142, %v7148
        %v7159 = vsub.f32 %v7143, %v7151
        %v7160 = vsub.f32 %v7144, %v7154
        %v7161 = vsub.f32 %v7145, %v7157
        %v7162 = vmul.f32 %v7158, 1.442695
        %v7163 = vpow.pop %v7162
        %v7164 = vmul.f32 %v7159, 1.442695
        %v7165 = vpow.pop %v7164
        %v7166 = vmul.f32 %v7160, 1.442695
        %v7167 = vpow.pop %v7166
        %v7168 = vmul.f32 %v7161, 1.442695
        %v7169 = vpow.pop %v7168
        %v7170 = vsel %vm647, %v7163, 0.0
        %7171 = vadd.xlane.f32.xlu0 %v7170
        %v7172 = vpop.xlane.xlu0 %7171
        %v7173 = vsel %vm647, %v7165, 0.0
        %7174 = vadd.xlane.f32.xlu0 %v7173
        %v7175 = vpop.xlane.xlu0 %7174
        %v7176 = vsel %vm647, %v7167, 0.0
        %7177 = vadd.xlane.f32.xlu0 %v7176
        %v7178 = vpop.xlane.xlu0 %7177
        %v7179 = vsel %vm647, %v7169, 0.0
        %7180 = vadd.xlane.f32.xlu0 %v7179
        %v7181 = vpop.xlane.xlu0 %7180
        %v7182 = vrcp.pop %v7172
        %v7183 = vrcp.pop %v7175
        %v7184 = vrcp.pop %v7178
        %v7185 = vrcp.pop %v7181
        %v7186 = vmul.f32 %v7163, %v7182
        %v7187 = vmul.f32 %v7165, %v7183
        %v7188 = vmul.f32 %v7167, %v7184
        %v7189 = vmul.f32 %v7169, %v7185
        %v7191 = vsel %vm647, %v7186, 0
        %7193 = vmatprep.subr.mxu0 0.0
        %7194 = vmatpush1.msra.mxu0 %v6820
        %7195 = vmatprep.subr.mxu0 0.0
        %7196 = vmatpush1.msra.mxu0 0.0
        %7197 = vmatprep.subr.mxu0 0.0
        %7198 = vmatpush1.msra.mxu0 0.0
        %7199 = vmatprep.subr.mxu0 0.0
        %7200 = vmatpush1.msra.mxu0 0.0
        %7201 = vmatprep.subr.mxu0 0.0
        %7202 = vmatpush1.msra.mxu0 0.0
        %7203 = vmatprep.subr.mxu0 0.0
        %7204 = vmatpush1.msra.mxu0 0.0
        %7205 = vmatprep.subr.mxu0 0.0
        %7206 = vmatpush1.msra.mxu0 0.0
        %7207 = vmatprep.subr.mxu0 0.0
        %7208 = vmatpush1.msra.mxu0 0.0
        %7209 = vmatprep.subr.mxu0 0.0
        %7210 = vmatpush1.msra.mxu0 0.0
        %7211 = vmatprep.subr.mxu0 0.0
        %7212 = vmatpush1.msra.mxu0 0.0
        %7213 = vmatprep.subr.mxu0 0.0
        %7214 = vmatpush1.msra.mxu0 0.0
        %7215 = vmatprep.subr.mxu0 0.0
        %7216 = vmatpush1.msra.mxu0 0.0
        %7217 = vmatprep.subr.mxu0 0.0
        %7218 = vmatpush1.msra.mxu0 0.0
        %7219 = vmatprep.subr.mxu0 0.0
        %7220 = vmatpush1.msra.mxu0 0.0
        %7221 = vmatprep.subr.mxu0 0.0
        %7222 = vmatpush1.msra.mxu0 0.0
        %7223 = vmatprep.subr.mxu0 0.0
        %7224 = vmatpush1.msra.mxu0 0.0
        %7225 = vmatprep.subr.mxu0 0.0
        %7226 = vmatpush1.msra.mxu0 0.0
        %7227 = vmatprep.subr.mxu0 0.0
        %7228 = vmatpush1.msra.mxu0 0.0
        %7229 = vmatprep.subr.mxu0 0.0
        %7230 = vmatpush1.msra.mxu0 0.0
        %7231 = vmatprep.subr.mxu0 0.0
        %7232 = vmatpush1.msra.mxu0 0.0
        %7233 = vmatprep.subr.mxu0 0.0
        %7234 = vmatpush1.msra.mxu0 0.0
        %7235 = vmatprep.subr.mxu0 0.0
        %7236 = vmatpush1.msra.mxu0 0.0
        %7237 = vmatprep.subr.mxu0 0.0
        %7238 = vmatpush1.msra.mxu0 0.0
        %7239 = vmatprep.subr.mxu0 0.0
        %7240 = vmatpush1.msra.mxu0 0.0
        %7241 = vmatprep.subr.mxu0 0.0
        %7242 = vmatpush1.msra.mxu0 0.0
        %7243 = vmatprep.subr.mxu0 0.0
        %7244 = vmatpush1.msra.mxu0 0.0
        %7245 = vmatprep.subr.mxu0 0.0
        %7246 = vmatpush1.msra.mxu0 0.0
        %7247 = vmatprep.subr.mxu0 0.0
        %7248 = vmatpush1.msra.mxu0 0.0
        %7249 = vmatprep.subr.mxu0 0.0
        %7250 = vmatpush1.msra.mxu0 0.0
        %7251 = vmatprep.subr.mxu0 0.0
        %7252 = vmatpush1.msra.mxu0 0.0
        %7253 = vmatprep.subr.mxu0 0.0
        %7254 = vmatpush1.msra.mxu0 0.0
        %7255 = vmatprep.subr.mxu0 0.0
        %7256 = vmatpush1.msra.mxu0 0.0
        %7257 = vmatprep.mubr.f32.mxu0 0.0
        %7258 = vmatmul.mubr.f32.gmra.mrb[0].mxu0 %v7191
        %v7259 = vpop.f32.mrb[0].mxu0
        %v7260 = vadd.f32 0.0, %v7259
        %v7261 = vpop.f32.mrb[0].mxu0
        %7262 = vdwg.mxu0
        %v7264 = vsel %vm647, %v7187, 0
        %7266 = vmatprep.subr.mxu0 0.0
        %7267 = vmatpush1.msra.mxu0 %v6825
        %7268 = vmatprep.subr.mxu0 0.0
        %7269 = vmatpush1.msra.mxu0 0.0
        %7270 = vmatprep.subr.mxu0 0.0
        %7271 = vmatpush1.msra.mxu0 0.0
        %7272 = vmatprep.subr.mxu0 0.0
        %7273 = vmatpush1.msra.mxu0 0.0
        %7274 = vmatprep.subr.mxu0 0.0
        %7275 = vmatpush1.msra.mxu0 0.0
        %7276 = vmatprep.subr.mxu0 0.0
        %7277 = vmatpush1.msra.mxu0 0.0
        %7278 = vmatprep.subr.mxu0 0.0
        %7279 = vmatpush1.msra.mxu0 0.0
        %7280 = vmatprep.subr.mxu0 0.0
        %7281 = vmatpush1.msra.mxu0 0.0
        %7282 = vmatprep.subr.mxu0 0.0
        %7283 = vmatpush1.msra.mxu0 0.0
        %7284 = vmatprep.subr.mxu0 0.0
        %7285 = vmatpush1.msra.mxu0 0.0
        %7286 = vmatprep.subr.mxu0 0.0
        %7287 = vmatpush1.msra.mxu0 0.0
        %7288 = vmatprep.subr.mxu0 0.0
        %7289 = vmatpush1.msra.mxu0 0.0
        %7290 = vmatprep.subr.mxu0 0.0
        %7291 = vmatpush1.msra.mxu0 0.0
        %7292 = vmatprep.subr.mxu0 0.0
        %7293 = vmatpush1.msra.mxu0 0.0
        %7294 = vmatprep.subr.mxu0 0.0
        %7295 = vmatpush1.msra.mxu0 0.0
        %7296 = vmatprep.subr.mxu0 0.0
        %7297 = vmatpush1.msra.mxu0 0.0
        %7298 = vmatprep.subr.mxu0 0.0
        %7299 = vmatpush1.msra.mxu0 0.0
        %7300 = vmatprep.subr.mxu0 0.0
        %7301 = vmatpush1.msra.mxu0 0.0
        %7302 = vmatprep.subr.mxu0 0.0
        %7303 = vmatpush1.msra.mxu0 0.0
        %7304 = vmatprep.subr.mxu0 0.0
        %7305 = vmatpush1.msra.mxu0 0.0
        %7306 = vmatprep.subr.mxu0 0.0
        %7307 = vmatpush1.msra.mxu0 0.0
        %7308 = vmatprep.subr.mxu0 0.0
        %7309 = vmatpush1.msra.mxu0 0.0
        %7310 = vmatprep.subr.mxu0 0.0
        %7311 = vmatpush1.msra.mxu0 0.0
        %7312 = vmatprep.subr.mxu0 0.0
        %7313 = vmatpush1.msra.mxu0 0.0
        %7314 = vmatprep.subr.mxu0 0.0
        %7315 = vmatpush1.msra.mxu0 0.0
        %7316 = vmatprep.subr.mxu0 0.0
        %7317 = vmatpush1.msra.mxu0 0.0
        %7318 = vmatprep.subr.mxu0 0.0
        %7319 = vmatpush1.msra.mxu0 0.0
        %7320 = vmatprep.subr.mxu0 0.0
        %7321 = vmatpush1.msra.mxu0 0.0
        %7322 = vmatprep.subr.mxu0 0.0
        %7323 = vmatpush1.msra.mxu0 0.0
        %7324 = vmatprep.subr.mxu0 0.0
        %7325 = vmatpush1.msra.mxu0 0.0
        %7326 = vmatprep.subr.mxu0 0.0
        %7327 = vmatpush1.msra.mxu0 0.0
        %7328 = vmatprep.subr.mxu0 0.0
        %7329 = vmatpush1.msra.mxu0 0.0
        %7330 = vmatprep.mubr.f32.mxu0 0.0
        %7331 = vmatmul.mubr.f32.gmra.mrb[0].mxu0 %v7264
        %v7332 = vpop.f32.mrb[0].mxu0
        %v7333 = vadd.f32 0.0, %v7332
        %v7334 = vpop.f32.mrb[0].mxu0
        %7335 = vdwg.mxu0
        %v7337 = vsel %vm647, %v7188, 0
        %7339 = vmatprep.subr.mxu0 0.0
        %7340 = vmatpush1.msra.mxu0 %v6830
        %7341 = vmatprep.subr.mxu0 0.0
        %7342 = vmatpush1.msra.mxu0 0.0
        %7343 = vmatprep.subr.mxu0 0.0
        %7344 = vmatpush1.msra.mxu0 0.0
        %7345 = vmatprep.subr.mxu0 0.0
        %7346 = vmatpush1.msra.mxu0 0.0
        %7347 = vmatprep.subr.mxu0 0.0
        %7348 = vmatpush1.msra.mxu0 0.0
        %7349 = vmatprep.subr.mxu0 0.0
        %7350 = vmatpush1.msra.mxu0 0.0
        %7351 = vmatprep.subr.mxu0 0.0
        %7352 = vmatpush1.msra.mxu0 0.0
        %7353 = vmatprep.subr.mxu0 0.0
        %7354 = vmatpush1.msra.mxu0 0.0
        %7355 = vmatprep.subr.mxu0 0.0
        %7356 = vmatpush1.msra.mxu0 0.0
        %7357 = vmatprep.subr.mxu0 0.0
        %7358 = vmatpush1.msra.mxu0 0.0
        %7359 = vmatprep.subr.mxu0 0.0
        %7360 = vmatpush1.msra.mxu0 0.0
        %7361 = vmatprep.subr.mxu0 0.0
        %7362 = vmatpush1.msra.mxu0 0.0
        %7363 = vmatprep.subr.mxu0 0.0
        %7364 = vmatpush1.msra.mxu0 0.0
        %7365 = vmatprep.subr.mxu0 0.0
        %7366 = vmatpush1.msra.mxu0 0.0
        %7367 = vmatprep.subr.mxu0 0.0
        %7368 = vmatpush1.msra.mxu0 0.0
        %7369 = vmatprep.subr.mxu0 0.0
        %7370 = vmatpush1.msra.mxu0 0.0
        %7371 = vmatprep.subr.mxu0 0.0
        %7372 = vmatpush1.msra.mxu0 0.0
        %7373 = vmatprep.subr.mxu0 0.0
        %7374 = vmatpush1.msra.mxu0 0.0
        %7375 = vmatprep.subr.mxu0 0.0
        %7376 = vmatpush1.msra.mxu0 0.0
        %7377 = vmatprep.subr.mxu0 0.0
        %7378 = vmatpush1.msra.mxu0 0.0
        %7379 = vmatprep.subr.mxu0 0.0
        %7380 = vmatpush1.msra.mxu0 0.0
        %7381 = vmatprep.subr.mxu0 0.0
        %7382 = vmatpush1.msra.mxu0 0.0
        %7383 = vmatprep.subr.mxu0 0.0
        %7384 = vmatpush1.msra.mxu0 0.0
        %7385 = vmatprep.subr.mxu0 0.0
        %7386 = vmatpush1.msra.mxu0 0.0
        %7387 = vmatprep.subr.mxu0 0.0
        %7388 = vmatpush1.msra.mxu0 0.0
        %7389 = vmatprep.subr.mxu0 0.0
        %7390 = vmatpush1.msra.mxu0 0.0
        %7391 = vmatprep.subr.mxu0 0.0
        %7392 = vmatpush1.msra.mxu0 0.0
        %7393 = vmatprep.subr.mxu0 0.0
        %7394 = vmatpush1.msra.mxu0 0.0
        %7395 = vmatprep.subr.mxu0 0.0
        %7396 = vmatpush1.msra.mxu0 0.0
        %7397 = vmatprep.subr.mxu0 0.0
        %7398 = vmatpush1.msra.mxu0 0.0
        %7399 = vmatprep.subr.mxu0 0.0
        %7400 = vmatpush1.msra.mxu0 0.0
        %7401 = vmatprep.subr.mxu0 0.0
        %7402 = vmatpush1.msra.mxu0 0.0
        %7403 = vmatprep.mubr.f32.mxu0 0.0
        %7404 = vmatmul.mubr.f32.gmra.mrb[0].mxu0 %v7337
        %v7405 = vpop.f32.mrb[0].mxu0
        %v7406 = vadd.f32 0.0, %v7405
        %v7407 = vpop.f32.mrb[0].mxu0
        %7408 = vdwg.mxu0
        %v7410 = vsel %vm647, %v7189, 0
        %7412 = vmatprep.subr.mxu0 0.0
        %7413 = vmatpush1.msra.mxu0 %v6835
        %7414 = vmatprep.subr.mxu0 0.0
        %7415 = vmatpush1.msra.mxu0 0.0
        %7416 = vmatprep.subr.mxu0 0.0
        %7417 = vmatpush1.msra.mxu0 0.0
        %7418 = vmatprep.subr.mxu0 0.0
        %7419 = vmatpush1.msra.mxu0 0.0
        %7420 = vmatprep.subr.mxu0 0.0
        %7421 = vmatpush1.msra.mxu0 0.0
        %7422 = vmatprep.subr.mxu0 0.0
        %7423 = vmatpush1.msra.mxu0 0.0
        %7424 = vmatprep.subr.mxu0 0.0
        %7425 = vmatpush1.msra.mxu0 0.0
        %7426 = vmatprep.subr.mxu0 0.0
        %7427 = vmatpush1.msra.mxu0 0.0
        %7428 = vmatprep.subr.mxu0 0.0
        %7429 = vmatpush1.msra.mxu0 0.0
        %7430 = vmatprep.subr.mxu0 0.0
        %7431 = vmatpush1.msra.mxu0 0.0
        %7432 = vmatprep.subr.mxu0 0.0
        %7433 = vmatpush1.msra.mxu0 0.0
        %7434 = vmatprep.subr.mxu0 0.0
        %7435 = vmatpush1.msra.mxu0 0.0
        %7436 = vmatprep.subr.mxu0 0.0
        %7437 = vmatpush1.msra.mxu0 0.0
        %7438 = vmatprep.subr.mxu0 0.0
        %7439 = vmatpush1.msra.mxu0 0.0
        %7440 = vmatprep.subr.mxu0 0.0
        %7441 = vmatpush1.msra.mxu0 0.0
        %7442 = vmatprep.subr.mxu0 0.0
        %7443 = vmatpush1.msra.mxu0 0.0
        %7444 = vmatprep.subr.mxu0 0.0
        %7445 = vmatpush1.msra.mxu0 0.0
        %7446 = vmatprep.subr.mxu0 0.0
        %7447 = vmatpush1.msra.mxu0 0.0
        %7448 = vmatprep.subr.mxu0 0.0
        %7449 = vmatpush1.msra.mxu0 0.0
        %7450 = vmatprep.subr.mxu0 0.0
        %7451 = vmatpush1.msra.mxu0 0.0
        %7452 = vmatprep.subr.mxu0 0.0
        %7453 = vmatpush1.msra.mxu0 0.0
        %7454 = vmatprep.subr.mxu0 0.0
        %7455 = vmatpush1.msra.mxu0 0.0
        %7456 = vmatprep.subr.mxu0 0.0
        %7457 = vmatpush1.msra.mxu0 0.0
        %7458 = vmatprep.subr.mxu0 0.0
        %7459 = vmatpush1.msra.mxu0 0.0
        %7460 = vmatprep.subr.mxu0 0.0
        %7461 = vmatpush1.msra.mxu0 0.0
        %7462 = vmatprep.subr.mxu0 0.0
        %7463 = vmatpush1.msra.mxu0 0.0
        %7464 = vmatprep.subr.mxu0 0.0
        %7465 = vmatpush1.msra.mxu0 0.0
        %7466 = vmatprep.subr.mxu0 0.0
        %7467 = vmatpush1.msra.mxu0 0.0
        %7468 = vmatprep.subr.mxu0 0.0
        %7469 = vmatpush1.msra.mxu0 0.0
        %7470 = vmatprep.subr.mxu0 0.0
        %7471 = vmatpush1.msra.mxu0 0.0
        %7472 = vmatprep.subr.mxu0 0.0
        %7473 = vmatpush1.msra.mxu0 0.0
        %7474 = vmatprep.subr.mxu0 0.0
        %7475 = vmatpush1.msra.mxu0 0.0
        %7476 = vmatprep.mubr.f32.mxu0 0.0
        %7477 = vmatmul.mubr.f32.gmra.mrb[0].mxu0 %v7410
        %v7478 = vpop.f32.mrb[0].mxu0
        %v7479 = vadd.f32 0.0, %v7478
        %v7480 = vpop.f32.mrb[0].mxu0
        %7481 = vdwg.mxu0
        %v7483 = vsel %vm647, %v7260, 0
        %v7486 = vsel %vm647, %v7333, 0
        %v7489 = vsel %vm647, %v7406, 0
        %v7492 = vsel %vm647, %v7479, 0
        %7494 = vmatprep.subr.mxu0 0.0
        %7495 = vmatpush1.msra.mxu0 %v6582
        %7496 = vmatprep.subr.mxu0 0.0
        %7497 = vmatpush1.msra.mxu0 0.0
        %7498 = vmatprep.subr.mxu0 0.0
        %7499 = vmatpush1.msra.mxu0 0.0
        %7500 = vmatprep.subr.mxu0 0.0
        %7501 = vmatpush1.msra.mxu0 0.0
        %7502 = vmatprep.subr.mxu0 0.0
        %7503 = vmatpush1.msra.mxu0 0.0
        %7504 = vmatprep.subr.mxu0 0.0
        %7505 = vmatpush1.msra.mxu0 0.0
        %7506 = vmatprep.subr.mxu0 0.0
        %7507 = vmatpush1.msra.mxu0 0.0
        %7508 = vmatprep.subr.mxu0 0.0
        %7509 = vmatpush1.msra.mxu0 0.0
        %7510 = vmatprep.subr.mxu0 0.0
        %7511 = vmatpush1.msra.mxu0 0.0
        %7512 = vmatprep.subr.mxu0 0.0
        %7513 = vmatpush1.msra.mxu0 0.0
        %7514 = vmatprep.subr.mxu0 0.0
        %7515 = vmatpush1.msra.mxu0 0.0
        %7516 = vmatprep.subr.mxu0 0.0
        %7517 = vmatpush1.msra.mxu0 0.0
        %7518 = vmatprep.subr.mxu0 0.0
        %7519 = vmatpush1.msra.mxu0 0.0
        %7520 = vmatprep.subr.mxu0 0.0
        %7521 = vmatpush1.msra.mxu0 0.0
        %7522 = vmatprep.subr.mxu0 0.0
        %7523 = vmatpush1.msra.mxu0 0.0
        %7524 = vmatprep.subr.mxu0 0.0
        %7525 = vmatpush1.msra.mxu0 0.0
        %7526 = vmatprep.subr.mxu0 0.0
        %7527 = vmatpush1.msra.mxu0 0.0
        %7528 = vmatprep.subr.mxu0 0.0
        %7529 = vmatpush1.msra.mxu0 0.0
        %7530 = vmatprep.subr.mxu0 0.0
        %7531 = vmatpush1.msra.mxu0 0.0
        %7532 = vmatprep.subr.mxu0 0.0
        %7533 = vmatpush1.msra.mxu0 0.0
        %7534 = vmatprep.subr.mxu0 0.0
        %7535 = vmatpush1.msra.mxu0 0.0
        %7536 = vmatprep.subr.mxu0 0.0
        %7537 = vmatpush1.msra.mxu0 0.0
        %7538 = vmatprep.subr.mxu0 0.0
        %7539 = vmatpush1.msra.mxu0 0.0
        %7540 = vmatprep.subr.mxu0 0.0
        %7541 = vmatpush1.msra.mxu0 0.0
        %7542 = vmatprep.subr.mxu0 0.0
        %7543 = vmatpush1.msra.mxu0 0.0
        %7544 = vmatprep.subr.mxu0 0.0
        %7545 = vmatpush1.msra.mxu0 0.0
        %7546 = vmatprep.subr.mxu0 0.0
        %7547 = vmatpush1.msra.mxu0 0.0
        %7548 = vmatprep.subr.mxu0 0.0
        %7549 = vmatpush1.msra.mxu0 0.0
        %7550 = vmatprep.subr.mxu0 0.0
        %7551 = vmatpush1.msra.mxu0 0.0
        %7552 = vmatprep.subr.mxu0 0.0
        %7553 = vmatpush1.msra.mxu0 0.0
        %7554 = vmatprep.subr.mxu0 0.0
        %7555 = vmatpush1.msra.mxu0 0.0
        %7556 = vmatprep.subr.mxu0 0.0
        %7557 = vmatpush1.msra.mxu0 0.0
        %7558 = vmatprep.mubr.f32.mxu0 0.0
        %7559 = vmatmul.mubr.f32.gmra.mrb[0].mxu0 %v7483
        %v7560 = vpop.f32.mrb[0].mxu0
        %v7561 = vadd.f32 0.0, %v7560
        %v7562 = vpop.f32.mrb[0].mxu0
        %7563 = vmatprep.mubr.f32.mxu0 0.0
        %7564 = vmatmul.mubr.f32.gmra.mrb[0].mxu0 %v7486
        %v7565 = vpop.f32.mrb[0].mxu0
        %v7566 = vadd.f32 0.0, %v7565
        %v7567 = vpop.f32.mrb[0].mxu0
        %7568 = vmatprep.mubr.f32.mxu0 0.0
        %7569 = vmatmul.mubr.f32.gmra.mrb[0].mxu0 %v7489
        %v7570 = vpop.f32.mrb[0].mxu0
        %v7571 = vadd.f32 0.0, %v7570
        %v7572 = vpop.f32.mrb[0].mxu0
        %7573 = vmatprep.mubr.f32.mxu0 0.0
        %7574 = vmatmul.mubr.f32.gmra.mrb[0].mxu0 %v7492
        %v7575 = vpop.f32.mrb[0].mxu0
        %v7576 = vadd.f32 0.0, %v7575
        %v7577 = vpop.f32.mrb[0].mxu0
        %7578 = vdwg.mxu0
        %v7579 = vadd.f32 %v6548, %v7561
        %v7580 = vadd.f32 %v6553, %v7566
        %v7581 = vadd.f32 %v6558, %v7571
        %v7582 = vadd.f32 %v6563, %v7576
        %s7583 = scalar_lea.vmem %s3, 480
        %v7584 = vld [vmem:[%s7583] sm:$0xff]
        %v7585 = vld [vmem:[%s7583 + $0x8] sm:$0xff]
        %v7586 = vld [vmem:[%s7583 + $0x10] sm:$0xff]
        %v7587 = vld [vmem:[%s7583 + $0x18] sm:$0xff]
        %s7588 = scalar_lea.vmem %s3, 608
        %v7589 = vld [vmem:[%s7588] sm:$0xff]
        %v7590 = vld [vmem:[%s7588 + $0x8] sm:$0xff]
        %v7591 = vld [vmem:[%s7588 + $0x10] sm:$0xff]
        %v7592 = vld [vmem:[%s7588 + $0x18] sm:$0xff]
        %s7593 = scalar_lea.vmem %s3, 736
        %v7594 = vld [vmem:[%s7593] sm:$0xff]
        %v7595 = vld [vmem:[%s7593 + $0x8] sm:$0xff]
        %v7596 = vld [vmem:[%s7593 + $0x10] sm:$0xff]
        %v7597 = vld [vmem:[%s7593 + $0x18] sm:$0xff]
        %s7598 = scalar_lea.vmem %s4, 56
        %v7599 = vld [vmem:[%s7598] sm:$0xff]
        %7600 = vmatprep.subr.mxu0 0.0
        %7601 = vmatpush1.msra.mxu0 %v7584
        %7602 = vmatprep.subr.mxu0 0.0
        %7603 = vmatpush1.msra.mxu0 %v7585
        %7604 = vmatprep.subr.mxu0 0.0
        %7605 = vmatpush1.msra.mxu0 %v7586
        %7606 = vmatprep.subr.mxu0 0.0
        %7607 = vmatpush1.msra.mxu0 %v7587
        %7608 = vmatprep.subr.mxu0 0.0
        %7609 = vmatpush1.msra.mxu0 0.0
        %7610 = vmatprep.subr.mxu0 0.0
        %7611 = vmatpush1.msra.mxu0 0.0
        %7612 = vmatprep.subr.mxu0 0.0
        %7613 = vmatpush1.msra.mxu0 0.0
        %7614 = vmatprep.subr.mxu0 0.0
        %7615 = vmatpush1.msra.mxu0 0.0
        %7616 = vmatprep.subr.mxu0 0.0
        %7617 = vmatpush1.msra.mxu0 0.0
        %7618 = vmatprep.subr.mxu0 0.0
        %7619 = vmatpush1.msra.mxu0 0.0
        %7620 = vmatprep.subr.mxu0 0.0
        %7621 = vmatpush1.msra.mxu0 0.0
        %7622 = vmatprep.subr.mxu0 0.0
        %7623 = vmatpush1.msra.mxu0 0.0
        %7624 = vmatprep.subr.mxu0 0.0
        %7625 = vmatpush1.msra.mxu0 0.0
        %7626 = vmatprep.subr.mxu0 0.0
        %7627 = vmatpush1.msra.mxu0 0.0
        %7628 = vmatprep.subr.mxu0 0.0
        %7629 = vmatpush1.msra.mxu0 0.0
        %7630 = vmatprep.subr.mxu0 0.0
        %7631 = vmatpush1.msra.mxu0 0.0
        %7632 = vmatprep.subr.mxu0 0.0
        %7633 = vmatpush1.msra.mxu0 0.0
        %7634 = vmatprep.subr.mxu0 0.0
        %7635 = vmatpush1.msra.mxu0 0.0
        %7636 = vmatprep.subr.mxu0 0.0
        %7637 = vmatpush1.msra.mxu0 0.0
        %7638 = vmatprep.subr.mxu0 0.0
        %7639 = vmatpush1.msra.mxu0 0.0
        %7640 = vmatprep.subr.mxu0 0.0
        %7641 = vmatpush1.msra.mxu0 0.0
        %7642 = vmatprep.subr.mxu0 0.0
        %7643 = vmatpush1.msra.mxu0 0.0
        %7644 = vmatprep.subr.mxu0 0.0
        %7645 = vmatpush1.msra.mxu0 0.0
        %7646 = vmatprep.subr.mxu0 0.0
        %7647 = vmatpush1.msra.mxu0 0.0
        %7648 = vmatprep.subr.mxu0 0.0
        %7649 = vmatpush1.msra.mxu0 0.0
        %7650 = vmatprep.subr.mxu0 0.0
        %7651 = vmatpush1.msra.mxu0 0.0
        %7652 = vmatprep.subr.mxu0 0.0
        %7653 = vmatpush1.msra.mxu0 0.0
        %7654 = vmatprep.subr.mxu0 0.0
        %7655 = vmatpush1.msra.mxu0 0.0
        %7656 = vmatprep.subr.mxu0 0.0
        %7657 = vmatpush1.msra.mxu0 0.0
        %7658 = vmatprep.subr.mxu0 0.0
        %7659 = vmatpush1.msra.mxu0 0.0
        %7660 = vmatprep.subr.mxu0 0.0
        %7661 = vmatpush1.msra.mxu0 0.0
        %7662 = vmatprep.subr.mxu0 0.0
        %7663 = vmatpush1.msra.mxu0 0.0
        %7664 = vmatprep.mubr.f32.mxu0 0.0
        %7665 = vmatmul.mubr.f32.gmra.mrb[0].mxu0 %v4534
        %v7666 = vpop.f32.mrb[0].mxu0
        %v7667 = vadd.f32 0.0, %v7666
        %v7668 = vpop.f32.mrb[0].mxu0
        %7669 = vmatprep.mubr.f32.mxu0 0.0
        %7670 = vmatmul.mubr.f32.gmra.mrb[0].mxu0 %v4537
        %v7671 = vpop.f32.mrb[0].mxu0
        %v7672 = vadd.f32 0.0, %v7671
        %v7673 = vpop.f32.mrb[0].mxu0
        %7674 = vmatprep.mubr.f32.mxu0 0.0
        %7675 = vmatmul.mubr.f32.gmra.mrb[0].mxu0 %v4540
        %v7676 = vpop.f32.mrb[0].mxu0
        %v7677 = vadd.f32 0.0, %v7676
        %v7678 = vpop.f32.mrb[0].mxu0
        %7679 = vmatprep.mubr.f32.mxu0 0.0
        %7680 = vmatmul.mubr.f32.gmra.mrb[0].mxu0 %v4543
        %v7681 = vpop.f32.mrb[0].mxu0
        %v7682 = vadd.f32 0.0, %v7681
        %v7683 = vpop.f32.mrb[0].mxu0
        %7684 = vdwg.mxu0
        %7685 = vmatprep.subr.mxu0 0.0
        %7686 = vmatpush1.msra.mxu0 %v7589
        %7687 = vmatprep.subr.mxu0 0.0
        %7688 = vmatpush1.msra.mxu0 %v7590
        %7689 = vmatprep.subr.mxu0 0.0
        %7690 = vmatpush1.msra.mxu0 %v7591
        %7691 = vmatprep.subr.mxu0 0.0
        %7692 = vmatpush1.msra.mxu0 %v7592
        %7693 = vmatprep.subr.mxu0 0.0
        %7694 = vmatpush1.msra.mxu0 0.0
        %7695 = vmatprep.subr.mxu0 0.0
        %7696 = vmatpush1.msra.mxu0 0.0
        %7697 = vmatprep.subr.mxu0 0.0
        %7698 = vmatpush1.msra.mxu0 0.0
        %7699 = vmatprep.subr.mxu0 0.0
        %7700 = vmatpush1.msra.mxu0 0.0
        %7701 = vmatprep.subr.mxu0 0.0
        %7702 = vmatpush1.msra.mxu0 0.0
        %7703 = vmatprep.subr.mxu0 0.0
        %7704 = vmatpush1.msra.mxu0 0.0
        %7705 = vmatprep.subr.mxu0 0.0
        %7706 = vmatpush1.msra.mxu0 0.0
        %7707 = vmatprep.subr.mxu0 0.0
        %7708 = vmatpush1.msra.mxu0 0.0
        %7709 = vmatprep.subr.mxu0 0.0
        %7710 = vmatpush1.msra.mxu0 0.0
        %7711 = vmatprep.subr.mxu0 0.0
        %7712 = vmatpush1.msra.mxu0 0.0
        %7713 = vmatprep.subr.mxu0 0.0
        %7714 = vmatpush1.msra.mxu0 0.0
        %7715 = vmatprep.subr.mxu0 0.0
        %7716 = vmatpush1.msra.mxu0 0.0
        %7717 = vmatprep.subr.mxu0 0.0
        %7718 = vmatpush1.msra.mxu0 0.0
        %7719 = vmatprep.subr.mxu0 0.0
        %7720 = vmatpush1.msra.mxu0 0.0
        %7721 = vmatprep.subr.mxu0 0.0
        %7722 = vmatpush1.msra.mxu0 0.0
        %7723 = vmatprep.subr.mxu0 0.0
        %7724 = vmatpush1.msra.mxu0 0.0
        %7725 = vmatprep.subr.mxu0 0.0
        %7726 = vmatpush1.msra.mxu0 0.0
        %7727 = vmatprep.subr.mxu0 0.0
        %7728 = vmatpush1.msra.mxu0 0.0
        %7729 = vmatprep.subr.mxu0 0.0
        %7730 = vmatpush1.msra.mxu0 0.0
        %7731 = vmatprep.subr.mxu0 0.0
        %7732 = vmatpush1.msra.mxu0 0.0
        %7733 = vmatprep.subr.mxu0 0.0
        %7734 = vmatpush1.msra.mxu0 0.0
        %7735 = vmatprep.subr.mxu0 0.0
        %7736 = vmatpush1.msra.mxu0 0.0
        %7737 = vmatprep.subr.mxu0 0.0
        %7738 = vmatpush1.msra.mxu0 0.0
        %7739 = vmatprep.subr.mxu0 0.0
        %7740 = vmatpush1.msra.mxu0 0.0
        %7741 = vmatprep.subr.mxu0 0.0
        %7742 = vmatpush1.msra.mxu0 0.0
        %7743 = vmatprep.subr.mxu0 0.0
        %7744 = vmatpush1.msra.mxu0 0.0
        %7745 = vmatprep.subr.mxu0 0.0
        %7746 = vmatpush1.msra.mxu0 0.0
        %7747 = vmatprep.subr.mxu0 0.0
        %7748 = vmatpush1.msra.mxu0 0.0
        %7749 = vmatprep.mubr.f32.mxu0 0.0
        %7750 = vmatmul.mubr.f32.gmra.mrb[0].mxu0 %v4631
        %v7751 = vpop.f32.mrb[0].mxu0
        %v7752 = vadd.f32 0.0, %v7751
        %v7753 = vpop.f32.mrb[0].mxu0
        %7754 = vmatprep.mubr.f32.mxu0 0.0
        %7755 = vmatmul.mubr.f32.gmra.mrb[0].mxu0 %v4634
        %v7756 = vpop.f32.mrb[0].mxu0
        %v7757 = vadd.f32 0.0, %v7756
        %v7758 = vpop.f32.mrb[0].mxu0
        %7759 = vmatprep.mubr.f32.mxu0 0.0
        %7760 = vmatmul.mubr.f32.gmra.mrb[0].mxu0 %v4637
        %v7761 = vpop.f32.mrb[0].mxu0
        %v7762 = vadd.f32 0.0, %v7761
        %v7763 = vpop.f32.mrb[0].mxu0
        %7764 = vmatprep.mubr.f32.mxu0 0.0
        %7765 = vmatmul.mubr.f32.gmra.mrb[0].mxu0 %v4640
        %v7766 = vpop.f32.mrb[0].mxu0
        %v7767 = vadd.f32 0.0, %v7766
        %v7768 = vpop.f32.mrb[0].mxu0
        %7769 = vdwg.mxu0
        %7770 = vmatprep.subr.mxu0 0.0
        %7771 = vmatpush1.msra.mxu0 %v7594
        %7772 = vmatprep.subr.mxu0 0.0
        %7773 = vmatpush1.msra.mxu0 %v7595
        %7774 = vmatprep.subr.mxu0 0.0
        %7775 = vmatpush1.msra.mxu0 %v7596
        %7776 = vmatprep.subr.mxu0 0.0
        %7777 = vmatpush1.msra.mxu0 %v7597
        %7778 = vmatprep.subr.mxu0 0.0
        %7779 = vmatpush1.msra.mxu0 0.0
        %7780 = vmatprep.subr.mxu0 0.0
        %7781 = vmatpush1.msra.mxu0 0.0
        %7782 = vmatprep.subr.mxu0 0.0
        %7783 = vmatpush1.msra.mxu0 0.0
        %7784 = vmatprep.subr.mxu0 0.0
        %7785 = vmatpush1.msra.mxu0 0.0
        %7786 = vmatprep.subr.mxu0 0.0
        %7787 = vmatpush1.msra.mxu0 0.0
        %7788 = vmatprep.subr.mxu0 0.0
        %7789 = vmatpush1.msra.mxu0 0.0
        %7790 = vmatprep.subr.mxu0 0.0
        %7791 = vmatpush1.msra.mxu0 0.0
        %7792 = vmatprep.subr.mxu0 0.0
        %7793 = vmatpush1.msra.mxu0 0.0
        %7794 = vmatprep.subr.mxu0 0.0
        %7795 = vmatpush1.msra.mxu0 0.0
        %7796 = vmatprep.subr.mxu0 0.0
        %7797 = vmatpush1.msra.mxu0 0.0
        %7798 = vmatprep.subr.mxu0 0.0
        %7799 = vmatpush1.msra.mxu0 0.0
        %7800 = vmatprep.subr.mxu0 0.0
        %7801 = vmatpush1.msra.mxu0 0.0
        %7802 = vmatprep.subr.mxu0 0.0
        %7803 = vmatpush1.msra.mxu0 0.0
        %7804 = vmatprep.subr.mxu0 0.0
        %7805 = vmatpush1.msra.mxu0 0.0
        %7806 = vmatprep.subr.mxu0 0.0
        %7807 = vmatpush1.msra.mxu0 0.0
        %7808 = vmatprep.subr.mxu0 0.0
        %7809 = vmatpush1.msra.mxu0 0.0
        %7810 = vmatprep.subr.mxu0 0.0
        %7811 = vmatpush1.msra.mxu0 0.0
        %7812 = vmatprep.subr.mxu0 0.0
        %7813 = vmatpush1.msra.mxu0 0.0
        %7814 = vmatprep.subr.mxu0 0.0
        %7815 = vmatpush1.msra.mxu0 0.0
        %7816 = vmatprep.subr.mxu0 0.0
        %7817 = vmatpush1.msra.mxu0 0.0
        %7818 = vmatprep.subr.mxu0 0.0
        %7819 = vmatpush1.msra.mxu0 0.0
        %7820 = vmatprep.subr.mxu0 0.0
        %7821 = vmatpush1.msra.mxu0 0.0
        %7822 = vmatprep.subr.mxu0 0.0
        %7823 = vmatpush1.msra.mxu0 0.0
        %7824 = vmatprep.subr.mxu0 0.0
        %7825 = vmatpush1.msra.mxu0 0.0
        %7826 = vmatprep.subr.mxu0 0.0
        %7827 = vmatpush1.msra.mxu0 0.0
        %7828 = vmatprep.subr.mxu0 0.0
        %7829 = vmatpush1.msra.mxu0 0.0
        %7830 = vmatprep.subr.mxu0 0.0
        %7831 = vmatpush1.msra.mxu0 0.0
        %7832 = vmatprep.subr.mxu0 0.0
        %7833 = vmatpush1.msra.mxu0 0.0
        %7834 = vmatprep.mubr.f32.mxu0 0.0
        %7835 = vmatmul.mubr.f32.gmra.mrb[0].mxu0 %v4631
        %v7836 = vpop.f32.mrb[0].mxu0
        %v7837 = vadd.f32 0.0, %v7836
        %v7838 = vpop.f32.mrb[0].mxu0
        %7839 = vmatprep.mubr.f32.mxu0 0.0
        %7840 = vmatmul.mubr.f32.gmra.mrb[0].mxu0 %v4634
        %v7841 = vpop.f32.mrb[0].mxu0
        %v7842 = vadd.f32 0.0, %v7841
        %v7843 = vpop.f32.mrb[0].mxu0
        %7844 = vmatprep.mubr.f32.mxu0 0.0
        %7845 = vmatmul.mubr.f32.gmra.mrb[0].mxu0 %v4637
        %v7846 = vpop.f32.mrb[0].mxu0
        %v7847 = vadd.f32 0.0, %v7846
        %v7848 = vpop.f32.mrb[0].mxu0
        %7849 = vmatprep.mubr.f32.mxu0 0.0
        %7850 = vmatmul.mubr.f32.gmra.mrb[0].mxu0 %v4640
        %v7851 = vpop.f32.mrb[0].mxu0
        %v7852 = vadd.f32 0.0, %v7851
        %v7853 = vpop.f32.mrb[0].mxu0
        %7854 = vdwg.mxu0
        %v7856 = vsel %vm647, %v7667, 0
        %v7859 = vsel %vm647, %v7752, 0
        %7861 = vmatprep.subr.mxu0 0.0
        %7862 = vmatpush1.xpose.msra.mxu0 %v7859
        %7863 = vmatprep.subr.mxu0 0.0
        %7864 = vmatpush1.xpose.msra.mxu0 0.0
        %7865 = vmatprep.subr.mxu0 0.0
        %7866 = vmatpush1.xpose.msra.mxu0 0.0
        %7867 = vmatprep.subr.mxu0 0.0
        %7868 = vmatpush1.xpose.msra.mxu0 0.0
        %7869 = vmatprep.subr.mxu0 0.0
        %7870 = vmatpush1.xpose.msra.mxu0 0.0
        %7871 = vmatprep.subr.mxu0 0.0
        %7872 = vmatpush1.xpose.msra.mxu0 0.0
        %7873 = vmatprep.subr.mxu0 0.0
        %7874 = vmatpush1.xpose.msra.mxu0 0.0
        %7875 = vmatprep.subr.mxu0 0.0
        %7876 = vmatpush1.xpose.msra.mxu0 0.0
        %7877 = vmatprep.subr.mxu0 0.0
        %7878 = vmatpush1.xpose.msra.mxu0 0.0
        %7879 = vmatprep.subr.mxu0 0.0
        %7880 = vmatpush1.xpose.msra.mxu0 0.0
        %7881 = vmatprep.subr.mxu0 0.0
        %7882 = vmatpush1.xpose.msra.mxu0 0.0
        %7883 = vmatprep.subr.mxu0 0.0
        %7884 = vmatpush1.xpose.msra.mxu0 0.0
        %7885 = vmatprep.subr.mxu0 0.0
        %7886 = vmatpush1.xpose.msra.mxu0 0.0
        %7887 = vmatprep.subr.mxu0 0.0
        %7888 = vmatpush1.xpose.msra.mxu0 0.0
        %7889 = vmatprep.subr.mxu0 0.0
        %7890 = vmatpush1.xpose.msra.mxu0 0.0
        %7891 = vmatprep.subr.mxu0 0.0
        %7892 = vmatpush1.xpose.msra.mxu0 0.0
        %7893 = vmatprep.subr.mxu0 0.0
        %7894 = vmatpush1.xpose.msra.mxu0 0.0
        %7895 = vmatprep.subr.mxu0 0.0
        %7896 = vmatpush1.xpose.msra.mxu0 0.0
        %7897 = vmatprep.subr.mxu0 0.0
        %7898 = vmatpush1.xpose.msra.mxu0 0.0
        %7899 = vmatprep.subr.mxu0 0.0
        %7900 = vmatpush1.xpose.msra.mxu0 0.0
        %7901 = vmatprep.subr.mxu0 0.0
        %7902 = vmatpush1.xpose.msra.mxu0 0.0
        %7903 = vmatprep.subr.mxu0 0.0
        %7904 = vmatpush1.xpose.msra.mxu0 0.0
        %7905 = vmatprep.subr.mxu0 0.0
        %7906 = vmatpush1.xpose.msra.mxu0 0.0
        %7907 = vmatprep.subr.mxu0 0.0
        %7908 = vmatpush1.xpose.msra.mxu0 0.0
        %7909 = vmatprep.subr.mxu0 0.0
        %7910 = vmatpush1.xpose.msra.mxu0 0.0
        %7911 = vmatprep.subr.mxu0 0.0
        %7912 = vmatpush1.xpose.msra.mxu0 0.0
        %7913 = vmatprep.subr.mxu0 0.0
        %7914 = vmatpush1.xpose.msra.mxu0 0.0
        %7915 = vmatprep.subr.mxu0 0.0
        %7916 = vmatpush1.xpose.msra.mxu0 0.0
        %7917 = vmatprep.subr.mxu0 0.0
        %7918 = vmatpush1.xpose.msra.mxu0 0.0
        %7919 = vmatprep.subr.mxu0 0.0
        %7920 = vmatpush1.xpose.msra.mxu0 0.0
        %7921 = vmatprep.subr.mxu0 0.0
        %7922 = vmatpush1.xpose.msra.mxu0 0.0
        %7923 = vmatprep.subr.mxu0 0.0
        %7924 = vmatpush1.xpose.msra.mxu0 0.0
        %7925 = vmatprep.mubr.f32.mxu0 0.0
        %7926 = vmatmul.mubr.f32.gmra.mrb[0].mxu0 %v7856
        %v7927 = vpop.f32.mrb[0].mxu0
        %v7928 = vadd.f32 0.0, %v7927
        %v7929 = vpop.f32.mrb[0].mxu0
        %7930 = vdwg.mxu0
        %v7932 = vsel %vm647, %v7672, 0
        %v7935 = vsel %vm647, %v7757, 0
        %7937 = vmatprep.subr.mxu0 0.0
        %7938 = vmatpush1.xpose.msra.mxu0 %v7935
        %7939 = vmatprep.subr.mxu0 0.0
        %7940 = vmatpush1.xpose.msra.mxu0 0.0
        %7941 = vmatprep.subr.mxu0 0.0
        %7942 = vmatpush1.xpose.msra.mxu0 0.0
        %7943 = vmatprep.subr.mxu0 0.0
        %7944 = vmatpush1.xpose.msra.mxu0 0.0
        %7945 = vmatprep.subr.mxu0 0.0
        %7946 = vmatpush1.xpose.msra.mxu0 0.0
        %7947 = vmatprep.subr.mxu0 0.0
        %7948 = vmatpush1.xpose.msra.mxu0 0.0
        %7949 = vmatprep.subr.mxu0 0.0
        %7950 = vmatpush1.xpose.msra.mxu0 0.0
        %7951 = vmatprep.subr.mxu0 0.0
        %7952 = vmatpush1.xpose.msra.mxu0 0.0
        %7953 = vmatprep.subr.mxu0 0.0
        %7954 = vmatpush1.xpose.msra.mxu0 0.0
        %7955 = vmatprep.subr.mxu0 0.0
        %7956 = vmatpush1.xpose.msra.mxu0 0.0
        %7957 = vmatprep.subr.mxu0 0.0
        %7958 = vmatpush1.xpose.msra.mxu0 0.0
        %7959 = vmatprep.subr.mxu0 0.0
        %7960 = vmatpush1.xpose.msra.mxu0 0.0
        %7961 = vmatprep.subr.mxu0 0.0
        %7962 = vmatpush1.xpose.msra.mxu0 0.0
        %7963 = vmatprep.subr.mxu0 0.0
        %7964 = vmatpush1.xpose.msra.mxu0 0.0
        %7965 = vmatprep.subr.mxu0 0.0
        %7966 = vmatpush1.xpose.msra.mxu0 0.0
        %7967 = vmatprep.subr.mxu0 0.0
        %7968 = vmatpush1.xpose.msra.mxu0 0.0
        %7969 = vmatprep.subr.mxu0 0.0
        %7970 = vmatpush1.xpose.msra.mxu0 0.0
        %7971 = vmatprep.subr.mxu0 0.0
        %7972 = vmatpush1.xpose.msra.mxu0 0.0
        %7973 = vmatprep.subr.mxu0 0.0
        %7974 = vmatpush1.xpose.msra.mxu0 0.0
        %7975 = vmatprep.subr.mxu0 0.0
        %7976 = vmatpush1.xpose.msra.mxu0 0.0
        %7977 = vmatprep.subr.mxu0 0.0
        %7978 = vmatpush1.xpose.msra.mxu0 0.0
        %7979 = vmatprep.subr.mxu0 0.0
        %7980 = vmatpush1.xpose.msra.mxu0 0.0
        %7981 = vmatprep.subr.mxu0 0.0
        %7982 = vmatpush1.xpose.msra.mxu0 0.0
        %7983 = vmatprep.subr.mxu0 0.0
        %7984 = vmatpush1.xpose.msra.mxu0 0.0
        %7985 = vmatprep.subr.mxu0 0.0
        %7986 = vmatpush1.xpose.msra.mxu0 0.0
        %7987 = vmatprep.subr.mxu0 0.0
        %7988 = vmatpush1.xpose.msra.mxu0 0.0
        %7989 = vmatprep.subr.mxu0 0.0
        %7990 = vmatpush1.xpose.msra.mxu0 0.0
        %7991 = vmatprep.subr.mxu0 0.0
        %7992 = vmatpush1.xpose.msra.mxu0 0.0
        %7993 = vmatprep.subr.mxu0 0.0
        %7994 = vmatpush1.xpose.msra.mxu0 0.0
        %7995 = vmatprep.subr.mxu0 0.0
        %7996 = vmatpush1.xpose.msra.mxu0 0.0
        %7997 = vmatprep.subr.mxu0 0.0
        %7998 = vmatpush1.xpose.msra.mxu0 0.0
        %7999 = vmatprep.subr.mxu0 0.0
        %8000 = vmatpush1.xpose.msra.mxu0 0.0
        %8001 = vmatprep.mubr.f32.mxu0 0.0
        %8002 = vmatmul.mubr.f32.gmra.mrb[0].mxu0 %v7932
        %v8003 = vpop.f32.mrb[0].mxu0
        %v8004 = vadd.f32 0.0, %v8003
        %v8005 = vpop.f32.mrb[0].mxu0
        %8006 = vdwg.mxu0
        %v8008 = vsel %vm647, %v7677, 0
        %v8011 = vsel %vm647, %v7762, 0
        %8013 = vmatprep.subr.mxu0 0.0
        %8014 = vmatpush1.xpose.msra.mxu0 %v8011
        %8015 = vmatprep.subr.mxu0 0.0
        %8016 = vmatpush1.xpose.msra.mxu0 0.0
        %8017 = vmatprep.subr.mxu0 0.0
        %8018 = vmatpush1.xpose.msra.mxu0 0.0
        %8019 = vmatprep.subr.mxu0 0.0
        %8020 = vmatpush1.xpose.msra.mxu0 0.0
        %8021 = vmatprep.subr.mxu0 0.0
        %8022 = vmatpush1.xpose.msra.mxu0 0.0
        %8023 = vmatprep.subr.mxu0 0.0
        %8024 = vmatpush1.xpose.msra.mxu0 0.0
        %8025 = vmatprep.subr.mxu0 0.0
        %8026 = vmatpush1.xpose.msra.mxu0 0.0
        %8027 = vmatprep.subr.mxu0 0.0
        %8028 = vmatpush1.xpose.msra.mxu0 0.0
        %8029 = vmatprep.subr.mxu0 0.0
        %8030 = vmatpush1.xpose.msra.mxu0 0.0
        %8031 = vmatprep.subr.mxu0 0.0
        %8032 = vmatpush1.xpose.msra.mxu0 0.0
        %8033 = vmatprep.subr.mxu0 0.0
        %8034 = vmatpush1.xpose.msra.mxu0 0.0
        %8035 = vmatprep.subr.mxu0 0.0
        %8036 = vmatpush1.xpose.msra.mxu0 0.0
        %8037 = vmatprep.subr.mxu0 0.0
        %8038 = vmatpush1.xpose.msra.mxu0 0.0
        %8039 = vmatprep.subr.mxu0 0.0
        %8040 = vmatpush1.xpose.msra.mxu0 0.0
        %8041 = vmatprep.subr.mxu0 0.0
        %8042 = vmatpush1.xpose.msra.mxu0 0.0
        %8043 = vmatprep.subr.mxu0 0.0
        %8044 = vmatpush1.xpose.msra.mxu0 0.0
        %8045 = vmatprep.subr.mxu0 0.0
        %8046 = vmatpush1.xpose.msra.mxu0 0.0
        %8047 = vmatprep.subr.mxu0 0.0
        %8048 = vmatpush1.xpose.msra.mxu0 0.0
        %8049 = vmatprep.subr.mxu0 0.0
        %8050 = vmatpush1.xpose.msra.mxu0 0.0
        %8051 = vmatprep.subr.mxu0 0.0
        %8052 = vmatpush1.xpose.msra.mxu0 0.0
        %8053 = vmatprep.subr.mxu0 0.0
        %8054 = vmatpush1.xpose.msra.mxu0 0.0
        %8055 = vmatprep.subr.mxu0 0.0
        %8056 = vmatpush1.xpose.msra.mxu0 0.0
        %8057 = vmatprep.subr.mxu0 0.0
        %8058 = vmatpush1.xpose.msra.mxu0 0.0
        %8059 = vmatprep.subr.mxu0 0.0
        %8060 = vmatpush1.xpose.msra.mxu0 0.0
        %8061 = vmatprep.subr.mxu0 0.0
        %8062 = vmatpush1.xpose.msra.mxu0 0.0
        %8063 = vmatprep.subr.mxu0 0.0
        %8064 = vmatpush1.xpose.msra.mxu0 0.0
        %8065 = vmatprep.subr.mxu0 0.0
        %8066 = vmatpush1.xpose.msra.mxu0 0.0
        %8067 = vmatprep.subr.mxu0 0.0
        %8068 = vmatpush1.xpose.msra.mxu0 0.0
        %8069 = vmatprep.subr.mxu0 0.0
        %8070 = vmatpush1.xpose.msra.mxu0 0.0
        %8071 = vmatprep.subr.mxu0 0.0
        %8072 = vmatpush1.xpose.msra.mxu0 0.0
        %8073 = vmatprep.subr.mxu0 0.0
        %8074 = vmatpush1.xpose.msra.mxu0 0.0
        %8075 = vmatprep.subr.mxu0 0.0
        %8076 = vmatpush1.xpose.msra.mxu0 0.0
        %8077 = vmatprep.mubr.f32.mxu0 0.0
        %8078 = vmatmul.mubr.f32.gmra.mrb[0].mxu0 %v8008
        %v8079 = vpop.f32.mrb[0].mxu0
        %v8080 = vadd.f32 0.0, %v8079
        %v8081 = vpop.f32.mrb[0].mxu0
        %8082 = vdwg.mxu0
        %v8084 = vsel %vm647, %v7682, 0
        %v8087 = vsel %vm647, %v7767, 0
        %8089 = vmatprep.subr.mxu0 0.0
        %8090 = vmatpush1.xpose.msra.mxu0 %v8087
        %8091 = vmatprep.subr.mxu0 0.0
        %8092 = vmatpush1.xpose.msra.mxu0 0.0
        %8093 = vmatprep.subr.mxu0 0.0
        %8094 = vmatpush1.xpose.msra.mxu0 0.0
        %8095 = vmatprep.subr.mxu0 0.0
        %8096 = vmatpush1.xpose.msra.mxu0 0.0
        %8097 = vmatprep.subr.mxu0 0.0
        %8098 = vmatpush1.xpose.msra.mxu0 0.0
        %8099 = vmatprep.subr.mxu0 0.0
        %8100 = vmatpush1.xpose.msra.mxu0 0.0
        %8101 = vmatprep.subr.mxu0 0.0
        %8102 = vmatpush1.xpose.msra.mxu0 0.0
        %8103 = vmatprep.subr.mxu0 0.0
        %8104 = vmatpush1.xpose.msra.mxu0 0.0
        %8105 = vmatprep.subr.mxu0 0.0
        %8106 = vmatpush1.xpose.msra.mxu0 0.0
        %8107 = vmatprep.subr.mxu0 0.0
        %8108 = vmatpush1.xpose.msra.mxu0 0.0
        %8109 = vmatprep.subr.mxu0 0.0
        %8110 = vmatpush1.xpose.msra.mxu0 0.0
        %8111 = vmatprep.subr.mxu0 0.0
        %8112 = vmatpush1.xpose.msra.mxu0 0.0
        %8113 = vmatprep.subr.mxu0 0.0
        %8114 = vmatpush1.xpose.msra.mxu0 0.0
        %8115 = vmatprep.subr.mxu0 0.0
        %8116 = vmatpush1.xpose.msra.mxu0 0.0
        %8117 = vmatprep.subr.mxu0 0.0
        %8118 = vmatpush1.xpose.msra.mxu0 0.0
        %8119 = vmatprep.subr.mxu0 0.0
        %8120 = vmatpush1.xpose.msra.mxu0 0.0
        %8121 = vmatprep.subr.mxu0 0.0
        %8122 = vmatpush1.xpose.msra.mxu0 0.0
        %8123 = vmatprep.subr.mxu0 0.0
        %8124 = vmatpush1.xpose.msra.mxu0 0.0
        %8125 = vmatprep.subr.mxu0 0.0
        %8126 = vmatpush1.xpose.msra.mxu0 0.0
        %8127 = vmatprep.subr.mxu0 0.0
        %8128 = vmatpush1.xpose.msra.mxu0 0.0
        %8129 = vmatprep.subr.mxu0 0.0
        %8130 = vmatpush1.xpose.msra.mxu0 0.0
        %8131 = vmatprep.subr.mxu0 0.0
        %8132 = vmatpush1.xpose.msra.mxu0 0.0
        %8133 = vmatprep.subr.mxu0 0.0
        %8134 = vmatpush1.xpose.msra.mxu0 0.0
        %8135 = vmatprep.subr.mxu0 0.0
        %8136 = vmatpush1.xpose.msra.mxu0 0.0
        %8137 = vmatprep.subr.mxu0 0.0
        %8138 = vmatpush1.xpose.msra.mxu0 0.0
        %8139 = vmatprep.subr.mxu0 0.0
        %8140 = vmatpush1.xpose.msra.mxu0 0.0
        %8141 = vmatprep.subr.mxu0 0.0
        %8142 = vmatpush1.xpose.msra.mxu0 0.0
        %8143 = vmatprep.subr.mxu0 0.0
        %8144 = vmatpush1.xpose.msra.mxu0 0.0
        %8145 = vmatprep.subr.mxu0 0.0
        %8146 = vmatpush1.xpose.msra.mxu0 0.0
        %8147 = vmatprep.subr.mxu0 0.0
        %8148 = vmatpush1.xpose.msra.mxu0 0.0
        %8149 = vmatprep.subr.mxu0 0.0
        %8150 = vmatpush1.xpose.msra.mxu0 0.0
        %8151 = vmatprep.subr.mxu0 0.0
        %8152 = vmatpush1.xpose.msra.mxu0 0.0
        %8153 = vmatprep.mubr.f32.mxu0 0.0
        %8154 = vmatmul.mubr.f32.gmra.mrb[0].mxu0 %v8084
        %v8155 = vpop.f32.mrb[0].mxu0
        %v8156 = vadd.f32 0.0, %v8155
        %v8157 = vpop.f32.mrb[0].mxu0
        %8158 = vdwg.mxu0
        %v8159 = vmul.f32 %v7928, 0.35355338
        %v8160 = vmul.f32 %v8004, 0.35355338
        %v8161 = vmul.f32 %v8080, 0.35355338
        %v8162 = vmul.f32 %v8156, 0.35355338
        %v8163 = vsel %vm647, %v8159, -inf
        %8164 = vmax.xlane.f32.xlu0 %v8163
        %v8165 = vpop.xlane.xlu0 %8164
        %v8166 = vsel %vm647, %v8160, -inf
        %8167 = vmax.xlane.f32.xlu0 %v8166
        %v8168 = vpop.xlane.xlu0 %8167
        %v8169 = vsel %vm647, %v8161, -inf
        %8170 = vmax.xlane.f32.xlu0 %v8169
        %v8171 = vpop.xlane.xlu0 %8170
        %v8172 = vsel %vm647, %v8162, -inf
        %8173 = vmax.xlane.f32.xlu0 %v8172
        %v8174 = vpop.xlane.xlu0 %8173
        %v8175 = vsub.f32 %v8159, %v8165
        %v8176 = vsub.f32 %v8160, %v8168
        %v8177 = vsub.f32 %v8161, %v8171
        %v8178 = vsub.f32 %v8162, %v8174
        %v8179 = vmul.f32 %v8175, 1.442695
        %v8180 = vpow.pop %v8179
        %v8181 = vmul.f32 %v8176, 1.442695
        %v8182 = vpow.pop %v8181
        %v8183 = vmul.f32 %v8177, 1.442695
        %v8184 = vpow.pop %v8183
        %v8185 = vmul.f32 %v8178, 1.442695
        %v8186 = vpow.pop %v8185
        %v8187 = vsel %vm647, %v8180, 0.0
        %8188 = vadd.xlane.f32.xlu0 %v8187
        %v8189 = vpop.xlane.xlu0 %8188
        %v8190 = vsel %vm647, %v8182, 0.0
        %8191 = vadd.xlane.f32.xlu0 %v8190
        %v8192 = vpop.xlane.xlu0 %8191
        %v8193 = vsel %vm647, %v8184, 0.0
        %8194 = vadd.xlane.f32.xlu0 %v8193
        %v8195 = vpop.xlane.xlu0 %8194
        %v8196 = vsel %vm647, %v8186, 0.0
        %8197 = vadd.xlane.f32.xlu0 %v8196
        %v8198 = vpop.xlane.xlu0 %8197
        %v8199 = vrcp.pop %v8189
        %v8200 = vrcp.pop %v8192
        %v8201 = vrcp.pop %v8195
        %v8202 = vrcp.pop %v8198
        %v8203 = vmul.f32 %v8180, %v8199
        %v8204 = vmul.f32 %v8182, %v8200
        %v8205 = vmul.f32 %v8184, %v8201
        %v8206 = vmul.f32 %v8186, %v8202
        %v8208 = vsel %vm647, %v8203, 0
        %8210 = vmatprep.subr.mxu0 0.0
        %8211 = vmatpush1.msra.mxu0 %v7837
        %8212 = vmatprep.subr.mxu0 0.0
        %8213 = vmatpush1.msra.mxu0 0.0
        %8214 = vmatprep.subr.mxu0 0.0
        %8215 = vmatpush1.msra.mxu0 0.0
        %8216 = vmatprep.subr.mxu0 0.0
        %8217 = vmatpush1.msra.mxu0 0.0
        %8218 = vmatprep.subr.mxu0 0.0
        %8219 = vmatpush1.msra.mxu0 0.0
        %8220 = vmatprep.subr.mxu0 0.0
        %8221 = vmatpush1.msra.mxu0 0.0
        %8222 = vmatprep.subr.mxu0 0.0
        %8223 = vmatpush1.msra.mxu0 0.0
        %8224 = vmatprep.subr.mxu0 0.0
        %8225 = vmatpush1.msra.mxu0 0.0
        %8226 = vmatprep.subr.mxu0 0.0
        %8227 = vmatpush1.msra.mxu0 0.0
        %8228 = vmatprep.subr.mxu0 0.0
        %8229 = vmatpush1.msra.mxu0 0.0
        %8230 = vmatprep.subr.mxu0 0.0
        %8231 = vmatpush1.msra.mxu0 0.0
        %8232 = vmatprep.subr.mxu0 0.0
        %8233 = vmatpush1.msra.mxu0 0.0
        %8234 = vmatprep.subr.mxu0 0.0
        %8235 = vmatpush1.msra.mxu0 0.0
        %8236 = vmatprep.subr.mxu0 0.0
        %8237 = vmatpush1.msra.mxu0 0.0
        %8238 = vmatprep.subr.mxu0 0.0
        %8239 = vmatpush1.msra.mxu0 0.0
        %8240 = vmatprep.subr.mxu0 0.0
        %8241 = vmatpush1.msra.mxu0 0.0
        %8242 = vmatprep.subr.mxu0 0.0
        %8243 = vmatpush1.msra.mxu0 0.0
        %8244 = vmatprep.subr.mxu0 0.0
        %8245 = vmatpush1.msra.mxu0 0.0
        %8246 = vmatprep.subr.mxu0 0.0
        %8247 = vmatpush1.msra.mxu0 0.0
        %8248 = vmatprep.subr.mxu0 0.0
        %8249 = vmatpush1.msra.mxu0 0.0
        %8250 = vmatprep.subr.mxu0 0.0
        %8251 = vmatpush1.msra.mxu0 0.0
        %8252 = vmatprep.subr.mxu0 0.0
        %8253 = vmatpush1.msra.mxu0 0.0
        %8254 = vmatprep.subr.mxu0 0.0
        %8255 = vmatpush1.msra.mxu0 0.0
        %8256 = vmatprep.subr.mxu0 0.0
        %8257 = vmatpush1.msra.mxu0 0.0
        %8258 = vmatprep.subr.mxu0 0.0
        %8259 = vmatpush1.msra.mxu0 0.0
        %8260 = vmatprep.subr.mxu0 0.0
        %8261 = vmatpush1.msra.mxu0 0.0
        %8262 = vmatprep.subr.mxu0 0.0
        %8263 = vmatpush1.msra.mxu0 0.0
        %8264 = vmatprep.subr.mxu0 0.0
        %8265 = vmatpush1.msra.mxu0 0.0
        %8266 = vmatprep.subr.mxu0 0.0
        %8267 = vmatpush1.msra.mxu0 0.0
        %8268 = vmatprep.subr.mxu0 0.0
        %8269 = vmatpush1.msra.mxu0 0.0
        %8270 = vmatprep.subr.mxu0 0.0
        %8271 = vmatpush1.msra.mxu0 0.0
        %8272 = vmatprep.subr.mxu0 0.0
        %8273 = vmatpush1.msra.mxu0 0.0
        %8274 = vmatprep.mubr.f32.mxu0 0.0
        %8275 = vmatmul.mubr.f32.gmra.mrb[0].mxu0 %v8208
        %v8276 = vpop.f32.mrb[0].mxu0
        %v8277 = vadd.f32 0.0, %v8276
        %v8278 = vpop.f32.mrb[0].mxu0
        %8279 = vdwg.mxu0
        %v8281 = vsel %vm647, %v8204, 0
        %8283 = vmatprep.subr.mxu0 0.0
        %8284 = vmatpush1.msra.mxu0 %v7842
        %8285 = vmatprep.subr.mxu0 0.0
        %8286 = vmatpush1.msra.mxu0 0.0
        %8287 = vmatprep.subr.mxu0 0.0
        %8288 = vmatpush1.msra.mxu0 0.0
        %8289 = vmatprep.subr.mxu0 0.0
        %8290 = vmatpush1.msra.mxu0 0.0
        %8291 = vmatprep.subr.mxu0 0.0
        %8292 = vmatpush1.msra.mxu0 0.0
        %8293 = vmatprep.subr.mxu0 0.0
        %8294 = vmatpush1.msra.mxu0 0.0
        %8295 = vmatprep.subr.mxu0 0.0
        %8296 = vmatpush1.msra.mxu0 0.0
        %8297 = vmatprep.subr.mxu0 0.0
        %8298 = vmatpush1.msra.mxu0 0.0
        %8299 = vmatprep.subr.mxu0 0.0
        %8300 = vmatpush1.msra.mxu0 0.0
        %8301 = vmatprep.subr.mxu0 0.0
        %8302 = vmatpush1.msra.mxu0 0.0
        %8303 = vmatprep.subr.mxu0 0.0
        %8304 = vmatpush1.msra.mxu0 0.0
        %8305 = vmatprep.subr.mxu0 0.0
        %8306 = vmatpush1.msra.mxu0 0.0
        %8307 = vmatprep.subr.mxu0 0.0
        %8308 = vmatpush1.msra.mxu0 0.0
        %8309 = vmatprep.subr.mxu0 0.0
        %8310 = vmatpush1.msra.mxu0 0.0
        %8311 = vmatprep.subr.mxu0 0.0
        %8312 = vmatpush1.msra.mxu0 0.0
        %8313 = vmatprep.subr.mxu0 0.0
        %8314 = vmatpush1.msra.mxu0 0.0
        %8315 = vmatprep.subr.mxu0 0.0
        %8316 = vmatpush1.msra.mxu0 0.0
        %8317 = vmatprep.subr.mxu0 0.0
        %8318 = vmatpush1.msra.mxu0 0.0
        %8319 = vmatprep.subr.mxu0 0.0
        %8320 = vmatpush1.msra.mxu0 0.0
        %8321 = vmatprep.subr.mxu0 0.0
        %8322 = vmatpush1.msra.mxu0 0.0
        %8323 = vmatprep.subr.mxu0 0.0
        %8324 = vmatpush1.msra.mxu0 0.0
        %8325 = vmatprep.subr.mxu0 0.0
        %8326 = vmatpush1.msra.mxu0 0.0
        %8327 = vmatprep.subr.mxu0 0.0
        %8328 = vmatpush1.msra.mxu0 0.0
        %8329 = vmatprep.subr.mxu0 0.0
        %8330 = vmatpush1.msra.mxu0 0.0
        %8331 = vmatprep.subr.mxu0 0.0
        %8332 = vmatpush1.msra.mxu0 0.0
        %8333 = vmatprep.subr.mxu0 0.0
        %8334 = vmatpush1.msra.mxu0 0.0
        %8335 = vmatprep.subr.mxu0 0.0
        %8336 = vmatpush1.msra.mxu0 0.0
        %8337 = vmatprep.subr.mxu0 0.0
        %8338 = vmatpush1.msra.mxu0 0.0
        %8339 = vmatprep.subr.mxu0 0.0
        %8340 = vmatpush1.msra.mxu0 0.0
        %8341 = vmatprep.subr.mxu0 0.0
        %8342 = vmatpush1.msra.mxu0 0.0
        %8343 = vmatprep.subr.mxu0 0.0
        %8344 = vmatpush1.msra.mxu0 0.0
        %8345 = vmatprep.subr.mxu0 0.0
        %8346 = vmatpush1.msra.mxu0 0.0
        %8347 = vmatprep.mubr.f32.mxu0 0.0
        %8348 = vmatmul.mubr.f32.gmra.mrb[0].mxu0 %v8281
        %v8349 = vpop.f32.mrb[0].mxu0
        %v8350 = vadd.f32 0.0, %v8349
        %v8351 = vpop.f32.mrb[0].mxu0
        %8352 = vdwg.mxu0
        %v8354 = vsel %vm647, %v8205, 0
        %8356 = vmatprep.subr.mxu0 0.0
        %8357 = vmatpush1.msra.mxu0 %v7847
        %8358 = vmatprep.subr.mxu0 0.0
        %8359 = vmatpush1.msra.mxu0 0.0
        %8360 = vmatprep.subr.mxu0 0.0
        %8361 = vmatpush1.msra.mxu0 0.0
        %8362 = vmatprep.subr.mxu0 0.0
        %8363 = vmatpush1.msra.mxu0 0.0
        %8364 = vmatprep.subr.mxu0 0.0
        %8365 = vmatpush1.msra.mxu0 0.0
        %8366 = vmatprep.subr.mxu0 0.0
        %8367 = vmatpush1.msra.mxu0 0.0
        %8368 = vmatprep.subr.mxu0 0.0
        %8369 = vmatpush1.msra.mxu0 0.0
        %8370 = vmatprep.subr.mxu0 0.0
        %8371 = vmatpush1.msra.mxu0 0.0
        %8372 = vmatprep.subr.mxu0 0.0
        %8373 = vmatpush1.msra.mxu0 0.0
        %8374 = vmatprep.subr.mxu0 0.0
        %8375 = vmatpush1.msra.mxu0 0.0
        %8376 = vmatprep.subr.mxu0 0.0
        %8377 = vmatpush1.msra.mxu0 0.0
        %8378 = vmatprep.subr.mxu0 0.0
        %8379 = vmatpush1.msra.mxu0 0.0
        %8380 = vmatprep.subr.mxu0 0.0
        %8381 = vmatpush1.msra.mxu0 0.0
        %8382 = vmatprep.subr.mxu0 0.0
        %8383 = vmatpush1.msra.mxu0 0.0
        %8384 = vmatprep.subr.mxu0 0.0
        %8385 = vmatpush1.msra.mxu0 0.0
        %8386 = vmatprep.subr.mxu0 0.0
        %8387 = vmatpush1.msra.mxu0 0.0
        %8388 = vmatprep.subr.mxu0 0.0
        %8389 = vmatpush1.msra.mxu0 0.0
        %8390 = vmatprep.subr.mxu0 0.0
        %8391 = vmatpush1.msra.mxu0 0.0
        %8392 = vmatprep.subr.mxu0 0.0
        %8393 = vmatpush1.msra.mxu0 0.0
        %8394 = vmatprep.subr.mxu0 0.0
        %8395 = vmatpush1.msra.mxu0 0.0
        %8396 = vmatprep.subr.mxu0 0.0
        %8397 = vmatpush1.msra.mxu0 0.0
        %8398 = vmatprep.subr.mxu0 0.0
        %8399 = vmatpush1.msra.mxu0 0.0
        %8400 = vmatprep.subr.mxu0 0.0
        %8401 = vmatpush1.msra.mxu0 0.0
        %8402 = vmatprep.subr.mxu0 0.0
        %8403 = vmatpush1.msra.mxu0 0.0
        %8404 = vmatprep.subr.mxu0 0.0
        %8405 = vmatpush1.msra.mxu0 0.0
        %8406 = vmatprep.subr.mxu0 0.0
        %8407 = vmatpush1.msra.mxu0 0.0
        %8408 = vmatprep.subr.mxu0 0.0
        %8409 = vmatpush1.msra.mxu0 0.0
        %8410 = vmatprep.subr.mxu0 0.0
        %8411 = vmatpush1.msra.mxu0 0.0
        %8412 = vmatprep.subr.mxu0 0.0
        %8413 = vmatpush1.msra.mxu0 0.0
        %8414 = vmatprep.subr.mxu0 0.0
        %8415 = vmatpush1.msra.mxu0 0.0
        %8416 = vmatprep.subr.mxu0 0.0
        %8417 = vmatpush1.msra.mxu0 0.0
        %8418 = vmatprep.subr.mxu0 0.0
        %8419 = vmatpush1.msra.mxu0 0.0
        %8420 = vmatprep.mubr.f32.mxu0 0.0
        %8421 = vmatmul.mubr.f32.gmra.mrb[0].mxu0 %v8354
        %v8422 = vpop.f32.mrb[0].mxu0
        %v8423 = vadd.f32 0.0, %v8422
        %v8424 = vpop.f32.mrb[0].mxu0
        %8425 = vdwg.mxu0
        %v8427 = vsel %vm647, %v8206, 0
        %8429 = vmatprep.subr.mxu0 0.0
        %8430 = vmatpush1.msra.mxu0 %v7852
        %8431 = vmatprep.subr.mxu0 0.0
        %8432 = vmatpush1.msra.mxu0 0.0
        %8433 = vmatprep.subr.mxu0 0.0
        %8434 = vmatpush1.msra.mxu0 0.0
        %8435 = vmatprep.subr.mxu0 0.0
        %8436 = vmatpush1.msra.mxu0 0.0
        %8437 = vmatprep.subr.mxu0 0.0
        %8438 = vmatpush1.msra.mxu0 0.0
        %8439 = vmatprep.subr.mxu0 0.0
        %8440 = vmatpush1.msra.mxu0 0.0
        %8441 = vmatprep.subr.mxu0 0.0
        %8442 = vmatpush1.msra.mxu0 0.0
        %8443 = vmatprep.subr.mxu0 0.0
        %8444 = vmatpush1.msra.mxu0 0.0
        %8445 = vmatprep.subr.mxu0 0.0
        %8446 = vmatpush1.msra.mxu0 0.0
        %8447 = vmatprep.subr.mxu0 0.0
        %8448 = vmatpush1.msra.mxu0 0.0
        %8449 = vmatprep.subr.mxu0 0.0
        %8450 = vmatpush1.msra.mxu0 0.0
        %8451 = vmatprep.subr.mxu0 0.0
        %8452 = vmatpush1.msra.mxu0 0.0
        %8453 = vmatprep.subr.mxu0 0.0
        %8454 = vmatpush1.msra.mxu0 0.0
        %8455 = vmatprep.subr.mxu0 0.0
        %8456 = vmatpush1.msra.mxu0 0.0
        %8457 = vmatprep.subr.mxu0 0.0
        %8458 = vmatpush1.msra.mxu0 0.0
        %8459 = vmatprep.subr.mxu0 0.0
        %8460 = vmatpush1.msra.mxu0 0.0
        %8461 = vmatprep.subr.mxu0 0.0
        %8462 = vmatpush1.msra.mxu0 0.0
        %8463 = vmatprep.subr.mxu0 0.0
        %8464 = vmatpush1.msra.mxu0 0.0
        %8465 = vmatprep.subr.mxu0 0.0
        %8466 = vmatpush1.msra.mxu0 0.0
        %8467 = vmatprep.subr.mxu0 0.0
        %8468 = vmatpush1.msra.mxu0 0.0
        %8469 = vmatprep.subr.mxu0 0.0
        %8470 = vmatpush1.msra.mxu0 0.0
        %8471 = vmatprep.subr.mxu0 0.0
        %8472 = vmatpush1.msra.mxu0 0.0
        %8473 = vmatprep.subr.mxu0 0.0
        %8474 = vmatpush1.msra.mxu0 0.0
        %8475 = vmatprep.subr.mxu0 0.0
        %8476 = vmatpush1.msra.mxu0 0.0
        %8477 = vmatprep.subr.mxu0 0.0
        %8478 = vmatpush1.msra.mxu0 0.0
        %8479 = vmatprep.subr.mxu0 0.0
        %8480 = vmatpush1.msra.mxu0 0.0
        %8481 = vmatprep.subr.mxu0 0.0
        %8482 = vmatpush1.msra.mxu0 0.0
        %8483 = vmatprep.subr.mxu0 0.0
        %8484 = vmatpush1.msra.mxu0 0.0
        %8485 = vmatprep.subr.mxu0 0.0
        %8486 = vmatpush1.msra.mxu0 0.0
        %8487 = vmatprep.subr.mxu0 0.0
        %8488 = vmatpush1.msra.mxu0 0.0
        %8489 = vmatprep.subr.mxu0 0.0
        %8490 = vmatpush1.msra.mxu0 0.0
        %8491 = vmatprep.subr.mxu0 0.0
        %8492 = vmatpush1.msra.mxu0 0.0
        %8493 = vmatprep.mubr.f32.mxu0 0.0
        %8494 = vmatmul.mubr.f32.gmra.mrb[0].mxu0 %v8427
        %v8495 = vpop.f32.mrb[0].mxu0
        %v8496 = vadd.f32 0.0, %v8495
        %v8497 = vpop.f32.mrb[0].mxu0
        %8498 = vdwg.mxu0
        %v8500 = vsel %vm647, %v8277, 0
        %v8503 = vsel %vm647, %v8350, 0
        %v8506 = vsel %vm647, %v8423, 0
        %v8509 = vsel %vm647, %v8496, 0
        %8511 = vmatprep.subr.mxu0 0.0
        %8512 = vmatpush1.msra.mxu0 %v7599
        %8513 = vmatprep.subr.mxu0 0.0
        %8514 = vmatpush1.msra.mxu0 0.0
        %8515 = vmatprep.subr.mxu0 0.0
        %8516 = vmatpush1.msra.mxu0 0.0
        %8517 = vmatprep.subr.mxu0 0.0
        %8518 = vmatpush1.msra.mxu0 0.0
        %8519 = vmatprep.subr.mxu0 0.0
        %8520 = vmatpush1.msra.mxu0 0.0
        %8521 = vmatprep.subr.mxu0 0.0
        %8522 = vmatpush1.msra.mxu0 0.0
        %8523 = vmatprep.subr.mxu0 0.0
        %8524 = vmatpush1.msra.mxu0 0.0
        %8525 = vmatprep.subr.mxu0 0.0
        %8526 = vmatpush1.msra.mxu0 0.0
        %8527 = vmatprep.subr.mxu0 0.0
        %8528 = vmatpush1.msra.mxu0 0.0
        %8529 = vmatprep.subr.mxu0 0.0
        %8530 = vmatpush1.msra.mxu0 0.0
        %8531 = vmatprep.subr.mxu0 0.0
        %8532 = vmatpush1.msra.mxu0 0.0
        %8533 = vmatprep.subr.mxu0 0.0
        %8534 = vmatpush1.msra.mxu0 0.0
        %8535 = vmatprep.subr.mxu0 0.0
        %8536 = vmatpush1.msra.mxu0 0.0
        %8537 = vmatprep.subr.mxu0 0.0
        %8538 = vmatpush1.msra.mxu0 0.0
        %8539 = vmatprep.subr.mxu0 0.0
        %8540 = vmatpush1.msra.mxu0 0.0
        %8541 = vmatprep.subr.mxu0 0.0
        %8542 = vmatpush1.msra.mxu0 0.0
        %8543 = vmatprep.subr.mxu0 0.0
        %8544 = vmatpush1.msra.mxu0 0.0
        %8545 = vmatprep.subr.mxu0 0.0
        %8546 = vmatpush1.msra.mxu0 0.0
        %8547 = vmatprep.subr.mxu0 0.0
        %8548 = vmatpush1.msra.mxu0 0.0
        %8549 = vmatprep.subr.mxu0 0.0
        %8550 = vmatpush1.msra.mxu0 0.0
        %8551 = vmatprep.subr.mxu0 0.0
        %8552 = vmatpush1.msra.mxu0 0.0
        %8553 = vmatprep.subr.mxu0 0.0
        %8554 = vmatpush1.msra.mxu0 0.0
        %8555 = vmatprep.subr.mxu0 0.0
        %8556 = vmatpush1.msra.mxu0 0.0
        %8557 = vmatprep.subr.mxu0 0.0
        %8558 = vmatpush1.msra.mxu0 0.0
        %8559 = vmatprep.subr.mxu0 0.0
        %8560 = vmatpush1.msra.mxu0 0.0
        %8561 = vmatprep.subr.mxu0 0.0
        %8562 = vmatpush1.msra.mxu0 0.0
        %8563 = vmatprep.subr.mxu0 0.0
        %8564 = vmatpush1.msra.mxu0 0.0
        %8565 = vmatprep.subr.mxu0 0.0
        %8566 = vmatpush1.msra.mxu0 0.0
        %8567 = vmatprep.subr.mxu0 0.0
        %8568 = vmatpush1.msra.mxu0 0.0
        %8569 = vmatprep.subr.mxu0 0.0
        %8570 = vmatpush1.msra.mxu0 0.0
        %8571 = vmatprep.subr.mxu0 0.0
        %8572 = vmatpush1.msra.mxu0 0.0
        %8573 = vmatprep.subr.mxu0 0.0
        %8574 = vmatpush1.msra.mxu0 0.0
        %8575 = vmatprep.mubr.f32.mxu0 0.0
        %8576 = vmatmul.mubr.f32.gmra.mrb[0].mxu0 %v8500
        %v8577 = vpop.f32.mrb[0].mxu0
        %v8578 = vadd.f32 0.0, %v8577
        %v8579 = vpop.f32.mrb[0].mxu0
        %8580 = vmatprep.mubr.f32.mxu0 0.0
        %8581 = vmatmul.mubr.f32.gmra.mrb[0].mxu0 %v8503
        %v8582 = vpop.f32.mrb[0].mxu0
        %v8583 = vadd.f32 0.0, %v8582
        %v8584 = vpop.f32.mrb[0].mxu0
        %8585 = vmatprep.mubr.f32.mxu0 0.0
        %8586 = vmatmul.mubr.f32.gmra.mrb[0].mxu0 %v8506
        %v8587 = vpop.f32.mrb[0].mxu0
        %v8588 = vadd.f32 0.0, %v8587
        %v8589 = vpop.f32.mrb[0].mxu0
        %8590 = vmatprep.mubr.f32.mxu0 0.0
        %8591 = vmatmul.mubr.f32.gmra.mrb[0].mxu0 %v8509
        %v8592 = vpop.f32.mrb[0].mxu0
        %v8593 = vadd.f32 0.0, %v8592
        %v8594 = vpop.f32.mrb[0].mxu0
        %8595 = vdwg.mxu0
        %v8596 = vadd.f32 %v7579, %v8578
        %v8597 = vadd.f32 %v7580, %v8583
        %v8598 = vadd.f32 %v7581, %v8588
        %v8599 = vadd.f32 %v7582, %v8593
        %v8600 = vlaneseq
        %v8601 = vshrl.u32 %v8600, 7
        %v8602 = vsub.s32 0, %v8601
        %v8603 = vrot.slane %v292, %v8602
        %v8604 = vadd.f32 %v8596, %v8603
        %v8605 = vadd.f32 %v8597, %v8603
        %v8606 = vadd.f32 %v8598, %v8603
        %v8607 = vadd.f32 %v8599, %v8603
        %v8608 = vadd.f32 %v8604, %v4444
        %v8609 = vadd.f32 %v8605, %v4445
        %v8610 = vadd.f32 %v8606, %v4446
        %v8611 = vadd.f32 %v8607, %v4447
        %v8612 = vsel %vm295, %v8608, 0.0
        %8613 = vadd.xlane.f32.xlu0 %v8612
        %v8614 = vpop.xlane.xlu0 %8613
        %v8615 = vsel %vm295, %v8609, 0.0
        %8616 = vadd.xlane.f32.xlu0 %v8615
        %v8617 = vpop.xlane.xlu0 %8616
        %v8618 = vsel %vm295, %v8610, 0.0
        %8619 = vadd.xlane.f32.xlu0 %v8618
        %v8620 = vpop.xlane.xlu0 %8619
        %v8621 = vsel %vm295, %v8611, 0.0
        %8622 = vadd.xlane.f32.xlu0 %v8621
        %v8623 = vpop.xlane.xlu0 %8622
        %v8624 = vmul.f32 %v8614, %v308
        %v8625 = vmul.f32 %v8617, %v308
        %v8626 = vmul.f32 %v8620, %v308
        %v8627 = vmul.f32 %v8623, %v308
        %v8628 = vsub.f32 %v8608, %v8624
        %v8629 = vsub.f32 %v8609, %v8625
        %v8630 = vsub.f32 %v8610, %v8626
        %v8631 = vsub.f32 %v8611, %v8627
        %v8632 = vmul.f32 %v8628, %v8628
        %v8633 = vmul.f32 %v8629, %v8629
        %v8634 = vmul.f32 %v8630, %v8630
        %v8635 = vmul.f32 %v8631, %v8631
        %v8636 = vsel %vm295, %v8632, 0.0
        %8637 = vadd.xlane.f32.xlu0 %v8636
        %v8638 = vpop.xlane.xlu0 %8637
        %v8639 = vsel %vm295, %v8633, 0.0
        %8640 = vadd.xlane.f32.xlu0 %v8639
        %v8641 = vpop.xlane.xlu0 %8640
        %v8642 = vsel %vm295, %v8634, 0.0
        %8643 = vadd.xlane.f32.xlu0 %v8642
        %v8644 = vpop.xlane.xlu0 %8643
        %v8645 = vsel %vm295, %v8635, 0.0
        %8646 = vadd.xlane.f32.xlu0 %v8645
        %v8647 = vpop.xlane.xlu0 %8646
        %v8648 = vmul.f32 %v8638, %v308
        %v8649 = vmul.f32 %v8641, %v308
        %v8650 = vmul.f32 %v8644, %v308
        %v8651 = vmul.f32 %v8647, %v308
        %v8652 = vadd.f32 %v8648, 1e-05
        %v8653 = vadd.f32 %v8649, 1e-05
        %v8654 = vadd.f32 %v8650, 1e-05
        %v8655 = vadd.f32 %v8651, 1e-05
        %v8656 = vrsqrt.pop %v8652
        %v8657 = vrsqrt.pop %v8653
        %v8658 = vrsqrt.pop %v8654
        %v8659 = vrsqrt.pop %v8655
        %v8660 = vmul.f32 %v8628, %v8656
        %v8661 = vmul.f32 %v8629, %v8657
        %v8662 = vmul.f32 %v8630, %v8658
        %v8663 = vmul.f32 %v8631, %v8659
        %v8664 = vlaneseq
        %v8665 = vshrl.u32 %v8664, 7
        %v8666 = vsub.s32 0, %v8665
        %v8667 = vrot.slane %v287, %v8666
        %v8668 = vmul.f32 %v8660, %v8667
        %v8669 = vmul.f32 %v8661, %v8667
        %v8670 = vmul.f32 %v8662, %v8667
        %v8671 = vmul.f32 %v8663, %v8667
        %v8672 = vlaneseq
        %v8673 = vshrl.u32 %v8672, 7
        %v8674 = vsub.s32 0, %v8673
        %v8675 = vrot.slane %v288, %v8674
        %v8676 = vadd.f32 %v8668, %v8675
        %v8677 = vadd.f32 %v8669, %v8675
        %v8678 = vadd.f32 %v8670, %v8675
        %v8679 = vadd.f32 %v8671, %v8675
        %v8680 = vld [vmem:[%s5] sm:$0xff]
        %v8681 = vld [vmem:[%s5 + $0x8] sm:$0xff]
        %v8682 = vld [vmem:[%s5 + $0x10] sm:$0xff]
        %v8683 = vld [vmem:[%s5 + $0x18] sm:$0xff]
        %v8684 = vlaneseq
        %v8685 = vshrl.u32 %v8684, 7
        %v8686 = vsub.s32 0, %v8685
        %v8687 = vrot.slane %v293, %v8686
        %v8689 = vsel %vm295, %v8676, 0
        %v8692 = vsel %vm295, %v8677, 0
        %v8695 = vsel %vm295, %v8678, 0
        %v8698 = vsel %vm295, %v8679, 0
        %8700 = vmatprep.subr.mxu0 0.0
        %8701 = vmatpush1.msra.mxu0 %v8680
        %8702 = vmatprep.subr.mxu0 0.0
        %8703 = vmatpush1.msra.mxu0 %v8681
        %8704 = vmatprep.subr.mxu0 0.0
        %8705 = vmatpush1.msra.mxu0 %v8682
        %8706 = vmatprep.subr.mxu0 0.0
        %8707 = vmatpush1.msra.mxu0 %v8683
        %8708 = vmatprep.subr.mxu0 0.0
        %8709 = vmatpush1.msra.mxu0 0.0
        %8710 = vmatprep.subr.mxu0 0.0
        %8711 = vmatpush1.msra.mxu0 0.0
        %8712 = vmatprep.subr.mxu0 0.0
        %8713 = vmatpush1.msra.mxu0 0.0
        %8714 = vmatprep.subr.mxu0 0.0
        %8715 = vmatpush1.msra.mxu0 0.0
        %8716 = vmatprep.subr.mxu0 0.0
        %8717 = vmatpush1.msra.mxu0 0.0
        %8718 = vmatprep.subr.mxu0 0.0
        %8719 = vmatpush1.msra.mxu0 0.0
        %8720 = vmatprep.subr.mxu0 0.0
        %8721 = vmatpush1.msra.mxu0 0.0
        %8722 = vmatprep.subr.mxu0 0.0
        %8723 = vmatpush1.msra.mxu0 0.0
        %8724 = vmatprep.subr.mxu0 0.0
        %8725 = vmatpush1.msra.mxu0 0.0
        %8726 = vmatprep.subr.mxu0 0.0
        %8727 = vmatpush1.msra.mxu0 0.0
        %8728 = vmatprep.subr.mxu0 0.0
        %8729 = vmatpush1.msra.mxu0 0.0
        %8730 = vmatprep.subr.mxu0 0.0
        %8731 = vmatpush1.msra.mxu0 0.0
        %8732 = vmatprep.subr.mxu0 0.0
        %8733 = vmatpush1.msra.mxu0 0.0
        %8734 = vmatprep.subr.mxu0 0.0
        %8735 = vmatpush1.msra.mxu0 0.0
        %8736 = vmatprep.subr.mxu0 0.0
        %8737 = vmatpush1.msra.mxu0 0.0
        %8738 = vmatprep.subr.mxu0 0.0
        %8739 = vmatpush1.msra.mxu0 0.0
        %8740 = vmatprep.subr.mxu0 0.0
        %8741 = vmatpush1.msra.mxu0 0.0
        %8742 = vmatprep.subr.mxu0 0.0
        %8743 = vmatpush1.msra.mxu0 0.0
        %8744 = vmatprep.subr.mxu0 0.0
        %8745 = vmatpush1.msra.mxu0 0.0
        %8746 = vmatprep.subr.mxu0 0.0
        %8747 = vmatpush1.msra.mxu0 0.0
        %8748 = vmatprep.subr.mxu0 0.0
        %8749 = vmatpush1.msra.mxu0 0.0
        %8750 = vmatprep.subr.mxu0 0.0
        %8751 = vmatpush1.msra.mxu0 0.0
        %8752 = vmatprep.subr.mxu0 0.0
        %8753 = vmatpush1.msra.mxu0 0.0
        %8754 = vmatprep.subr.mxu0 0.0
        %8755 = vmatpush1.msra.mxu0 0.0
        %8756 = vmatprep.subr.mxu0 0.0
        %8757 = vmatpush1.msra.mxu0 0.0
        %8758 = vmatprep.subr.mxu0 0.0
        %8759 = vmatpush1.msra.mxu0 0.0
        %8760 = vmatprep.subr.mxu0 0.0
        %8761 = vmatpush1.msra.mxu0 0.0
        %8762 = vmatprep.subr.mxu0 0.0
        %8763 = vmatpush1.msra.mxu0 0.0
        %8764 = vmatprep.mubr.f32.mxu0 0.0
        %8765 = vmatmul.mubr.f32.gmra.mrb[0].mxu0 %v8689
        %v8766 = vpop.f32.mrb[0].mxu0
        %v8767 = vadd.f32 %v8687, %v8766
        %v8768 = vpop.f32.mrb[0].mxu0
        %8769 = vmatprep.mubr.f32.mxu0 0.0
        %8770 = vmatmul.mubr.f32.gmra.mrb[0].mxu0 %v8692
        %v8771 = vpop.f32.mrb[0].mxu0
        %v8772 = vadd.f32 %v8687, %v8771
        %v8773 = vpop.f32.mrb[0].mxu0
        %8774 = vmatprep.mubr.f32.mxu0 0.0
        %8775 = vmatmul.mubr.f32.gmra.mrb[0].mxu0 %v8695
        %v8776 = vpop.f32.mrb[0].mxu0
        %v8777 = vadd.f32 %v8687, %v8776
        %v8778 = vpop.f32.mrb[0].mxu0
        %8779 = vmatprep.mubr.f32.mxu0 0.0
        %8780 = vmatmul.mubr.f32.gmra.mrb[0].mxu0 %v8698
        %v8781 = vpop.f32.mrb[0].mxu0
        %v8782 = vadd.f32 %v8687, %v8781
        %v8783 = vpop.f32.mrb[0].mxu0
        %8784 = vdwg.mxu0
        %v8785 = vmul.f32 %v8767, %v8767
        %v8786 = vmul.f32 %v8772, %v8772
        %v8787 = vmul.f32 %v8777, %v8777
        %v8788 = vmul.f32 %v8782, %v8782
        %v8789 = vmul.f32 %v8767, %v8785
        %v8790 = vmul.f32 %v8772, %v8786
        %v8791 = vmul.f32 %v8777, %v8787
        %v8792 = vmul.f32 %v8782, %v8788
        %v8793 = vmul.f32 %v8789, 0.044715
        %v8794 = vmul.f32 %v8790, 0.044715
        %v8795 = vmul.f32 %v8791, 0.044715
        %v8796 = vmul.f32 %v8792, 0.044715
        %v8797 = vadd.f32 %v8767, %v8793
        %v8798 = vadd.f32 %v8772, %v8794
        %v8799 = vadd.f32 %v8777, %v8795
        %v8800 = vadd.f32 %v8782, %v8796
        %v8801 = vmul.f32 %v8797, 0.7978846
        %v8802 = vmul.f32 %v8798, 0.7978846
        %v8803 = vmul.f32 %v8799, 0.7978846
        %v8804 = vmul.f32 %v8800, 0.7978846
        %v8805 = vtanh.pop %v8801
        %v8806 = vtanh.pop %v8802
        %v8807 = vtanh.pop %v8803
        %v8808 = vtanh.pop %v8804
        %v8809 = vadd.f32 %v8805, 1.0
        %v8810 = vadd.f32 %v8806, 1.0
        %v8811 = vadd.f32 %v8807, 1.0
        %v8812 = vadd.f32 %v8808, 1.0
        %v8813 = vmul.f32 %v8809, 0.5
        %v8814 = vmul.f32 %v8810, 0.5
        %v8815 = vmul.f32 %v8811, 0.5
        %v8816 = vmul.f32 %v8812, 0.5
        %v8817 = vmul.f32 %v8767, %v8813
        %v8818 = vmul.f32 %v8772, %v8814
        %v8819 = vmul.f32 %v8777, %v8815
        %v8820 = vmul.f32 %v8782, %v8816
        %v8821 = vld [vmem:[%s5 + $0x20] sm:$0xff]
        %v8822 = vld [vmem:[%s5 + $0x28] sm:$0xff]
        %v8823 = vld [vmem:[%s5 + $0x30] sm:$0xff]
        %v8824 = vld [vmem:[%s5 + $0x38] sm:$0xff]
        %v8825 = vld [vmem:[%s5 + $0x40] sm:$0xff]
        %v8826 = vld [vmem:[%s5 + $0x48] sm:$0xff]
        %v8827 = vld [vmem:[%s5 + $0x50] sm:$0xff]
        %v8828 = vld [vmem:[%s5 + $0x58] sm:$0xff]
        %v8829 = vlaneseq
        %v8830 = vshrl.u32 %v8829, 7
        %v8831 = vsub.s32 0, %v8830
        %v8832 = vrot.slane %v294, %v8831
        %vm8833 = vcmask 523264
        %v8835 = vsel %vm8833, %v8817, 0
        %v8838 = vsel %vm8833, %v8818, 0
        %v8841 = vsel %vm8833, %v8819, 0
        %v8844 = vsel %vm8833, %v8820, 0
        %8846 = vmatprep.subr.mxu0 0.0
        %8847 = vmatpush1.msra.mxu0 %v8821
        %8848 = vmatprep.subr.mxu0 0.0
        %8849 = vmatpush1.msra.mxu0 %v8822
        %8850 = vmatprep.subr.mxu0 0.0
        %8851 = vmatpush1.msra.mxu0 %v8823
        %8852 = vmatprep.subr.mxu0 0.0
        %8853 = vmatpush1.msra.mxu0 %v8824
        %8854 = vmatprep.subr.mxu0 0.0
        %8855 = vmatpush1.msra.mxu0 %v8825
        %8856 = vmatprep.subr.mxu0 0.0
        %8857 = vmatpush1.msra.mxu0 %v8826
        %8858 = vmatprep.subr.mxu0 0.0
        %8859 = vmatpush1.msra.mxu0 %v8827
        %8860 = vmatprep.subr.mxu0 0.0
        %8861 = vmatpush1.msra.mxu0 %v8828
        %8862 = vmatprep.subr.mxu0 0.0
        %8863 = vmatpush1.msra.mxu0 0.0
        %8864 = vmatprep.subr.mxu0 0.0
        %8865 = vmatpush1.msra.mxu0 0.0
        %8866 = vmatprep.subr.mxu0 0.0
        %8867 = vmatpush1.msra.mxu0 0.0
        %8868 = vmatprep.subr.mxu0 0.0
        %8869 = vmatpush1.msra.mxu0 0.0
        %8870 = vmatprep.subr.mxu0 0.0
        %8871 = vmatpush1.msra.mxu0 0.0
        %8872 = vmatprep.subr.mxu0 0.0
        %8873 = vmatpush1.msra.mxu0 0.0
        %8874 = vmatprep.subr.mxu0 0.0
        %8875 = vmatpush1.msra.mxu0 0.0
        %8876 = vmatprep.subr.mxu0 0.0
        %8877 = vmatpush1.msra.mxu0 0.0
        %8878 = vmatprep.subr.mxu0 0.0
        %8879 = vmatpush1.msra.mxu0 0.0
        %8880 = vmatprep.subr.mxu0 0.0
        %8881 = vmatpush1.msra.mxu0 0.0
        %8882 = vmatprep.subr.mxu0 0.0
        %8883 = vmatpush1.msra.mxu0 0.0
        %8884 = vmatprep.subr.mxu0 0.0
        %8885 = vmatpush1.msra.mxu0 0.0
        %8886 = vmatprep.subr.mxu0 0.0
        %8887 = vmatpush1.msra.mxu0 0.0
        %8888 = vmatprep.subr.mxu0 0.0
        %8889 = vmatpush1.msra.mxu0 0.0
        %8890 = vmatprep.subr.mxu0 0.0
        %8891 = vmatpush1.msra.mxu0 0.0
        %8892 = vmatprep.subr.mxu0 0.0
        %8893 = vmatpush1.msra.mxu0 0.0
        %8894 = vmatprep.subr.mxu0 0.0
        %8895 = vmatpush1.msra.mxu0 0.0
        %8896 = vmatprep.subr.mxu0 0.0
        %8897 = vmatpush1.msra.mxu0 0.0
        %8898 = vmatprep.subr.mxu0 0.0
        %8899 = vmatpush1.msra.mxu0 0.0
        %8900 = vmatprep.subr.mxu0 0.0
        %8901 = vmatpush1.msra.mxu0 0.0
        %8902 = vmatprep.subr.mxu0 0.0
        %8903 = vmatpush1.msra.mxu0 0.0
        %8904 = vmatprep.subr.mxu0 0.0
        %8905 = vmatpush1.msra.mxu0 0.0
        %8906 = vmatprep.subr.mxu0 0.0
        %8907 = vmatpush1.msra.mxu0 0.0
        %8908 = vmatprep.subr.mxu0 0.0
        %8909 = vmatpush1.msra.mxu0 0.0
        %8910 = vmatprep.mubr.f32.mxu0 0.0
        %8911 = vmatmul.mubr.f32.gmra.mrb[0].mxu0 %v8835
        %v8912 = vpop.f32.mrb[0].mxu0
        %v8913 = vadd.f32 %v8832, %v8912
        %v8914 = vpop.f32.mrb[0].mxu0
        %8915 = vmatprep.mubr.f32.mxu0 0.0
        %8916 = vmatmul.mubr.f32.gmra.mrb[0].mxu0 %v8838
        %v8917 = vpop.f32.mrb[0].mxu0
        %v8918 = vadd.f32 %v8832, %v8917
        %v8919 = vpop.f32.mrb[0].mxu0
        %8920 = vmatprep.mubr.f32.mxu0 0.0
        %8921 = vmatmul.mubr.f32.gmra.mrb[0].mxu0 %v8841
        %v8922 = vpop.f32.mrb[0].mxu0
        %v8923 = vadd.f32 %v8832, %v8922
        %v8924 = vpop.f32.mrb[0].mxu0
        %8925 = vmatprep.mubr.f32.mxu0 0.0
        %8926 = vmatmul.mubr.f32.gmra.mrb[0].mxu0 %v8844
        %v8927 = vpop.f32.mrb[0].mxu0
        %v8928 = vadd.f32 %v8832, %v8927
        %v8929 = vpop.f32.mrb[0].mxu0
        %8930 = vdwg.mxu0
        %v8931 = vadd.f32 %v8913, %v8608
        %v8932 = vadd.f32 %v8918, %v8609
        %v8933 = vadd.f32 %v8923, %v8610
        %v8934 = vadd.f32 %v8928, %v8611
        %v8935 = vsel %vm295, %v8931, 0.0
        %8936 = vadd.xlane.f32.xlu0 %v8935
        %v8937 = vpop.xlane.xlu0 %8936
        %v8938 = vsel %vm295, %v8932, 0.0
        %8939 = vadd.xlane.f32.xlu0 %v8938
        %v8940 = vpop.xlane.xlu0 %8939
        %v8941 = vsel %vm295, %v8933, 0.0
        %8942 = vadd.xlane.f32.xlu0 %v8941
        %v8943 = vpop.xlane.xlu0 %8942
        %v8944 = vsel %vm295, %v8934, 0.0
        %8945 = vadd.xlane.f32.xlu0 %v8944
        %v8946 = vpop.xlane.xlu0 %8945
        %v8947 = vmul.f32 %v8937, %v308
        %v8948 = vmul.f32 %v8940, %v308
        %v8949 = vmul.f32 %v8943, %v308
        %v8950 = vmul.f32 %v8946, %v308
        %v8951 = vsub.f32 %v8931, %v8947
        %v8952 = vsub.f32 %v8932, %v8948
        %v8953 = vsub.f32 %v8933, %v8949
        %v8954 = vsub.f32 %v8934, %v8950
        %v8955 = vmul.f32 %v8951, %v8951
        %v8956 = vmul.f32 %v8952, %v8952
        %v8957 = vmul.f32 %v8953, %v8953
        %v8958 = vmul.f32 %v8954, %v8954
        %v8959 = vsel %vm295, %v8955, 0.0
        %8960 = vadd.xlane.f32.xlu0 %v8959
        %v8961 = vpop.xlane.xlu0 %8960
        %v8962 = vsel %vm295, %v8956, 0.0
        %8963 = vadd.xlane.f32.xlu0 %v8962
        %v8964 = vpop.xlane.xlu0 %8963
        %v8965 = vsel %vm295, %v8957, 0.0
        %8966 = vadd.xlane.f32.xlu0 %v8965
        %v8967 = vpop.xlane.xlu0 %8966
        %v8968 = vsel %vm295, %v8958, 0.0
        %8969 = vadd.xlane.f32.xlu0 %v8968
        %v8970 = vpop.xlane.xlu0 %8969
        %v8971 = vmul.f32 %v8961, %v308
        %v8972 = vmul.f32 %v8964, %v308
        %v8973 = vmul.f32 %v8967, %v308
        %v8974 = vmul.f32 %v8970, %v308
        %v8975 = vadd.f32 %v8971, 1e-05
        %v8976 = vadd.f32 %v8972, 1e-05
        %v8977 = vadd.f32 %v8973, 1e-05
        %v8978 = vadd.f32 %v8974, 1e-05
        %v8979 = vrsqrt.pop %v8975
        %v8980 = vrsqrt.pop %v8976
        %v8981 = vrsqrt.pop %v8977
        %v8982 = vrsqrt.pop %v8978
        %v8983 = vmul.f32 %v8951, %v8979
        %v8984 = vmul.f32 %v8952, %v8980
        %v8985 = vmul.f32 %v8953, %v8981
        %v8986 = vmul.f32 %v8954, %v8982
        %v8987 = vlaneseq
        %v8988 = vshrl.u32 %v8987, 7
        %v8989 = vsub.s32 0, %v8988
        %v8990 = vrot.slane %v289, %v8989
        %v8991 = vmul.f32 %v8983, %v8990
        %v8992 = vmul.f32 %v8984, %v8990
        %v8993 = vmul.f32 %v8985, %v8990
        %v8994 = vmul.f32 %v8986, %v8990
        %v8995 = vlaneseq
        %v8996 = vshrl.u32 %v8995, 7
        %v8997 = vsub.s32 0, %v8996
        %v8998 = vrot.slane %v290, %v8997
        %v8999 = vadd.f32 %v8991, %v8998
        %v9000 = vadd.f32 %v8992, %v8998
        %v9001 = vadd.f32 %v8993, %v8998
        %v9002 = vadd.f32 %v8994, %v8998
        %9003 = vst.msk [vmem:[%s261] sm:$0xff] %vm295, %v8999
        %9004 = vst.msk [vmem:[%s261 + $0x8] sm:$0xff] %vm295, %v9000
        %9005 = vst.msk [vmem:[%s261 + $0x10] sm:$0xff] %vm295, %v9001
        %9006 = vst.msk [vmem:[%s261 + $0x18] sm:$0xff] %vm295, %v9002
        %s9007 = sand.u32 %s164, 1
        %s9008 = scalar_lea.sflag [#allocation3], %s9007
        %s9009 = sand.u32 %s164, 1
        %s9010 = smul.addr %s9009, 32
        %s9011 = scalar_lea.vmem [#allocation2], %s9010
        // Predicated region
        $region45: #{transformer_cross_v2.1} parent=43 // pred_check
          %p9012 = pneg %p174
        $region46: #{transformer_cross_v2.1} parent=43 // pred_check_branch
          %9014 = sbr.rel (%p9012) target = $region48
        $region47: #{transformer_cross_v2.1} parent=43 // pred_region
          %s9015 = smul.u32 4, %s20
          %s9017 = ssub.s32 512, 512
          %9018 = vsyncadd %s9008, %s9017
          %s9019 = smul.addr %s9015, 128
          %s9020 = scalar_lea.hbm %s6, %s9019
          %s9021 = sshll.u32 %s9011, 4
          %s9022 = int_to_ptr.vmem [resolvable:$true] %s9021
          %9027 = dma.vmem_to_hbm [thread:$0]  %s9022, 512, %s9020, %s9008, 128, 128, 8
        $region48: #{transformer_cross_v2.1} parent=43 // pred_fallthru
          _
      $region44: #{transformer_cross_v2.1} parent=5 // pred_fallthru
        _
      %p9028 = scmp.le.s32.totalorder 2, %s15
      // Predicated region
      $region49: #{transformer_cross_v2.1} parent=5 // pred_check
        %p9029 = pneg %p9028
      $region50: #{transformer_cross_v2.1} parent=5 // pred_check_branch
        %9031 = sbr.rel (%p9029) target = $region52
      $region51: #{transformer_cross_v2.1} parent=5 // pred_region
        %s9032 = ssub.s32 %s15, 2
        // Predicated region
        $region53: #{transformer_cross_v2.1} parent=51 // pred_check
          %p9033 = pneg %p180
        $region54: #{transformer_cross_v2.1} parent=51 // pred_check_branch
          %9035 = sbr.rel (%p9033) target = $region56
        $region55: #{transformer_cross_v2.1} parent=51 // pred_region
          %s9036 = sand.u32 %s165, 1
          %s9037 = scalar_lea.sflag [#allocation3], %s9036
          %s9038 = sand.u32 %s165, 1
          %s9039 = smul.addr %s9038, 32
          %s9040 = scalar_lea.vmem [#allocation2], %s9039
          %9041 = dma.done %s9037, 512
        $region56: #{transformer_cross_v2.1} parent=51 // pred_fallthru
          _
      $region52: #{transformer_cross_v2.1} parent=5 // pred_fallthru
        _
    $region6: #{transformer_cross_v2.1} parent=1 // loop_footer
      %s19 = sadd.s32 1, %s15
    $region7: #{transformer_cross_v2.1} parent=1 // loop_footer_branch
      %14 = sbr.rel target = $region3
    $region8: #{transformer_cross_v2.1} parent=1 // loop_exit
      _
    %9042 = vsyncpa [#allocation3], 1
    %s9043 = scalar_lea.sflag [#allocation3], 1
    %9044 = vsyncpa %s9043, 1

</llo_original>
